<compile_context>
chip_gen: v6e
topology: v6e:2x2x1
jax: 0.10.0
libtpu: 0.0.40
codegen_flags: <defaults>
</compile_context>

<pallas_src>
import functools
import numpy as np

import jax
import jax.numpy as jnp
from jax.experimental import pallas as pl
from jax.experimental.pallas import tpu as pltpu  # noqa: F401  (kept per harness convention)

D_MODEL = 32
D_INNER = 64
N_HEAD = 4
N_LAYER = 2
D_HEAD = D_MODEL // N_HEAD
LN_EPS = 1e-6
NEG_INF = -1e9


# ---------------------------------------------------------------------------
# Single fused Pallas kernel: embeddings + the whole decoder stack
# ---------------------------------------------------------------------------

def _decoder_stack_kernel(
    pos3_ref, id_ref, cat_ref, pos_tab_ref, enc_ref, dec_pad_ref, enc_pad_ref,
    pos_w_ref, pos_b_ref, id_tab_ref, cat_tab_ref,
    s_wqkv_ref, s_bqkv_ref, s_wo_ref, s_bo_ref, s_g_ref, s_b_ref,
    c_wqkv_ref, c_bqkv_ref, c_wo_ref, c_bo_ref, c_g_ref, c_b_ref,
    f_w1_ref, f_b1_ref, f_w2_ref, f_b2_ref, f_g_ref, f_b_ref,
    out_ref, *, n_layer, n_head):
    B, Ld, D = out_ref.shape
    Le = enc_ref.shape[1]
    Dh = D // n_head
    scale = float(Dh) ** -0.5

    # --- per-head lane masks (built once; VPU select, no XLU lane slicing) ---
    lane = jax.lax.broadcasted_iota(jnp.int32, (1, 1, D), 2)
    head_masks = [((lane >= h * Dh) & (lane < (h + 1) * Dh)).astype(jnp.float32)
                  for h in range(n_head)]

    def layer_norm(x2d, g, b):
        mu = jnp.mean(x2d, axis=-1, keepdims=True)
        var = jnp.mean(jnp.square(x2d - mu), axis=-1, keepdims=True)
        return (x2d - mu) * jax.lax.rsqrt(var + LN_EPS) * g + b

    def mha(xq, xkv, bias, wqkv, bqkv, wo, bo, g, bln, fused_qkv):
        # xq: (B, Lq, D) queries, xkv: (B, Lk, D) keys/values, bias: (B, Lq, Lk)
        Lq, Lk = xq.shape[1], xkv.shape[1]
        xq2 = xq.reshape(B * Lq, D)
        if fused_qkv:  # self-attention: one (D, 3D) matmul for Q, K, V
            qkv = jnp.dot(xq2, wqkv, preferred_element_type=jnp.float32) + bqkv
            q2, k2, v2 = qkv[:, :D], qkv[:, D:2 * D], qkv[:, 2 * D:]
        else:          # cross-attention: Q from decoder, fused KV from encoder
            xkv2 = xkv.reshape(B * Lk, D)
            q2 = jnp.dot(xq2, wqkv[:, :D],
                         preferred_element_type=jnp.float32) + bqkv[:, :D]
            kv2 = jnp.dot(xkv2, wqkv[:, D:],
                          preferred_element_type=jnp.float32) + bqkv[:, D:]
            k2, v2 = kv2[:, :D], kv2[:, D:]
        q = q2.reshape(B, Lq, D)
        k = k2.reshape(B, Lk, D)
        v = v2.reshape(B, Lk, D)

        # Per-head attention via lane masks: head h's K/V lanes zeroed elsewhere,
        # so each head's PV output lands in its own lanes; the head outputs are
        # summed (== concat) and go through ONE full output-projection matmul.
        o = jnp.zeros((B, Lq, D), jnp.float32)
        for h in range(n_head):
            kh = k * head_masks[h]
            vh = v * head_masks[h]
            s = jnp.einsum("bqd,bkd->bqk", q, kh,
                           preferred_element_type=jnp.float32) * scale + bias
            s = s - jnp.max(s, axis=-1, keepdims=True)
            p = jnp.exp(s)
            p = p * pl.reciprocal(jnp.sum(p, axis=-1, keepdims=True), approx=True)
            o = o + jnp.einsum("bqk,bkd->bqd", p, vh,
                               preferred_element_type=jnp.float32)
        y = jnp.dot(o.reshape(B * Lq, D), wo,
                    preferred_element_type=jnp.float32) + bo + xq2
        return layer_norm(y, g, bln).reshape(B, Lq, D)

    def ffn(x, w1, b1, w2, b2, g, bln):
        x2 = x.reshape(B * Ld, D)
        h = jnp.maximum(jnp.dot(x2, w1, preferred_element_type=jnp.float32) + b1, 0.0)
        y = jnp.dot(h, w2, preferred_element_type=jnp.float32) + b2 + x2
        return layer_norm(y, g, bln).reshape(B, Ld, D)

    # --- additive attention biases, built in-kernel (hoisted above layer loop)
    dec_pad = dec_pad_ref[...]                                   # (B, Ld) 1=keep
    enc_pad = enc_pad_ref[...]                                   # (B, Le)
    qi = jax.lax.broadcasted_iota(jnp.int32, (Ld, Ld), 0)
    ki = jax.lax.broadcasted_iota(jnp.int32, (Ld, Ld), 1)
    causal = (qi >= ki).astype(jnp.float32)                      # incl. diagonal
    dec_keep = causal[None, :, :] * dec_pad[:, None, :]          # (B, Ld, Ld)
    dec_bias = (1.0 - dec_keep) * NEG_INF
    enc_keep = jnp.broadcast_to(enc_pad[:, None, :], (B, Ld, Le))
    enc_bias = (1.0 - enc_keep) * NEG_INF

    # --- decoder-input embedding: one-hot matmuls (== gathers) into pre-padded
    #     (V, D) tables, so no concat and no lane offsets are needed.
    x2 = jnp.dot(pos3_ref[...], pos_w_ref[...],
                 preferred_element_type=jnp.float32) + pos_b_ref[...]
    n_id = id_tab_ref.shape[0]
    id_oh = (jax.lax.broadcasted_iota(jnp.int32, (B * Ld, n_id), 1)
             == id_ref[...]).astype(jnp.float32)
    x2 = x2 + jnp.dot(id_oh, id_tab_ref[...], preferred_element_type=jnp.float32)
    n_cat = cat_tab_ref.shape[0]
    cat_oh = (jax.lax.broadcasted_iota(jnp.int32, (B * Ld, n_cat), 1)
              == cat_ref[...]).astype(jnp.float32)
    x2 = x2 + jnp.dot(cat_oh, cat_tab_ref[...], preferred_element_type=jnp.float32)
    x = x2.reshape(B, Ld, D) + pos_tab_ref[...][None, :, :]
    # dropout: identity (eval mode)

    enc = enc_ref[...]
    for l in range(n_layer):  # static unroll; all layer weights already in VMEM
        x = mha(x, x, dec_bias, s_wqkv_ref[l], s_bqkv_ref[l], s_wo_ref[l],
                s_bo_ref[l], s_g_ref[l], s_b_ref[l], fused_qkv=True)
        x = mha(x, enc, enc_bias, c_wqkv_ref[l], c_bqkv_ref[l], c_wo_ref[l],
                c_bo_ref[l], c_g_ref[l], c_b_ref[l], fused_qkv=False)
        x = ffn(x, f_w1_ref[l], f_b1_ref[l], f_w2_ref[l], f_b2_ref[l],
                f_g_ref[l], f_b_ref[l])
    out_ref[...] = x.astype(out_ref.dtype)


# ---------------------------------------------------------------------------
# Wrapper: TransformerDecoder.forward  (everything in one pallas_call)
# ---------------------------------------------------------------------------

def transformer_decoder_forward(params, enc_input, position_sequence, id_sequence,
                                category_sequence, enc_mask, dec_mask):
    """enc_mask: (B, L_enc) key pad mask (1=keep). dec_mask: (B, L_dec) key pad
    mask; combined with the causal (subsequent) mask inside the kernel."""
    B, L_dec = id_sequence.shape

    kernel = functools.partial(_decoder_stack_kernel,
                               n_layer=N_LAYER, n_head=N_HEAD)
    return pl.pallas_call(
        kernel,
        out_shape=jax.ShapeDtypeStruct((B, L_dec, D_MODEL), jnp.float32),
    )(position_sequence.reshape(B * L_dec, 3).astype(jnp.float32),
      id_sequence.reshape(B * L_dec, 1).astype(jnp.int32),
      category_sequence.reshape(B * L_dec, 1).astype(jnp.int32),
      params["pos_table"][0, :L_dec],
      enc_input.astype(jnp.float32),
      dec_mask.astype(jnp.float32), enc_mask.astype(jnp.float32),
      params["pos_enc_w_pad"], params["pos_enc_b_pad"],
      params["id_embed_pad"], params["cat_embed_pad"],
      params["slf_wqkv"], params["slf_bqkv"], params["slf_wo"], params["slf_bo"],
      params["slf_ln_g"], params["slf_ln_b"],
      params["crs_wqkv"], params["crs_bqkv"], params["crs_wo"], params["crs_bo"],
      params["crs_ln_g"], params["crs_ln_b"],
      params["ffn_w1"], params["ffn_b1"], params["ffn_w2"], params["ffn_b2"],
      params["ffn_ln_g"], params["ffn_ln_b"])


# ---------------------------------------------------------------------------
# Parameters (deterministic, synthetic) — per-layer weights stacked on axis 0
# ---------------------------------------------------------------------------

def sinusoid_table(seq_length, d_hid):
    pos = np.arange(seq_length, dtype=np.float64)[:, None]
    hid = np.arange(d_hid)[None, :]
    angle = pos / np.power(10000.0, 2.0 * (hid // 2) / d_hid)
    table = angle.copy()
    table[:, 0::2] = np.sin(angle[:, 0::2])
    table[:, 1::2] = np.cos(angle[:, 1::2])
    return jnp.asarray(table[None], dtype=jnp.float32)               # (1, L, D)


def _init_linear(key, din, dout, scale=0.02):
    kw, kb = jax.random.split(key)
    return (jax.random.normal(kw, (din, dout), jnp.float32) * scale,
            jax.random.normal(kb, (dout,), jnp.float32) * scale)


def init_params(key):
    keys = iter(jax.random.split(key, 64))
    nk = lambda: next(keys)
    p = {}
    p["pos_enc_w"], p["pos_enc_b"] = _init_linear(nk(), 3, D_MODEL // 2)
    p["id_embed"] = jax.random.normal(nk(), (257, D_MODEL // 4), jnp.float32) * 0.02
    p["cat_embed"] = jax.random.normal(nk(), (37, D_MODEL // 4), jnp.float32) * 0.02
    p["pos_table"] = sinusoid_table(2048, D_MODEL)

    # Pre-padded (V, D_MODEL) versions so the kernel's one-hot matmuls land each
    # embedding field directly in its target lanes (no in-kernel concat).
    half, quarter = D_MODEL // 2, D_MODEL // 4
    p["pos_enc_w_pad"] = (jnp.zeros((3, D_MODEL), jnp.float32)
                          .at[:, :half].set(p["pos_enc_w"]))
    p["pos_enc_b_pad"] = (jnp.zeros((1, D_MODEL), jnp.float32)
                          .at[0, :half].set(p["pos_enc_b"]))
    p["id_embed_pad"] = (jnp.zeros((257, D_MODEL), jnp.float32)
                         .at[:, half:half + quarter].set(p["id_embed"]))
    p["cat_embed_pad"] = (jnp.zeros((37, D_MODEL), jnp.float32)
                          .at[:, half + quarter:].set(p["cat_embed"]))

    def stacked_mha():
        wqkv, bqkv, wo, bo = [], [], [], []
        for _ in range(N_LAYER):
            wq, bq = _init_linear(nk(), D_MODEL, D_MODEL)
            wk, bk = _init_linear(nk(), D_MODEL, D_MODEL)
            wv, bv = _init_linear(nk(), D_MODEL, D_MODEL)
            w_o, b_o = _init_linear(nk(), D_MODEL, D_MODEL)
            wqkv.append(jnp.concatenate([wq, wk, wv], axis=1))       # (D, 3D) fused
            bqkv.append(jnp.concatenate([bq, bk, bv])[None, :])      # (1, 3D)
            wo.append(w_o)
            bo.append(b_o[None, :])
        return (jnp.stack(wqkv), jnp.stack(bqkv), jnp.stack(wo), jnp.stack(bo),
                jnp.ones((N_LAYER, 1, D_MODEL), jnp.float32),
                jnp.zeros((N_LAYER, 1, D_MODEL), jnp.float32))

    (p["slf_wqkv"], p["slf_bqkv"], p["slf_wo"], p["slf_bo"],
     p["slf_ln_g"], p["slf_ln_b"]) = stacked_mha()
    (p["crs_wqkv"], p["crs_bqkv"], p["crs_wo"], p["crs_bo"],
     p["crs_ln_g"], p["crs_ln_b"]) = stacked_mha()

    w1, b1, w2, b2 = [], [], [], []
    for _ in range(N_LAYER):
        a, c = _init_linear(nk(), D_MODEL, D_INNER)
        d, e = _init_linear(nk(), D_INNER, D_MODEL)
        w1.append(a); b1.append(c[None, :]); w2.append(d); b2.append(e[None, :])
    p["ffn_w1"], p["ffn_b1"] = jnp.stack(w1), jnp.stack(b1)
    p["ffn_w2"], p["ffn_b2"] = jnp.stack(w2), jnp.stack(b2)
    p["ffn_ln_g"] = jnp.ones((N_LAYER, 1, D_MODEL), jnp.float32)
    p["ffn_ln_b"] = jnp.zeros((N_LAYER, 1, D_MODEL), jnp.float32)
    return p


# ---------------------------------------------------------------------------
# Pure-JAX reference (same math) for a sanity check
# ---------------------------------------------------------------------------

def _reference_forward(params, enc_input, position_sequence, id_sequence,
                       category_sequence, enc_mask, dec_mask):
    B, L_dec = id_sequence.shape
    L_enc = enc_input.shape[1]
    pos_emb = jnp.dot(position_sequence, params["pos_enc_w"]) + params["pos_enc_b"]
    id_emb = params["id_embed"][id_sequence]
    cat_emb = params["cat_embed"][category_sequence]
    x = jnp.concatenate([pos_emb, id_emb, cat_emb], axis=-1) + params["pos_table"][:, :L_dec]

    causal = jnp.tril(jnp.ones((L_dec, L_dec), jnp.float32))
    dec_bias = (1.0 - causal[None] * dec_mask.astype(jnp.float32)[:, None, :]) * NEG_INF
    enc_bias = (1.0 - jnp.broadcast_to(enc_mask.astype(jnp.float32)[:, None, :],
                                       (B, L_dec, L_enc))) * NEG_INF

    def ln(y, g, b):
        mu = jnp.mean(y, -1, keepdims=True)
        var = jnp.mean(jnp.square(y - mu), -1, keepdims=True)
        return (y - mu) * jax.lax.rsqrt(var + LN_EPS) * g + b

    def mha(xq, xkv, bias, wqkv, bqkv, wo, bo, g, bln):
        q = jnp.dot(xq, wqkv[:, :D_MODEL]) + bqkv[:, :D_MODEL]
        k = jnp.dot(xkv, wqkv[:, D_MODEL:2 * D_MODEL]) + bqkv[:, D_MODEL:2 * D_MODEL]
        v = jnp.dot(xkv, wqkv[:, 2 * D_MODEL:]) + bqkv[:, 2 * D_MODEL:]
        outs = []
        for h in range(N_HEAD):
            sl = slice(h * D_HEAD, (h + 1) * D_HEAD)
            s = jnp.einsum("bqd,bkd->bqk", q[..., sl], k[..., sl]) * (D_HEAD ** -0.5) + bias
            outs.append(jnp.einsum("bqk,bkd->bqd", jax.nn.softmax(s, axis=-1), v[..., sl]))
        y = jnp.dot(jnp.concatenate(outs, axis=-1), wo) + bo + xq
        return ln(y, g, bln)

    def ffn(xx, w1, b1, w2, b2, g, bln):
        h = jax.nn.relu(jnp.dot(xx, w1) + b1)
        return ln(jnp.dot(h, w2) + b2 + xx, g, bln)

    for l in range(N_LAYER):
        x = mha(x, x, dec_bias, params["slf_wqkv"][l], params["slf_bqkv"][l],
                params["slf_wo"][l], params["slf_bo"][l],
                params["slf_ln_g"][l], params["slf_ln_b"][l])
        x = mha(x, enc_input, enc_bias, params["crs_wqkv"][l], params["crs_bqkv"][l],
                params["crs_wo"][l], params["crs_bo"][l],
                params["crs_ln_g"][l], params["crs_ln_b"][l])
        x = ffn(x, params["ffn_w1"][l], params["ffn_b1"][l], params["ffn_w2"][l],
                params["ffn_b2"][l], params["ffn_ln_g"][l], params["ffn_ln_b"][l])
    return x


if __name__ == "__main__":
    params = init_params(jax.random.PRNGKey(0))

    B, L_enc, L_dec = 2, 8, 8
    k1, k2, k3, k4 = jax.random.split(jax.random.PRNGKey(0), 4)
    enc_input = jax.random.normal(k1, (B, L_enc, D_MODEL), jnp.float32)
    position_sequence = jax.random.normal(k2, (B, L_dec, 3), jnp.float32)
    id_sequence = jax.random.randint(k3, (B, L_dec), 0, 257)
    category_sequence = jax.random.randint(k4, (B, L_dec), 0, 37)
    enc_mask = jnp.ones((B, L_enc), jnp.float32)
    dec_mask = jnp.ones((B, L_dec), jnp.float32)

    fwd = jax.jit(transformer_decoder_forward)
    out = fwd(params, enc_input, position_sequence, id_sequence,
              category_sequence, enc_mask, dec_mask)
    jax.block_until_ready(out)

    with jax.default_matmul_precision("float32"):
        ref = _reference_forward(params, enc_input, position_sequence, id_sequence,
                                 category_sequence, enc_mask, dec_mask)

    assert out.shape == (B, L_dec, D_MODEL)
    assert bool(jnp.all(jnp.isfinite(out)))
    max_err = float(jnp.max(jnp.abs(out - ref)))
    assert max_err < 5e-2, f"max |out - ref| = {max_err}"
    print("KERNEL_OK")
</pallas_src>

<mosaic_0001>
module attributes {stable_mosaic.version = 11 : i64} {
  func.func @_decoder_stack_kernel(%arg0: memref<16x3xf32, #tpu.memory_space<vmem>>, %arg1: memref<16x1xi32, #tpu.memory_space<vmem>>, %arg2: memref<16x1xi32, #tpu.memory_space<vmem>>, %arg3: memref<8x32xf32, #tpu.memory_space<vmem>>, %arg4: memref<2x8x32xf32, #tpu.memory_space<vmem>>, %arg5: memref<2x8xf32, #tpu.memory_space<vmem>>, %arg6: memref<2x8xf32, #tpu.memory_space<vmem>>, %arg7: memref<3x32xf32, #tpu.memory_space<vmem>>, %arg8: memref<1x32xf32, #tpu.memory_space<vmem>>, %arg9: memref<257x32xf32, #tpu.memory_space<vmem>>, %arg10: memref<37x32xf32, #tpu.memory_space<vmem>>, %arg11: memref<2x32x96xf32, #tpu.memory_space<vmem>>, %arg12: memref<2x1x96xf32, #tpu.memory_space<vmem>>, %arg13: memref<2x32x32xf32, #tpu.memory_space<vmem>>, %arg14: memref<2x1x32xf32, #tpu.memory_space<vmem>>, %arg15: memref<2x1x32xf32, #tpu.memory_space<vmem>>, %arg16: memref<2x1x32xf32, #tpu.memory_space<vmem>>, %arg17: memref<2x32x96xf32, #tpu.memory_space<vmem>>, %arg18: memref<2x1x96xf32, #tpu.memory_space<vmem>>, %arg19: memref<2x32x32xf32, #tpu.memory_space<vmem>>, %arg20: memref<2x1x32xf32, #tpu.memory_space<vmem>>, %arg21: memref<2x1x32xf32, #tpu.memory_space<vmem>>, %arg22: memref<2x1x32xf32, #tpu.memory_space<vmem>>, %arg23: memref<2x32x64xf32, #tpu.memory_space<vmem>>, %arg24: memref<2x1x64xf32, #tpu.memory_space<vmem>>, %arg25: memref<2x64x32xf32, #tpu.memory_space<vmem>>, %arg26: memref<2x1x32xf32, #tpu.memory_space<vmem>>, %arg27: memref<2x1x32xf32, #tpu.memory_space<vmem>>, %arg28: memref<2x1x32xf32, #tpu.memory_space<vmem>>, %arg29: memref<2x8x32xf32, #tpu.memory_space<vmem>>) attributes {dimension_semantics = [], scalar_prefetch = 0 : i64, scratch_operands = 0 : i64, tpu.core_type = #tpu.core_type<tc>} {
    %0 = tpu.iota {dimensions = array<i32: 2>} : vector<1x1x32xi32>
    %c0_i32 = arith.constant 0 : i32
    %1 = vector.broadcast %c0_i32 : i32 to vector<1x1x32xi32>
    %2 = arith.cmpi sge, %0, %1 : vector<1x1x32xi32>
    %c8_i32 = arith.constant 8 : i32
    %3 = vector.broadcast %c8_i32 : i32 to vector<1x1x32xi32>
    %4 = arith.cmpi slt, %0, %3 : vector<1x1x32xi32>
    %5 = arith.andi %2, %4 : vector<1x1x32xi1>
    %6 = arith.extui %5 : vector<1x1x32xi1> to vector<1x1x32xi32>
    %7 = arith.sitofp %6 : vector<1x1x32xi32> to vector<1x1x32xf32>
    %c8_i32_0 = arith.constant 8 : i32
    %8 = vector.broadcast %c8_i32_0 : i32 to vector<1x1x32xi32>
    %9 = arith.cmpi sge, %0, %8 : vector<1x1x32xi32>
    %c16_i32 = arith.constant 16 : i32
    %10 = vector.broadcast %c16_i32 : i32 to vector<1x1x32xi32>
    %11 = arith.cmpi slt, %0, %10 : vector<1x1x32xi32>
    %12 = arith.andi %9, %11 : vector<1x1x32xi1>
    %13 = arith.extui %12 : vector<1x1x32xi1> to vector<1x1x32xi32>
    %14 = arith.sitofp %13 : vector<1x1x32xi32> to vector<1x1x32xf32>
    %c16_i32_1 = arith.constant 16 : i32
    %15 = vector.broadcast %c16_i32_1 : i32 to vector<1x1x32xi32>
    %16 = arith.cmpi sge, %0, %15 : vector<1x1x32xi32>
    %c24_i32 = arith.constant 24 : i32
    %17 = vector.broadcast %c24_i32 : i32 to vector<1x1x32xi32>
    %18 = arith.cmpi slt, %0, %17 : vector<1x1x32xi32>
    %19 = arith.andi %16, %18 : vector<1x1x32xi1>
    %20 = arith.extui %19 : vector<1x1x32xi1> to vector<1x1x32xi32>
    %21 = arith.sitofp %20 : vector<1x1x32xi32> to vector<1x1x32xf32>
    %c24_i32_2 = arith.constant 24 : i32
    %22 = vector.broadcast %c24_i32_2 : i32 to vector<1x1x32xi32>
    %23 = arith.cmpi sge, %0, %22 : vector<1x1x32xi32>
    %c32_i32 = arith.constant 32 : i32
    %24 = vector.broadcast %c32_i32 : i32 to vector<1x1x32xi32>
    %25 = arith.cmpi slt, %0, %24 : vector<1x1x32xi32>
    %26 = arith.andi %23, %25 : vector<1x1x32xi1>
    %27 = arith.extui %26 : vector<1x1x32xi1> to vector<1x1x32xi32>
    %28 = arith.sitofp %27 : vector<1x1x32xi32> to vector<1x1x32xf32>
    %c0 = arith.constant 0 : index
    %c0_3 = arith.constant 0 : index
    %29 = vector.load %arg5[%c0, %c0_3] : memref<2x8xf32, #tpu.memory_space<vmem>>, vector<2x8xf32>
    %c0_4 = arith.constant 0 : index
    %c0_5 = arith.constant 0 : index
    %30 = vector.load %arg6[%c0_4, %c0_5] : memref<2x8xf32, #tpu.memory_space<vmem>>, vector<2x8xf32>
    %31 = tpu.iota {dimensions = array<i32: 0>} : vector<8x8xi32>
    %32 = tpu.iota {dimensions = array<i32: 1>} : vector<8x8xi32>
    %33 = arith.cmpi sge, %31, %32 : vector<8x8xi32>
    %34 = arith.extui %33 : vector<8x8xi1> to vector<8x8xi32>
    %35 = arith.sitofp %34 : vector<8x8xi32> to vector<8x8xf32>
    %36 = vector.shape_cast %35 : vector<8x8xf32> to vector<1x8x8xf32>
    %37 = vector.shape_cast %29 : vector<2x8xf32> to vector<2x1x8xf32>
    %38 = vector.broadcast %36 : vector<1x8x8xf32> to vector<2x8x8xf32>
    %39 = vector.broadcast %37 : vector<2x1x8xf32> to vector<2x8x8xf32>
    %40 = arith.mulf %38, %39 : vector<2x8x8xf32>
    %cst = arith.constant 1.000000e+00 : f32
    %41 = vector.broadcast %cst : f32 to vector<2x8x8xf32>
    %42 = arith.subf %41, %40 : vector<2x8x8xf32>
    %cst_6 = arith.constant -1.000000e+09 : f32
    %43 = vector.broadcast %cst_6 : f32 to vector<2x8x8xf32>
    %44 = arith.mulf %42, %43 : vector<2x8x8xf32>
    %45 = vector.shape_cast %30 : vector<2x8xf32> to vector<2x1x8xf32>
    %46 = vector.shape_cast %45 : vector<2x1x8xf32> to vector<2x1x8xf32>
    %47 = vector.broadcast %46 : vector<2x1x8xf32> to vector<2x8x8xf32>
    %cst_7 = arith.constant 1.000000e+00 : f32
    %48 = vector.broadcast %cst_7 : f32 to vector<2x8x8xf32>
    %49 = arith.subf %48, %47 : vector<2x8x8xf32>
    %cst_8 = arith.constant -1.000000e+09 : f32
    %50 = vector.broadcast %cst_8 : f32 to vector<2x8x8xf32>
    %51 = arith.mulf %49, %50 : vector<2x8x8xf32>
    %c0_9 = arith.constant 0 : index
    %c0_10 = arith.constant 0 : index
    %52 = vector.load %arg0[%c0_9, %c0_10] : memref<16x3xf32, #tpu.memory_space<vmem>>, vector<16x3xf32>
    %c0_11 = arith.constant 0 : index
    %c0_12 = arith.constant 0 : index
    %53 = vector.load %arg7[%c0_11, %c0_12] : memref<3x32xf32, #tpu.memory_space<vmem>>, vector<3x32xf32>
    %cst_13 = arith.constant dense<0.000000e+00> : vector<16x32xf32>
    %54 = tpu.matmul %52, %53, %cst_13 {dimension_numbers = #tpu.dot_dimension_numbers<[1], [0], [0], [1], [0, 0, 1, 1], [], []>} : vector<16x3xf32>, vector<3x32xf32>, vector<16x32xf32> -> vector<16x32xf32>
    %c0_14 = arith.constant 0 : index
    %c0_15 = arith.constant 0 : index
    %55 = vector.load %arg8[%c0_14, %c0_15] : memref<1x32xf32, #tpu.memory_space<vmem>>, vector<1x32xf32>
    %56 = vector.broadcast %55 : vector<1x32xf32> to vector<16x32xf32>
    %57 = arith.addf %54, %56 : vector<16x32xf32>
    %58 = tpu.iota {dimensions = array<i32: 1>} : vector<16x257xi32>
    %c0_16 = arith.constant 0 : index
    %c0_17 = arith.constant 0 : index
    %59 = vector.load %arg1[%c0_16, %c0_17] : memref<16x1xi32, #tpu.memory_space<vmem>>, vector<16x1xi32>
    %60 = vector.broadcast %59 : vector<16x1xi32> to vector<16x257xi32>
    %61 = arith.cmpi eq, %58, %60 : vector<16x257xi32>
    %62 = arith.extui %61 : vector<16x257xi1> to vector<16x257xi32>
    %63 = arith.sitofp %62 : vector<16x257xi32> to vector<16x257xf32>
    %c0_18 = arith.constant 0 : index
    %c0_19 = arith.constant 0 : index
    %64 = vector.load %arg9[%c0_18, %c0_19] : memref<257x32xf32, #tpu.memory_space<vmem>>, vector<257x32xf32>
    %cst_20 = arith.constant dense<0.000000e+00> : vector<16x32xf32>
    %65 = tpu.matmul %63, %64, %cst_20 {dimension_numbers = #tpu.dot_dimension_numbers<[1], [0], [0], [1], [0, 0, 1, 1], [], []>} : vector<16x257xf32>, vector<257x32xf32>, vector<16x32xf32> -> vector<16x32xf32>
    %66 = arith.addf %57, %65 : vector<16x32xf32>
    %67 = tpu.iota {dimensions = array<i32: 1>} : vector<16x37xi32>
    %c0_21 = arith.constant 0 : index
    %c0_22 = arith.constant 0 : index
    %68 = vector.load %arg2[%c0_21, %c0_22] : memref<16x1xi32, #tpu.memory_space<vmem>>, vector<16x1xi32>
    %69 = vector.broadcast %68 : vector<16x1xi32> to vector<16x37xi32>
    %70 = arith.cmpi eq, %67, %69 : vector<16x37xi32>
    %71 = arith.extui %70 : vector<16x37xi1> to vector<16x37xi32>
    %72 = arith.sitofp %71 : vector<16x37xi32> to vector<16x37xf32>
    %c0_23 = arith.constant 0 : index
    %c0_24 = arith.constant 0 : index
    %73 = vector.load %arg10[%c0_23, %c0_24] : memref<37x32xf32, #tpu.memory_space<vmem>>, vector<37x32xf32>
    %cst_25 = arith.constant dense<0.000000e+00> : vector<16x32xf32>
    %74 = tpu.matmul %72, %73, %cst_25 {dimension_numbers = #tpu.dot_dimension_numbers<[1], [0], [0], [1], [0, 0, 1, 1], [], []>} : vector<16x37xf32>, vector<37x32xf32>, vector<16x32xf32> -> vector<16x32xf32>
    %75 = arith.addf %66, %74 : vector<16x32xf32>
    %76 = vector.shape_cast %75 : vector<16x32xf32> to vector<2x8x32xf32>
    %c0_26 = arith.constant 0 : index
    %c0_27 = arith.constant 0 : index
    %77 = vector.load %arg3[%c0_26, %c0_27] : memref<8x32xf32, #tpu.memory_space<vmem>>, vector<8x32xf32>
    %78 = vector.shape_cast %77 : vector<8x32xf32> to vector<1x8x32xf32>
    %79 = vector.broadcast %78 : vector<1x8x32xf32> to vector<2x8x32xf32>
    %80 = arith.addf %76, %79 : vector<2x8x32xf32>
    %c0_28 = arith.constant 0 : index
    %c0_29 = arith.constant 0 : index
    %c0_30 = arith.constant 0 : index
    %81 = vector.load %arg4[%c0_28, %c0_29, %c0_30] : memref<2x8x32xf32, #tpu.memory_space<vmem>>, vector<2x8x32xf32>
    %c0_31 = arith.constant 0 : index
    %c0_32 = arith.constant 0 : index
    %c0_33 = arith.constant 0 : index
    %82 = vector.load %arg11[%c0_31, %c0_32, %c0_33] : memref<2x32x96xf32, #tpu.memory_space<vmem>>, vector<1x32x96xf32>
    %83 = vector.shape_cast %82 : vector<1x32x96xf32> to vector<32x96xf32>
    %c0_34 = arith.constant 0 : index
    %c0_35 = arith.constant 0 : index
    %c0_36 = arith.constant 0 : index
    %84 = vector.load %arg12[%c0_34, %c0_35, %c0_36] : memref<2x1x96xf32, #tpu.memory_space<vmem>>, vector<1x1x96xf32>
    %85 = vector.shape_cast %84 : vector<1x1x96xf32> to vector<1x96xf32>
    %c0_37 = arith.constant 0 : index
    %c0_38 = arith.constant 0 : index
    %c0_39 = arith.constant 0 : index
    %86 = vector.load %arg13[%c0_37, %c0_38, %c0_39] : memref<2x32x32xf32, #tpu.memory_space<vmem>>, vector<1x32x32xf32>
    %87 = vector.shape_cast %86 : vector<1x32x32xf32> to vector<32x32xf32>
    %c0_40 = arith.constant 0 : index
    %c0_41 = arith.constant 0 : index
    %c0_42 = arith.constant 0 : index
    %88 = vector.load %arg14[%c0_40, %c0_41, %c0_42] : memref<2x1x32xf32, #tpu.memory_space<vmem>>, vector<1x1x32xf32>
    %89 = vector.shape_cast %88 : vector<1x1x32xf32> to vector<1x32xf32>
    %c0_43 = arith.constant 0 : index
    %c0_44 = arith.constant 0 : index
    %c0_45 = arith.constant 0 : index
    %90 = vector.load %arg15[%c0_43, %c0_44, %c0_45] : memref<2x1x32xf32, #tpu.memory_space<vmem>>, vector<1x1x32xf32>
    %91 = vector.shape_cast %90 : vector<1x1x32xf32> to vector<1x32xf32>
    %c0_46 = arith.constant 0 : index
    %c0_47 = arith.constant 0 : index
    %c0_48 = arith.constant 0 : index
    %92 = vector.load %arg16[%c0_46, %c0_47, %c0_48] : memref<2x1x32xf32, #tpu.memory_space<vmem>>, vector<1x1x32xf32>
    %93 = vector.shape_cast %92 : vector<1x1x32xf32> to vector<1x32xf32>
    %94 = vector.shape_cast %80 : vector<2x8x32xf32> to vector<16x32xf32>
    %cst_49 = arith.constant dense<0.000000e+00> : vector<16x96xf32>
    %95 = tpu.matmul %94, %83, %cst_49 {dimension_numbers = #tpu.dot_dimension_numbers<[1], [0], [0], [1], [0, 0, 1, 1], [], []>} : vector<16x32xf32>, vector<32x96xf32>, vector<16x96xf32> -> vector<16x96xf32>
    %96 = vector.broadcast %85 : vector<1x96xf32> to vector<16x96xf32>
    %97 = arith.addf %95, %96 : vector<16x96xf32>
    %98 = vector.extract_strided_slice %97 {offsets = [0, 0], sizes = [16, 32], strides = [1, 1]} : vector<16x96xf32> to vector<16x32xf32>
    %99 = vector.extract_strided_slice %97 {offsets = [0, 32], sizes = [16, 32], strides = [1, 1]} : vector<16x96xf32> to vector<16x32xf32>
    %100 = vector.extract_strided_slice %97 {offsets = [0, 64], sizes = [16, 32], strides = [1, 1]} : vector<16x96xf32> to vector<16x32xf32>
    %101 = vector.shape_cast %98 : vector<16x32xf32> to vector<2x8x32xf32>
    %102 = vector.shape_cast %99 : vector<16x32xf32> to vector<2x8x32xf32>
    %103 = vector.shape_cast %100 : vector<16x32xf32> to vector<2x8x32xf32>
    %cst_50 = arith.constant 0.000000e+00 : f32
    %104 = vector.broadcast %cst_50 : f32 to vector<2x8x32xf32>
    %105 = vector.broadcast %7 : vector<1x1x32xf32> to vector<2x8x32xf32>
    %106 = arith.mulf %102, %105 : vector<2x8x32xf32>
    %107 = vector.broadcast %7 : vector<1x1x32xf32> to vector<2x8x32xf32>
    %108 = arith.mulf %103, %107 : vector<2x8x32xf32>
    "tpu.trace_start"() <{level = 10 : i32, message = "bqd,bkd->bqk"}> : () -> ()
    %cst_51 = arith.constant dense<0.000000e+00> : vector<2x8x8xf32>
    %109 = tpu.matmul %101, %106, %cst_51 {dimension_numbers = #tpu.dot_dimension_numbers<[2], [2], [1], [1], [0, 0, 0, 1, 1, 1], [0], [0]>} : vector<2x8x32xf32>, vector<2x8x32xf32>, vector<2x8x8xf32> -> vector<2x8x8xf32>
    "tpu.trace_stop"() : () -> ()
    %cst_52 = arith.constant 0.353553385 : f32
    %110 = vector.broadcast %cst_52 : f32 to vector<2x8x8xf32>
    %111 = arith.mulf %109, %110 : vector<2x8x8xf32>
    %112 = arith.addf %111, %44 : vector<2x8x8xf32>
    %cst_53 = arith.constant dense<0xFF800000> : vector<2x8xf32>
    %113 = vector.multi_reduction <maximumf>, %112, %cst_53 [2] : vector<2x8x8xf32> to vector<2x8xf32>
    %114 = vector.shape_cast %113 : vector<2x8xf32> to vector<2x8x1xf32>
    %115 = vector.broadcast %114 : vector<2x8x1xf32> to vector<2x8x8xf32>
    %116 = arith.subf %112, %115 : vector<2x8x8xf32>
    %117 = math.exp %116 : vector<2x8x8xf32>
    %cst_54 = arith.constant dense<0.000000e+00> : vector<2x8xf32>
    %118 = vector.multi_reduction <add>, %117, %cst_54 [2] : vector<2x8x8xf32> to vector<2x8xf32>
    %119 = vector.shape_cast %118 : vector<2x8xf32> to vector<2x8x1xf32>
    %120 = tpu.reciprocal %119 {approx = true} : vector<2x8x1xf32> -> vector<2x8x1xf32>
    %121 = vector.broadcast %120 : vector<2x8x1xf32> to vector<2x8x8xf32>
    %122 = arith.mulf %117, %121 : vector<2x8x8xf32>
    "tpu.trace_start"() <{level = 10 : i32, message = "bqk,bkd->bqd"}> : () -> ()
    %cst_55 = arith.constant dense<0.000000e+00> : vector<2x8x32xf32>
    %123 = tpu.matmul %122, %108, %cst_55 {dimension_numbers = #tpu.dot_dimension_numbers<[2], [1], [1], [2], [0, 0, 0, 1, 1, 2], [0], [0]>} : vector<2x8x8xf32>, vector<2x8x32xf32>, vector<2x8x32xf32> -> vector<2x8x32xf32>
    "tpu.trace_stop"() : () -> ()
    %124 = arith.addf %104, %123 : vector<2x8x32xf32>
    %125 = vector.broadcast %14 : vector<1x1x32xf32> to vector<2x8x32xf32>
    %126 = arith.mulf %102, %125 : vector<2x8x32xf32>
    %127 = vector.broadcast %14 : vector<1x1x32xf32> to vector<2x8x32xf32>
    %128 = arith.mulf %103, %127 : vector<2x8x32xf32>
    "tpu.trace_start"() <{level = 10 : i32, message = "bqd,bkd->bqk"}> : () -> ()
    %cst_56 = arith.constant dense<0.000000e+00> : vector<2x8x8xf32>
    %129 = tpu.matmul %101, %126, %cst_56 {dimension_numbers = #tpu.dot_dimension_numbers<[2], [2], [1], [1], [0, 0, 0, 1, 1, 1], [0], [0]>} : vector<2x8x32xf32>, vector<2x8x32xf32>, vector<2x8x8xf32> -> vector<2x8x8xf32>
    "tpu.trace_stop"() : () -> ()
    %cst_57 = arith.constant 0.353553385 : f32
    %130 = vector.broadcast %cst_57 : f32 to vector<2x8x8xf32>
    %131 = arith.mulf %129, %130 : vector<2x8x8xf32>
    %132 = arith.addf %131, %44 : vector<2x8x8xf32>
    %cst_58 = arith.constant dense<0xFF800000> : vector<2x8xf32>
    %133 = vector.multi_reduction <maximumf>, %132, %cst_58 [2] : vector<2x8x8xf32> to vector<2x8xf32>
    %134 = vector.shape_cast %133 : vector<2x8xf32> to vector<2x8x1xf32>
    %135 = vector.broadcast %134 : vector<2x8x1xf32> to vector<2x8x8xf32>
    %136 = arith.subf %132, %135 : vector<2x8x8xf32>
    %137 = math.exp %136 : vector<2x8x8xf32>
    %cst_59 = arith.constant dense<0.000000e+00> : vector<2x8xf32>
    %138 = vector.multi_reduction <add>, %137, %cst_59 [2] : vector<2x8x8xf32> to vector<2x8xf32>
    %139 = vector.shape_cast %138 : vector<2x8xf32> to vector<2x8x1xf32>
    %140 = tpu.reciprocal %139 {approx = true} : vector<2x8x1xf32> -> vector<2x8x1xf32>
    %141 = vector.broadcast %140 : vector<2x8x1xf32> to vector<2x8x8xf32>
    %142 = arith.mulf %137, %141 : vector<2x8x8xf32>
    "tpu.trace_start"() <{level = 10 : i32, message = "bqk,bkd->bqd"}> : () -> ()
    %cst_60 = arith.constant dense<0.000000e+00> : vector<2x8x32xf32>
    %143 = tpu.matmul %142, %128, %cst_60 {dimension_numbers = #tpu.dot_dimension_numbers<[2], [1], [1], [2], [0, 0, 0, 1, 1, 2], [0], [0]>} : vector<2x8x8xf32>, vector<2x8x32xf32>, vector<2x8x32xf32> -> vector<2x8x32xf32>
    "tpu.trace_stop"() : () -> ()
    %144 = arith.addf %124, %143 : vector<2x8x32xf32>
    %145 = vector.broadcast %21 : vector<1x1x32xf32> to vector<2x8x32xf32>
    %146 = arith.mulf %102, %145 : vector<2x8x32xf32>
    %147 = vector.broadcast %21 : vector<1x1x32xf32> to vector<2x8x32xf32>
    %148 = arith.mulf %103, %147 : vector<2x8x32xf32>
    "tpu.trace_start"() <{level = 10 : i32, message = "bqd,bkd->bqk"}> : () -> ()
    %cst_61 = arith.constant dense<0.000000e+00> : vector<2x8x8xf32>
    %149 = tpu.matmul %101, %146, %cst_61 {dimension_numbers = #tpu.dot_dimension_numbers<[2], [2], [1], [1], [0, 0, 0, 1, 1, 1], [0], [0]>} : vector<2x8x32xf32>, vector<2x8x32xf32>, vector<2x8x8xf32> -> vector<2x8x8xf32>
    "tpu.trace_stop"() : () -> ()
    %cst_62 = arith.constant 0.353553385 : f32
    %150 = vector.broadcast %cst_62 : f32 to vector<2x8x8xf32>
    %151 = arith.mulf %149, %150 : vector<2x8x8xf32>
    %152 = arith.addf %151, %44 : vector<2x8x8xf32>
    %cst_63 = arith.constant dense<0xFF800000> : vector<2x8xf32>
    %153 = vector.multi_reduction <maximumf>, %152, %cst_63 [2] : vector<2x8x8xf32> to vector<2x8xf32>
    %154 = vector.shape_cast %153 : vector<2x8xf32> to vector<2x8x1xf32>
    %155 = vector.broadcast %154 : vector<2x8x1xf32> to vector<2x8x8xf32>
    %156 = arith.subf %152, %155 : vector<2x8x8xf32>
    %157 = math.exp %156 : vector<2x8x8xf32>
    %cst_64 = arith.constant dense<0.000000e+00> : vector<2x8xf32>
    %158 = vector.multi_reduction <add>, %157, %cst_64 [2] : vector<2x8x8xf32> to vector<2x8xf32>
    %159 = vector.shape_cast %158 : vector<2x8xf32> to vector<2x8x1xf32>
    %160 = tpu.reciprocal %159 {approx = true} : vector<2x8x1xf32> -> vector<2x8x1xf32>
    %161 = vector.broadcast %160 : vector<2x8x1xf32> to vector<2x8x8xf32>
    %162 = arith.mulf %157, %161 : vector<2x8x8xf32>
    "tpu.trace_start"() <{level = 10 : i32, message = "bqk,bkd->bqd"}> : () -> ()
    %cst_65 = arith.constant dense<0.000000e+00> : vector<2x8x32xf32>
    %163 = tpu.matmul %162, %148, %cst_65 {dimension_numbers = #tpu.dot_dimension_numbers<[2], [1], [1], [2], [0, 0, 0, 1, 1, 2], [0], [0]>} : vector<2x8x8xf32>, vector<2x8x32xf32>, vector<2x8x32xf32> -> vector<2x8x32xf32>
    "tpu.trace_stop"() : () -> ()
    %164 = arith.addf %144, %163 : vector<2x8x32xf32>
    %165 = vector.broadcast %28 : vector<1x1x32xf32> to vector<2x8x32xf32>
    %166 = arith.mulf %102, %165 : vector<2x8x32xf32>
    %167 = vector.broadcast %28 : vector<1x1x32xf32> to vector<2x8x32xf32>
    %168 = arith.mulf %103, %167 : vector<2x8x32xf32>
    "tpu.trace_start"() <{level = 10 : i32, message = "bqd,bkd->bqk"}> : () -> ()
    %cst_66 = arith.constant dense<0.000000e+00> : vector<2x8x8xf32>
    %169 = tpu.matmul %101, %166, %cst_66 {dimension_numbers = #tpu.dot_dimension_numbers<[2], [2], [1], [1], [0, 0, 0, 1, 1, 1], [0], [0]>} : vector<2x8x32xf32>, vector<2x8x32xf32>, vector<2x8x8xf32> -> vector<2x8x8xf32>
    "tpu.trace_stop"() : () -> ()
    %cst_67 = arith.constant 0.353553385 : f32
    %170 = vector.broadcast %cst_67 : f32 to vector<2x8x8xf32>
    %171 = arith.mulf %169, %170 : vector<2x8x8xf32>
    %172 = arith.addf %171, %44 : vector<2x8x8xf32>
    %cst_68 = arith.constant dense<0xFF800000> : vector<2x8xf32>
    %173 = vector.multi_reduction <maximumf>, %172, %cst_68 [2] : vector<2x8x8xf32> to vector<2x8xf32>
    %174 = vector.shape_cast %173 : vector<2x8xf32> to vector<2x8x1xf32>
    %175 = vector.broadcast %174 : vector<2x8x1xf32> to vector<2x8x8xf32>
    %176 = arith.subf %172, %175 : vector<2x8x8xf32>
    %177 = math.exp %176 : vector<2x8x8xf32>
    %cst_69 = arith.constant dense<0.000000e+00> : vector<2x8xf32>
    %178 = vector.multi_reduction <add>, %177, %cst_69 [2] : vector<2x8x8xf32> to vector<2x8xf32>
    %179 = vector.shape_cast %178 : vector<2x8xf32> to vector<2x8x1xf32>
    %180 = tpu.reciprocal %179 {approx = true} : vector<2x8x1xf32> -> vector<2x8x1xf32>
    %181 = vector.broadcast %180 : vector<2x8x1xf32> to vector<2x8x8xf32>
    %182 = arith.mulf %177, %181 : vector<2x8x8xf32>
    "tpu.trace_start"() <{level = 10 : i32, message = "bqk,bkd->bqd"}> : () -> ()
    %cst_70 = arith.constant dense<0.000000e+00> : vector<2x8x32xf32>
    %183 = tpu.matmul %182, %168, %cst_70 {dimension_numbers = #tpu.dot_dimension_numbers<[2], [1], [1], [2], [0, 0, 0, 1, 1, 2], [0], [0]>} : vector<2x8x8xf32>, vector<2x8x32xf32>, vector<2x8x32xf32> -> vector<2x8x32xf32>
    "tpu.trace_stop"() : () -> ()
    %184 = arith.addf %164, %183 : vector<2x8x32xf32>
    %185 = vector.shape_cast %184 : vector<2x8x32xf32> to vector<16x32xf32>
    %cst_71 = arith.constant dense<0.000000e+00> : vector<16x32xf32>
    %186 = tpu.matmul %185, %87, %cst_71 {dimension_numbers = #tpu.dot_dimension_numbers<[1], [0], [0], [1], [0, 0, 1, 1], [], []>} : vector<16x32xf32>, vector<32x32xf32>, vector<16x32xf32> -> vector<16x32xf32>
    %187 = vector.broadcast %89 : vector<1x32xf32> to vector<16x32xf32>
    %188 = arith.addf %186, %187 : vector<16x32xf32>
    %189 = arith.addf %188, %94 : vector<16x32xf32>
    %cst_72 = arith.constant dense<0.000000e+00> : vector<16xf32>
    %190 = vector.multi_reduction <add>, %189, %cst_72 [1] : vector<16x32xf32> to vector<16xf32>
    %191 = vector.shape_cast %190 : vector<16xf32> to vector<16x1xf32>
    %cst_73 = arith.constant 3.200000e+01 : f32
    %192 = vector.broadcast %cst_73 : f32 to vector<16x1xf32>
    %193 = arith.divf %191, %192 : vector<16x1xf32>
    %194 = vector.broadcast %193 : vector<16x1xf32> to vector<16x32xf32>
    %195 = arith.subf %189, %194 : vector<16x32xf32>
    %196 = arith.mulf %195, %195 : vector<16x32xf32>
    %cst_74 = arith.constant dense<0.000000e+00> : vector<16xf32>
    %197 = vector.multi_reduction <add>, %196, %cst_74 [1] : vector<16x32xf32> to vector<16xf32>
    %198 = vector.shape_cast %197 : vector<16xf32> to vector<16x1xf32>
    %cst_75 = arith.constant 3.200000e+01 : f32
    %199 = vector.broadcast %cst_75 : f32 to vector<16x1xf32>
    %200 = arith.divf %198, %199 : vector<16x1xf32>
    %201 = vector.broadcast %193 : vector<16x1xf32> to vector<16x32xf32>
    %202 = arith.subf %189, %201 : vector<16x32xf32>
    %cst_76 = arith.constant 9.99999997E-7 : f32
    %203 = vector.broadcast %cst_76 : f32 to vector<16x1xf32>
    %204 = arith.addf %200, %203 : vector<16x1xf32>
    %205 = math.rsqrt %204 : vector<16x1xf32>
    %206 = vector.broadcast %205 : vector<16x1xf32> to vector<16x32xf32>
    %207 = arith.mulf %202, %206 : vector<16x32xf32>
    %208 = vector.broadcast %91 : vector<1x32xf32> to vector<16x32xf32>
    %209 = arith.mulf %207, %208 : vector<16x32xf32>
    %210 = vector.broadcast %93 : vector<1x32xf32> to vector<16x32xf32>
    %211 = arith.addf %209, %210 : vector<16x32xf32>
    %212 = vector.shape_cast %211 : vector<16x32xf32> to vector<2x8x32xf32>
    %c0_77 = arith.constant 0 : index
    %c0_78 = arith.constant 0 : index
    %c0_79 = arith.constant 0 : index
    %213 = vector.load %arg17[%c0_77, %c0_78, %c0_79] : memref<2x32x96xf32, #tpu.memory_space<vmem>>, vector<1x32x96xf32>
    %214 = vector.shape_cast %213 : vector<1x32x96xf32> to vector<32x96xf32>
    %c0_80 = arith.constant 0 : index
    %c0_81 = arith.constant 0 : index
    %c0_82 = arith.constant 0 : index
    %215 = vector.load %arg18[%c0_80, %c0_81, %c0_82] : memref<2x1x96xf32, #tpu.memory_space<vmem>>, vector<1x1x96xf32>
    %216 = vector.shape_cast %215 : vector<1x1x96xf32> to vector<1x96xf32>
    %c0_83 = arith.constant 0 : index
    %c0_84 = arith.constant 0 : index
    %c0_85 = arith.constant 0 : index
    %217 = vector.load %arg19[%c0_83, %c0_84, %c0_85] : memref<2x32x32xf32, #tpu.memory_space<vmem>>, vector<1x32x32xf32>
    %218 = vector.shape_cast %217 : vector<1x32x32xf32> to vector<32x32xf32>
    %c0_86 = arith.constant 0 : index
    %c0_87 = arith.constant 0 : index
    %c0_88 = arith.constant 0 : index
    %219 = vector.load %arg20[%c0_86, %c0_87, %c0_88] : memref<2x1x32xf32, #tpu.memory_space<vmem>>, vector<1x1x32xf32>
    %220 = vector.shape_cast %219 : vector<1x1x32xf32> to vector<1x32xf32>
    %c0_89 = arith.constant 0 : index
    %c0_90 = arith.constant 0 : index
    %c0_91 = arith.constant 0 : index
    %221 = vector.load %arg21[%c0_89, %c0_90, %c0_91] : memref<2x1x32xf32, #tpu.memory_space<vmem>>, vector<1x1x32xf32>
    %222 = vector.shape_cast %221 : vector<1x1x32xf32> to vector<1x32xf32>
    %c0_92 = arith.constant 0 : index
    %c0_93 = arith.constant 0 : index
    %c0_94 = arith.constant 0 : index
    %223 = vector.load %arg22[%c0_92, %c0_93, %c0_94] : memref<2x1x32xf32, #tpu.memory_space<vmem>>, vector<1x1x32xf32>
    %224 = vector.shape_cast %223 : vector<1x1x32xf32> to vector<1x32xf32>
    %225 = vector.shape_cast %212 : vector<2x8x32xf32> to vector<16x32xf32>
    %226 = vector.shape_cast %81 : vector<2x8x32xf32> to vector<16x32xf32>
    %227 = vector.extract_strided_slice %214 {offsets = [0, 0], sizes = [32, 32], strides = [1, 1]} : vector<32x96xf32> to vector<32x32xf32>
    %cst_95 = arith.constant dense<0.000000e+00> : vector<16x32xf32>
    %228 = tpu.matmul %225, %227, %cst_95 {dimension_numbers = #tpu.dot_dimension_numbers<[1], [0], [0], [1], [0, 0, 1, 1], [], []>} : vector<16x32xf32>, vector<32x32xf32>, vector<16x32xf32> -> vector<16x32xf32>
    %229 = vector.extract_strided_slice %216 {offsets = [0, 0], sizes = [1, 32], strides = [1, 1]} : vector<1x96xf32> to vector<1x32xf32>
    %230 = vector.broadcast %229 : vector<1x32xf32> to vector<16x32xf32>
    %231 = arith.addf %228, %230 : vector<16x32xf32>
    %232 = vector.extract_strided_slice %214 {offsets = [0, 32], sizes = [32, 64], strides = [1, 1]} : vector<32x96xf32> to vector<32x64xf32>
    %cst_96 = arith.constant dense<0.000000e+00> : vector<16x64xf32>
    %233 = tpu.matmul %226, %232, %cst_96 {dimension_numbers = #tpu.dot_dimension_numbers<[1], [0], [0], [1], [0, 0, 1, 1], [], []>} : vector<16x32xf32>, vector<32x64xf32>, vector<16x64xf32> -> vector<16x64xf32>
    %234 = vector.extract_strided_slice %216 {offsets = [0, 32], sizes = [1, 64], strides = [1, 1]} : vector<1x96xf32> to vector<1x64xf32>
    %235 = vector.broadcast %234 : vector<1x64xf32> to vector<16x64xf32>
    %236 = arith.addf %233, %235 : vector<16x64xf32>
    %237 = vector.extract_strided_slice %236 {offsets = [0, 0], sizes = [16, 32], strides = [1, 1]} : vector<16x64xf32> to vector<16x32xf32>
    %238 = vector.extract_strided_slice %236 {offsets = [0, 32], sizes = [16, 32], strides = [1, 1]} : vector<16x64xf32> to vector<16x32xf32>
    %239 = vector.shape_cast %231 : vector<16x32xf32> to vector<2x8x32xf32>
    %240 = vector.shape_cast %237 : vector<16x32xf32> to vector<2x8x32xf32>
    %241 = vector.shape_cast %238 : vector<16x32xf32> to vector<2x8x32xf32>
    %cst_97 = arith.constant 0.000000e+00 : f32
    %242 = vector.broadcast %cst_97 : f32 to vector<2x8x32xf32>
    %243 = vector.broadcast %7 : vector<1x1x32xf32> to vector<2x8x32xf32>
    %244 = arith.mulf %240, %243 : vector<2x8x32xf32>
    %245 = vector.broadcast %7 : vector<1x1x32xf32> to vector<2x8x32xf32>
    %246 = arith.mulf %241, %245 : vector<2x8x32xf32>
    "tpu.trace_start"() <{level = 10 : i32, message = "bqd,bkd->bqk"}> : () -> ()
    %cst_98 = arith.constant dense<0.000000e+00> : vector<2x8x8xf32>
    %247 = tpu.matmul %239, %244, %cst_98 {dimension_numbers = #tpu.dot_dimension_numbers<[2], [2], [1], [1], [0, 0, 0, 1, 1, 1], [0], [0]>} : vector<2x8x32xf32>, vector<2x8x32xf32>, vector<2x8x8xf32> -> vector<2x8x8xf32>
    "tpu.trace_stop"() : () -> ()
    %cst_99 = arith.constant 0.353553385 : f32
    %248 = vector.broadcast %cst_99 : f32 to vector<2x8x8xf32>
    %249 = arith.mulf %247, %248 : vector<2x8x8xf32>
    %250 = arith.addf %249, %51 : vector<2x8x8xf32>
    %cst_100 = arith.constant dense<0xFF800000> : vector<2x8xf32>
    %251 = vector.multi_reduction <maximumf>, %250, %cst_100 [2] : vector<2x8x8xf32> to vector<2x8xf32>
    %252 = vector.shape_cast %251 : vector<2x8xf32> to vector<2x8x1xf32>
    %253 = vector.broadcast %252 : vector<2x8x1xf32> to vector<2x8x8xf32>
    %254 = arith.subf %250, %253 : vector<2x8x8xf32>
    %255 = math.exp %254 : vector<2x8x8xf32>
    %cst_101 = arith.constant dense<0.000000e+00> : vector<2x8xf32>
    %256 = vector.multi_reduction <add>, %255, %cst_101 [2] : vector<2x8x8xf32> to vector<2x8xf32>
    %257 = vector.shape_cast %256 : vector<2x8xf32> to vector<2x8x1xf32>
    %258 = tpu.reciprocal %257 {approx = true} : vector<2x8x1xf32> -> vector<2x8x1xf32>
    %259 = vector.broadcast %258 : vector<2x8x1xf32> to vector<2x8x8xf32>
    %260 = arith.mulf %255, %259 : vector<2x8x8xf32>
    "tpu.trace_start"() <{level = 10 : i32, message = "bqk,bkd->bqd"}> : () -> ()
    %cst_102 = arith.constant dense<0.000000e+00> : vector<2x8x32xf32>
    %261 = tpu.matmul %260, %246, %cst_102 {dimension_numbers = #tpu.dot_dimension_numbers<[2], [1], [1], [2], [0, 0, 0, 1, 1, 2], [0], [0]>} : vector<2x8x8xf32>, vector<2x8x32xf32>, vector<2x8x32xf32> -> vector<2x8x32xf32>
    "tpu.trace_stop"() : () -> ()
    %262 = arith.addf %242, %261 : vector<2x8x32xf32>
    %263 = vector.broadcast %14 : vector<1x1x32xf32> to vector<2x8x32xf32>
    %264 = arith.mulf %240, %263 : vector<2x8x32xf32>
    %265 = vector.broadcast %14 : vector<1x1x32xf32> to vector<2x8x32xf32>
    %266 = arith.mulf %241, %265 : vector<2x8x32xf32>
    "tpu.trace_start"() <{level = 10 : i32, message = "bqd,bkd->bqk"}> : () -> ()
    %cst_103 = arith.constant dense<0.000000e+00> : vector<2x8x8xf32>
    %267 = tpu.matmul %239, %264, %cst_103 {dimension_numbers = #tpu.dot_dimension_numbers<[2], [2], [1], [1], [0, 0, 0, 1, 1, 1], [0], [0]>} : vector<2x8x32xf32>, vector<2x8x32xf32>, vector<2x8x8xf32> -> vector<2x8x8xf32>
    "tpu.trace_stop"() : () -> ()
    %cst_104 = arith.constant 0.353553385 : f32
    %268 = vector.broadcast %cst_104 : f32 to vector<2x8x8xf32>
    %269 = arith.mulf %267, %268 : vector<2x8x8xf32>
    %270 = arith.addf %269, %51 : vector<2x8x8xf32>
    %cst_105 = arith.constant dense<0xFF800000> : vector<2x8xf32>
    %271 = vector.multi_reduction <maximumf>, %270, %cst_105 [2] : vector<2x8x8xf32> to vector<2x8xf32>
    %272 = vector.shape_cast %271 : vector<2x8xf32> to vector<2x8x1xf32>
    %273 = vector.broadcast %272 : vector<2x8x1xf32> to vector<2x8x8xf32>
    %274 = arith.subf %270, %273 : vector<2x8x8xf32>
    %275 = math.exp %274 : vector<2x8x8xf32>
    %cst_106 = arith.constant dense<0.000000e+00> : vector<2x8xf32>
    %276 = vector.multi_reduction <add>, %275, %cst_106 [2] : vector<2x8x8xf32> to vector<2x8xf32>
    %277 = vector.shape_cast %276 : vector<2x8xf32> to vector<2x8x1xf32>
    %278 = tpu.reciprocal %277 {approx = true} : vector<2x8x1xf32> -> vector<2x8x1xf32>
    %279 = vector.broadcast %278 : vector<2x8x1xf32> to vector<2x8x8xf32>
    %280 = arith.mulf %275, %279 : vector<2x8x8xf32>
    "tpu.trace_start"() <{level = 10 : i32, message = "bqk,bkd->bqd"}> : () -> ()
    %cst_107 = arith.constant dense<0.000000e+00> : vector<2x8x32xf32>
    %281 = tpu.matmul %280, %266, %cst_107 {dimension_numbers = #tpu.dot_dimension_numbers<[2], [1], [1], [2], [0, 0, 0, 1, 1, 2], [0], [0]>} : vector<2x8x8xf32>, vector<2x8x32xf32>, vector<2x8x32xf32> -> vector<2x8x32xf32>
    "tpu.trace_stop"() : () -> ()
    %282 = arith.addf %262, %281 : vector<2x8x32xf32>
    %283 = vector.broadcast %21 : vector<1x1x32xf32> to vector<2x8x32xf32>
    %284 = arith.mulf %240, %283 : vector<2x8x32xf32>
    %285 = vector.broadcast %21 : vector<1x1x32xf32> to vector<2x8x32xf32>
    %286 = arith.mulf %241, %285 : vector<2x8x32xf32>
    "tpu.trace_start"() <{level = 10 : i32, message = "bqd,bkd->bqk"}> : () -> ()
    %cst_108 = arith.constant dense<0.000000e+00> : vector<2x8x8xf32>
    %287 = tpu.matmul %239, %284, %cst_108 {dimension_numbers = #tpu.dot_dimension_numbers<[2], [2], [1], [1], [0, 0, 0, 1, 1, 1], [0], [0]>} : vector<2x8x32xf32>, vector<2x8x32xf32>, vector<2x8x8xf32> -> vector<2x8x8xf32>
    "tpu.trace_stop"() : () -> ()
    %cst_109 = arith.constant 0.353553385 : f32
    %288 = vector.broadcast %cst_109 : f32 to vector<2x8x8xf32>
    %289 = arith.mulf %287, %288 : vector<2x8x8xf32>
    %290 = arith.addf %289, %51 : vector<2x8x8xf32>
    %cst_110 = arith.constant dense<0xFF800000> : vector<2x8xf32>
    %291 = vector.multi_reduction <maximumf>, %290, %cst_110 [2] : vector<2x8x8xf32> to vector<2x8xf32>
    %292 = vector.shape_cast %291 : vector<2x8xf32> to vector<2x8x1xf32>
    %293 = vector.broadcast %292 : vector<2x8x1xf32> to vector<2x8x8xf32>
    %294 = arith.subf %290, %293 : vector<2x8x8xf32>
    %295 = math.exp %294 : vector<2x8x8xf32>
    %cst_111 = arith.constant dense<0.000000e+00> : vector<2x8xf32>
    %296 = vector.multi_reduction <add>, %295, %cst_111 [2] : vector<2x8x8xf32> to vector<2x8xf32>
    %297 = vector.shape_cast %296 : vector<2x8xf32> to vector<2x8x1xf32>
    %298 = tpu.reciprocal %297 {approx = true} : vector<2x8x1xf32> -> vector<2x8x1xf32>
    %299 = vector.broadcast %298 : vector<2x8x1xf32> to vector<2x8x8xf32>
    %300 = arith.mulf %295, %299 : vector<2x8x8xf32>
    "tpu.trace_start"() <{level = 10 : i32, message = "bqk,bkd->bqd"}> : () -> ()
    %cst_112 = arith.constant dense<0.000000e+00> : vector<2x8x32xf32>
    %301 = tpu.matmul %300, %286, %cst_112 {dimension_numbers = #tpu.dot_dimension_numbers<[2], [1], [1], [2], [0, 0, 0, 1, 1, 2], [0], [0]>} : vector<2x8x8xf32>, vector<2x8x32xf32>, vector<2x8x32xf32> -> vector<2x8x32xf32>
    "tpu.trace_stop"() : () -> ()
    %302 = arith.addf %282, %301 : vector<2x8x32xf32>
    %303 = vector.broadcast %28 : vector<1x1x32xf32> to vector<2x8x32xf32>
    %304 = arith.mulf %240, %303 : vector<2x8x32xf32>
    %305 = vector.broadcast %28 : vector<1x1x32xf32> to vector<2x8x32xf32>
    %306 = arith.mulf %241, %305 : vector<2x8x32xf32>
    "tpu.trace_start"() <{level = 10 : i32, message = "bqd,bkd->bqk"}> : () -> ()
    %cst_113 = arith.constant dense<0.000000e+00> : vector<2x8x8xf32>
    %307 = tpu.matmul %239, %304, %cst_113 {dimension_numbers = #tpu.dot_dimension_numbers<[2], [2], [1], [1], [0, 0, 0, 1, 1, 1], [0], [0]>} : vector<2x8x32xf32>, vector<2x8x32xf32>, vector<2x8x8xf32> -> vector<2x8x8xf32>
    "tpu.trace_stop"() : () -> ()
    %cst_114 = arith.constant 0.353553385 : f32
    %308 = vector.broadcast %cst_114 : f32 to vector<2x8x8xf32>
    %309 = arith.mulf %307, %308 : vector<2x8x8xf32>
    %310 = arith.addf %309, %51 : vector<2x8x8xf32>
    %cst_115 = arith.constant dense<0xFF800000> : vector<2x8xf32>
    %311 = vector.multi_reduction <maximumf>, %310, %cst_115 [2] : vector<2x8x8xf32> to vector<2x8xf32>
    %312 = vector.shape_cast %311 : vector<2x8xf32> to vector<2x8x1xf32>
    %313 = vector.broadcast %312 : vector<2x8x1xf32> to vector<2x8x8xf32>
    %314 = arith.subf %310, %313 : vector<2x8x8xf32>
    %315 = math.exp %314 : vector<2x8x8xf32>
    %cst_116 = arith.constant dense<0.000000e+00> : vector<2x8xf32>
    %316 = vector.multi_reduction <add>, %315, %cst_116 [2] : vector<2x8x8xf32> to vector<2x8xf32>
    %317 = vector.shape_cast %316 : vector<2x8xf32> to vector<2x8x1xf32>
    %318 = tpu.reciprocal %317 {approx = true} : vector<2x8x1xf32> -> vector<2x8x1xf32>
    %319 = vector.broadcast %318 : vector<2x8x1xf32> to vector<2x8x8xf32>
    %320 = arith.mulf %315, %319 : vector<2x8x8xf32>
    "tpu.trace_start"() <{level = 10 : i32, message = "bqk,bkd->bqd"}> : () -> ()
    %cst_117 = arith.constant dense<0.000000e+00> : vector<2x8x32xf32>
    %321 = tpu.matmul %320, %306, %cst_117 {dimension_numbers = #tpu.dot_dimension_numbers<[2], [1], [1], [2], [0, 0, 0, 1, 1, 2], [0], [0]>} : vector<2x8x8xf32>, vector<2x8x32xf32>, vector<2x8x32xf32> -> vector<2x8x32xf32>
    "tpu.trace_stop"() : () -> ()
    %322 = arith.addf %302, %321 : vector<2x8x32xf32>
    %323 = vector.shape_cast %322 : vector<2x8x32xf32> to vector<16x32xf32>
    %cst_118 = arith.constant dense<0.000000e+00> : vector<16x32xf32>
    %324 = tpu.matmul %323, %218, %cst_118 {dimension_numbers = #tpu.dot_dimension_numbers<[1], [0], [0], [1], [0, 0, 1, 1], [], []>} : vector<16x32xf32>, vector<32x32xf32>, vector<16x32xf32> -> vector<16x32xf32>
    %325 = vector.broadcast %220 : vector<1x32xf32> to vector<16x32xf32>
    %326 = arith.addf %324, %325 : vector<16x32xf32>
    %327 = arith.addf %326, %225 : vector<16x32xf32>
    %cst_119 = arith.constant dense<0.000000e+00> : vector<16xf32>
    %328 = vector.multi_reduction <add>, %327, %cst_119 [1] : vector<16x32xf32> to vector<16xf32>
    %329 = vector.shape_cast %328 : vector<16xf32> to vector<16x1xf32>
    %cst_120 = arith.constant 3.200000e+01 : f32
    %330 = vector.broadcast %cst_120 : f32 to vector<16x1xf32>
    %331 = arith.divf %329, %330 : vector<16x1xf32>
    %332 = vector.broadcast %331 : vector<16x1xf32> to vector<16x32xf32>
    %333 = arith.subf %327, %332 : vector<16x32xf32>
    %334 = arith.mulf %333, %333 : vector<16x32xf32>
    %cst_121 = arith.constant dense<0.000000e+00> : vector<16xf32>
    %335 = vector.multi_reduction <add>, %334, %cst_121 [1] : vector<16x32xf32> to vector<16xf32>
    %336 = vector.shape_cast %335 : vector<16xf32> to vector<16x1xf32>
    %cst_122 = arith.constant 3.200000e+01 : f32
    %337 = vector.broadcast %cst_122 : f32 to vector<16x1xf32>
    %338 = arith.divf %336, %337 : vector<16x1xf32>
    %339 = vector.broadcast %331 : vector<16x1xf32> to vector<16x32xf32>
    %340 = arith.subf %327, %339 : vector<16x32xf32>
    %cst_123 = arith.constant 9.99999997E-7 : f32
    %341 = vector.broadcast %cst_123 : f32 to vector<16x1xf32>
    %342 = arith.addf %338, %341 : vector<16x1xf32>
    %343 = math.rsqrt %342 : vector<16x1xf32>
    %344 = vector.broadcast %343 : vector<16x1xf32> to vector<16x32xf32>
    %345 = arith.mulf %340, %344 : vector<16x32xf32>
    %346 = vector.broadcast %222 : vector<1x32xf32> to vector<16x32xf32>
    %347 = arith.mulf %345, %346 : vector<16x32xf32>
    %348 = vector.broadcast %224 : vector<1x32xf32> to vector<16x32xf32>
    %349 = arith.addf %347, %348 : vector<16x32xf32>
    %350 = vector.shape_cast %349 : vector<16x32xf32> to vector<2x8x32xf32>
    %c0_124 = arith.constant 0 : index
    %c0_125 = arith.constant 0 : index
    %c0_126 = arith.constant 0 : index
    %351 = vector.load %arg23[%c0_124, %c0_125, %c0_126] : memref<2x32x64xf32, #tpu.memory_space<vmem>>, vector<1x32x64xf32>
    %352 = vector.shape_cast %351 : vector<1x32x64xf32> to vector<32x64xf32>
    %c0_127 = arith.constant 0 : index
    %c0_128 = arith.constant 0 : index
    %c0_129 = arith.constant 0 : index
    %353 = vector.load %arg24[%c0_127, %c0_128, %c0_129] : memref<2x1x64xf32, #tpu.memory_space<vmem>>, vector<1x1x64xf32>
    %354 = vector.shape_cast %353 : vector<1x1x64xf32> to vector<1x64xf32>
    %c0_130 = arith.constant 0 : index
    %c0_131 = arith.constant 0 : index
    %c0_132 = arith.constant 0 : index
    %355 = vector.load %arg25[%c0_130, %c0_131, %c0_132] : memref<2x64x32xf32, #tpu.memory_space<vmem>>, vector<1x64x32xf32>
    %356 = vector.shape_cast %355 : vector<1x64x32xf32> to vector<64x32xf32>
    %c0_133 = arith.constant 0 : index
    %c0_134 = arith.constant 0 : index
    %c0_135 = arith.constant 0 : index
    %357 = vector.load %arg26[%c0_133, %c0_134, %c0_135] : memref<2x1x32xf32, #tpu.memory_space<vmem>>, vector<1x1x32xf32>
    %358 = vector.shape_cast %357 : vector<1x1x32xf32> to vector<1x32xf32>
    %c0_136 = arith.constant 0 : index
    %c0_137 = arith.constant 0 : index
    %c0_138 = arith.constant 0 : index
    %359 = vector.load %arg27[%c0_136, %c0_137, %c0_138] : memref<2x1x32xf32, #tpu.memory_space<vmem>>, vector<1x1x32xf32>
    %360 = vector.shape_cast %359 : vector<1x1x32xf32> to vector<1x32xf32>
    %c0_139 = arith.constant 0 : index
    %c0_140 = arith.constant 0 : index
    %c0_141 = arith.constant 0 : index
    %361 = vector.load %arg28[%c0_139, %c0_140, %c0_141] : memref<2x1x32xf32, #tpu.memory_space<vmem>>, vector<1x1x32xf32>
    %362 = vector.shape_cast %361 : vector<1x1x32xf32> to vector<1x32xf32>
    %363 = vector.shape_cast %350 : vector<2x8x32xf32> to vector<16x32xf32>
    %cst_142 = arith.constant dense<0.000000e+00> : vector<16x64xf32>
    %364 = tpu.matmul %363, %352, %cst_142 {dimension_numbers = #tpu.dot_dimension_numbers<[1], [0], [0], [1], [0, 0, 1, 1], [], []>} : vector<16x32xf32>, vector<32x64xf32>, vector<16x64xf32> -> vector<16x64xf32>
    %365 = vector.broadcast %354 : vector<1x64xf32> to vector<16x64xf32>
    %366 = arith.addf %364, %365 : vector<16x64xf32>
    %cst_143 = arith.constant 0.000000e+00 : f32
    %367 = vector.broadcast %cst_143 : f32 to vector<16x64xf32>
    %368 = arith.maximumf %366, %367 : vector<16x64xf32>
    %cst_144 = arith.constant dense<0.000000e+00> : vector<16x32xf32>
    %369 = tpu.matmul %368, %356, %cst_144 {dimension_numbers = #tpu.dot_dimension_numbers<[1], [0], [0], [1], [0, 0, 1, 1], [], []>} : vector<16x64xf32>, vector<64x32xf32>, vector<16x32xf32> -> vector<16x32xf32>
    %370 = vector.broadcast %358 : vector<1x32xf32> to vector<16x32xf32>
    %371 = arith.addf %369, %370 : vector<16x32xf32>
    %372 = arith.addf %371, %363 : vector<16x32xf32>
    %cst_145 = arith.constant dense<0.000000e+00> : vector<16xf32>
    %373 = vector.multi_reduction <add>, %372, %cst_145 [1] : vector<16x32xf32> to vector<16xf32>
    %374 = vector.shape_cast %373 : vector<16xf32> to vector<16x1xf32>
    %cst_146 = arith.constant 3.200000e+01 : f32
    %375 = vector.broadcast %cst_146 : f32 to vector<16x1xf32>
    %376 = arith.divf %374, %375 : vector<16x1xf32>
    %377 = vector.broadcast %376 : vector<16x1xf32> to vector<16x32xf32>
    %378 = arith.subf %372, %377 : vector<16x32xf32>
    %379 = arith.mulf %378, %378 : vector<16x32xf32>
    %cst_147 = arith.constant dense<0.000000e+00> : vector<16xf32>
    %380 = vector.multi_reduction <add>, %379, %cst_147 [1] : vector<16x32xf32> to vector<16xf32>
    %381 = vector.shape_cast %380 : vector<16xf32> to vector<16x1xf32>
    %cst_148 = arith.constant 3.200000e+01 : f32
    %382 = vector.broadcast %cst_148 : f32 to vector<16x1xf32>
    %383 = arith.divf %381, %382 : vector<16x1xf32>
    %384 = vector.broadcast %376 : vector<16x1xf32> to vector<16x32xf32>
    %385 = arith.subf %372, %384 : vector<16x32xf32>
    %cst_149 = arith.constant 9.99999997E-7 : f32
    %386 = vector.broadcast %cst_149 : f32 to vector<16x1xf32>
    %387 = arith.addf %383, %386 : vector<16x1xf32>
    %388 = math.rsqrt %387 : vector<16x1xf32>
    %389 = vector.broadcast %388 : vector<16x1xf32> to vector<16x32xf32>
    %390 = arith.mulf %385, %389 : vector<16x32xf32>
    %391 = vector.broadcast %360 : vector<1x32xf32> to vector<16x32xf32>
    %392 = arith.mulf %390, %391 : vector<16x32xf32>
    %393 = vector.broadcast %362 : vector<1x32xf32> to vector<16x32xf32>
    %394 = arith.addf %392, %393 : vector<16x32xf32>
    %395 = vector.shape_cast %394 : vector<16x32xf32> to vector<2x8x32xf32>
    %c1 = arith.constant 1 : index
    %c0_150 = arith.constant 0 : index
    %c0_151 = arith.constant 0 : index
    %396 = vector.load %arg11[%c1, %c0_150, %c0_151] : memref<2x32x96xf32, #tpu.memory_space<vmem>>, vector<1x32x96xf32>
    %397 = vector.shape_cast %396 : vector<1x32x96xf32> to vector<32x96xf32>
    %c1_152 = arith.constant 1 : index
    %c0_153 = arith.constant 0 : index
    %c0_154 = arith.constant 0 : index
    %398 = vector.load %arg12[%c1_152, %c0_153, %c0_154] : memref<2x1x96xf32, #tpu.memory_space<vmem>>, vector<1x1x96xf32>
    %399 = vector.shape_cast %398 : vector<1x1x96xf32> to vector<1x96xf32>
    %c1_155 = arith.constant 1 : index
    %c0_156 = arith.constant 0 : index
    %c0_157 = arith.constant 0 : index
    %400 = vector.load %arg13[%c1_155, %c0_156, %c0_157] : memref<2x32x32xf32, #tpu.memory_space<vmem>>, vector<1x32x32xf32>
    %401 = vector.shape_cast %400 : vector<1x32x32xf32> to vector<32x32xf32>
    %c1_158 = arith.constant 1 : index
    %c0_159 = arith.constant 0 : index
    %c0_160 = arith.constant 0 : index
    %402 = vector.load %arg14[%c1_158, %c0_159, %c0_160] : memref<2x1x32xf32, #tpu.memory_space<vmem>>, vector<1x1x32xf32>
    %403 = vector.shape_cast %402 : vector<1x1x32xf32> to vector<1x32xf32>
    %c1_161 = arith.constant 1 : index
    %c0_162 = arith.constant 0 : index
    %c0_163 = arith.constant 0 : index
    %404 = vector.load %arg15[%c1_161, %c0_162, %c0_163] : memref<2x1x32xf32, #tpu.memory_space<vmem>>, vector<1x1x32xf32>
    %405 = vector.shape_cast %404 : vector<1x1x32xf32> to vector<1x32xf32>
    %c1_164 = arith.constant 1 : index
    %c0_165 = arith.constant 0 : index
    %c0_166 = arith.constant 0 : index
    %406 = vector.load %arg16[%c1_164, %c0_165, %c0_166] : memref<2x1x32xf32, #tpu.memory_space<vmem>>, vector<1x1x32xf32>
    %407 = vector.shape_cast %406 : vector<1x1x32xf32> to vector<1x32xf32>
    %408 = vector.shape_cast %395 : vector<2x8x32xf32> to vector<16x32xf32>
    %cst_167 = arith.constant dense<0.000000e+00> : vector<16x96xf32>
    %409 = tpu.matmul %408, %397, %cst_167 {dimension_numbers = #tpu.dot_dimension_numbers<[1], [0], [0], [1], [0, 0, 1, 1], [], []>} : vector<16x32xf32>, vector<32x96xf32>, vector<16x96xf32> -> vector<16x96xf32>
    %410 = vector.broadcast %399 : vector<1x96xf32> to vector<16x96xf32>
    %411 = arith.addf %409, %410 : vector<16x96xf32>
    %412 = vector.extract_strided_slice %411 {offsets = [0, 0], sizes = [16, 32], strides = [1, 1]} : vector<16x96xf32> to vector<16x32xf32>
    %413 = vector.extract_strided_slice %411 {offsets = [0, 32], sizes = [16, 32], strides = [1, 1]} : vector<16x96xf32> to vector<16x32xf32>
    %414 = vector.extract_strided_slice %411 {offsets = [0, 64], sizes = [16, 32], strides = [1, 1]} : vector<16x96xf32> to vector<16x32xf32>
    %415 = vector.shape_cast %412 : vector<16x32xf32> to vector<2x8x32xf32>
    %416 = vector.shape_cast %413 : vector<16x32xf32> to vector<2x8x32xf32>
    %417 = vector.shape_cast %414 : vector<16x32xf32> to vector<2x8x32xf32>
    %cst_168 = arith.constant 0.000000e+00 : f32
    %418 = vector.broadcast %cst_168 : f32 to vector<2x8x32xf32>
    %419 = vector.broadcast %7 : vector<1x1x32xf32> to vector<2x8x32xf32>
    %420 = arith.mulf %416, %419 : vector<2x8x32xf32>
    %421 = vector.broadcast %7 : vector<1x1x32xf32> to vector<2x8x32xf32>
    %422 = arith.mulf %417, %421 : vector<2x8x32xf32>
    "tpu.trace_start"() <{level = 10 : i32, message = "bqd,bkd->bqk"}> : () -> ()
    %cst_169 = arith.constant dense<0.000000e+00> : vector<2x8x8xf32>
    %423 = tpu.matmul %415, %420, %cst_169 {dimension_numbers = #tpu.dot_dimension_numbers<[2], [2], [1], [1], [0, 0, 0, 1, 1, 1], [0], [0]>} : vector<2x8x32xf32>, vector<2x8x32xf32>, vector<2x8x8xf32> -> vector<2x8x8xf32>
    "tpu.trace_stop"() : () -> ()
    %cst_170 = arith.constant 0.353553385 : f32
    %424 = vector.broadcast %cst_170 : f32 to vector<2x8x8xf32>
    %425 = arith.mulf %423, %424 : vector<2x8x8xf32>
    %426 = arith.addf %425, %44 : vector<2x8x8xf32>
    %cst_171 = arith.constant dense<0xFF800000> : vector<2x8xf32>
    %427 = vector.multi_reduction <maximumf>, %426, %cst_171 [2] : vector<2x8x8xf32> to vector<2x8xf32>
    %428 = vector.shape_cast %427 : vector<2x8xf32> to vector<2x8x1xf32>
    %429 = vector.broadcast %428 : vector<2x8x1xf32> to vector<2x8x8xf32>
    %430 = arith.subf %426, %429 : vector<2x8x8xf32>
    %431 = math.exp %430 : vector<2x8x8xf32>
    %cst_172 = arith.constant dense<0.000000e+00> : vector<2x8xf32>
    %432 = vector.multi_reduction <add>, %431, %cst_172 [2] : vector<2x8x8xf32> to vector<2x8xf32>
    %433 = vector.shape_cast %432 : vector<2x8xf32> to vector<2x8x1xf32>
    %434 = tpu.reciprocal %433 {approx = true} : vector<2x8x1xf32> -> vector<2x8x1xf32>
    %435 = vector.broadcast %434 : vector<2x8x1xf32> to vector<2x8x8xf32>
    %436 = arith.mulf %431, %435 : vector<2x8x8xf32>
    "tpu.trace_start"() <{level = 10 : i32, message = "bqk,bkd->bqd"}> : () -> ()
    %cst_173 = arith.constant dense<0.000000e+00> : vector<2x8x32xf32>
    %437 = tpu.matmul %436, %422, %cst_173 {dimension_numbers = #tpu.dot_dimension_numbers<[2], [1], [1], [2], [0, 0, 0, 1, 1, 2], [0], [0]>} : vector<2x8x8xf32>, vector<2x8x32xf32>, vector<2x8x32xf32> -> vector<2x8x32xf32>
    "tpu.trace_stop"() : () -> ()
    %438 = arith.addf %418, %437 : vector<2x8x32xf32>
    %439 = vector.broadcast %14 : vector<1x1x32xf32> to vector<2x8x32xf32>
    %440 = arith.mulf %416, %439 : vector<2x8x32xf32>
    %441 = vector.broadcast %14 : vector<1x1x32xf32> to vector<2x8x32xf32>
    %442 = arith.mulf %417, %441 : vector<2x8x32xf32>
    "tpu.trace_start"() <{level = 10 : i32, message = "bqd,bkd->bqk"}> : () -> ()
    %cst_174 = arith.constant dense<0.000000e+00> : vector<2x8x8xf32>
    %443 = tpu.matmul %415, %440, %cst_174 {dimension_numbers = #tpu.dot_dimension_numbers<[2], [2], [1], [1], [0, 0, 0, 1, 1, 1], [0], [0]>} : vector<2x8x32xf32>, vector<2x8x32xf32>, vector<2x8x8xf32> -> vector<2x8x8xf32>
    "tpu.trace_stop"() : () -> ()
    %cst_175 = arith.constant 0.353553385 : f32
    %444 = vector.broadcast %cst_175 : f32 to vector<2x8x8xf32>
    %445 = arith.mulf %443, %444 : vector<2x8x8xf32>
    %446 = arith.addf %445, %44 : vector<2x8x8xf32>
    %cst_176 = arith.constant dense<0xFF800000> : vector<2x8xf32>
    %447 = vector.multi_reduction <maximumf>, %446, %cst_176 [2] : vector<2x8x8xf32> to vector<2x8xf32>
    %448 = vector.shape_cast %447 : vector<2x8xf32> to vector<2x8x1xf32>
    %449 = vector.broadcast %448 : vector<2x8x1xf32> to vector<2x8x8xf32>
    %450 = arith.subf %446, %449 : vector<2x8x8xf32>
    %451 = math.exp %450 : vector<2x8x8xf32>
    %cst_177 = arith.constant dense<0.000000e+00> : vector<2x8xf32>
    %452 = vector.multi_reduction <add>, %451, %cst_177 [2] : vector<2x8x8xf32> to vector<2x8xf32>
    %453 = vector.shape_cast %452 : vector<2x8xf32> to vector<2x8x1xf32>
    %454 = tpu.reciprocal %453 {approx = true} : vector<2x8x1xf32> -> vector<2x8x1xf32>
    %455 = vector.broadcast %454 : vector<2x8x1xf32> to vector<2x8x8xf32>
    %456 = arith.mulf %451, %455 : vector<2x8x8xf32>
    "tpu.trace_start"() <{level = 10 : i32, message = "bqk,bkd->bqd"}> : () -> ()
    %cst_178 = arith.constant dense<0.000000e+00> : vector<2x8x32xf32>
    %457 = tpu.matmul %456, %442, %cst_178 {dimension_numbers = #tpu.dot_dimension_numbers<[2], [1], [1], [2], [0, 0, 0, 1, 1, 2], [0], [0]>} : vector<2x8x8xf32>, vector<2x8x32xf32>, vector<2x8x32xf32> -> vector<2x8x32xf32>
    "tpu.trace_stop"() : () -> ()
    %458 = arith.addf %438, %457 : vector<2x8x32xf32>
    %459 = vector.broadcast %21 : vector<1x1x32xf32> to vector<2x8x32xf32>
    %460 = arith.mulf %416, %459 : vector<2x8x32xf32>
    %461 = vector.broadcast %21 : vector<1x1x32xf32> to vector<2x8x32xf32>
    %462 = arith.mulf %417, %461 : vector<2x8x32xf32>
    "tpu.trace_start"() <{level = 10 : i32, message = "bqd,bkd->bqk"}> : () -> ()
    %cst_179 = arith.constant dense<0.000000e+00> : vector<2x8x8xf32>
    %463 = tpu.matmul %415, %460, %cst_179 {dimension_numbers = #tpu.dot_dimension_numbers<[2], [2], [1], [1], [0, 0, 0, 1, 1, 1], [0], [0]>} : vector<2x8x32xf32>, vector<2x8x32xf32>, vector<2x8x8xf32> -> vector<2x8x8xf32>
    "tpu.trace_stop"() : () -> ()
    %cst_180 = arith.constant 0.353553385 : f32
    %464 = vector.broadcast %cst_180 : f32 to vector<2x8x8xf32>
    %465 = arith.mulf %463, %464 : vector<2x8x8xf32>
    %466 = arith.addf %465, %44 : vector<2x8x8xf32>
    %cst_181 = arith.constant dense<0xFF800000> : vector<2x8xf32>
    %467 = vector.multi_reduction <maximumf>, %466, %cst_181 [2] : vector<2x8x8xf32> to vector<2x8xf32>
    %468 = vector.shape_cast %467 : vector<2x8xf32> to vector<2x8x1xf32>
    %469 = vector.broadcast %468 : vector<2x8x1xf32> to vector<2x8x8xf32>
    %470 = arith.subf %466, %469 : vector<2x8x8xf32>
    %471 = math.exp %470 : vector<2x8x8xf32>
    %cst_182 = arith.constant dense<0.000000e+00> : vector<2x8xf32>
    %472 = vector.multi_reduction <add>, %471, %cst_182 [2] : vector<2x8x8xf32> to vector<2x8xf32>
    %473 = vector.shape_cast %472 : vector<2x8xf32> to vector<2x8x1xf32>
    %474 = tpu.reciprocal %473 {approx = true} : vector<2x8x1xf32> -> vector<2x8x1xf32>
    %475 = vector.broadcast %474 : vector<2x8x1xf32> to vector<2x8x8xf32>
    %476 = arith.mulf %471, %475 : vector<2x8x8xf32>
    "tpu.trace_start"() <{level = 10 : i32, message = "bqk,bkd->bqd"}> : () -> ()
    %cst_183 = arith.constant dense<0.000000e+00> : vector<2x8x32xf32>
    %477 = tpu.matmul %476, %462, %cst_183 {dimension_numbers = #tpu.dot_dimension_numbers<[2], [1], [1], [2], [0, 0, 0, 1, 1, 2], [0], [0]>} : vector<2x8x8xf32>, vector<2x8x32xf32>, vector<2x8x32xf32> -> vector<2x8x32xf32>
    "tpu.trace_stop"() : () -> ()
    %478 = arith.addf %458, %477 : vector<2x8x32xf32>
    %479 = vector.broadcast %28 : vector<1x1x32xf32> to vector<2x8x32xf32>
    %480 = arith.mulf %416, %479 : vector<2x8x32xf32>
    %481 = vector.broadcast %28 : vector<1x1x32xf32> to vector<2x8x32xf32>
    %482 = arith.mulf %417, %481 : vector<2x8x32xf32>
    "tpu.trace_start"() <{level = 10 : i32, message = "bqd,bkd->bqk"}> : () -> ()
    %cst_184 = arith.constant dense<0.000000e+00> : vector<2x8x8xf32>
    %483 = tpu.matmul %415, %480, %cst_184 {dimension_numbers = #tpu.dot_dimension_numbers<[2], [2], [1], [1], [0, 0, 0, 1, 1, 1], [0], [0]>} : vector<2x8x32xf32>, vector<2x8x32xf32>, vector<2x8x8xf32> -> vector<2x8x8xf32>
    "tpu.trace_stop"() : () -> ()
    %cst_185 = arith.constant 0.353553385 : f32
    %484 = vector.broadcast %cst_185 : f32 to vector<2x8x8xf32>
    %485 = arith.mulf %483, %484 : vector<2x8x8xf32>
    %486 = arith.addf %485, %44 : vector<2x8x8xf32>
    %cst_186 = arith.constant dense<0xFF800000> : vector<2x8xf32>
    %487 = vector.multi_reduction <maximumf>, %486, %cst_186 [2] : vector<2x8x8xf32> to vector<2x8xf32>
    %488 = vector.shape_cast %487 : vector<2x8xf32> to vector<2x8x1xf32>
    %489 = vector.broadcast %488 : vector<2x8x1xf32> to vector<2x8x8xf32>
    %490 = arith.subf %486, %489 : vector<2x8x8xf32>
    %491 = math.exp %490 : vector<2x8x8xf32>
    %cst_187 = arith.constant dense<0.000000e+00> : vector<2x8xf32>
    %492 = vector.multi_reduction <add>, %491, %cst_187 [2] : vector<2x8x8xf32> to vector<2x8xf32>
    %493 = vector.shape_cast %492 : vector<2x8xf32> to vector<2x8x1xf32>
    %494 = tpu.reciprocal %493 {approx = true} : vector<2x8x1xf32> -> vector<2x8x1xf32>
    %495 = vector.broadcast %494 : vector<2x8x1xf32> to vector<2x8x8xf32>
    %496 = arith.mulf %491, %495 : vector<2x8x8xf32>
    "tpu.trace_start"() <{level = 10 : i32, message = "bqk,bkd->bqd"}> : () -> ()
    %cst_188 = arith.constant dense<0.000000e+00> : vector<2x8x32xf32>
    %497 = tpu.matmul %496, %482, %cst_188 {dimension_numbers = #tpu.dot_dimension_numbers<[2], [1], [1], [2], [0, 0, 0, 1, 1, 2], [0], [0]>} : vector<2x8x8xf32>, vector<2x8x32xf32>, vector<2x8x32xf32> -> vector<2x8x32xf32>
    "tpu.trace_stop"() : () -> ()
    %498 = arith.addf %478, %497 : vector<2x8x32xf32>
    %499 = vector.shape_cast %498 : vector<2x8x32xf32> to vector<16x32xf32>
    %cst_189 = arith.constant dense<0.000000e+00> : vector<16x32xf32>
    %500 = tpu.matmul %499, %401, %cst_189 {dimension_numbers = #tpu.dot_dimension_numbers<[1], [0], [0], [1], [0, 0, 1, 1], [], []>} : vector<16x32xf32>, vector<32x32xf32>, vector<16x32xf32> -> vector<16x32xf32>
    %501 = vector.broadcast %403 : vector<1x32xf32> to vector<16x32xf32>
    %502 = arith.addf %500, %501 : vector<16x32xf32>
    %503 = arith.addf %502, %408 : vector<16x32xf32>
    %cst_190 = arith.constant dense<0.000000e+00> : vector<16xf32>
    %504 = vector.multi_reduction <add>, %503, %cst_190 [1] : vector<16x32xf32> to vector<16xf32>
    %505 = vector.shape_cast %504 : vector<16xf32> to vector<16x1xf32>
    %cst_191 = arith.constant 3.200000e+01 : f32
    %506 = vector.broadcast %cst_191 : f32 to vector<16x1xf32>
    %507 = arith.divf %505, %506 : vector<16x1xf32>
    %508 = vector.broadcast %507 : vector<16x1xf32> to vector<16x32xf32>
    %509 = arith.subf %503, %508 : vector<16x32xf32>
    %510 = arith.mulf %509, %509 : vector<16x32xf32>
    %cst_192 = arith.constant dense<0.000000e+00> : vector<16xf32>
    %511 = vector.multi_reduction <add>, %510, %cst_192 [1] : vector<16x32xf32> to vector<16xf32>
    %512 = vector.shape_cast %511 : vector<16xf32> to vector<16x1xf32>
    %cst_193 = arith.constant 3.200000e+01 : f32
    %513 = vector.broadcast %cst_193 : f32 to vector<16x1xf32>
    %514 = arith.divf %512, %513 : vector<16x1xf32>
    %515 = vector.broadcast %507 : vector<16x1xf32> to vector<16x32xf32>
    %516 = arith.subf %503, %515 : vector<16x32xf32>
    %cst_194 = arith.constant 9.99999997E-7 : f32
    %517 = vector.broadcast %cst_194 : f32 to vector<16x1xf32>
    %518 = arith.addf %514, %517 : vector<16x1xf32>
    %519 = math.rsqrt %518 : vector<16x1xf32>
    %520 = vector.broadcast %519 : vector<16x1xf32> to vector<16x32xf32>
    %521 = arith.mulf %516, %520 : vector<16x32xf32>
    %522 = vector.broadcast %405 : vector<1x32xf32> to vector<16x32xf32>
    %523 = arith.mulf %521, %522 : vector<16x32xf32>
    %524 = vector.broadcast %407 : vector<1x32xf32> to vector<16x32xf32>
    %525 = arith.addf %523, %524 : vector<16x32xf32>
    %526 = vector.shape_cast %525 : vector<16x32xf32> to vector<2x8x32xf32>
    %c1_195 = arith.constant 1 : index
    %c0_196 = arith.constant 0 : index
    %c0_197 = arith.constant 0 : index
    %527 = vector.load %arg17[%c1_195, %c0_196, %c0_197] : memref<2x32x96xf32, #tpu.memory_space<vmem>>, vector<1x32x96xf32>
    %528 = vector.shape_cast %527 : vector<1x32x96xf32> to vector<32x96xf32>
    %c1_198 = arith.constant 1 : index
    %c0_199 = arith.constant 0 : index
    %c0_200 = arith.constant 0 : index
    %529 = vector.load %arg18[%c1_198, %c0_199, %c0_200] : memref<2x1x96xf32, #tpu.memory_space<vmem>>, vector<1x1x96xf32>
    %530 = vector.shape_cast %529 : vector<1x1x96xf32> to vector<1x96xf32>
    %c1_201 = arith.constant 1 : index
    %c0_202 = arith.constant 0 : index
    %c0_203 = arith.constant 0 : index
    %531 = vector.load %arg19[%c1_201, %c0_202, %c0_203] : memref<2x32x32xf32, #tpu.memory_space<vmem>>, vector<1x32x32xf32>
    %532 = vector.shape_cast %531 : vector<1x32x32xf32> to vector<32x32xf32>
    %c1_204 = arith.constant 1 : index
    %c0_205 = arith.constant 0 : index
    %c0_206 = arith.constant 0 : index
    %533 = vector.load %arg20[%c1_204, %c0_205, %c0_206] : memref<2x1x32xf32, #tpu.memory_space<vmem>>, vector<1x1x32xf32>
    %534 = vector.shape_cast %533 : vector<1x1x32xf32> to vector<1x32xf32>
    %c1_207 = arith.constant 1 : index
    %c0_208 = arith.constant 0 : index
    %c0_209 = arith.constant 0 : index
    %535 = vector.load %arg21[%c1_207, %c0_208, %c0_209] : memref<2x1x32xf32, #tpu.memory_space<vmem>>, vector<1x1x32xf32>
    %536 = vector.shape_cast %535 : vector<1x1x32xf32> to vector<1x32xf32>
    %c1_210 = arith.constant 1 : index
    %c0_211 = arith.constant 0 : index
    %c0_212 = arith.constant 0 : index
    %537 = vector.load %arg22[%c1_210, %c0_211, %c0_212] : memref<2x1x32xf32, #tpu.memory_space<vmem>>, vector<1x1x32xf32>
    %538 = vector.shape_cast %537 : vector<1x1x32xf32> to vector<1x32xf32>
    %539 = vector.shape_cast %526 : vector<2x8x32xf32> to vector<16x32xf32>
    %540 = vector.shape_cast %81 : vector<2x8x32xf32> to vector<16x32xf32>
    %541 = vector.extract_strided_slice %528 {offsets = [0, 0], sizes = [32, 32], strides = [1, 1]} : vector<32x96xf32> to vector<32x32xf32>
    %cst_213 = arith.constant dense<0.000000e+00> : vector<16x32xf32>
    %542 = tpu.matmul %539, %541, %cst_213 {dimension_numbers = #tpu.dot_dimension_numbers<[1], [0], [0], [1], [0, 0, 1, 1], [], []>} : vector<16x32xf32>, vector<32x32xf32>, vector<16x32xf32> -> vector<16x32xf32>
    %543 = vector.extract_strided_slice %530 {offsets = [0, 0], sizes = [1, 32], strides = [1, 1]} : vector<1x96xf32> to vector<1x32xf32>
    %544 = vector.broadcast %543 : vector<1x32xf32> to vector<16x32xf32>
    %545 = arith.addf %542, %544 : vector<16x32xf32>
    %546 = vector.extract_strided_slice %528 {offsets = [0, 32], sizes = [32, 64], strides = [1, 1]} : vector<32x96xf32> to vector<32x64xf32>
    %cst_214 = arith.constant dense<0.000000e+00> : vector<16x64xf32>
    %547 = tpu.matmul %540, %546, %cst_214 {dimension_numbers = #tpu.dot_dimension_numbers<[1], [0], [0], [1], [0, 0, 1, 1], [], []>} : vector<16x32xf32>, vector<32x64xf32>, vector<16x64xf32> -> vector<16x64xf32>
    %548 = vector.extract_strided_slice %530 {offsets = [0, 32], sizes = [1, 64], strides = [1, 1]} : vector<1x96xf32> to vector<1x64xf32>
    %549 = vector.broadcast %548 : vector<1x64xf32> to vector<16x64xf32>
    %550 = arith.addf %547, %549 : vector<16x64xf32>
    %551 = vector.extract_strided_slice %550 {offsets = [0, 0], sizes = [16, 32], strides = [1, 1]} : vector<16x64xf32> to vector<16x32xf32>
    %552 = vector.extract_strided_slice %550 {offsets = [0, 32], sizes = [16, 32], strides = [1, 1]} : vector<16x64xf32> to vector<16x32xf32>
    %553 = vector.shape_cast %545 : vector<16x32xf32> to vector<2x8x32xf32>
    %554 = vector.shape_cast %551 : vector<16x32xf32> to vector<2x8x32xf32>
    %555 = vector.shape_cast %552 : vector<16x32xf32> to vector<2x8x32xf32>
    %cst_215 = arith.constant 0.000000e+00 : f32
    %556 = vector.broadcast %cst_215 : f32 to vector<2x8x32xf32>
    %557 = vector.broadcast %7 : vector<1x1x32xf32> to vector<2x8x32xf32>
    %558 = arith.mulf %554, %557 : vector<2x8x32xf32>
    %559 = vector.broadcast %7 : vector<1x1x32xf32> to vector<2x8x32xf32>
    %560 = arith.mulf %555, %559 : vector<2x8x32xf32>
    "tpu.trace_start"() <{level = 10 : i32, message = "bqd,bkd->bqk"}> : () -> ()
    %cst_216 = arith.constant dense<0.000000e+00> : vector<2x8x8xf32>
    %561 = tpu.matmul %553, %558, %cst_216 {dimension_numbers = #tpu.dot_dimension_numbers<[2], [2], [1], [1], [0, 0, 0, 1, 1, 1], [0], [0]>} : vector<2x8x32xf32>, vector<2x8x32xf32>, vector<2x8x8xf32> -> vector<2x8x8xf32>
    "tpu.trace_stop"() : () -> ()
    %cst_217 = arith.constant 0.353553385 : f32
    %562 = vector.broadcast %cst_217 : f32 to vector<2x8x8xf32>
    %563 = arith.mulf %561, %562 : vector<2x8x8xf32>
    %564 = arith.addf %563, %51 : vector<2x8x8xf32>
    %cst_218 = arith.constant dense<0xFF800000> : vector<2x8xf32>
    %565 = vector.multi_reduction <maximumf>, %564, %cst_218 [2] : vector<2x8x8xf32> to vector<2x8xf32>
    %566 = vector.shape_cast %565 : vector<2x8xf32> to vector<2x8x1xf32>
    %567 = vector.broadcast %566 : vector<2x8x1xf32> to vector<2x8x8xf32>
    %568 = arith.subf %564, %567 : vector<2x8x8xf32>
    %569 = math.exp %568 : vector<2x8x8xf32>
    %cst_219 = arith.constant dense<0.000000e+00> : vector<2x8xf32>
    %570 = vector.multi_reduction <add>, %569, %cst_219 [2] : vector<2x8x8xf32> to vector<2x8xf32>
    %571 = vector.shape_cast %570 : vector<2x8xf32> to vector<2x8x1xf32>
    %572 = tpu.reciprocal %571 {approx = true} : vector<2x8x1xf32> -> vector<2x8x1xf32>
    %573 = vector.broadcast %572 : vector<2x8x1xf32> to vector<2x8x8xf32>
    %574 = arith.mulf %569, %573 : vector<2x8x8xf32>
    "tpu.trace_start"() <{level = 10 : i32, message = "bqk,bkd->bqd"}> : () -> ()
    %cst_220 = arith.constant dense<0.000000e+00> : vector<2x8x32xf32>
    %575 = tpu.matmul %574, %560, %cst_220 {dimension_numbers = #tpu.dot_dimension_numbers<[2], [1], [1], [2], [0, 0, 0, 1, 1, 2], [0], [0]>} : vector<2x8x8xf32>, vector<2x8x32xf32>, vector<2x8x32xf32> -> vector<2x8x32xf32>
    "tpu.trace_stop"() : () -> ()
    %576 = arith.addf %556, %575 : vector<2x8x32xf32>
    %577 = vector.broadcast %14 : vector<1x1x32xf32> to vector<2x8x32xf32>
    %578 = arith.mulf %554, %577 : vector<2x8x32xf32>
    %579 = vector.broadcast %14 : vector<1x1x32xf32> to vector<2x8x32xf32>
    %580 = arith.mulf %555, %579 : vector<2x8x32xf32>
    "tpu.trace_start"() <{level = 10 : i32, message = "bqd,bkd->bqk"}> : () -> ()
    %cst_221 = arith.constant dense<0.000000e+00> : vector<2x8x8xf32>
    %581 = tpu.matmul %553, %578, %cst_221 {dimension_numbers = #tpu.dot_dimension_numbers<[2], [2], [1], [1], [0, 0, 0, 1, 1, 1], [0], [0]>} : vector<2x8x32xf32>, vector<2x8x32xf32>, vector<2x8x8xf32> -> vector<2x8x8xf32>
    "tpu.trace_stop"() : () -> ()
    %cst_222 = arith.constant 0.353553385 : f32
    %582 = vector.broadcast %cst_222 : f32 to vector<2x8x8xf32>
    %583 = arith.mulf %581, %582 : vector<2x8x8xf32>
    %584 = arith.addf %583, %51 : vector<2x8x8xf32>
    %cst_223 = arith.constant dense<0xFF800000> : vector<2x8xf32>
    %585 = vector.multi_reduction <maximumf>, %584, %cst_223 [2] : vector<2x8x8xf32> to vector<2x8xf32>
    %586 = vector.shape_cast %585 : vector<2x8xf32> to vector<2x8x1xf32>
    %587 = vector.broadcast %586 : vector<2x8x1xf32> to vector<2x8x8xf32>
    %588 = arith.subf %584, %587 : vector<2x8x8xf32>
    %589 = math.exp %588 : vector<2x8x8xf32>
    %cst_224 = arith.constant dense<0.000000e+00> : vector<2x8xf32>
    %590 = vector.multi_reduction <add>, %589, %cst_224 [2] : vector<2x8x8xf32> to vector<2x8xf32>
    %591 = vector.shape_cast %590 : vector<2x8xf32> to vector<2x8x1xf32>
    %592 = tpu.reciprocal %591 {approx = true} : vector<2x8x1xf32> -> vector<2x8x1xf32>
    %593 = vector.broadcast %592 : vector<2x8x1xf32> to vector<2x8x8xf32>
    %594 = arith.mulf %589, %593 : vector<2x8x8xf32>
    "tpu.trace_start"() <{level = 10 : i32, message = "bqk,bkd->bqd"}> : () -> ()
    %cst_225 = arith.constant dense<0.000000e+00> : vector<2x8x32xf32>
    %595 = tpu.matmul %594, %580, %cst_225 {dimension_numbers = #tpu.dot_dimension_numbers<[2], [1], [1], [2], [0, 0, 0, 1, 1, 2], [0], [0]>} : vector<2x8x8xf32>, vector<2x8x32xf32>, vector<2x8x32xf32> -> vector<2x8x32xf32>
    "tpu.trace_stop"() : () -> ()
    %596 = arith.addf %576, %595 : vector<2x8x32xf32>
    %597 = vector.broadcast %21 : vector<1x1x32xf32> to vector<2x8x32xf32>
    %598 = arith.mulf %554, %597 : vector<2x8x32xf32>
    %599 = vector.broadcast %21 : vector<1x1x32xf32> to vector<2x8x32xf32>
    %600 = arith.mulf %555, %599 : vector<2x8x32xf32>
    "tpu.trace_start"() <{level = 10 : i32, message = "bqd,bkd->bqk"}> : () -> ()
    %cst_226 = arith.constant dense<0.000000e+00> : vector<2x8x8xf32>
    %601 = tpu.matmul %553, %598, %cst_226 {dimension_numbers = #tpu.dot_dimension_numbers<[2], [2], [1], [1], [0, 0, 0, 1, 1, 1], [0], [0]>} : vector<2x8x32xf32>, vector<2x8x32xf32>, vector<2x8x8xf32> -> vector<2x8x8xf32>
    "tpu.trace_stop"() : () -> ()
    %cst_227 = arith.constant 0.353553385 : f32
    %602 = vector.broadcast %cst_227 : f32 to vector<2x8x8xf32>
    %603 = arith.mulf %601, %602 : vector<2x8x8xf32>
    %604 = arith.addf %603, %51 : vector<2x8x8xf32>
    %cst_228 = arith.constant dense<0xFF800000> : vector<2x8xf32>
    %605 = vector.multi_reduction <maximumf>, %604, %cst_228 [2] : vector<2x8x8xf32> to vector<2x8xf32>
    %606 = vector.shape_cast %605 : vector<2x8xf32> to vector<2x8x1xf32>
    %607 = vector.broadcast %606 : vector<2x8x1xf32> to vector<2x8x8xf32>
    %608 = arith.subf %604, %607 : vector<2x8x8xf32>
    %609 = math.exp %608 : vector<2x8x8xf32>
    %cst_229 = arith.constant dense<0.000000e+00> : vector<2x8xf32>
    %610 = vector.multi_reduction <add>, %609, %cst_229 [2] : vector<2x8x8xf32> to vector<2x8xf32>
    %611 = vector.shape_cast %610 : vector<2x8xf32> to vector<2x8x1xf32>
    %612 = tpu.reciprocal %611 {approx = true} : vector<2x8x1xf32> -> vector<2x8x1xf32>
    %613 = vector.broadcast %612 : vector<2x8x1xf32> to vector<2x8x8xf32>
    %614 = arith.mulf %609, %613 : vector<2x8x8xf32>
    "tpu.trace_start"() <{level = 10 : i32, message = "bqk,bkd->bqd"}> : () -> ()
    %cst_230 = arith.constant dense<0.000000e+00> : vector<2x8x32xf32>
    %615 = tpu.matmul %614, %600, %cst_230 {dimension_numbers = #tpu.dot_dimension_numbers<[2], [1], [1], [2], [0, 0, 0, 1, 1, 2], [0], [0]>} : vector<2x8x8xf32>, vector<2x8x32xf32>, vector<2x8x32xf32> -> vector<2x8x32xf32>
    "tpu.trace_stop"() : () -> ()
    %616 = arith.addf %596, %615 : vector<2x8x32xf32>
    %617 = vector.broadcast %28 : vector<1x1x32xf32> to vector<2x8x32xf32>
    %618 = arith.mulf %554, %617 : vector<2x8x32xf32>
    %619 = vector.broadcast %28 : vector<1x1x32xf32> to vector<2x8x32xf32>
    %620 = arith.mulf %555, %619 : vector<2x8x32xf32>
    "tpu.trace_start"() <{level = 10 : i32, message = "bqd,bkd->bqk"}> : () -> ()
    %cst_231 = arith.constant dense<0.000000e+00> : vector<2x8x8xf32>
    %621 = tpu.matmul %553, %618, %cst_231 {dimension_numbers = #tpu.dot_dimension_numbers<[2], [2], [1], [1], [0, 0, 0, 1, 1, 1], [0], [0]>} : vector<2x8x32xf32>, vector<2x8x32xf32>, vector<2x8x8xf32> -> vector<2x8x8xf32>
    "tpu.trace_stop"() : () -> ()
    %cst_232 = arith.constant 0.353553385 : f32
    %622 = vector.broadcast %cst_232 : f32 to vector<2x8x8xf32>
    %623 = arith.mulf %621, %622 : vector<2x8x8xf32>
    %624 = arith.addf %623, %51 : vector<2x8x8xf32>
    %cst_233 = arith.constant dense<0xFF800000> : vector<2x8xf32>
    %625 = vector.multi_reduction <maximumf>, %624, %cst_233 [2] : vector<2x8x8xf32> to vector<2x8xf32>
    %626 = vector.shape_cast %625 : vector<2x8xf32> to vector<2x8x1xf32>
    %627 = vector.broadcast %626 : vector<2x8x1xf32> to vector<2x8x8xf32>
    %628 = arith.subf %624, %627 : vector<2x8x8xf32>
    %629 = math.exp %628 : vector<2x8x8xf32>
    %cst_234 = arith.constant dense<0.000000e+00> : vector<2x8xf32>
    %630 = vector.multi_reduction <add>, %629, %cst_234 [2] : vector<2x8x8xf32> to vector<2x8xf32>
    %631 = vector.shape_cast %630 : vector<2x8xf32> to vector<2x8x1xf32>
    %632 = tpu.reciprocal %631 {approx = true} : vector<2x8x1xf32> -> vector<2x8x1xf32>
    %633 = vector.broadcast %632 : vector<2x8x1xf32> to vector<2x8x8xf32>
    %634 = arith.mulf %629, %633 : vector<2x8x8xf32>
    "tpu.trace_start"() <{level = 10 : i32, message = "bqk,bkd->bqd"}> : () -> ()
    %cst_235 = arith.constant dense<0.000000e+00> : vector<2x8x32xf32>
    %635 = tpu.matmul %634, %620, %cst_235 {dimension_numbers = #tpu.dot_dimension_numbers<[2], [1], [1], [2], [0, 0, 0, 1, 1, 2], [0], [0]>} : vector<2x8x8xf32>, vector<2x8x32xf32>, vector<2x8x32xf32> -> vector<2x8x32xf32>
    "tpu.trace_stop"() : () -> ()
    %636 = arith.addf %616, %635 : vector<2x8x32xf32>
    %637 = vector.shape_cast %636 : vector<2x8x32xf32> to vector<16x32xf32>
    %cst_236 = arith.constant dense<0.000000e+00> : vector<16x32xf32>
    %638 = tpu.matmul %637, %532, %cst_236 {dimension_numbers = #tpu.dot_dimension_numbers<[1], [0], [0], [1], [0, 0, 1, 1], [], []>} : vector<16x32xf32>, vector<32x32xf32>, vector<16x32xf32> -> vector<16x32xf32>
    %639 = vector.broadcast %534 : vector<1x32xf32> to vector<16x32xf32>
    %640 = arith.addf %638, %639 : vector<16x32xf32>
    %641 = arith.addf %640, %539 : vector<16x32xf32>
    %cst_237 = arith.constant dense<0.000000e+00> : vector<16xf32>
    %642 = vector.multi_reduction <add>, %641, %cst_237 [1] : vector<16x32xf32> to vector<16xf32>
    %643 = vector.shape_cast %642 : vector<16xf32> to vector<16x1xf32>
    %cst_238 = arith.constant 3.200000e+01 : f32
    %644 = vector.broadcast %cst_238 : f32 to vector<16x1xf32>
    %645 = arith.divf %643, %644 : vector<16x1xf32>
    %646 = vector.broadcast %645 : vector<16x1xf32> to vector<16x32xf32>
    %647 = arith.subf %641, %646 : vector<16x32xf32>
    %648 = arith.mulf %647, %647 : vector<16x32xf32>
    %cst_239 = arith.constant dense<0.000000e+00> : vector<16xf32>
    %649 = vector.multi_reduction <add>, %648, %cst_239 [1] : vector<16x32xf32> to vector<16xf32>
    %650 = vector.shape_cast %649 : vector<16xf32> to vector<16x1xf32>
    %cst_240 = arith.constant 3.200000e+01 : f32
    %651 = vector.broadcast %cst_240 : f32 to vector<16x1xf32>
    %652 = arith.divf %650, %651 : vector<16x1xf32>
    %653 = vector.broadcast %645 : vector<16x1xf32> to vector<16x32xf32>
    %654 = arith.subf %641, %653 : vector<16x32xf32>
    %cst_241 = arith.constant 9.99999997E-7 : f32
    %655 = vector.broadcast %cst_241 : f32 to vector<16x1xf32>
    %656 = arith.addf %652, %655 : vector<16x1xf32>
    %657 = math.rsqrt %656 : vector<16x1xf32>
    %658 = vector.broadcast %657 : vector<16x1xf32> to vector<16x32xf32>
    %659 = arith.mulf %654, %658 : vector<16x32xf32>
    %660 = vector.broadcast %536 : vector<1x32xf32> to vector<16x32xf32>
    %661 = arith.mulf %659, %660 : vector<16x32xf32>
    %662 = vector.broadcast %538 : vector<1x32xf32> to vector<16x32xf32>
    %663 = arith.addf %661, %662 : vector<16x32xf32>
    %664 = vector.shape_cast %663 : vector<16x32xf32> to vector<2x8x32xf32>
    %c1_242 = arith.constant 1 : index
    %c0_243 = arith.constant 0 : index
    %c0_244 = arith.constant 0 : index
    %665 = vector.load %arg23[%c1_242, %c0_243, %c0_244] : memref<2x32x64xf32, #tpu.memory_space<vmem>>, vector<1x32x64xf32>
    %666 = vector.shape_cast %665 : vector<1x32x64xf32> to vector<32x64xf32>
    %c1_245 = arith.constant 1 : index
    %c0_246 = arith.constant 0 : index
    %c0_247 = arith.constant 0 : index
    %667 = vector.load %arg24[%c1_245, %c0_246, %c0_247] : memref<2x1x64xf32, #tpu.memory_space<vmem>>, vector<1x1x64xf32>
    %668 = vector.shape_cast %667 : vector<1x1x64xf32> to vector<1x64xf32>
    %c1_248 = arith.constant 1 : index
    %c0_249 = arith.constant 0 : index
    %c0_250 = arith.constant 0 : index
    %669 = vector.load %arg25[%c1_248, %c0_249, %c0_250] : memref<2x64x32xf32, #tpu.memory_space<vmem>>, vector<1x64x32xf32>
    %670 = vector.shape_cast %669 : vector<1x64x32xf32> to vector<64x32xf32>
    %c1_251 = arith.constant 1 : index
    %c0_252 = arith.constant 0 : index
    %c0_253 = arith.constant 0 : index
    %671 = vector.load %arg26[%c1_251, %c0_252, %c0_253] : memref<2x1x32xf32, #tpu.memory_space<vmem>>, vector<1x1x32xf32>
    %672 = vector.shape_cast %671 : vector<1x1x32xf32> to vector<1x32xf32>
    %c1_254 = arith.constant 1 : index
    %c0_255 = arith.constant 0 : index
    %c0_256 = arith.constant 0 : index
    %673 = vector.load %arg27[%c1_254, %c0_255, %c0_256] : memref<2x1x32xf32, #tpu.memory_space<vmem>>, vector<1x1x32xf32>
    %674 = vector.shape_cast %673 : vector<1x1x32xf32> to vector<1x32xf32>
    %c1_257 = arith.constant 1 : index
    %c0_258 = arith.constant 0 : index
    %c0_259 = arith.constant 0 : index
    %675 = vector.load %arg28[%c1_257, %c0_258, %c0_259] : memref<2x1x32xf32, #tpu.memory_space<vmem>>, vector<1x1x32xf32>
    %676 = vector.shape_cast %675 : vector<1x1x32xf32> to vector<1x32xf32>
    %677 = vector.shape_cast %664 : vector<2x8x32xf32> to vector<16x32xf32>
    %cst_260 = arith.constant dense<0.000000e+00> : vector<16x64xf32>
    %678 = tpu.matmul %677, %666, %cst_260 {dimension_numbers = #tpu.dot_dimension_numbers<[1], [0], [0], [1], [0, 0, 1, 1], [], []>} : vector<16x32xf32>, vector<32x64xf32>, vector<16x64xf32> -> vector<16x64xf32>
    %679 = vector.broadcast %668 : vector<1x64xf32> to vector<16x64xf32>
    %680 = arith.addf %678, %679 : vector<16x64xf32>
    %cst_261 = arith.constant 0.000000e+00 : f32
    %681 = vector.broadcast %cst_261 : f32 to vector<16x64xf32>
    %682 = arith.maximumf %680, %681 : vector<16x64xf32>
    %cst_262 = arith.constant dense<0.000000e+00> : vector<16x32xf32>
    %683 = tpu.matmul %682, %670, %cst_262 {dimension_numbers = #tpu.dot_dimension_numbers<[1], [0], [0], [1], [0, 0, 1, 1], [], []>} : vector<16x64xf32>, vector<64x32xf32>, vector<16x32xf32> -> vector<16x32xf32>
    %684 = vector.broadcast %672 : vector<1x32xf32> to vector<16x32xf32>
    %685 = arith.addf %683, %684 : vector<16x32xf32>
    %686 = arith.addf %685, %677 : vector<16x32xf32>
    %cst_263 = arith.constant dense<0.000000e+00> : vector<16xf32>
    %687 = vector.multi_reduction <add>, %686, %cst_263 [1] : vector<16x32xf32> to vector<16xf32>
    %688 = vector.shape_cast %687 : vector<16xf32> to vector<16x1xf32>
    %cst_264 = arith.constant 3.200000e+01 : f32
    %689 = vector.broadcast %cst_264 : f32 to vector<16x1xf32>
    %690 = arith.divf %688, %689 : vector<16x1xf32>
    %691 = vector.broadcast %690 : vector<16x1xf32> to vector<16x32xf32>
    %692 = arith.subf %686, %691 : vector<16x32xf32>
    %693 = arith.mulf %692, %692 : vector<16x32xf32>
    %cst_265 = arith.constant dense<0.000000e+00> : vector<16xf32>
    %694 = vector.multi_reduction <add>, %693, %cst_265 [1] : vector<16x32xf32> to vector<16xf32>
    %695 = vector.shape_cast %694 : vector<16xf32> to vector<16x1xf32>
    %cst_266 = arith.constant 3.200000e+01 : f32
    %696 = vector.broadcast %cst_266 : f32 to vector<16x1xf32>
    %697 = arith.divf %695, %696 : vector<16x1xf32>
    %698 = vector.broadcast %690 : vector<16x1xf32> to vector<16x32xf32>
    %699 = arith.subf %686, %698 : vector<16x32xf32>
    %cst_267 = arith.constant 9.99999997E-7 : f32
    %700 = vector.broadcast %cst_267 : f32 to vector<16x1xf32>
    %701 = arith.addf %697, %700 : vector<16x1xf32>
    %702 = math.rsqrt %701 : vector<16x1xf32>
    %703 = vector.broadcast %702 : vector<16x1xf32> to vector<16x32xf32>
    %704 = arith.mulf %699, %703 : vector<16x32xf32>
    %705 = vector.broadcast %674 : vector<1x32xf32> to vector<16x32xf32>
    %706 = arith.mulf %704, %705 : vector<16x32xf32>
    %707 = vector.broadcast %676 : vector<1x32xf32> to vector<16x32xf32>
    %708 = arith.addf %706, %707 : vector<16x32xf32>
    %709 = vector.shape_cast %708 : vector<16x32xf32> to vector<2x8x32xf32>
    %c0_268 = arith.constant 0 : index
    %c0_269 = arith.constant 0 : index
    %c0_270 = arith.constant 0 : index
    %710 = vector.load %arg29[%c0_268, %c0_269, %c0_270] : memref<2x8x32xf32, #tpu.memory_space<vmem>>, vector<2x8x32xf32>
    tpu.vector_store %arg29[%c0_268, %c0_269, %c0_270], %709 {strides = array<i32>} : memref<2x8x32xf32, #tpu.memory_space<vmem>>, vector<2x8x32xf32>,
    return
  }
}

</mosaic_0001>

<llo_original>
// kernel: transformer_decoder_forward.1
$region0: #{transformer_decoder_forward.1}
  #allocation0 [shape = 'u32[]', space=smem, size = 0x4, offset = 0x4, fixed_abs, tag = 'smem constant byte address 0x4 - core index']
  #allocation1 [shape = 'u32[144,128]{1,0:T(1,128)}', space=vmem, size = 0x12000, scoped, tag = 'internal scratch']
  %s0 = inlined_call_operand.smem [shape: u32[30], index: -1, kind: input, shape index: {}]
  %s1 = sld [smem:[%s0]]
  %s2 = scalar_lea.smem %s0, 1
  %s3 = sld [smem:[%s2]]
  %s4 = scalar_lea.smem %s0, 2
  %s5 = sld [smem:[%s4]]
  %s6 = scalar_lea.smem %s0, 3
  %s7 = sld [smem:[%s6]]
  %s8 = scalar_lea.smem %s0, 4
  %s9 = sld [smem:[%s8]]
  %s10 = scalar_lea.smem %s0, 5
  %s11 = sld [smem:[%s10]]
  %s12 = scalar_lea.smem %s0, 6
  %s13 = sld [smem:[%s12]]
  %s14 = scalar_lea.smem %s0, 7
  %s15 = sld [smem:[%s14]]
  %s16 = scalar_lea.smem %s0, 8
  %s17 = sld [smem:[%s16]]
  %s18 = scalar_lea.smem %s0, 9
  %s19 = sld [smem:[%s18]]
  %s20 = scalar_lea.smem %s0, 10
  %s21 = sld [smem:[%s20]]
  %s22 = scalar_lea.smem %s0, 11
  %s23 = sld [smem:[%s22]]
  %s24 = scalar_lea.smem %s0, 12
  %s25 = sld [smem:[%s24]]
  %s26 = scalar_lea.smem %s0, 13
  %s27 = sld [smem:[%s26]]
  %s28 = scalar_lea.smem %s0, 14
  %s29 = sld [smem:[%s28]]
  %s30 = scalar_lea.smem %s0, 15
  %s31 = sld [smem:[%s30]]
  %s32 = scalar_lea.smem %s0, 16
  %s33 = sld [smem:[%s32]]
  %s34 = scalar_lea.smem %s0, 17
  %s35 = sld [smem:[%s34]]
  %s36 = scalar_lea.smem %s0, 18
  %s37 = sld [smem:[%s36]]
  %s38 = scalar_lea.smem %s0, 19
  %s39 = sld [smem:[%s38]]
  %s40 = scalar_lea.smem %s0, 20
  %s41 = sld [smem:[%s40]]
  %s42 = scalar_lea.smem %s0, 21
  %s43 = sld [smem:[%s42]]
  %s44 = scalar_lea.smem %s0, 22
  %s45 = sld [smem:[%s44]]
  %s46 = scalar_lea.smem %s0, 23
  %s47 = sld [smem:[%s46]]
  %s48 = scalar_lea.smem %s0, 24
  %s49 = sld [smem:[%s48]]
  %s50 = scalar_lea.smem %s0, 25
  %s51 = sld [smem:[%s50]]
  %s52 = scalar_lea.smem %s0, 26
  %s53 = sld [smem:[%s52]]
  %s54 = scalar_lea.smem %s0, 27
  %s55 = sld [smem:[%s54]]
  %s56 = scalar_lea.smem %s0, 28
  %s57 = sld [smem:[%s56]]
  %s58 = scalar_lea.smem %s0, 29
  %s59 = sld [smem:[%s58]]
  %s60 = sld [smem:[#allocation0]]
  $region126: #{transformer_decoder_forward.1} parent=0
    _
  %s62 = ssub.s32 1, %s60
  %s63 = scalar_select 0, %s62, %s60
  $region1: #{transformer_decoder_forward.1} parent=0
    #allocation2 [shape = 'u8[8192]{0}', space=vmem, size = 0x2000, scoped, tag = 'output window, operand 0, single buffered']
    #allocation3 [shape = 's32[1]{0}', space=sflag, size = 0x4, scoped, tag = 'scoped memory for transformer_decoder_forward.1']
    %64 = vsyncpa [#allocation3], 0
    // Predicated region
    $region2: #{transformer_decoder_forward.1} parent=1 // pred_check
      _
    $region3: #{transformer_decoder_forward.1} parent=1 // pred_check_branch
      %66 = sbr.rel (0) target = $region5
    $region4: #{transformer_decoder_forward.1} parent=1 // pred_region
      _
    $region5: #{transformer_decoder_forward.1} parent=1 // pred_fallthru
      _
    // Predicated region
    $region6: #{transformer_decoder_forward.1} parent=1 // pred_check
      _
    $region7: #{transformer_decoder_forward.1} parent=1 // pred_check_branch
      %68 = sbr.rel (0) target = $region9
    $region8: #{transformer_decoder_forward.1} parent=1 // pred_region
      _
    $region9: #{transformer_decoder_forward.1} parent=1 // pred_fallthru
      _
    // Predicated region
    $region10: #{transformer_decoder_forward.1} parent=1 // pred_check
      _
    $region11: #{transformer_decoder_forward.1} parent=1 // pred_check_branch
      %70 = sbr.rel (0) target = $region13
    $region12: #{transformer_decoder_forward.1} parent=1 // pred_region
      _
    $region13: #{transformer_decoder_forward.1} parent=1 // pred_fallthru
      _
    // Predicated region
    $region14: #{transformer_decoder_forward.1} parent=1 // pred_check
      _
    $region15: #{transformer_decoder_forward.1} parent=1 // pred_check_branch
      %72 = sbr.rel (0) target = $region17
    $region16: #{transformer_decoder_forward.1} parent=1 // pred_region
      _
    $region17: #{transformer_decoder_forward.1} parent=1 // pred_fallthru
      _
    // Predicated region
    $region18: #{transformer_decoder_forward.1} parent=1 // pred_check
      _
    $region19: #{transformer_decoder_forward.1} parent=1 // pred_check_branch
      %74 = sbr.rel (0) target = $region21
    $region20: #{transformer_decoder_forward.1} parent=1 // pred_region
      _
    $region21: #{transformer_decoder_forward.1} parent=1 // pred_fallthru
      _
    // Predicated region
    $region22: #{transformer_decoder_forward.1} parent=1 // pred_check
      _
    $region23: #{transformer_decoder_forward.1} parent=1 // pred_check_branch
      %76 = sbr.rel (0) target = $region25
    $region24: #{transformer_decoder_forward.1} parent=1 // pred_region
      _
    $region25: #{transformer_decoder_forward.1} parent=1 // pred_fallthru
      _
    // Predicated region
    $region26: #{transformer_decoder_forward.1} parent=1 // pred_check
      _
    $region27: #{transformer_decoder_forward.1} parent=1 // pred_check_branch
      %78 = sbr.rel (0) target = $region29
    $region28: #{transformer_decoder_forward.1} parent=1 // pred_region
      _
    $region29: #{transformer_decoder_forward.1} parent=1 // pred_fallthru
      _
    // Predicated region
    $region30: #{transformer_decoder_forward.1} parent=1 // pred_check
      _
    $region31: #{transformer_decoder_forward.1} parent=1 // pred_check_branch
      %80 = sbr.rel (0) target = $region33
    $region32: #{transformer_decoder_forward.1} parent=1 // pred_region
      _
    $region33: #{transformer_decoder_forward.1} parent=1 // pred_fallthru
      _
    // Predicated region
    $region34: #{transformer_decoder_forward.1} parent=1 // pred_check
      _
    $region35: #{transformer_decoder_forward.1} parent=1 // pred_check_branch
      %82 = sbr.rel (0) target = $region37
    $region36: #{transformer_decoder_forward.1} parent=1 // pred_region
      _
    $region37: #{transformer_decoder_forward.1} parent=1 // pred_fallthru
      _
    // Predicated region
    $region38: #{transformer_decoder_forward.1} parent=1 // pred_check
      _
    $region39: #{transformer_decoder_forward.1} parent=1 // pred_check_branch
      %84 = sbr.rel (0) target = $region41
    $region40: #{transformer_decoder_forward.1} parent=1 // pred_region
      _
    $region41: #{transformer_decoder_forward.1} parent=1 // pred_fallthru
      _
    // Predicated region
    $region42: #{transformer_decoder_forward.1} parent=1 // pred_check
      _
    $region43: #{transformer_decoder_forward.1} parent=1 // pred_check_branch
      %86 = sbr.rel (0) target = $region45
    $region44: #{transformer_decoder_forward.1} parent=1 // pred_region
      _
    $region45: #{transformer_decoder_forward.1} parent=1 // pred_fallthru
      _
    // Predicated region
    $region46: #{transformer_decoder_forward.1} parent=1 // pred_check
      _
    $region47: #{transformer_decoder_forward.1} parent=1 // pred_check_branch
      %88 = sbr.rel (0) target = $region49
    $region48: #{transformer_decoder_forward.1} parent=1 // pred_region
      _
    $region49: #{transformer_decoder_forward.1} parent=1 // pred_fallthru
      _
    // Predicated region
    $region50: #{transformer_decoder_forward.1} parent=1 // pred_check
      _
    $region51: #{transformer_decoder_forward.1} parent=1 // pred_check_branch
      %90 = sbr.rel (0) target = $region53
    $region52: #{transformer_decoder_forward.1} parent=1 // pred_region
      _
    $region53: #{transformer_decoder_forward.1} parent=1 // pred_fallthru
      _
    // Predicated region
    $region54: #{transformer_decoder_forward.1} parent=1 // pred_check
      _
    $region55: #{transformer_decoder_forward.1} parent=1 // pred_check_branch
      %92 = sbr.rel (0) target = $region57
    $region56: #{transformer_decoder_forward.1} parent=1 // pred_region
      _
    $region57: #{transformer_decoder_forward.1} parent=1 // pred_fallthru
      _
    // Predicated region
    $region58: #{transformer_decoder_forward.1} parent=1 // pred_check
      _
    $region59: #{transformer_decoder_forward.1} parent=1 // pred_check_branch
      %94 = sbr.rel (0) target = $region61
    $region60: #{transformer_decoder_forward.1} parent=1 // pred_region
      _
    $region61: #{transformer_decoder_forward.1} parent=1 // pred_fallthru
      _
    // Predicated region
    $region62: #{transformer_decoder_forward.1} parent=1 // pred_check
      _
    $region63: #{transformer_decoder_forward.1} parent=1 // pred_check_branch
      %96 = sbr.rel (0) target = $region65
    $region64: #{transformer_decoder_forward.1} parent=1 // pred_region
      _
    $region65: #{transformer_decoder_forward.1} parent=1 // pred_fallthru
      _
    // Predicated region
    $region66: #{transformer_decoder_forward.1} parent=1 // pred_check
      _
    $region67: #{transformer_decoder_forward.1} parent=1 // pred_check_branch
      %98 = sbr.rel (0) target = $region69
    $region68: #{transformer_decoder_forward.1} parent=1 // pred_region
      _
    $region69: #{transformer_decoder_forward.1} parent=1 // pred_fallthru
      _
    // Predicated region
    $region70: #{transformer_decoder_forward.1} parent=1 // pred_check
      _
    $region71: #{transformer_decoder_forward.1} parent=1 // pred_check_branch
      %100 = sbr.rel (0) target = $region73
    $region72: #{transformer_decoder_forward.1} parent=1 // pred_region
      _
    $region73: #{transformer_decoder_forward.1} parent=1 // pred_fallthru
      _
    // Predicated region
    $region74: #{transformer_decoder_forward.1} parent=1 // pred_check
      _
    $region75: #{transformer_decoder_forward.1} parent=1 // pred_check_branch
      %102 = sbr.rel (0) target = $region77
    $region76: #{transformer_decoder_forward.1} parent=1 // pred_region
      _
    $region77: #{transformer_decoder_forward.1} parent=1 // pred_fallthru
      _
    // Predicated region
    $region78: #{transformer_decoder_forward.1} parent=1 // pred_check
      _
    $region79: #{transformer_decoder_forward.1} parent=1 // pred_check_branch
      %104 = sbr.rel (0) target = $region81
    $region80: #{transformer_decoder_forward.1} parent=1 // pred_region
      _
    $region81: #{transformer_decoder_forward.1} parent=1 // pred_fallthru
      _
    // Predicated region
    $region82: #{transformer_decoder_forward.1} parent=1 // pred_check
      _
    $region83: #{transformer_decoder_forward.1} parent=1 // pred_check_branch
      %106 = sbr.rel (0) target = $region85
    $region84: #{transformer_decoder_forward.1} parent=1 // pred_region
      _
    $region85: #{transformer_decoder_forward.1} parent=1 // pred_fallthru
      _
    // Predicated region
    $region86: #{transformer_decoder_forward.1} parent=1 // pred_check
      _
    $region87: #{transformer_decoder_forward.1} parent=1 // pred_check_branch
      %108 = sbr.rel (0) target = $region89
    $region88: #{transformer_decoder_forward.1} parent=1 // pred_region
      _
    $region89: #{transformer_decoder_forward.1} parent=1 // pred_fallthru
      _
    // Predicated region
    $region90: #{transformer_decoder_forward.1} parent=1 // pred_check
      _
    $region91: #{transformer_decoder_forward.1} parent=1 // pred_check_branch
      %110 = sbr.rel (0) target = $region93
    $region92: #{transformer_decoder_forward.1} parent=1 // pred_region
      _
    $region93: #{transformer_decoder_forward.1} parent=1 // pred_fallthru
      _
    // Predicated region
    $region94: #{transformer_decoder_forward.1} parent=1 // pred_check
      _
    $region95: #{transformer_decoder_forward.1} parent=1 // pred_check_branch
      %112 = sbr.rel (0) target = $region97
    $region96: #{transformer_decoder_forward.1} parent=1 // pred_region
      _
    $region97: #{transformer_decoder_forward.1} parent=1 // pred_fallthru
      _
    // Predicated region
    $region98: #{transformer_decoder_forward.1} parent=1 // pred_check
      _
    $region99: #{transformer_decoder_forward.1} parent=1 // pred_check_branch
      %114 = sbr.rel (0) target = $region101
    $region100: #{transformer_decoder_forward.1} parent=1 // pred_region
      _
    $region101: #{transformer_decoder_forward.1} parent=1 // pred_fallthru
      _
    // Predicated region
    $region102: #{transformer_decoder_forward.1} parent=1 // pred_check
      _
    $region103: #{transformer_decoder_forward.1} parent=1 // pred_check_branch
      %116 = sbr.rel (0) target = $region105
    $region104: #{transformer_decoder_forward.1} parent=1 // pred_region
      _
    $region105: #{transformer_decoder_forward.1} parent=1 // pred_fallthru
      _
    // Predicated region
    $region106: #{transformer_decoder_forward.1} parent=1 // pred_check
      _
    $region107: #{transformer_decoder_forward.1} parent=1 // pred_check_branch
      %118 = sbr.rel (0) target = $region109
    $region108: #{transformer_decoder_forward.1} parent=1 // pred_region
      _
    $region109: #{transformer_decoder_forward.1} parent=1 // pred_fallthru
      _
    // Predicated region
    $region110: #{transformer_decoder_forward.1} parent=1 // pred_check
      _
    $region111: #{transformer_decoder_forward.1} parent=1 // pred_check_branch
      %120 = sbr.rel (0) target = $region113
    $region112: #{transformer_decoder_forward.1} parent=1 // pred_region
      _
    $region113: #{transformer_decoder_forward.1} parent=1 // pred_fallthru
      _
    // Predicated region
    $region114: #{transformer_decoder_forward.1} parent=1 // pred_check
      _
    $region115: #{transformer_decoder_forward.1} parent=1 // pred_check_branch
      %122 = sbr.rel (0) target = $region117
    $region116: #{transformer_decoder_forward.1} parent=1 // pred_region
      _
    $region117: #{transformer_decoder_forward.1} parent=1 // pred_fallthru
      _
    %v123 = vlaneseq
    %v124 = vand.u32 %v123, 127
    %vm125 = vcmp.ge.s32.totalorder %v124, 0
    %vm126 = vcmp.lt.s32.totalorder %v124, 8
    %vm127 = vmand %vm125, %vm126
    %v128 = vsel %vm127, 1, 0
    %v129 = vcvt.s32.f32 %v128
    %vm130 = vcmp.ge.s32.totalorder %v124, 8
    %vm131 = vcmp.lt.s32.totalorder %v124, 16
    %vm132 = vmand %vm130, %vm131
    %v133 = vsel %vm132, 1, 0
    %v134 = vcvt.s32.f32 %v133
    %vm135 = vcmp.ge.s32.totalorder %v124, 16
    %vm136 = vcmp.lt.s32.totalorder %v124, 24
    %vm137 = vmand %vm135, %vm136
    %v138 = vsel %vm137, 1, 0
    %v139 = vcvt.s32.f32 %v138
    %vm140 = vcmp.ge.s32.totalorder %v124, 24
    %vm141 = vcmp.lt.s32.totalorder %v124, 32
    %vm142 = vmand %vm140, %vm141
    %v143 = vsel %vm142, 1, 0
    %v144 = vcvt.s32.f32 %v143
    %v145 = vld [vmem:[%s11] sm:$0x3]
    %v146 = vld [vmem:[%s13] sm:$0x3]
    %v147 = vlaneseq
    %v148 = vshrl.u32 %v147, 7
    %vm149 = vcmp.ge.s32.totalorder %v148, %v124
    %v150 = vsel %vm149, 1, 0
    %v151 = vcvt.s32.f32 %v150
    %v154 = vunpack.c.l.s4 1966171168
    %v155 = vunpack.c.0.s8 %v154
    %v156 = vlaneseq
    %v157 = vshrl.u32 %v156, 7
    %v158 = vsub.s32 %v155, %v157
    %v159 = vrot.slane %v145, %v158
    %v160 = vcombine.high %v159, %v159
    %v162 = vunpack.c.l.s4 1966171168
    %v163 = vunpack.c.0.s8 %v162
    %v164 = vlaneseq
    %v165 = vshrl.u32 %v164, 7
    %v166 = vsub.s32 %v163, %v165
    %v167 = vrot.slane %v159, %v166
    %v169 = vunpack.c.l.s4 1966171168
    %v170 = vunpack.c.0.s8 %v169
    %v171 = vlaneseq
    %v172 = vshrl.u32 %v171, 7
    %v173 = vsub.s32 %v170, %v172
    %v174 = vrot.slane %v160, %v173
    %v175 = vlaneseq
    %v176 = vshrl.u32 %v175, 7
    %v177 = vsub.s32 0, %v176
    %v178 = vrot.slane %v167, %v177
    %v179 = vlaneseq
    %v180 = vshrl.u32 %v179, 7
    %v181 = vsub.s32 0, %v180
    %v182 = vrot.slane %v174, %v181
    %v185 = vmul.f32 %v151, %v178
    %v186 = vmul.f32 %v151, %v182
    %v187 = vsub.f32 1.0, %v185
    %v188 = vsub.f32 1.0, %v186
    %v189 = vmul.f32 %v187, -1e+09
    %v190 = vmul.f32 %v188, -1e+09
    %v193 = vunpack.c.l.s4 1966171168
    %v194 = vunpack.c.0.s8 %v193
    %v195 = vlaneseq
    %v196 = vshrl.u32 %v195, 7
    %v197 = vsub.s32 %v194, %v196
    %v198 = vrot.slane %v146, %v197
    %v199 = vcombine.high %v198, %v198
    %v201 = vunpack.c.l.s4 1966171168
    %v202 = vunpack.c.0.s8 %v201
    %v203 = vlaneseq
    %v204 = vshrl.u32 %v203, 7
    %v205 = vsub.s32 %v202, %v204
    %v206 = vrot.slane %v198, %v205
    %v208 = vunpack.c.l.s4 1966171168
    %v209 = vunpack.c.0.s8 %v208
    %v210 = vlaneseq
    %v211 = vshrl.u32 %v210, 7
    %v212 = vsub.s32 %v209, %v211
    %v213 = vrot.slane %v199, %v212
    %v214 = vlaneseq
    %v215 = vshrl.u32 %v214, 7
    %v216 = vsub.s32 0, %v215
    %v217 = vrot.slane %v206, %v216
    %v218 = vlaneseq
    %v219 = vshrl.u32 %v218, 7
    %v220 = vsub.s32 0, %v219
    %v221 = vrot.slane %v213, %v220
    %v224 = vsub.f32 1.0, %v217
    %v225 = vsub.f32 1.0, %v221
    %v226 = vmul.f32 %v224, -1e+09
    %v227 = vmul.f32 %v225, -1e+09
    %v228 = vld [vmem:[%s1] sm:$0xff]
    %v229 = vld [vmem:[%s1 + $0x8] sm:$0xff]
    %v230 = vld [vmem:[%s15] sm:$0x7]
    %v231 = vld [vmem:[%s17] sm:$0x1]
    %v233 = vlaneseq
    %v234 = vshrl.u32 %v233, 7
    %v235 = vsub.s32 0, %v234
    %v236 = vrot.slane %v231, %v235
    %vm238 = vcmask 23552
    %v240 = vsel %vm238, %v228, 0
    %v243 = vsel %vm238, %v229, 0
    %vm245 = vcmask 1042432
    %v247 = vsel %vm245, %v230, 0
    %249 = vmatprep.subr.mxu0 0.0
    %250 = vmatpush1.msra.mxu0 0.0
    %251 = vmatprep.subr.mxu0 0.0
    %252 = vmatpush1.msra.mxu0 0.0
    %253 = vmatprep.subr.mxu0 0.0
    %254 = vmatpush1.msra.mxu0 0.0
    %255 = vmatprep.subr.mxu0 0.0
    %256 = vmatpush1.msra.mxu0 0.0
    %257 = vmatprep.subr.mxu0 0.0
    %258 = vmatpush1.msra.mxu0 0.0
    %259 = vmatprep.subr.mxu0 0.0
    %260 = vmatpush1.msra.mxu0 0.0
    %261 = vmatprep.subr.mxu0 0.0
    %262 = vmatpush1.msra.mxu0 0.0
    %263 = vmatprep.subr.mxu0 0.0
    %264 = vmatpush1.msra.mxu0 0.0
    %265 = vmatprep.subr.mxu0 0.0
    %266 = vmatpush1.msra.mxu0 0.0
    %267 = vmatprep.subr.mxu0 0.0
    %268 = vmatpush1.msra.mxu0 0.0
    %269 = vmatprep.subr.mxu0 0.0
    %270 = vmatpush1.msra.mxu0 0.0
    %271 = vmatprep.subr.mxu0 0.0
    %272 = vmatpush1.msra.mxu0 0.0
    %273 = vmatprep.subr.mxu0 0.0
    %274 = vmatpush1.msra.mxu0 0.0
    %275 = vmatprep.subr.mxu0 0.0
    %276 = vmatpush1.msra.mxu0 0.0
    %277 = vmatprep.subr.mxu0 0.0
    %278 = vmatpush1.msra.mxu0 0.0
    %279 = vmatprep.subr.mxu0 0.0
    %280 = vmatpush1.msra.mxu0 %v247
    %281 = vmatprep.subr.mxu0 0.0
    %282 = vmatpush2.msra.mxu0 0.0
    %283 = vmatprep.subr.mxu0 0.0
    %284 = vmatpush2.msra.mxu0 0.0
    %285 = vmatprep.subr.mxu0 0.0
    %286 = vmatpush2.msra.mxu0 0.0
    %287 = vmatprep.subr.mxu0 0.0
    %288 = vmatpush2.msra.mxu0 0.0
    %289 = vmatprep.subr.mxu0 0.0
    %290 = vmatpush2.msra.mxu0 0.0
    %291 = vmatprep.subr.mxu0 0.0
    %292 = vmatpush2.msra.mxu0 0.0
    %293 = vmatprep.subr.mxu0 0.0
    %294 = vmatpush2.msra.mxu0 0.0
    %295 = vmatprep.subr.mxu0 0.0
    %296 = vmatpush2.msra.mxu0 0.0
    %297 = vmatprep.subr.mxu0 0.0
    %298 = vmatpush2.msra.mxu0 0.0
    %299 = vmatprep.subr.mxu0 0.0
    %300 = vmatpush2.msra.mxu0 0.0
    %301 = vmatprep.subr.mxu0 0.0
    %302 = vmatpush2.msra.mxu0 0.0
    %303 = vmatprep.subr.mxu0 0.0
    %304 = vmatpush2.msra.mxu0 0.0
    %305 = vmatprep.subr.mxu0 0.0
    %306 = vmatpush2.msra.mxu0 0.0
    %307 = vmatprep.subr.mxu0 0.0
    %308 = vmatpush2.msra.mxu0 0.0
    %309 = vmatprep.subr.mxu0 0.0
    %310 = vmatpush2.msra.mxu0 0.0
    %311 = vmatprep.subr.mxu0 0.0
    %312 = vmatpush2.msra.mxu0 0.0
    %313 = vmatprep.mubr.f32.mxu0 0.0
    %314 = vmatmul.mubr.f32.gmra.mxu0 %v240
    %v315 = vpop.f32.mrf.mxu0
    %v316 = vadd.f32 %v236, %v315
    %v317 = vpop.f32.mrf.mxu0
    %318 = vmatprep.mubr.f32.mxu0 0.0
    %319 = vmatmul.mubr.f32.gmra.mxu0 %v243
    %v320 = vpop.f32.mrf.mxu0
    %v321 = vadd.f32 %v236, %v320
    %v322 = vpop.f32.mrf.mxu0
    %323 = vdwg.mxu0
    %v324 = vadd.s32 %v124, 128
    %v325 = vadd.s32 %v124, 256
    %v326 = vld [vmem:[%s3] sm:$0xff]
    %v327 = vld [vmem:[%s3 + $0x8] sm:$0xff]
    %328 = vset.pattern.permute.xlu0 0
    %329 = vperm.xlu0 %328, %v326
    %v330 = vpop.permute.xlu0 %329
    %331 = vset.pattern.permute.xlu0 0
    %332 = vperm.xlu0 %331, %v327
    %v333 = vpop.permute.xlu0 %332
    %vm334 = vcmp.eq.s32.totalorder %v124, %v330
    %vm335 = vcmp.eq.s32.totalorder %v324, %v330
    %vm336 = vcmp.eq.s32.totalorder %v325, %v330
    %vm337 = vcmp.eq.s32.totalorder %v124, %v333
    %vm338 = vcmp.eq.s32.totalorder %v324, %v333
    %vm339 = vcmp.eq.s32.totalorder %v325, %v333
    %v340 = vsel %vm334, 1, 0
    %v341 = vsel %vm335, 1, 0
    %v342 = vsel %vm336, 1, 0
    %v343 = vsel %vm337, 1, 0
    %v344 = vsel %vm338, 1, 0
    %v345 = vsel %vm339, 1, 0
    %v346 = vcvt.s32.f32 %v340
    %v347 = vcvt.s32.f32 %v341
    %v348 = vcvt.s32.f32 %v342
    %v349 = vcvt.s32.f32 %v343
    %v350 = vcvt.s32.f32 %v344
    %v351 = vcvt.s32.f32 %v345
    %v352 = vld [vmem:[%s19] sm:$0xff]
    %v353 = vld [vmem:[%s19 + $0x8] sm:$0xff]
    %v354 = vld [vmem:[%s19 + $0x10] sm:$0xff]
    %v355 = vld [vmem:[%s19 + $0x18] sm:$0xff]
    %v356 = vld [vmem:[%s19 + $0x20] sm:$0xff]
    %v357 = vld [vmem:[%s19 + $0x28] sm:$0xff]
    %v358 = vld [vmem:[%s19 + $0x30] sm:$0xff]
    %v359 = vld [vmem:[%s19 + $0x38] sm:$0xff]
    %v360 = vld [vmem:[%s19 + $0x40] sm:$0xff]
    %v361 = vld [vmem:[%s19 + $0x48] sm:$0xff]
    %v362 = vld [vmem:[%s19 + $0x50] sm:$0xff]
    %v363 = vld [vmem:[%s19 + $0x58] sm:$0xff]
    %v364 = vld [vmem:[%s19 + $0x60] sm:$0xff]
    %v365 = vld [vmem:[%s19 + $0x68] sm:$0xff]
    %v366 = vld [vmem:[%s19 + $0x70] sm:$0xff]
    %v367 = vld [vmem:[%s19 + $0x78] sm:$0xff]
    %v368 = vld [vmem:[%s19 + $0x80] sm:$0xff]
    %v369 = vld [vmem:[%s19 + $0x88] sm:$0xff]
    %v370 = vld [vmem:[%s19 + $0x90] sm:$0xff]
    %v371 = vld [vmem:[%s19 + $0x98] sm:$0xff]
    %v372 = vld [vmem:[%s19 + $0xa0] sm:$0xff]
    %v373 = vld [vmem:[%s19 + $0xa8] sm:$0xff]
    %v374 = vld [vmem:[%s19 + $0xb0] sm:$0xff]
    %v375 = vld [vmem:[%s19 + $0xb8] sm:$0xff]
    %v376 = vld [vmem:[%s19 + $0xc0] sm:$0xff]
    %v377 = vld [vmem:[%s19 + $0xc8] sm:$0xff]
    %v378 = vld [vmem:[%s19 + $0xd0] sm:$0xff]
    %v379 = vld [vmem:[%s19 + $0xd8] sm:$0xff]
    %v380 = vld [vmem:[%s19 + $0xe0] sm:$0xff]
    %v381 = vld [vmem:[%s19 + $0xe8] sm:$0xff]
    %v382 = vld [vmem:[%s19 + $0xf0] sm:$0xff]
    %v383 = vld [vmem:[%s19 + $0xf8] sm:$0xff]
    %v384 = vld [vmem:[%s19 + $0x100] sm:$0x1]
    %vm385 = vcmask 7168
    %v387 = vsel %vm385, %v348, 0
    %v390 = vsel %vm385, %v351, 0
    %vm392 = vcmask 1040384
    %v394 = vsel %vm392, %v384, 0
    %396 = vmatprep.subr.mxu0 0.0
    %397 = vmatpush1.msra.mxu0 %v367
    %398 = vmatprep.subr.mxu0 0.0
    %399 = vmatpush1.msra.mxu0 %v366
    %400 = vmatprep.subr.mxu0 0.0
    %401 = vmatpush1.msra.mxu0 %v365
    %402 = vmatprep.subr.mxu0 0.0
    %403 = vmatpush1.msra.mxu0 %v364
    %404 = vmatprep.subr.mxu0 0.0
    %405 = vmatpush1.msra.mxu0 %v363
    %406 = vmatprep.subr.mxu0 0.0
    %407 = vmatpush1.msra.mxu0 %v362
    %408 = vmatprep.subr.mxu0 0.0
    %409 = vmatpush1.msra.mxu0 %v361
    %410 = vmatprep.subr.mxu0 0.0
    %411 = vmatpush1.msra.mxu0 %v360
    %412 = vmatprep.subr.mxu0 0.0
    %413 = vmatpush1.msra.mxu0 %v359
    %414 = vmatprep.subr.mxu0 0.0
    %415 = vmatpush1.msra.mxu0 %v358
    %416 = vmatprep.subr.mxu0 0.0
    %417 = vmatpush1.msra.mxu0 %v357
    %418 = vmatprep.subr.mxu0 0.0
    %419 = vmatpush1.msra.mxu0 %v356
    %420 = vmatprep.subr.mxu0 0.0
    %421 = vmatpush1.msra.mxu0 %v355
    %422 = vmatprep.subr.mxu0 0.0
    %423 = vmatpush1.msra.mxu0 %v354
    %424 = vmatprep.subr.mxu0 0.0
    %425 = vmatpush1.msra.mxu0 %v353
    %426 = vmatprep.subr.mxu0 0.0
    %427 = vmatpush1.msra.mxu0 %v352
    %428 = vmatprep.subr.mxu0 0.0
    %429 = vmatpush2.msra.mxu0 %v383
    %430 = vmatprep.subr.mxu0 0.0
    %431 = vmatpush2.msra.mxu0 %v382
    %432 = vmatprep.subr.mxu0 0.0
    %433 = vmatpush2.msra.mxu0 %v381
    %434 = vmatprep.subr.mxu0 0.0
    %435 = vmatpush2.msra.mxu0 %v380
    %436 = vmatprep.subr.mxu0 0.0
    %437 = vmatpush2.msra.mxu0 %v379
    %438 = vmatprep.subr.mxu0 0.0
    %439 = vmatpush2.msra.mxu0 %v378
    %440 = vmatprep.subr.mxu0 0.0
    %441 = vmatpush2.msra.mxu0 %v377
    %442 = vmatprep.subr.mxu0 0.0
    %443 = vmatpush2.msra.mxu0 %v376
    %444 = vmatprep.subr.mxu0 0.0
    %445 = vmatpush2.msra.mxu0 %v375
    %446 = vmatprep.subr.mxu0 0.0
    %447 = vmatpush2.msra.mxu0 %v374
    %448 = vmatprep.subr.mxu0 0.0
    %449 = vmatpush2.msra.mxu0 %v373
    %450 = vmatprep.subr.mxu0 0.0
    %451 = vmatpush2.msra.mxu0 %v372
    %452 = vmatprep.subr.mxu0 0.0
    %453 = vmatpush2.msra.mxu0 %v371
    %454 = vmatprep.subr.mxu0 0.0
    %455 = vmatpush2.msra.mxu0 %v370
    %456 = vmatprep.subr.mxu0 0.0
    %457 = vmatpush2.msra.mxu0 %v369
    %458 = vmatprep.subr.mxu0 0.0
    %459 = vmatpush2.msra.mxu0 %v368
    %460 = vmatprep.mubr.f32.mxu0 %v347
    %461 = vmatmul.mubr.f32.gmra.mxu0 %v346
    %v462 = vpop.f32.mrf.mxu0
    %v463 = vadd.f32 0.0, %v462
    %v464 = vpop.f32.mrf.mxu0
    %465 = vmatprep.mubr.f32.mxu0 %v350
    %466 = vmatmul.mubr.f32.gmra.mxu0 %v349
    %v467 = vpop.f32.mrf.mxu0
    %v468 = vadd.f32 0.0, %v467
    %v469 = vpop.f32.mrf.mxu0
    %470 = vdwg.mxu0
    %471 = vmatprep.subr.mxu0 0.0
    %472 = vmatpush1.msra.mxu0 0.0
    %473 = vmatprep.subr.mxu0 0.0
    %474 = vmatpush1.msra.mxu0 0.0
    %475 = vmatprep.subr.mxu0 0.0
    %476 = vmatpush1.msra.mxu0 0.0
    %477 = vmatprep.subr.mxu0 0.0
    %478 = vmatpush1.msra.mxu0 0.0
    %479 = vmatprep.subr.mxu0 0.0
    %480 = vmatpush1.msra.mxu0 0.0
    %481 = vmatprep.subr.mxu0 0.0
    %482 = vmatpush1.msra.mxu0 0.0
    %483 = vmatprep.subr.mxu0 0.0
    %484 = vmatpush1.msra.mxu0 0.0
    %485 = vmatprep.subr.mxu0 0.0
    %486 = vmatpush1.msra.mxu0 0.0
    %487 = vmatprep.subr.mxu0 0.0
    %488 = vmatpush1.msra.mxu0 0.0
    %489 = vmatprep.subr.mxu0 0.0
    %490 = vmatpush1.msra.mxu0 0.0
    %491 = vmatprep.subr.mxu0 0.0
    %492 = vmatpush1.msra.mxu0 0.0
    %493 = vmatprep.subr.mxu0 0.0
    %494 = vmatpush1.msra.mxu0 0.0
    %495 = vmatprep.subr.mxu0 0.0
    %496 = vmatpush1.msra.mxu0 0.0
    %497 = vmatprep.subr.mxu0 0.0
    %498 = vmatpush1.msra.mxu0 0.0
    %499 = vmatprep.subr.mxu0 0.0
    %500 = vmatpush1.msra.mxu0 0.0
    %501 = vmatprep.subr.mxu0 0.0
    %502 = vmatpush1.msra.mxu0 %v394
    %503 = vmatprep.subr.mxu0 0.0
    %504 = vmatpush2.msra.mxu0 0.0
    %505 = vmatprep.subr.mxu0 0.0
    %506 = vmatpush2.msra.mxu0 0.0
    %507 = vmatprep.subr.mxu0 0.0
    %508 = vmatpush2.msra.mxu0 0.0
    %509 = vmatprep.subr.mxu0 0.0
    %510 = vmatpush2.msra.mxu0 0.0
    %511 = vmatprep.subr.mxu0 0.0
    %512 = vmatpush2.msra.mxu0 0.0
    %513 = vmatprep.subr.mxu0 0.0
    %514 = vmatpush2.msra.mxu0 0.0
    %515 = vmatprep.subr.mxu0 0.0
    %516 = vmatpush2.msra.mxu0 0.0
    %517 = vmatprep.subr.mxu0 0.0
    %518 = vmatpush2.msra.mxu0 0.0
    %519 = vmatprep.subr.mxu0 0.0
    %520 = vmatpush2.msra.mxu0 0.0
    %521 = vmatprep.subr.mxu0 0.0
    %522 = vmatpush2.msra.mxu0 0.0
    %523 = vmatprep.subr.mxu0 0.0
    %524 = vmatpush2.msra.mxu0 0.0
    %525 = vmatprep.subr.mxu0 0.0
    %526 = vmatpush2.msra.mxu0 0.0
    %527 = vmatprep.subr.mxu0 0.0
    %528 = vmatpush2.msra.mxu0 0.0
    %529 = vmatprep.subr.mxu0 0.0
    %530 = vmatpush2.msra.mxu0 0.0
    %531 = vmatprep.subr.mxu0 0.0
    %532 = vmatpush2.msra.mxu0 0.0
    %533 = vmatprep.subr.mxu0 0.0
    %534 = vmatpush2.msra.mxu0 0.0
    %535 = vmatprep.mubr.f32.mxu0 0.0
    %536 = vmatmul.mubr.f32.gmra.mxu0 %v387
    %v537 = vpop.f32.mrf.mxu0
    %v538 = vadd.f32 %v463, %v537
    %v539 = vpop.f32.mrf.mxu0
    %540 = vmatprep.mubr.f32.mxu0 0.0
    %541 = vmatmul.mubr.f32.gmra.mxu0 %v390
    %v542 = vpop.f32.mrf.mxu0
    %v543 = vadd.f32 %v468, %v542
    %v544 = vpop.f32.mrf.mxu0
    %545 = vdwg.mxu0
    %v546 = vadd.f32 %v316, %v538
    %v547 = vadd.f32 %v321, %v543
    %v548 = vld [vmem:[%s5] sm:$0xff]
    %v549 = vld [vmem:[%s5 + $0x8] sm:$0xff]
    %550 = vset.pattern.permute.xlu0 0
    %551 = vperm.xlu0 %550, %v548
    %v552 = vpop.permute.xlu0 %551
    %553 = vset.pattern.permute.xlu0 0
    %554 = vperm.xlu0 %553, %v549
    %v555 = vpop.permute.xlu0 %554
    %vm556 = vcmp.eq.s32.totalorder %v124, %v552
    %vm557 = vcmp.eq.s32.totalorder %v124, %v555
    %v558 = vsel %vm556, 1, 0
    %v559 = vsel %vm557, 1, 0
    %v560 = vcvt.s32.f32 %v558
    %v561 = vcvt.s32.f32 %v559
    %v562 = vld [vmem:[%s21] sm:$0xff]
    %v563 = vld [vmem:[%s21 + $0x8] sm:$0xff]
    %v564 = vld [vmem:[%s21 + $0x10] sm:$0xff]
    %v565 = vld [vmem:[%s21 + $0x18] sm:$0xff]
    %v566 = vld [vmem:[%s21 + $0x20] sm:$0x1f]
    %vm567 = vcmask 302080
    %v569 = vsel %vm567, %v560, 0
    %v572 = vsel %vm567, %v561, 0
    %vm574 = vcmask 1044480
    %v576 = vsel %vm574, %v566, 0
    %578 = vmatprep.subr.mxu0 0.0
    %579 = vmatpush1.msra.mxu0 0.0
    %580 = vmatprep.subr.mxu0 0.0
    %581 = vmatpush1.msra.mxu0 0.0
    %582 = vmatprep.subr.mxu0 0.0
    %583 = vmatpush1.msra.mxu0 0.0
    %584 = vmatprep.subr.mxu0 0.0
    %585 = vmatpush1.msra.mxu0 0.0
    %586 = vmatprep.subr.mxu0 0.0
    %587 = vmatpush1.msra.mxu0 0.0
    %588 = vmatprep.subr.mxu0 0.0
    %589 = vmatpush1.msra.mxu0 0.0
    %590 = vmatprep.subr.mxu0 0.0
    %591 = vmatpush1.msra.mxu0 0.0
    %592 = vmatprep.subr.mxu0 0.0
    %593 = vmatpush1.msra.mxu0 0.0
    %594 = vmatprep.subr.mxu0 0.0
    %595 = vmatpush1.msra.mxu0 0.0
    %596 = vmatprep.subr.mxu0 0.0
    %597 = vmatpush1.msra.mxu0 0.0
    %598 = vmatprep.subr.mxu0 0.0
    %599 = vmatpush1.msra.mxu0 0.0
    %600 = vmatprep.subr.mxu0 0.0
    %601 = vmatpush1.msra.mxu0 %v576
    %602 = vmatprep.subr.mxu0 0.0
    %603 = vmatpush1.msra.mxu0 %v565
    %604 = vmatprep.subr.mxu0 0.0
    %605 = vmatpush1.msra.mxu0 %v564
    %606 = vmatprep.subr.mxu0 0.0
    %607 = vmatpush1.msra.mxu0 %v563
    %608 = vmatprep.subr.mxu0 0.0
    %609 = vmatpush1.msra.mxu0 %v562
    %610 = vmatprep.subr.mxu0 0.0
    %611 = vmatpush2.msra.mxu0 0.0
    %612 = vmatprep.subr.mxu0 0.0
    %613 = vmatpush2.msra.mxu0 0.0
    %614 = vmatprep.subr.mxu0 0.0
    %615 = vmatpush2.msra.mxu0 0.0
    %616 = vmatprep.subr.mxu0 0.0
    %617 = vmatpush2.msra.mxu0 0.0
    %618 = vmatprep.subr.mxu0 0.0
    %619 = vmatpush2.msra.mxu0 0.0
    %620 = vmatprep.subr.mxu0 0.0
    %621 = vmatpush2.msra.mxu0 0.0
    %622 = vmatprep.subr.mxu0 0.0
    %623 = vmatpush2.msra.mxu0 0.0
    %624 = vmatprep.subr.mxu0 0.0
    %625 = vmatpush2.msra.mxu0 0.0
    %626 = vmatprep.subr.mxu0 0.0
    %627 = vmatpush2.msra.mxu0 0.0
    %628 = vmatprep.subr.mxu0 0.0
    %629 = vmatpush2.msra.mxu0 0.0
    %630 = vmatprep.subr.mxu0 0.0
    %631 = vmatpush2.msra.mxu0 0.0
    %632 = vmatprep.subr.mxu0 0.0
    %633 = vmatpush2.msra.mxu0 0.0
    %634 = vmatprep.subr.mxu0 0.0
    %635 = vmatpush2.msra.mxu0 0.0
    %636 = vmatprep.subr.mxu0 0.0
    %637 = vmatpush2.msra.mxu0 0.0
    %638 = vmatprep.subr.mxu0 0.0
    %639 = vmatpush2.msra.mxu0 0.0
    %640 = vmatprep.subr.mxu0 0.0
    %641 = vmatpush2.msra.mxu0 0.0
    %642 = vmatprep.mubr.f32.mxu0 0.0
    %643 = vmatmul.mubr.f32.gmra.mxu0 %v569
    %v644 = vpop.f32.mrf.mxu0
    %v645 = vadd.f32 0.0, %v644
    %v646 = vpop.f32.mrf.mxu0
    %647 = vmatprep.mubr.f32.mxu0 0.0
    %648 = vmatmul.mubr.f32.gmra.mxu0 %v572
    %v649 = vpop.f32.mrf.mxu0
    %v650 = vadd.f32 0.0, %v649
    %v651 = vpop.f32.mrf.mxu0
    %652 = vdwg.mxu0
    %v653 = vadd.f32 %v546, %v645
    %v654 = vadd.f32 %v547, %v650
    %v655 = vld [vmem:[%s7] sm:$0xff]
    %v656 = vadd.f32 %v653, %v655
    %v657 = vadd.f32 %v654, %v655
    %v658 = vld [vmem:[%s9] sm:$0xff]
    %v659 = vld [vmem:[%s9 + $0x8] sm:$0xff]
    %v660 = vld [vmem:[%s23] sm:$0xff]
    %v661 = vld [vmem:[%s23 + $0x8] sm:$0xff]
    %v662 = vld [vmem:[%s23 + $0x10] sm:$0xff]
    %v663 = vld [vmem:[%s23 + $0x18] sm:$0xff]
    %v664 = vld [vmem:[%s25] sm:$0x1]
    %v665 = vld [vmem:[%s27] sm:$0xff]
    %v666 = vld [vmem:[%s27 + $0x8] sm:$0xff]
    %v667 = vld [vmem:[%s27 + $0x10] sm:$0xff]
    %v668 = vld [vmem:[%s27 + $0x18] sm:$0xff]
    %v669 = vld [vmem:[%s29] sm:$0x1]
    %v670 = vld [vmem:[%s31] sm:$0x1]
    %v671 = vld [vmem:[%s33] sm:$0x1]
    %v673 = vlaneseq
    %v674 = vshrl.u32 %v673, 7
    %v675 = vsub.s32 0, %v674
    %v676 = vrot.slane %v664, %v675
    %vm678 = vcmask 261120
    %v680 = vsel %vm678, %v656, 0
    %v683 = vsel %vm678, %v657, 0
    %685 = vmatprep.subr.mxu0 0.0
    %686 = vmatpush1.msra.mxu0 0.0
    %687 = vmatprep.subr.mxu0 0.0
    %688 = vmatpush1.msra.mxu0 0.0
    %689 = vmatprep.subr.mxu0 0.0
    %690 = vmatpush1.msra.mxu0 0.0
    %691 = vmatprep.subr.mxu0 0.0
    %692 = vmatpush1.msra.mxu0 0.0
    %693 = vmatprep.subr.mxu0 0.0
    %694 = vmatpush1.msra.mxu0 0.0
    %695 = vmatprep.subr.mxu0 0.0
    %696 = vmatpush1.msra.mxu0 0.0
    %697 = vmatprep.subr.mxu0 0.0
    %698 = vmatpush1.msra.mxu0 0.0
    %699 = vmatprep.subr.mxu0 0.0
    %700 = vmatpush1.msra.mxu0 0.0
    %701 = vmatprep.subr.mxu0 0.0
    %702 = vmatpush1.msra.mxu0 0.0
    %703 = vmatprep.subr.mxu0 0.0
    %704 = vmatpush1.msra.mxu0 0.0
    %705 = vmatprep.subr.mxu0 0.0
    %706 = vmatpush1.msra.mxu0 0.0
    %707 = vmatprep.subr.mxu0 0.0
    %708 = vmatpush1.msra.mxu0 0.0
    %709 = vmatprep.subr.mxu0 0.0
    %710 = vmatpush1.msra.mxu0 %v663
    %711 = vmatprep.subr.mxu0 0.0
    %712 = vmatpush1.msra.mxu0 %v662
    %713 = vmatprep.subr.mxu0 0.0
    %714 = vmatpush1.msra.mxu0 %v661
    %715 = vmatprep.subr.mxu0 0.0
    %716 = vmatpush1.msra.mxu0 %v660
    %717 = vmatprep.subr.mxu0 0.0
    %718 = vmatpush2.msra.mxu0 0.0
    %719 = vmatprep.subr.mxu0 0.0
    %720 = vmatpush2.msra.mxu0 0.0
    %721 = vmatprep.subr.mxu0 0.0
    %722 = vmatpush2.msra.mxu0 0.0
    %723 = vmatprep.subr.mxu0 0.0
    %724 = vmatpush2.msra.mxu0 0.0
    %725 = vmatprep.subr.mxu0 0.0
    %726 = vmatpush2.msra.mxu0 0.0
    %727 = vmatprep.subr.mxu0 0.0
    %728 = vmatpush2.msra.mxu0 0.0
    %729 = vmatprep.subr.mxu0 0.0
    %730 = vmatpush2.msra.mxu0 0.0
    %731 = vmatprep.subr.mxu0 0.0
    %732 = vmatpush2.msra.mxu0 0.0
    %733 = vmatprep.subr.mxu0 0.0
    %734 = vmatpush2.msra.mxu0 0.0
    %735 = vmatprep.subr.mxu0 0.0
    %736 = vmatpush2.msra.mxu0 0.0
    %737 = vmatprep.subr.mxu0 0.0
    %738 = vmatpush2.msra.mxu0 0.0
    %739 = vmatprep.subr.mxu0 0.0
    %740 = vmatpush2.msra.mxu0 0.0
    %741 = vmatprep.subr.mxu0 0.0
    %742 = vmatpush2.msra.mxu0 0.0
    %743 = vmatprep.subr.mxu0 0.0
    %744 = vmatpush2.msra.mxu0 0.0
    %745 = vmatprep.subr.mxu0 0.0
    %746 = vmatpush2.msra.mxu0 0.0
    %747 = vmatprep.subr.mxu0 0.0
    %748 = vmatpush2.msra.mxu0 0.0
    %749 = vmatprep.mubr.f32.mxu0 0.0
    %750 = vmatmul.mubr.f32.gmra.mxu0 %v680
    %v751 = vpop.f32.mrf.mxu0
    %v752 = vadd.f32 %v676, %v751
    %v753 = vpop.f32.mrf.mxu0
    %754 = vmatprep.mubr.f32.mxu0 0.0
    %755 = vmatmul.mubr.f32.gmra.mxu0 %v683
    %v756 = vpop.f32.mrf.mxu0
    %v757 = vadd.f32 %v676, %v756
    %v758 = vpop.f32.mrf.mxu0
    %759 = vdwg.mxu0
    %761 = vrot.lane.b32.xlu0 %v129, 32
    %v762 = vpop.permute.xlu0 %761
    %v764 = vmul.f32 %v752, %v762
    %v765 = vmul.f32 %v757, %v762
    %766 = vrot.lane.b32.xlu0 %v129, 64
    %v767 = vpop.permute.xlu0 %766
    %v769 = vmul.f32 %v752, %v767
    %v770 = vmul.f32 %v757, %v767
    %772 = vrot.lane.b32.xlu0 %v764, 96
    %v773 = vpop.permute.xlu0 %772
    %v775 = vsel %vm678, %v752, 0
    %v777 = vsel %vm678, %v773, 0
    %779 = vmatprep.subr.mxu0 0.0
    %780 = vmatpush1.xpose.msra.mxu0 0.0
    %781 = vmatprep.subr.mxu0 0.0
    %782 = vmatpush1.xpose.msra.mxu0 0.0
    %783 = vmatprep.subr.mxu0 0.0
    %784 = vmatpush1.xpose.msra.mxu0 0.0
    %785 = vmatprep.subr.mxu0 0.0
    %786 = vmatpush1.xpose.msra.mxu0 0.0
    %787 = vmatprep.subr.mxu0 0.0
    %788 = vmatpush1.xpose.msra.mxu0 0.0
    %789 = vmatprep.subr.mxu0 0.0
    %790 = vmatpush1.xpose.msra.mxu0 0.0
    %791 = vmatprep.subr.mxu0 0.0
    %792 = vmatpush1.xpose.msra.mxu0 0.0
    %793 = vmatprep.subr.mxu0 0.0
    %794 = vmatpush1.xpose.msra.mxu0 0.0
    %795 = vmatprep.subr.mxu0 0.0
    %796 = vmatpush1.xpose.msra.mxu0 0.0
    %797 = vmatprep.subr.mxu0 0.0
    %798 = vmatpush1.xpose.msra.mxu0 0.0
    %799 = vmatprep.subr.mxu0 0.0
    %800 = vmatpush1.xpose.msra.mxu0 0.0
    %801 = vmatprep.subr.mxu0 0.0
    %802 = vmatpush1.xpose.msra.mxu0 0.0
    %803 = vmatprep.subr.mxu0 0.0
    %804 = vmatpush1.xpose.msra.mxu0 0.0
    %805 = vmatprep.subr.mxu0 0.0
    %806 = vmatpush1.xpose.msra.mxu0 0.0
    %807 = vmatprep.subr.mxu0 0.0
    %808 = vmatpush1.xpose.msra.mxu0 0.0
    %809 = vmatprep.subr.mxu0 0.0
    %810 = vmatpush1.xpose.msra.mxu0 %v777
    %811 = vmatprep.subr.mxu0 0.0
    %812 = vmatpush2.xpose.msra.mxu0 0.0
    %813 = vmatprep.subr.mxu0 0.0
    %814 = vmatpush2.xpose.msra.mxu0 0.0
    %815 = vmatprep.subr.mxu0 0.0
    %816 = vmatpush2.xpose.msra.mxu0 0.0
    %817 = vmatprep.subr.mxu0 0.0
    %818 = vmatpush2.xpose.msra.mxu0 0.0
    %819 = vmatprep.subr.mxu0 0.0
    %820 = vmatpush2.xpose.msra.mxu0 0.0
    %821 = vmatprep.subr.mxu0 0.0
    %822 = vmatpush2.xpose.msra.mxu0 0.0
    %823 = vmatprep.subr.mxu0 0.0
    %824 = vmatpush2.xpose.msra.mxu0 0.0
    %825 = vmatprep.subr.mxu0 0.0
    %826 = vmatpush2.xpose.msra.mxu0 0.0
    %827 = vmatprep.subr.mxu0 0.0
    %828 = vmatpush2.xpose.msra.mxu0 0.0
    %829 = vmatprep.subr.mxu0 0.0
    %830 = vmatpush2.xpose.msra.mxu0 0.0
    %831 = vmatprep.subr.mxu0 0.0
    %832 = vmatpush2.xpose.msra.mxu0 0.0
    %833 = vmatprep.subr.mxu0 0.0
    %834 = vmatpush2.xpose.msra.mxu0 0.0
    %835 = vmatprep.subr.mxu0 0.0
    %836 = vmatpush2.xpose.msra.mxu0 0.0
    %837 = vmatprep.subr.mxu0 0.0
    %838 = vmatpush2.xpose.msra.mxu0 0.0
    %839 = vmatprep.subr.mxu0 0.0
    %840 = vmatpush2.xpose.msra.mxu0 0.0
    %841 = vmatprep.subr.mxu0 0.0
    %842 = vmatpush2.xpose.msra.mxu0 0.0
    %843 = vmatprep.mubr.f32.mxu0 0.0
    %844 = vmatmul.mubr.f32.gmra.mxu0 %v775
    %v845 = vpop.f32.mrf.mxu0
    %v846 = vadd.f32 0.0, %v845
    %v847 = vpop.f32.mrf.mxu0
    %848 = vdwg.mxu0
    %850 = vrot.lane.b32.xlu0 %v765, 96
    %v851 = vpop.permute.xlu0 %850
    %v853 = vsel %vm678, %v757, 0
    %v855 = vsel %vm678, %v851, 0
    %857 = vmatprep.subr.mxu0 0.0
    %858 = vmatpush1.xpose.msra.mxu0 0.0
    %859 = vmatprep.subr.mxu0 0.0
    %860 = vmatpush1.xpose.msra.mxu0 0.0
    %861 = vmatprep.subr.mxu0 0.0
    %862 = vmatpush1.xpose.msra.mxu0 0.0
    %863 = vmatprep.subr.mxu0 0.0
    %864 = vmatpush1.xpose.msra.mxu0 0.0
    %865 = vmatprep.subr.mxu0 0.0
    %866 = vmatpush1.xpose.msra.mxu0 0.0
    %867 = vmatprep.subr.mxu0 0.0
    %868 = vmatpush1.xpose.msra.mxu0 0.0
    %869 = vmatprep.subr.mxu0 0.0
    %870 = vmatpush1.xpose.msra.mxu0 0.0
    %871 = vmatprep.subr.mxu0 0.0
    %872 = vmatpush1.xpose.msra.mxu0 0.0
    %873 = vmatprep.subr.mxu0 0.0
    %874 = vmatpush1.xpose.msra.mxu0 0.0
    %875 = vmatprep.subr.mxu0 0.0
    %876 = vmatpush1.xpose.msra.mxu0 0.0
    %877 = vmatprep.subr.mxu0 0.0
    %878 = vmatpush1.xpose.msra.mxu0 0.0
    %879 = vmatprep.subr.mxu0 0.0
    %880 = vmatpush1.xpose.msra.mxu0 0.0
    %881 = vmatprep.subr.mxu0 0.0
    %882 = vmatpush1.xpose.msra.mxu0 0.0
    %883 = vmatprep.subr.mxu0 0.0
    %884 = vmatpush1.xpose.msra.mxu0 0.0
    %885 = vmatprep.subr.mxu0 0.0
    %886 = vmatpush1.xpose.msra.mxu0 0.0
    %887 = vmatprep.subr.mxu0 0.0
    %888 = vmatpush1.xpose.msra.mxu0 %v855
    %889 = vmatprep.subr.mxu0 0.0
    %890 = vmatpush2.xpose.msra.mxu0 0.0
    %891 = vmatprep.subr.mxu0 0.0
    %892 = vmatpush2.xpose.msra.mxu0 0.0
    %893 = vmatprep.subr.mxu0 0.0
    %894 = vmatpush2.xpose.msra.mxu0 0.0
    %895 = vmatprep.subr.mxu0 0.0
    %896 = vmatpush2.xpose.msra.mxu0 0.0
    %897 = vmatprep.subr.mxu0 0.0
    %898 = vmatpush2.xpose.msra.mxu0 0.0
    %899 = vmatprep.subr.mxu0 0.0
    %900 = vmatpush2.xpose.msra.mxu0 0.0
    %901 = vmatprep.subr.mxu0 0.0
    %902 = vmatpush2.xpose.msra.mxu0 0.0
    %903 = vmatprep.subr.mxu0 0.0
    %904 = vmatpush2.xpose.msra.mxu0 0.0
    %905 = vmatprep.subr.mxu0 0.0
    %906 = vmatpush2.xpose.msra.mxu0 0.0
    %907 = vmatprep.subr.mxu0 0.0
    %908 = vmatpush2.xpose.msra.mxu0 0.0
    %909 = vmatprep.subr.mxu0 0.0
    %910 = vmatpush2.xpose.msra.mxu0 0.0
    %911 = vmatprep.subr.mxu0 0.0
    %912 = vmatpush2.xpose.msra.mxu0 0.0
    %913 = vmatprep.subr.mxu0 0.0
    %914 = vmatpush2.xpose.msra.mxu0 0.0
    %915 = vmatprep.subr.mxu0 0.0
    %916 = vmatpush2.xpose.msra.mxu0 0.0
    %917 = vmatprep.subr.mxu0 0.0
    %918 = vmatpush2.xpose.msra.mxu0 0.0
    %919 = vmatprep.subr.mxu0 0.0
    %920 = vmatpush2.xpose.msra.mxu0 0.0
    %921 = vmatprep.mubr.f32.mxu0 0.0
    %922 = vmatmul.mubr.f32.gmra.mxu0 %v853
    %v923 = vpop.f32.mrf.mxu0
    %v924 = vadd.f32 0.0, %v923
    %v925 = vpop.f32.mrf.mxu0
    %926 = vdwg.mxu0
    %v927 = vmul.f32 %v846, 0.35355338
    %v928 = vmul.f32 %v924, 0.35355338
    %v929 = vadd.f32 %v927, %v189
    %v930 = vadd.f32 %v928, %v190
    %vm931 = vcmask 64512
    %v932 = vsel %vm931, %v929, -inf
    %933 = vmax.xlane.f32.xlu0 %v932
    %v934 = vpop.xlane.xlu0 %933
    %v935 = vsel %vm931, %v930, -inf
    %936 = vmax.xlane.f32.xlu0 %v935
    %v937 = vpop.xlane.xlu0 %936
    %v938 = vsub.f32 %v929, %v934
    %v939 = vsub.f32 %v930, %v937
    %v940 = vmul.f32 %v938, 1.442695
    %v941 = vpow.pop %v940
    %v942 = vmul.f32 %v939, 1.442695
    %v943 = vpow.pop %v942
    %v944 = vsel %vm931, %v941, 0.0
    %945 = vadd.xlane.f32.xlu0 %v944
    %v946 = vpop.xlane.xlu0 %945
    %v947 = vsel %vm931, %v943, 0.0
    %948 = vadd.xlane.f32.xlu0 %v947
    %v949 = vpop.xlane.xlu0 %948
    %v950 = vrcp.pop %v946
    %v951 = vrcp.pop %v949
    %v952 = vmul.f32 %v941, %v950
    %v953 = vmul.f32 %v943, %v951
    %955 = vrot.lane.b32.xlu0 %v134, 32
    %v956 = vpop.permute.xlu0 %955
    %v958 = vmul.f32 %v752, %v956
    %v959 = vmul.f32 %v757, %v956
    %960 = vrot.lane.b32.xlu0 %v134, 64
    %v961 = vpop.permute.xlu0 %960
    %v963 = vmul.f32 %v752, %v961
    %v964 = vmul.f32 %v757, %v961
    %966 = vrot.lane.b32.xlu0 %v958, 96
    %v967 = vpop.permute.xlu0 %966
    %v968 = vsel %vm678, %v967, 0
    %970 = vmatprep.subr.mxu0 0.0
    %971 = vmatpush1.xpose.msra.mxu0 0.0
    %972 = vmatprep.subr.mxu0 0.0
    %973 = vmatpush1.xpose.msra.mxu0 0.0
    %974 = vmatprep.subr.mxu0 0.0
    %975 = vmatpush1.xpose.msra.mxu0 0.0
    %976 = vmatprep.subr.mxu0 0.0
    %977 = vmatpush1.xpose.msra.mxu0 0.0
    %978 = vmatprep.subr.mxu0 0.0
    %979 = vmatpush1.xpose.msra.mxu0 0.0
    %980 = vmatprep.subr.mxu0 0.0
    %981 = vmatpush1.xpose.msra.mxu0 0.0
    %982 = vmatprep.subr.mxu0 0.0
    %983 = vmatpush1.xpose.msra.mxu0 0.0
    %984 = vmatprep.subr.mxu0 0.0
    %985 = vmatpush1.xpose.msra.mxu0 0.0
    %986 = vmatprep.subr.mxu0 0.0
    %987 = vmatpush1.xpose.msra.mxu0 0.0
    %988 = vmatprep.subr.mxu0 0.0
    %989 = vmatpush1.xpose.msra.mxu0 0.0
    %990 = vmatprep.subr.mxu0 0.0
    %991 = vmatpush1.xpose.msra.mxu0 0.0
    %992 = vmatprep.subr.mxu0 0.0
    %993 = vmatpush1.xpose.msra.mxu0 0.0
    %994 = vmatprep.subr.mxu0 0.0
    %995 = vmatpush1.xpose.msra.mxu0 0.0
    %996 = vmatprep.subr.mxu0 0.0
    %997 = vmatpush1.xpose.msra.mxu0 0.0
    %998 = vmatprep.subr.mxu0 0.0
    %999 = vmatpush1.xpose.msra.mxu0 0.0
    %1000 = vmatprep.subr.mxu0 0.0
    %1001 = vmatpush1.xpose.msra.mxu0 %v968
    %1002 = vmatprep.subr.mxu0 0.0
    %1003 = vmatpush2.xpose.msra.mxu0 0.0
    %1004 = vmatprep.subr.mxu0 0.0
    %1005 = vmatpush2.xpose.msra.mxu0 0.0
    %1006 = vmatprep.subr.mxu0 0.0
    %1007 = vmatpush2.xpose.msra.mxu0 0.0
    %1008 = vmatprep.subr.mxu0 0.0
    %1009 = vmatpush2.xpose.msra.mxu0 0.0
    %1010 = vmatprep.subr.mxu0 0.0
    %1011 = vmatpush2.xpose.msra.mxu0 0.0
    %1012 = vmatprep.subr.mxu0 0.0
    %1013 = vmatpush2.xpose.msra.mxu0 0.0
    %1014 = vmatprep.subr.mxu0 0.0
    %1015 = vmatpush2.xpose.msra.mxu0 0.0
    %1016 = vmatprep.subr.mxu0 0.0
    %1017 = vmatpush2.xpose.msra.mxu0 0.0
    %1018 = vmatprep.subr.mxu0 0.0
    %1019 = vmatpush2.xpose.msra.mxu0 0.0
    %1020 = vmatprep.subr.mxu0 0.0
    %1021 = vmatpush2.xpose.msra.mxu0 0.0
    %1022 = vmatprep.subr.mxu0 0.0
    %1023 = vmatpush2.xpose.msra.mxu0 0.0
    %1024 = vmatprep.subr.mxu0 0.0
    %1025 = vmatpush2.xpose.msra.mxu0 0.0
    %1026 = vmatprep.subr.mxu0 0.0
    %1027 = vmatpush2.xpose.msra.mxu0 0.0
    %1028 = vmatprep.subr.mxu0 0.0
    %1029 = vmatpush2.xpose.msra.mxu0 0.0
    %1030 = vmatprep.subr.mxu0 0.0
    %1031 = vmatpush2.xpose.msra.mxu0 0.0
    %1032 = vmatprep.subr.mxu0 0.0
    %1033 = vmatpush2.xpose.msra.mxu0 0.0
    %1034 = vmatprep.mubr.f32.mxu0 0.0
    %1035 = vmatmul.mubr.f32.gmra.mxu0 %v775
    %v1036 = vpop.f32.mrf.mxu0
    %v1037 = vadd.f32 0.0, %v1036
    %v1038 = vpop.f32.mrf.mxu0
    %1039 = vdwg.mxu0
    %1041 = vrot.lane.b32.xlu0 %v959, 96
    %v1042 = vpop.permute.xlu0 %1041
    %v1043 = vsel %vm678, %v1042, 0
    %1045 = vmatprep.subr.mxu0 0.0
    %1046 = vmatpush1.xpose.msra.mxu0 0.0
    %1047 = vmatprep.subr.mxu0 0.0
    %1048 = vmatpush1.xpose.msra.mxu0 0.0
    %1049 = vmatprep.subr.mxu0 0.0
    %1050 = vmatpush1.xpose.msra.mxu0 0.0
    %1051 = vmatprep.subr.mxu0 0.0
    %1052 = vmatpush1.xpose.msra.mxu0 0.0
    %1053 = vmatprep.subr.mxu0 0.0
    %1054 = vmatpush1.xpose.msra.mxu0 0.0
    %1055 = vmatprep.subr.mxu0 0.0
    %1056 = vmatpush1.xpose.msra.mxu0 0.0
    %1057 = vmatprep.subr.mxu0 0.0
    %1058 = vmatpush1.xpose.msra.mxu0 0.0
    %1059 = vmatprep.subr.mxu0 0.0
    %1060 = vmatpush1.xpose.msra.mxu0 0.0
    %1061 = vmatprep.subr.mxu0 0.0
    %1062 = vmatpush1.xpose.msra.mxu0 0.0
    %1063 = vmatprep.subr.mxu0 0.0
    %1064 = vmatpush1.xpose.msra.mxu0 0.0
    %1065 = vmatprep.subr.mxu0 0.0
    %1066 = vmatpush1.xpose.msra.mxu0 0.0
    %1067 = vmatprep.subr.mxu0 0.0
    %1068 = vmatpush1.xpose.msra.mxu0 0.0
    %1069 = vmatprep.subr.mxu0 0.0
    %1070 = vmatpush1.xpose.msra.mxu0 0.0
    %1071 = vmatprep.subr.mxu0 0.0
    %1072 = vmatpush1.xpose.msra.mxu0 0.0
    %1073 = vmatprep.subr.mxu0 0.0
    %1074 = vmatpush1.xpose.msra.mxu0 0.0
    %1075 = vmatprep.subr.mxu0 0.0
    %1076 = vmatpush1.xpose.msra.mxu0 %v1043
    %1077 = vmatprep.subr.mxu0 0.0
    %1078 = vmatpush2.xpose.msra.mxu0 0.0
    %1079 = vmatprep.subr.mxu0 0.0
    %1080 = vmatpush2.xpose.msra.mxu0 0.0
    %1081 = vmatprep.subr.mxu0 0.0
    %1082 = vmatpush2.xpose.msra.mxu0 0.0
    %1083 = vmatprep.subr.mxu0 0.0
    %1084 = vmatpush2.xpose.msra.mxu0 0.0
    %1085 = vmatprep.subr.mxu0 0.0
    %1086 = vmatpush2.xpose.msra.mxu0 0.0
    %1087 = vmatprep.subr.mxu0 0.0
    %1088 = vmatpush2.xpose.msra.mxu0 0.0
    %1089 = vmatprep.subr.mxu0 0.0
    %1090 = vmatpush2.xpose.msra.mxu0 0.0
    %1091 = vmatprep.subr.mxu0 0.0
    %1092 = vmatpush2.xpose.msra.mxu0 0.0
    %1093 = vmatprep.subr.mxu0 0.0
    %1094 = vmatpush2.xpose.msra.mxu0 0.0
    %1095 = vmatprep.subr.mxu0 0.0
    %1096 = vmatpush2.xpose.msra.mxu0 0.0
    %1097 = vmatprep.subr.mxu0 0.0
    %1098 = vmatpush2.xpose.msra.mxu0 0.0
    %1099 = vmatprep.subr.mxu0 0.0
    %1100 = vmatpush2.xpose.msra.mxu0 0.0
    %1101 = vmatprep.subr.mxu0 0.0
    %1102 = vmatpush2.xpose.msra.mxu0 0.0
    %1103 = vmatprep.subr.mxu0 0.0
    %1104 = vmatpush2.xpose.msra.mxu0 0.0
    %1105 = vmatprep.subr.mxu0 0.0
    %1106 = vmatpush2.xpose.msra.mxu0 0.0
    %1107 = vmatprep.subr.mxu0 0.0
    %1108 = vmatpush2.xpose.msra.mxu0 0.0
    %1109 = vmatprep.mubr.f32.mxu0 0.0
    %1110 = vmatmul.mubr.f32.gmra.mxu0 %v853
    %v1111 = vpop.f32.mrf.mxu0
    %v1112 = vadd.f32 0.0, %v1111
    %v1113 = vpop.f32.mrf.mxu0
    %1114 = vdwg.mxu0
    %v1115 = vmul.f32 %v1037, 0.35355338
    %v1116 = vmul.f32 %v1112, 0.35355338
    %v1117 = vadd.f32 %v1115, %v189
    %v1118 = vadd.f32 %v1116, %v190
    %v1119 = vsel %vm931, %v1117, -inf
    %1120 = vmax.xlane.f32.xlu0 %v1119
    %v1121 = vpop.xlane.xlu0 %1120
    %v1122 = vsel %vm931, %v1118, -inf
    %1123 = vmax.xlane.f32.xlu0 %v1122
    %v1124 = vpop.xlane.xlu0 %1123
    %v1125 = vsub.f32 %v1117, %v1121
    %v1126 = vsub.f32 %v1118, %v1124
    %v1127 = vmul.f32 %v1125, 1.442695
    %v1128 = vpow.pop %v1127
    %v1129 = vmul.f32 %v1126, 1.442695
    %v1130 = vpow.pop %v1129
    %v1131 = vsel %vm931, %v1128, 0.0
    %1132 = vadd.xlane.f32.xlu0 %v1131
    %v1133 = vpop.xlane.xlu0 %1132
    %v1134 = vsel %vm931, %v1130, 0.0
    %1135 = vadd.xlane.f32.xlu0 %v1134
    %v1136 = vpop.xlane.xlu0 %1135
    %v1137 = vrcp.pop %v1133
    %v1138 = vrcp.pop %v1136
    %v1139 = vmul.f32 %v1128, %v1137
    %v1140 = vmul.f32 %v1130, %v1138
    %1142 = vrot.lane.b32.xlu0 %v963, 64
    %v1143 = vpop.permute.xlu0 %1142
    %v1146 = vsel %vm931, %v1139, 0
    %1148 = vmatprep.subr.mxu0 0.0
    %1149 = vmatpush1.msra.mxu0 0.0
    %1150 = vmatprep.subr.mxu0 0.0
    %1151 = vmatpush1.msra.mxu0 0.0
    %1152 = vmatprep.subr.mxu0 0.0
    %1153 = vmatpush1.msra.mxu0 0.0
    %1154 = vmatprep.subr.mxu0 0.0
    %1155 = vmatpush1.msra.mxu0 0.0
    %1156 = vmatprep.subr.mxu0 0.0
    %1157 = vmatpush1.msra.mxu0 0.0
    %1158 = vmatprep.subr.mxu0 0.0
    %1159 = vmatpush1.msra.mxu0 0.0
    %1160 = vmatprep.subr.mxu0 0.0
    %1161 = vmatpush1.msra.mxu0 0.0
    %1162 = vmatprep.subr.mxu0 0.0
    %1163 = vmatpush1.msra.mxu0 0.0
    %1164 = vmatprep.subr.mxu0 0.0
    %1165 = vmatpush1.msra.mxu0 0.0
    %1166 = vmatprep.subr.mxu0 0.0
    %1167 = vmatpush1.msra.mxu0 0.0
    %1168 = vmatprep.subr.mxu0 0.0
    %1169 = vmatpush1.msra.mxu0 0.0
    %1170 = vmatprep.subr.mxu0 0.0
    %1171 = vmatpush1.msra.mxu0 0.0
    %1172 = vmatprep.subr.mxu0 0.0
    %1173 = vmatpush1.msra.mxu0 0.0
    %1174 = vmatprep.subr.mxu0 0.0
    %1175 = vmatpush1.msra.mxu0 0.0
    %1176 = vmatprep.subr.mxu0 0.0
    %1177 = vmatpush1.msra.mxu0 0.0
    %1178 = vmatprep.subr.mxu0 0.0
    %1179 = vmatpush1.msra.mxu0 %v1143
    %1180 = vmatprep.subr.mxu0 0.0
    %1181 = vmatpush2.msra.mxu0 0.0
    %1182 = vmatprep.subr.mxu0 0.0
    %1183 = vmatpush2.msra.mxu0 0.0
    %1184 = vmatprep.subr.mxu0 0.0
    %1185 = vmatpush2.msra.mxu0 0.0
    %1186 = vmatprep.subr.mxu0 0.0
    %1187 = vmatpush2.msra.mxu0 0.0
    %1188 = vmatprep.subr.mxu0 0.0
    %1189 = vmatpush2.msra.mxu0 0.0
    %1190 = vmatprep.subr.mxu0 0.0
    %1191 = vmatpush2.msra.mxu0 0.0
    %1192 = vmatprep.subr.mxu0 0.0
    %1193 = vmatpush2.msra.mxu0 0.0
    %1194 = vmatprep.subr.mxu0 0.0
    %1195 = vmatpush2.msra.mxu0 0.0
    %1196 = vmatprep.subr.mxu0 0.0
    %1197 = vmatpush2.msra.mxu0 0.0
    %1198 = vmatprep.subr.mxu0 0.0
    %1199 = vmatpush2.msra.mxu0 0.0
    %1200 = vmatprep.subr.mxu0 0.0
    %1201 = vmatpush2.msra.mxu0 0.0
    %1202 = vmatprep.subr.mxu0 0.0
    %1203 = vmatpush2.msra.mxu0 0.0
    %1204 = vmatprep.subr.mxu0 0.0
    %1205 = vmatpush2.msra.mxu0 0.0
    %1206 = vmatprep.subr.mxu0 0.0
    %1207 = vmatpush2.msra.mxu0 0.0
    %1208 = vmatprep.subr.mxu0 0.0
    %1209 = vmatpush2.msra.mxu0 0.0
    %1210 = vmatprep.subr.mxu0 0.0
    %1211 = vmatpush2.msra.mxu0 0.0
    %1212 = vmatprep.mubr.f32.mxu0 0.0
    %1213 = vmatmul.mubr.f32.gmra.mxu0 %v1146
    %v1214 = vpop.f32.mrf.mxu0
    %v1215 = vadd.f32 0.0, %v1214
    %v1216 = vpop.f32.mrf.mxu0
    %1217 = vdwg.mxu0
    %1219 = vrot.lane.b32.xlu0 %v964, 64
    %v1220 = vpop.permute.xlu0 %1219
    %v1223 = vsel %vm931, %v1140, 0
    %1225 = vmatprep.subr.mxu0 0.0
    %1226 = vmatpush1.msra.mxu0 0.0
    %1227 = vmatprep.subr.mxu0 0.0
    %1228 = vmatpush1.msra.mxu0 0.0
    %1229 = vmatprep.subr.mxu0 0.0
    %1230 = vmatpush1.msra.mxu0 0.0
    %1231 = vmatprep.subr.mxu0 0.0
    %1232 = vmatpush1.msra.mxu0 0.0
    %1233 = vmatprep.subr.mxu0 0.0
    %1234 = vmatpush1.msra.mxu0 0.0
    %1235 = vmatprep.subr.mxu0 0.0
    %1236 = vmatpush1.msra.mxu0 0.0
    %1237 = vmatprep.subr.mxu0 0.0
    %1238 = vmatpush1.msra.mxu0 0.0
    %1239 = vmatprep.subr.mxu0 0.0
    %1240 = vmatpush1.msra.mxu0 0.0
    %1241 = vmatprep.subr.mxu0 0.0
    %1242 = vmatpush1.msra.mxu0 0.0
    %1243 = vmatprep.subr.mxu0 0.0
    %1244 = vmatpush1.msra.mxu0 0.0
    %1245 = vmatprep.subr.mxu0 0.0
    %1246 = vmatpush1.msra.mxu0 0.0
    %1247 = vmatprep.subr.mxu0 0.0
    %1248 = vmatpush1.msra.mxu0 0.0
    %1249 = vmatprep.subr.mxu0 0.0
    %1250 = vmatpush1.msra.mxu0 0.0
    %1251 = vmatprep.subr.mxu0 0.0
    %1252 = vmatpush1.msra.mxu0 0.0
    %1253 = vmatprep.subr.mxu0 0.0
    %1254 = vmatpush1.msra.mxu0 0.0
    %1255 = vmatprep.subr.mxu0 0.0
    %1256 = vmatpush1.msra.mxu0 %v1220
    %1257 = vmatprep.subr.mxu0 0.0
    %1258 = vmatpush2.msra.mxu0 0.0
    %1259 = vmatprep.subr.mxu0 0.0
    %1260 = vmatpush2.msra.mxu0 0.0
    %1261 = vmatprep.subr.mxu0 0.0
    %1262 = vmatpush2.msra.mxu0 0.0
    %1263 = vmatprep.subr.mxu0 0.0
    %1264 = vmatpush2.msra.mxu0 0.0
    %1265 = vmatprep.subr.mxu0 0.0
    %1266 = vmatpush2.msra.mxu0 0.0
    %1267 = vmatprep.subr.mxu0 0.0
    %1268 = vmatpush2.msra.mxu0 0.0
    %1269 = vmatprep.subr.mxu0 0.0
    %1270 = vmatpush2.msra.mxu0 0.0
    %1271 = vmatprep.subr.mxu0 0.0
    %1272 = vmatpush2.msra.mxu0 0.0
    %1273 = vmatprep.subr.mxu0 0.0
    %1274 = vmatpush2.msra.mxu0 0.0
    %1275 = vmatprep.subr.mxu0 0.0
    %1276 = vmatpush2.msra.mxu0 0.0
    %1277 = vmatprep.subr.mxu0 0.0
    %1278 = vmatpush2.msra.mxu0 0.0
    %1279 = vmatprep.subr.mxu0 0.0
    %1280 = vmatpush2.msra.mxu0 0.0
    %1281 = vmatprep.subr.mxu0 0.0
    %1282 = vmatpush2.msra.mxu0 0.0
    %1283 = vmatprep.subr.mxu0 0.0
    %1284 = vmatpush2.msra.mxu0 0.0
    %1285 = vmatprep.subr.mxu0 0.0
    %1286 = vmatpush2.msra.mxu0 0.0
    %1287 = vmatprep.subr.mxu0 0.0
    %1288 = vmatpush2.msra.mxu0 0.0
    %1289 = vmatprep.mubr.f32.mxu0 0.0
    %1290 = vmatmul.mubr.f32.gmra.mxu0 %v1223
    %v1291 = vpop.f32.mrf.mxu0
    %v1292 = vadd.f32 0.0, %v1291
    %v1293 = vpop.f32.mrf.mxu0
    %1294 = vdwg.mxu0
    %1296 = vrot.lane.b32.xlu0 %v769, 64
    %v1297 = vpop.permute.xlu0 %1296
    %v1300 = vsel %vm931, %v952, 0
    %1302 = vmatprep.subr.mxu0 0.0
    %1303 = vmatpush1.msra.mxu0 0.0
    %1304 = vmatprep.subr.mxu0 0.0
    %1305 = vmatpush1.msra.mxu0 0.0
    %1306 = vmatprep.subr.mxu0 0.0
    %1307 = vmatpush1.msra.mxu0 0.0
    %1308 = vmatprep.subr.mxu0 0.0
    %1309 = vmatpush1.msra.mxu0 0.0
    %1310 = vmatprep.subr.mxu0 0.0
    %1311 = vmatpush1.msra.mxu0 0.0
    %1312 = vmatprep.subr.mxu0 0.0
    %1313 = vmatpush1.msra.mxu0 0.0
    %1314 = vmatprep.subr.mxu0 0.0
    %1315 = vmatpush1.msra.mxu0 0.0
    %1316 = vmatprep.subr.mxu0 0.0
    %1317 = vmatpush1.msra.mxu0 0.0
    %1318 = vmatprep.subr.mxu0 0.0
    %1319 = vmatpush1.msra.mxu0 0.0
    %1320 = vmatprep.subr.mxu0 0.0
    %1321 = vmatpush1.msra.mxu0 0.0
    %1322 = vmatprep.subr.mxu0 0.0
    %1323 = vmatpush1.msra.mxu0 0.0
    %1324 = vmatprep.subr.mxu0 0.0
    %1325 = vmatpush1.msra.mxu0 0.0
    %1326 = vmatprep.subr.mxu0 0.0
    %1327 = vmatpush1.msra.mxu0 0.0
    %1328 = vmatprep.subr.mxu0 0.0
    %1329 = vmatpush1.msra.mxu0 0.0
    %1330 = vmatprep.subr.mxu0 0.0
    %1331 = vmatpush1.msra.mxu0 0.0
    %1332 = vmatprep.subr.mxu0 0.0
    %1333 = vmatpush1.msra.mxu0 %v1297
    %1334 = vmatprep.subr.mxu0 0.0
    %1335 = vmatpush2.msra.mxu0 0.0
    %1336 = vmatprep.subr.mxu0 0.0
    %1337 = vmatpush2.msra.mxu0 0.0
    %1338 = vmatprep.subr.mxu0 0.0
    %1339 = vmatpush2.msra.mxu0 0.0
    %1340 = vmatprep.subr.mxu0 0.0
    %1341 = vmatpush2.msra.mxu0 0.0
    %1342 = vmatprep.subr.mxu0 0.0
    %1343 = vmatpush2.msra.mxu0 0.0
    %1344 = vmatprep.subr.mxu0 0.0
    %1345 = vmatpush2.msra.mxu0 0.0
    %1346 = vmatprep.subr.mxu0 0.0
    %1347 = vmatpush2.msra.mxu0 0.0
    %1348 = vmatprep.subr.mxu0 0.0
    %1349 = vmatpush2.msra.mxu0 0.0
    %1350 = vmatprep.subr.mxu0 0.0
    %1351 = vmatpush2.msra.mxu0 0.0
    %1352 = vmatprep.subr.mxu0 0.0
    %1353 = vmatpush2.msra.mxu0 0.0
    %1354 = vmatprep.subr.mxu0 0.0
    %1355 = vmatpush2.msra.mxu0 0.0
    %1356 = vmatprep.subr.mxu0 0.0
    %1357 = vmatpush2.msra.mxu0 0.0
    %1358 = vmatprep.subr.mxu0 0.0
    %1359 = vmatpush2.msra.mxu0 0.0
    %1360 = vmatprep.subr.mxu0 0.0
    %1361 = vmatpush2.msra.mxu0 0.0
    %1362 = vmatprep.subr.mxu0 0.0
    %1363 = vmatpush2.msra.mxu0 0.0
    %1364 = vmatprep.subr.mxu0 0.0
    %1365 = vmatpush2.msra.mxu0 0.0
    %1366 = vmatprep.mubr.f32.mxu0 0.0
    %1367 = vmatmul.mubr.f32.gmra.mxu0 %v1300
    %v1368 = vpop.f32.mrf.mxu0
    %v1369 = vadd.f32 %v1215, %v1368
    %v1370 = vpop.f32.mrf.mxu0
    %1371 = vdwg.mxu0
    %1373 = vrot.lane.b32.xlu0 %v770, 64
    %v1374 = vpop.permute.xlu0 %1373
    %v1377 = vsel %vm931, %v953, 0
    %1379 = vmatprep.subr.mxu0 0.0
    %1380 = vmatpush1.msra.mxu0 0.0
    %1381 = vmatprep.subr.mxu0 0.0
    %1382 = vmatpush1.msra.mxu0 0.0
    %1383 = vmatprep.subr.mxu0 0.0
    %1384 = vmatpush1.msra.mxu0 0.0
    %1385 = vmatprep.subr.mxu0 0.0
    %1386 = vmatpush1.msra.mxu0 0.0
    %1387 = vmatprep.subr.mxu0 0.0
    %1388 = vmatpush1.msra.mxu0 0.0
    %1389 = vmatprep.subr.mxu0 0.0
    %1390 = vmatpush1.msra.mxu0 0.0
    %1391 = vmatprep.subr.mxu0 0.0
    %1392 = vmatpush1.msra.mxu0 0.0
    %1393 = vmatprep.subr.mxu0 0.0
    %1394 = vmatpush1.msra.mxu0 0.0
    %1395 = vmatprep.subr.mxu0 0.0
    %1396 = vmatpush1.msra.mxu0 0.0
    %1397 = vmatprep.subr.mxu0 0.0
    %1398 = vmatpush1.msra.mxu0 0.0
    %1399 = vmatprep.subr.mxu0 0.0
    %1400 = vmatpush1.msra.mxu0 0.0
    %1401 = vmatprep.subr.mxu0 0.0
    %1402 = vmatpush1.msra.mxu0 0.0
    %1403 = vmatprep.subr.mxu0 0.0
    %1404 = vmatpush1.msra.mxu0 0.0
    %1405 = vmatprep.subr.mxu0 0.0
    %1406 = vmatpush1.msra.mxu0 0.0
    %1407 = vmatprep.subr.mxu0 0.0
    %1408 = vmatpush1.msra.mxu0 0.0
    %1409 = vmatprep.subr.mxu0 0.0
    %1410 = vmatpush1.msra.mxu0 %v1374
    %1411 = vmatprep.subr.mxu0 0.0
    %1412 = vmatpush2.msra.mxu0 0.0
    %1413 = vmatprep.subr.mxu0 0.0
    %1414 = vmatpush2.msra.mxu0 0.0
    %1415 = vmatprep.subr.mxu0 0.0
    %1416 = vmatpush2.msra.mxu0 0.0
    %1417 = vmatprep.subr.mxu0 0.0
    %1418 = vmatpush2.msra.mxu0 0.0
    %1419 = vmatprep.subr.mxu0 0.0
    %1420 = vmatpush2.msra.mxu0 0.0
    %1421 = vmatprep.subr.mxu0 0.0
    %1422 = vmatpush2.msra.mxu0 0.0
    %1423 = vmatprep.subr.mxu0 0.0
    %1424 = vmatpush2.msra.mxu0 0.0
    %1425 = vmatprep.subr.mxu0 0.0
    %1426 = vmatpush2.msra.mxu0 0.0
    %1427 = vmatprep.subr.mxu0 0.0
    %1428 = vmatpush2.msra.mxu0 0.0
    %1429 = vmatprep.subr.mxu0 0.0
    %1430 = vmatpush2.msra.mxu0 0.0
    %1431 = vmatprep.subr.mxu0 0.0
    %1432 = vmatpush2.msra.mxu0 0.0
    %1433 = vmatprep.subr.mxu0 0.0
    %1434 = vmatpush2.msra.mxu0 0.0
    %1435 = vmatprep.subr.mxu0 0.0
    %1436 = vmatpush2.msra.mxu0 0.0
    %1437 = vmatprep.subr.mxu0 0.0
    %1438 = vmatpush2.msra.mxu0 0.0
    %1439 = vmatprep.subr.mxu0 0.0
    %1440 = vmatpush2.msra.mxu0 0.0
    %1441 = vmatprep.subr.mxu0 0.0
    %1442 = vmatpush2.msra.mxu0 0.0
    %1443 = vmatprep.mubr.f32.mxu0 0.0
    %1444 = vmatmul.mubr.f32.gmra.mxu0 %v1377
    %v1445 = vpop.f32.mrf.mxu0
    %v1446 = vadd.f32 %v1292, %v1445
    %v1447 = vpop.f32.mrf.mxu0
    %1448 = vdwg.mxu0
    %1450 = vrot.lane.b32.xlu0 %v139, 32
    %v1451 = vpop.permute.xlu0 %1450
    %v1453 = vmul.f32 %v752, %v1451
    %v1454 = vmul.f32 %v757, %v1451
    %1455 = vrot.lane.b32.xlu0 %v139, 64
    %v1456 = vpop.permute.xlu0 %1455
    %v1458 = vmul.f32 %v752, %v1456
    %v1459 = vmul.f32 %v757, %v1456
    %1461 = vrot.lane.b32.xlu0 %v1453, 96
    %v1462 = vpop.permute.xlu0 %1461
    %v1463 = vsel %vm678, %v1462, 0
    %1465 = vmatprep.subr.mxu0 0.0
    %1466 = vmatpush1.xpose.msra.mxu0 0.0
    %1467 = vmatprep.subr.mxu0 0.0
    %1468 = vmatpush1.xpose.msra.mxu0 0.0
    %1469 = vmatprep.subr.mxu0 0.0
    %1470 = vmatpush1.xpose.msra.mxu0 0.0
    %1471 = vmatprep.subr.mxu0 0.0
    %1472 = vmatpush1.xpose.msra.mxu0 0.0
    %1473 = vmatprep.subr.mxu0 0.0
    %1474 = vmatpush1.xpose.msra.mxu0 0.0
    %1475 = vmatprep.subr.mxu0 0.0
    %1476 = vmatpush1.xpose.msra.mxu0 0.0
    %1477 = vmatprep.subr.mxu0 0.0
    %1478 = vmatpush1.xpose.msra.mxu0 0.0
    %1479 = vmatprep.subr.mxu0 0.0
    %1480 = vmatpush1.xpose.msra.mxu0 0.0
    %1481 = vmatprep.subr.mxu0 0.0
    %1482 = vmatpush1.xpose.msra.mxu0 0.0
    %1483 = vmatprep.subr.mxu0 0.0
    %1484 = vmatpush1.xpose.msra.mxu0 0.0
    %1485 = vmatprep.subr.mxu0 0.0
    %1486 = vmatpush1.xpose.msra.mxu0 0.0
    %1487 = vmatprep.subr.mxu0 0.0
    %1488 = vmatpush1.xpose.msra.mxu0 0.0
    %1489 = vmatprep.subr.mxu0 0.0
    %1490 = vmatpush1.xpose.msra.mxu0 0.0
    %1491 = vmatprep.subr.mxu0 0.0
    %1492 = vmatpush1.xpose.msra.mxu0 0.0
    %1493 = vmatprep.subr.mxu0 0.0
    %1494 = vmatpush1.xpose.msra.mxu0 0.0
    %1495 = vmatprep.subr.mxu0 0.0
    %1496 = vmatpush1.xpose.msra.mxu0 %v1463
    %1497 = vmatprep.subr.mxu0 0.0
    %1498 = vmatpush2.xpose.msra.mxu0 0.0
    %1499 = vmatprep.subr.mxu0 0.0
    %1500 = vmatpush2.xpose.msra.mxu0 0.0
    %1501 = vmatprep.subr.mxu0 0.0
    %1502 = vmatpush2.xpose.msra.mxu0 0.0
    %1503 = vmatprep.subr.mxu0 0.0
    %1504 = vmatpush2.xpose.msra.mxu0 0.0
    %1505 = vmatprep.subr.mxu0 0.0
    %1506 = vmatpush2.xpose.msra.mxu0 0.0
    %1507 = vmatprep.subr.mxu0 0.0
    %1508 = vmatpush2.xpose.msra.mxu0 0.0
    %1509 = vmatprep.subr.mxu0 0.0
    %1510 = vmatpush2.xpose.msra.mxu0 0.0
    %1511 = vmatprep.subr.mxu0 0.0
    %1512 = vmatpush2.xpose.msra.mxu0 0.0
    %1513 = vmatprep.subr.mxu0 0.0
    %1514 = vmatpush2.xpose.msra.mxu0 0.0
    %1515 = vmatprep.subr.mxu0 0.0
    %1516 = vmatpush2.xpose.msra.mxu0 0.0
    %1517 = vmatprep.subr.mxu0 0.0
    %1518 = vmatpush2.xpose.msra.mxu0 0.0
    %1519 = vmatprep.subr.mxu0 0.0
    %1520 = vmatpush2.xpose.msra.mxu0 0.0
    %1521 = vmatprep.subr.mxu0 0.0
    %1522 = vmatpush2.xpose.msra.mxu0 0.0
    %1523 = vmatprep.subr.mxu0 0.0
    %1524 = vmatpush2.xpose.msra.mxu0 0.0
    %1525 = vmatprep.subr.mxu0 0.0
    %1526 = vmatpush2.xpose.msra.mxu0 0.0
    %1527 = vmatprep.subr.mxu0 0.0
    %1528 = vmatpush2.xpose.msra.mxu0 0.0
    %1529 = vmatprep.mubr.f32.mxu0 0.0
    %1530 = vmatmul.mubr.f32.gmra.mxu0 %v775
    %v1531 = vpop.f32.mrf.mxu0
    %v1532 = vadd.f32 0.0, %v1531
    %v1533 = vpop.f32.mrf.mxu0
    %1534 = vdwg.mxu0
    %1536 = vrot.lane.b32.xlu0 %v1454, 96
    %v1537 = vpop.permute.xlu0 %1536
    %v1538 = vsel %vm678, %v1537, 0
    %1540 = vmatprep.subr.mxu0 0.0
    %1541 = vmatpush1.xpose.msra.mxu0 0.0
    %1542 = vmatprep.subr.mxu0 0.0
    %1543 = vmatpush1.xpose.msra.mxu0 0.0
    %1544 = vmatprep.subr.mxu0 0.0
    %1545 = vmatpush1.xpose.msra.mxu0 0.0
    %1546 = vmatprep.subr.mxu0 0.0
    %1547 = vmatpush1.xpose.msra.mxu0 0.0
    %1548 = vmatprep.subr.mxu0 0.0
    %1549 = vmatpush1.xpose.msra.mxu0 0.0
    %1550 = vmatprep.subr.mxu0 0.0
    %1551 = vmatpush1.xpose.msra.mxu0 0.0
    %1552 = vmatprep.subr.mxu0 0.0
    %1553 = vmatpush1.xpose.msra.mxu0 0.0
    %1554 = vmatprep.subr.mxu0 0.0
    %1555 = vmatpush1.xpose.msra.mxu0 0.0
    %1556 = vmatprep.subr.mxu0 0.0
    %1557 = vmatpush1.xpose.msra.mxu0 0.0
    %1558 = vmatprep.subr.mxu0 0.0
    %1559 = vmatpush1.xpose.msra.mxu0 0.0
    %1560 = vmatprep.subr.mxu0 0.0
    %1561 = vmatpush1.xpose.msra.mxu0 0.0
    %1562 = vmatprep.subr.mxu0 0.0
    %1563 = vmatpush1.xpose.msra.mxu0 0.0
    %1564 = vmatprep.subr.mxu0 0.0
    %1565 = vmatpush1.xpose.msra.mxu0 0.0
    %1566 = vmatprep.subr.mxu0 0.0
    %1567 = vmatpush1.xpose.msra.mxu0 0.0
    %1568 = vmatprep.subr.mxu0 0.0
    %1569 = vmatpush1.xpose.msra.mxu0 0.0
    %1570 = vmatprep.subr.mxu0 0.0
    %1571 = vmatpush1.xpose.msra.mxu0 %v1538
    %1572 = vmatprep.subr.mxu0 0.0
    %1573 = vmatpush2.xpose.msra.mxu0 0.0
    %1574 = vmatprep.subr.mxu0 0.0
    %1575 = vmatpush2.xpose.msra.mxu0 0.0
    %1576 = vmatprep.subr.mxu0 0.0
    %1577 = vmatpush2.xpose.msra.mxu0 0.0
    %1578 = vmatprep.subr.mxu0 0.0
    %1579 = vmatpush2.xpose.msra.mxu0 0.0
    %1580 = vmatprep.subr.mxu0 0.0
    %1581 = vmatpush2.xpose.msra.mxu0 0.0
    %1582 = vmatprep.subr.mxu0 0.0
    %1583 = vmatpush2.xpose.msra.mxu0 0.0
    %1584 = vmatprep.subr.mxu0 0.0
    %1585 = vmatpush2.xpose.msra.mxu0 0.0
    %1586 = vmatprep.subr.mxu0 0.0
    %1587 = vmatpush2.xpose.msra.mxu0 0.0
    %1588 = vmatprep.subr.mxu0 0.0
    %1589 = vmatpush2.xpose.msra.mxu0 0.0
    %1590 = vmatprep.subr.mxu0 0.0
    %1591 = vmatpush2.xpose.msra.mxu0 0.0
    %1592 = vmatprep.subr.mxu0 0.0
    %1593 = vmatpush2.xpose.msra.mxu0 0.0
    %1594 = vmatprep.subr.mxu0 0.0
    %1595 = vmatpush2.xpose.msra.mxu0 0.0
    %1596 = vmatprep.subr.mxu0 0.0
    %1597 = vmatpush2.xpose.msra.mxu0 0.0
    %1598 = vmatprep.subr.mxu0 0.0
    %1599 = vmatpush2.xpose.msra.mxu0 0.0
    %1600 = vmatprep.subr.mxu0 0.0
    %1601 = vmatpush2.xpose.msra.mxu0 0.0
    %1602 = vmatprep.subr.mxu0 0.0
    %1603 = vmatpush2.xpose.msra.mxu0 0.0
    %1604 = vmatprep.mubr.f32.mxu0 0.0
    %1605 = vmatmul.mubr.f32.gmra.mxu0 %v853
    %v1606 = vpop.f32.mrf.mxu0
    %v1607 = vadd.f32 0.0, %v1606
    %v1608 = vpop.f32.mrf.mxu0
    %1609 = vdwg.mxu0
    %v1610 = vmul.f32 %v1532, 0.35355338
    %v1611 = vmul.f32 %v1607, 0.35355338
    %v1612 = vadd.f32 %v1610, %v189
    %v1613 = vadd.f32 %v1611, %v190
    %v1614 = vsel %vm931, %v1612, -inf
    %1615 = vmax.xlane.f32.xlu0 %v1614
    %v1616 = vpop.xlane.xlu0 %1615
    %v1617 = vsel %vm931, %v1613, -inf
    %1618 = vmax.xlane.f32.xlu0 %v1617
    %v1619 = vpop.xlane.xlu0 %1618
    %v1620 = vsub.f32 %v1612, %v1616
    %v1621 = vsub.f32 %v1613, %v1619
    %v1622 = vmul.f32 %v1620, 1.442695
    %v1623 = vpow.pop %v1622
    %v1624 = vmul.f32 %v1621, 1.442695
    %v1625 = vpow.pop %v1624
    %v1626 = vsel %vm931, %v1623, 0.0
    %1627 = vadd.xlane.f32.xlu0 %v1626
    %v1628 = vpop.xlane.xlu0 %1627
    %v1629 = vsel %vm931, %v1625, 0.0
    %1630 = vadd.xlane.f32.xlu0 %v1629
    %v1631 = vpop.xlane.xlu0 %1630
    %v1632 = vrcp.pop %v1628
    %v1633 = vrcp.pop %v1631
    %v1634 = vmul.f32 %v1623, %v1632
    %v1635 = vmul.f32 %v1625, %v1633
    %1637 = vrot.lane.b32.xlu0 %v1458, 64
    %v1638 = vpop.permute.xlu0 %1637
    %v1641 = vsel %vm931, %v1634, 0
    %1643 = vmatprep.subr.mxu0 0.0
    %1644 = vmatpush1.msra.mxu0 0.0
    %1645 = vmatprep.subr.mxu0 0.0
    %1646 = vmatpush1.msra.mxu0 0.0
    %1647 = vmatprep.subr.mxu0 0.0
    %1648 = vmatpush1.msra.mxu0 0.0
    %1649 = vmatprep.subr.mxu0 0.0
    %1650 = vmatpush1.msra.mxu0 0.0
    %1651 = vmatprep.subr.mxu0 0.0
    %1652 = vmatpush1.msra.mxu0 0.0
    %1653 = vmatprep.subr.mxu0 0.0
    %1654 = vmatpush1.msra.mxu0 0.0
    %1655 = vmatprep.subr.mxu0 0.0
    %1656 = vmatpush1.msra.mxu0 0.0
    %1657 = vmatprep.subr.mxu0 0.0
    %1658 = vmatpush1.msra.mxu0 0.0
    %1659 = vmatprep.subr.mxu0 0.0
    %1660 = vmatpush1.msra.mxu0 0.0
    %1661 = vmatprep.subr.mxu0 0.0
    %1662 = vmatpush1.msra.mxu0 0.0
    %1663 = vmatprep.subr.mxu0 0.0
    %1664 = vmatpush1.msra.mxu0 0.0
    %1665 = vmatprep.subr.mxu0 0.0
    %1666 = vmatpush1.msra.mxu0 0.0
    %1667 = vmatprep.subr.mxu0 0.0
    %1668 = vmatpush1.msra.mxu0 0.0
    %1669 = vmatprep.subr.mxu0 0.0
    %1670 = vmatpush1.msra.mxu0 0.0
    %1671 = vmatprep.subr.mxu0 0.0
    %1672 = vmatpush1.msra.mxu0 0.0
    %1673 = vmatprep.subr.mxu0 0.0
    %1674 = vmatpush1.msra.mxu0 %v1638
    %1675 = vmatprep.subr.mxu0 0.0
    %1676 = vmatpush2.msra.mxu0 0.0
    %1677 = vmatprep.subr.mxu0 0.0
    %1678 = vmatpush2.msra.mxu0 0.0
    %1679 = vmatprep.subr.mxu0 0.0
    %1680 = vmatpush2.msra.mxu0 0.0
    %1681 = vmatprep.subr.mxu0 0.0
    %1682 = vmatpush2.msra.mxu0 0.0
    %1683 = vmatprep.subr.mxu0 0.0
    %1684 = vmatpush2.msra.mxu0 0.0
    %1685 = vmatprep.subr.mxu0 0.0
    %1686 = vmatpush2.msra.mxu0 0.0
    %1687 = vmatprep.subr.mxu0 0.0
    %1688 = vmatpush2.msra.mxu0 0.0
    %1689 = vmatprep.subr.mxu0 0.0
    %1690 = vmatpush2.msra.mxu0 0.0
    %1691 = vmatprep.subr.mxu0 0.0
    %1692 = vmatpush2.msra.mxu0 0.0
    %1693 = vmatprep.subr.mxu0 0.0
    %1694 = vmatpush2.msra.mxu0 0.0
    %1695 = vmatprep.subr.mxu0 0.0
    %1696 = vmatpush2.msra.mxu0 0.0
    %1697 = vmatprep.subr.mxu0 0.0
    %1698 = vmatpush2.msra.mxu0 0.0
    %1699 = vmatprep.subr.mxu0 0.0
    %1700 = vmatpush2.msra.mxu0 0.0
    %1701 = vmatprep.subr.mxu0 0.0
    %1702 = vmatpush2.msra.mxu0 0.0
    %1703 = vmatprep.subr.mxu0 0.0
    %1704 = vmatpush2.msra.mxu0 0.0
    %1705 = vmatprep.subr.mxu0 0.0
    %1706 = vmatpush2.msra.mxu0 0.0
    %1707 = vmatprep.mubr.f32.mxu0 0.0
    %1708 = vmatmul.mubr.f32.gmra.mxu0 %v1641
    %v1709 = vpop.f32.mrf.mxu0
    %v1710 = vadd.f32 0.0, %v1709
    %v1711 = vpop.f32.mrf.mxu0
    %1712 = vdwg.mxu0
    %1714 = vrot.lane.b32.xlu0 %v1459, 64
    %v1715 = vpop.permute.xlu0 %1714
    %v1718 = vsel %vm931, %v1635, 0
    %1720 = vmatprep.subr.mxu0 0.0
    %1721 = vmatpush1.msra.mxu0 0.0
    %1722 = vmatprep.subr.mxu0 0.0
    %1723 = vmatpush1.msra.mxu0 0.0
    %1724 = vmatprep.subr.mxu0 0.0
    %1725 = vmatpush1.msra.mxu0 0.0
    %1726 = vmatprep.subr.mxu0 0.0
    %1727 = vmatpush1.msra.mxu0 0.0
    %1728 = vmatprep.subr.mxu0 0.0
    %1729 = vmatpush1.msra.mxu0 0.0
    %1730 = vmatprep.subr.mxu0 0.0
    %1731 = vmatpush1.msra.mxu0 0.0
    %1732 = vmatprep.subr.mxu0 0.0
    %1733 = vmatpush1.msra.mxu0 0.0
    %1734 = vmatprep.subr.mxu0 0.0
    %1735 = vmatpush1.msra.mxu0 0.0
    %1736 = vmatprep.subr.mxu0 0.0
    %1737 = vmatpush1.msra.mxu0 0.0
    %1738 = vmatprep.subr.mxu0 0.0
    %1739 = vmatpush1.msra.mxu0 0.0
    %1740 = vmatprep.subr.mxu0 0.0
    %1741 = vmatpush1.msra.mxu0 0.0
    %1742 = vmatprep.subr.mxu0 0.0
    %1743 = vmatpush1.msra.mxu0 0.0
    %1744 = vmatprep.subr.mxu0 0.0
    %1745 = vmatpush1.msra.mxu0 0.0
    %1746 = vmatprep.subr.mxu0 0.0
    %1747 = vmatpush1.msra.mxu0 0.0
    %1748 = vmatprep.subr.mxu0 0.0
    %1749 = vmatpush1.msra.mxu0 0.0
    %1750 = vmatprep.subr.mxu0 0.0
    %1751 = vmatpush1.msra.mxu0 %v1715
    %1752 = vmatprep.subr.mxu0 0.0
    %1753 = vmatpush2.msra.mxu0 0.0
    %1754 = vmatprep.subr.mxu0 0.0
    %1755 = vmatpush2.msra.mxu0 0.0
    %1756 = vmatprep.subr.mxu0 0.0
    %1757 = vmatpush2.msra.mxu0 0.0
    %1758 = vmatprep.subr.mxu0 0.0
    %1759 = vmatpush2.msra.mxu0 0.0
    %1760 = vmatprep.subr.mxu0 0.0
    %1761 = vmatpush2.msra.mxu0 0.0
    %1762 = vmatprep.subr.mxu0 0.0
    %1763 = vmatpush2.msra.mxu0 0.0
    %1764 = vmatprep.subr.mxu0 0.0
    %1765 = vmatpush2.msra.mxu0 0.0
    %1766 = vmatprep.subr.mxu0 0.0
    %1767 = vmatpush2.msra.mxu0 0.0
    %1768 = vmatprep.subr.mxu0 0.0
    %1769 = vmatpush2.msra.mxu0 0.0
    %1770 = vmatprep.subr.mxu0 0.0
    %1771 = vmatpush2.msra.mxu0 0.0
    %1772 = vmatprep.subr.mxu0 0.0
    %1773 = vmatpush2.msra.mxu0 0.0
    %1774 = vmatprep.subr.mxu0 0.0
    %1775 = vmatpush2.msra.mxu0 0.0
    %1776 = vmatprep.subr.mxu0 0.0
    %1777 = vmatpush2.msra.mxu0 0.0
    %1778 = vmatprep.subr.mxu0 0.0
    %1779 = vmatpush2.msra.mxu0 0.0
    %1780 = vmatprep.subr.mxu0 0.0
    %1781 = vmatpush2.msra.mxu0 0.0
    %1782 = vmatprep.subr.mxu0 0.0
    %1783 = vmatpush2.msra.mxu0 0.0
    %1784 = vmatprep.mubr.f32.mxu0 0.0
    %1785 = vmatmul.mubr.f32.gmra.mxu0 %v1718
    %v1786 = vpop.f32.mrf.mxu0
    %v1787 = vadd.f32 0.0, %v1786
    %v1788 = vpop.f32.mrf.mxu0
    %1789 = vdwg.mxu0
    %v1790 = vadd.f32 %v1369, %v1710
    %v1791 = vadd.f32 %v1446, %v1787
    %1793 = vrot.lane.b32.xlu0 %v144, 32
    %v1794 = vpop.permute.xlu0 %1793
    %v1796 = vmul.f32 %v752, %v1794
    %v1797 = vmul.f32 %v757, %v1794
    %1798 = vrot.lane.b32.xlu0 %v144, 64
    %v1799 = vpop.permute.xlu0 %1798
    %v1801 = vmul.f32 %v752, %v1799
    %v1802 = vmul.f32 %v757, %v1799
    %1804 = vrot.lane.b32.xlu0 %v1796, 96
    %v1805 = vpop.permute.xlu0 %1804
    %v1806 = vsel %vm678, %v1805, 0
    %1808 = vmatprep.subr.mxu0 0.0
    %1809 = vmatpush1.xpose.msra.mxu0 0.0
    %1810 = vmatprep.subr.mxu0 0.0
    %1811 = vmatpush1.xpose.msra.mxu0 0.0
    %1812 = vmatprep.subr.mxu0 0.0
    %1813 = vmatpush1.xpose.msra.mxu0 0.0
    %1814 = vmatprep.subr.mxu0 0.0
    %1815 = vmatpush1.xpose.msra.mxu0 0.0
    %1816 = vmatprep.subr.mxu0 0.0
    %1817 = vmatpush1.xpose.msra.mxu0 0.0
    %1818 = vmatprep.subr.mxu0 0.0
    %1819 = vmatpush1.xpose.msra.mxu0 0.0
    %1820 = vmatprep.subr.mxu0 0.0
    %1821 = vmatpush1.xpose.msra.mxu0 0.0
    %1822 = vmatprep.subr.mxu0 0.0
    %1823 = vmatpush1.xpose.msra.mxu0 0.0
    %1824 = vmatprep.subr.mxu0 0.0
    %1825 = vmatpush1.xpose.msra.mxu0 0.0
    %1826 = vmatprep.subr.mxu0 0.0
    %1827 = vmatpush1.xpose.msra.mxu0 0.0
    %1828 = vmatprep.subr.mxu0 0.0
    %1829 = vmatpush1.xpose.msra.mxu0 0.0
    %1830 = vmatprep.subr.mxu0 0.0
    %1831 = vmatpush1.xpose.msra.mxu0 0.0
    %1832 = vmatprep.subr.mxu0 0.0
    %1833 = vmatpush1.xpose.msra.mxu0 0.0
    %1834 = vmatprep.subr.mxu0 0.0
    %1835 = vmatpush1.xpose.msra.mxu0 0.0
    %1836 = vmatprep.subr.mxu0 0.0
    %1837 = vmatpush1.xpose.msra.mxu0 0.0
    %1838 = vmatprep.subr.mxu0 0.0
    %1839 = vmatpush1.xpose.msra.mxu0 %v1806
    %1840 = vmatprep.subr.mxu0 0.0
    %1841 = vmatpush2.xpose.msra.mxu0 0.0
    %1842 = vmatprep.subr.mxu0 0.0
    %1843 = vmatpush2.xpose.msra.mxu0 0.0
    %1844 = vmatprep.subr.mxu0 0.0
    %1845 = vmatpush2.xpose.msra.mxu0 0.0
    %1846 = vmatprep.subr.mxu0 0.0
    %1847 = vmatpush2.xpose.msra.mxu0 0.0
    %1848 = vmatprep.subr.mxu0 0.0
    %1849 = vmatpush2.xpose.msra.mxu0 0.0
    %1850 = vmatprep.subr.mxu0 0.0
    %1851 = vmatpush2.xpose.msra.mxu0 0.0
    %1852 = vmatprep.subr.mxu0 0.0
    %1853 = vmatpush2.xpose.msra.mxu0 0.0
    %1854 = vmatprep.subr.mxu0 0.0
    %1855 = vmatpush2.xpose.msra.mxu0 0.0
    %1856 = vmatprep.subr.mxu0 0.0
    %1857 = vmatpush2.xpose.msra.mxu0 0.0
    %1858 = vmatprep.subr.mxu0 0.0
    %1859 = vmatpush2.xpose.msra.mxu0 0.0
    %1860 = vmatprep.subr.mxu0 0.0
    %1861 = vmatpush2.xpose.msra.mxu0 0.0
    %1862 = vmatprep.subr.mxu0 0.0
    %1863 = vmatpush2.xpose.msra.mxu0 0.0
    %1864 = vmatprep.subr.mxu0 0.0
    %1865 = vmatpush2.xpose.msra.mxu0 0.0
    %1866 = vmatprep.subr.mxu0 0.0
    %1867 = vmatpush2.xpose.msra.mxu0 0.0
    %1868 = vmatprep.subr.mxu0 0.0
    %1869 = vmatpush2.xpose.msra.mxu0 0.0
    %1870 = vmatprep.subr.mxu0 0.0
    %1871 = vmatpush2.xpose.msra.mxu0 0.0
    %1872 = vmatprep.mubr.f32.mxu0 0.0
    %1873 = vmatmul.mubr.f32.gmra.mxu0 %v775
    %v1874 = vpop.f32.mrf.mxu0
    %v1875 = vadd.f32 0.0, %v1874
    %v1876 = vpop.f32.mrf.mxu0
    %1877 = vdwg.mxu0
    %1879 = vrot.lane.b32.xlu0 %v1797, 96
    %v1880 = vpop.permute.xlu0 %1879
    %v1881 = vsel %vm678, %v1880, 0
    %1883 = vmatprep.subr.mxu0 0.0
    %1884 = vmatpush1.xpose.msra.mxu0 0.0
    %1885 = vmatprep.subr.mxu0 0.0
    %1886 = vmatpush1.xpose.msra.mxu0 0.0
    %1887 = vmatprep.subr.mxu0 0.0
    %1888 = vmatpush1.xpose.msra.mxu0 0.0
    %1889 = vmatprep.subr.mxu0 0.0
    %1890 = vmatpush1.xpose.msra.mxu0 0.0
    %1891 = vmatprep.subr.mxu0 0.0
    %1892 = vmatpush1.xpose.msra.mxu0 0.0
    %1893 = vmatprep.subr.mxu0 0.0
    %1894 = vmatpush1.xpose.msra.mxu0 0.0
    %1895 = vmatprep.subr.mxu0 0.0
    %1896 = vmatpush1.xpose.msra.mxu0 0.0
    %1897 = vmatprep.subr.mxu0 0.0
    %1898 = vmatpush1.xpose.msra.mxu0 0.0
    %1899 = vmatprep.subr.mxu0 0.0
    %1900 = vmatpush1.xpose.msra.mxu0 0.0
    %1901 = vmatprep.subr.mxu0 0.0
    %1902 = vmatpush1.xpose.msra.mxu0 0.0
    %1903 = vmatprep.subr.mxu0 0.0
    %1904 = vmatpush1.xpose.msra.mxu0 0.0
    %1905 = vmatprep.subr.mxu0 0.0
    %1906 = vmatpush1.xpose.msra.mxu0 0.0
    %1907 = vmatprep.subr.mxu0 0.0
    %1908 = vmatpush1.xpose.msra.mxu0 0.0
    %1909 = vmatprep.subr.mxu0 0.0
    %1910 = vmatpush1.xpose.msra.mxu0 0.0
    %1911 = vmatprep.subr.mxu0 0.0
    %1912 = vmatpush1.xpose.msra.mxu0 0.0
    %1913 = vmatprep.subr.mxu0 0.0
    %1914 = vmatpush1.xpose.msra.mxu0 %v1881
    %1915 = vmatprep.subr.mxu0 0.0
    %1916 = vmatpush2.xpose.msra.mxu0 0.0
    %1917 = vmatprep.subr.mxu0 0.0
    %1918 = vmatpush2.xpose.msra.mxu0 0.0
    %1919 = vmatprep.subr.mxu0 0.0
    %1920 = vmatpush2.xpose.msra.mxu0 0.0
    %1921 = vmatprep.subr.mxu0 0.0
    %1922 = vmatpush2.xpose.msra.mxu0 0.0
    %1923 = vmatprep.subr.mxu0 0.0
    %1924 = vmatpush2.xpose.msra.mxu0 0.0
    %1925 = vmatprep.subr.mxu0 0.0
    %1926 = vmatpush2.xpose.msra.mxu0 0.0
    %1927 = vmatprep.subr.mxu0 0.0
    %1928 = vmatpush2.xpose.msra.mxu0 0.0
    %1929 = vmatprep.subr.mxu0 0.0
    %1930 = vmatpush2.xpose.msra.mxu0 0.0
    %1931 = vmatprep.subr.mxu0 0.0
    %1932 = vmatpush2.xpose.msra.mxu0 0.0
    %1933 = vmatprep.subr.mxu0 0.0
    %1934 = vmatpush2.xpose.msra.mxu0 0.0
    %1935 = vmatprep.subr.mxu0 0.0
    %1936 = vmatpush2.xpose.msra.mxu0 0.0
    %1937 = vmatprep.subr.mxu0 0.0
    %1938 = vmatpush2.xpose.msra.mxu0 0.0
    %1939 = vmatprep.subr.mxu0 0.0
    %1940 = vmatpush2.xpose.msra.mxu0 0.0
    %1941 = vmatprep.subr.mxu0 0.0
    %1942 = vmatpush2.xpose.msra.mxu0 0.0
    %1943 = vmatprep.subr.mxu0 0.0
    %1944 = vmatpush2.xpose.msra.mxu0 0.0
    %1945 = vmatprep.subr.mxu0 0.0
    %1946 = vmatpush2.xpose.msra.mxu0 0.0
    %1947 = vmatprep.mubr.f32.mxu0 0.0
    %1948 = vmatmul.mubr.f32.gmra.mxu0 %v853
    %v1949 = vpop.f32.mrf.mxu0
    %v1950 = vadd.f32 0.0, %v1949
    %v1951 = vpop.f32.mrf.mxu0
    %1952 = vdwg.mxu0
    %v1953 = vmul.f32 %v1875, 0.35355338
    %v1954 = vmul.f32 %v1950, 0.35355338
    %v1955 = vadd.f32 %v1953, %v189
    %v1956 = vadd.f32 %v1954, %v190
    %v1957 = vsel %vm931, %v1955, -inf
    %1958 = vmax.xlane.f32.xlu0 %v1957
    %v1959 = vpop.xlane.xlu0 %1958
    %v1960 = vsel %vm931, %v1956, -inf
    %1961 = vmax.xlane.f32.xlu0 %v1960
    %v1962 = vpop.xlane.xlu0 %1961
    %v1963 = vsub.f32 %v1955, %v1959
    %v1964 = vsub.f32 %v1956, %v1962
    %v1965 = vmul.f32 %v1963, 1.442695
    %v1966 = vpow.pop %v1965
    %v1967 = vmul.f32 %v1964, 1.442695
    %v1968 = vpow.pop %v1967
    %v1969 = vsel %vm931, %v1966, 0.0
    %1970 = vadd.xlane.f32.xlu0 %v1969
    %v1971 = vpop.xlane.xlu0 %1970
    %v1972 = vsel %vm931, %v1968, 0.0
    %1973 = vadd.xlane.f32.xlu0 %v1972
    %v1974 = vpop.xlane.xlu0 %1973
    %v1975 = vrcp.pop %v1971
    %v1976 = vrcp.pop %v1974
    %v1977 = vmul.f32 %v1966, %v1975
    %v1978 = vmul.f32 %v1968, %v1976
    %1980 = vrot.lane.b32.xlu0 %v1801, 64
    %v1981 = vpop.permute.xlu0 %1980
    %v1984 = vsel %vm931, %v1977, 0
    %1986 = vmatprep.subr.mxu0 0.0
    %1987 = vmatpush1.msra.mxu0 0.0
    %1988 = vmatprep.subr.mxu0 0.0
    %1989 = vmatpush1.msra.mxu0 0.0
    %1990 = vmatprep.subr.mxu0 0.0
    %1991 = vmatpush1.msra.mxu0 0.0
    %1992 = vmatprep.subr.mxu0 0.0
    %1993 = vmatpush1.msra.mxu0 0.0
    %1994 = vmatprep.subr.mxu0 0.0
    %1995 = vmatpush1.msra.mxu0 0.0
    %1996 = vmatprep.subr.mxu0 0.0
    %1997 = vmatpush1.msra.mxu0 0.0
    %1998 = vmatprep.subr.mxu0 0.0
    %1999 = vmatpush1.msra.mxu0 0.0
    %2000 = vmatprep.subr.mxu0 0.0
    %2001 = vmatpush1.msra.mxu0 0.0
    %2002 = vmatprep.subr.mxu0 0.0
    %2003 = vmatpush1.msra.mxu0 0.0
    %2004 = vmatprep.subr.mxu0 0.0
    %2005 = vmatpush1.msra.mxu0 0.0
    %2006 = vmatprep.subr.mxu0 0.0
    %2007 = vmatpush1.msra.mxu0 0.0
    %2008 = vmatprep.subr.mxu0 0.0
    %2009 = vmatpush1.msra.mxu0 0.0
    %2010 = vmatprep.subr.mxu0 0.0
    %2011 = vmatpush1.msra.mxu0 0.0
    %2012 = vmatprep.subr.mxu0 0.0
    %2013 = vmatpush1.msra.mxu0 0.0
    %2014 = vmatprep.subr.mxu0 0.0
    %2015 = vmatpush1.msra.mxu0 0.0
    %2016 = vmatprep.subr.mxu0 0.0
    %2017 = vmatpush1.msra.mxu0 %v1981
    %2018 = vmatprep.subr.mxu0 0.0
    %2019 = vmatpush2.msra.mxu0 0.0
    %2020 = vmatprep.subr.mxu0 0.0
    %2021 = vmatpush2.msra.mxu0 0.0
    %2022 = vmatprep.subr.mxu0 0.0
    %2023 = vmatpush2.msra.mxu0 0.0
    %2024 = vmatprep.subr.mxu0 0.0
    %2025 = vmatpush2.msra.mxu0 0.0
    %2026 = vmatprep.subr.mxu0 0.0
    %2027 = vmatpush2.msra.mxu0 0.0
    %2028 = vmatprep.subr.mxu0 0.0
    %2029 = vmatpush2.msra.mxu0 0.0
    %2030 = vmatprep.subr.mxu0 0.0
    %2031 = vmatpush2.msra.mxu0 0.0
    %2032 = vmatprep.subr.mxu0 0.0
    %2033 = vmatpush2.msra.mxu0 0.0
    %2034 = vmatprep.subr.mxu0 0.0
    %2035 = vmatpush2.msra.mxu0 0.0
    %2036 = vmatprep.subr.mxu0 0.0
    %2037 = vmatpush2.msra.mxu0 0.0
    %2038 = vmatprep.subr.mxu0 0.0
    %2039 = vmatpush2.msra.mxu0 0.0
    %2040 = vmatprep.subr.mxu0 0.0
    %2041 = vmatpush2.msra.mxu0 0.0
    %2042 = vmatprep.subr.mxu0 0.0
    %2043 = vmatpush2.msra.mxu0 0.0
    %2044 = vmatprep.subr.mxu0 0.0
    %2045 = vmatpush2.msra.mxu0 0.0
    %2046 = vmatprep.subr.mxu0 0.0
    %2047 = vmatpush2.msra.mxu0 0.0
    %2048 = vmatprep.subr.mxu0 0.0
    %2049 = vmatpush2.msra.mxu0 0.0
    %2050 = vmatprep.mubr.f32.mxu0 0.0
    %2051 = vmatmul.mubr.f32.gmra.mxu0 %v1984
    %v2052 = vpop.f32.mrf.mxu0
    %v2053 = vadd.f32 0.0, %v2052
    %v2054 = vpop.f32.mrf.mxu0
    %2055 = vdwg.mxu0
    %2057 = vrot.lane.b32.xlu0 %v1802, 64
    %v2058 = vpop.permute.xlu0 %2057
    %v2061 = vsel %vm931, %v1978, 0
    %2063 = vmatprep.subr.mxu0 0.0
    %2064 = vmatpush1.msra.mxu0 0.0
    %2065 = vmatprep.subr.mxu0 0.0
    %2066 = vmatpush1.msra.mxu0 0.0
    %2067 = vmatprep.subr.mxu0 0.0
    %2068 = vmatpush1.msra.mxu0 0.0
    %2069 = vmatprep.subr.mxu0 0.0
    %2070 = vmatpush1.msra.mxu0 0.0
    %2071 = vmatprep.subr.mxu0 0.0
    %2072 = vmatpush1.msra.mxu0 0.0
    %2073 = vmatprep.subr.mxu0 0.0
    %2074 = vmatpush1.msra.mxu0 0.0
    %2075 = vmatprep.subr.mxu0 0.0
    %2076 = vmatpush1.msra.mxu0 0.0
    %2077 = vmatprep.subr.mxu0 0.0
    %2078 = vmatpush1.msra.mxu0 0.0
    %2079 = vmatprep.subr.mxu0 0.0
    %2080 = vmatpush1.msra.mxu0 0.0
    %2081 = vmatprep.subr.mxu0 0.0
    %2082 = vmatpush1.msra.mxu0 0.0
    %2083 = vmatprep.subr.mxu0 0.0
    %2084 = vmatpush1.msra.mxu0 0.0
    %2085 = vmatprep.subr.mxu0 0.0
    %2086 = vmatpush1.msra.mxu0 0.0
    %2087 = vmatprep.subr.mxu0 0.0
    %2088 = vmatpush1.msra.mxu0 0.0
    %2089 = vmatprep.subr.mxu0 0.0
    %2090 = vmatpush1.msra.mxu0 0.0
    %2091 = vmatprep.subr.mxu0 0.0
    %2092 = vmatpush1.msra.mxu0 0.0
    %2093 = vmatprep.subr.mxu0 0.0
    %2094 = vmatpush1.msra.mxu0 %v2058
    %2095 = vmatprep.subr.mxu0 0.0
    %2096 = vmatpush2.msra.mxu0 0.0
    %2097 = vmatprep.subr.mxu0 0.0
    %2098 = vmatpush2.msra.mxu0 0.0
    %2099 = vmatprep.subr.mxu0 0.0
    %2100 = vmatpush2.msra.mxu0 0.0
    %2101 = vmatprep.subr.mxu0 0.0
    %2102 = vmatpush2.msra.mxu0 0.0
    %2103 = vmatprep.subr.mxu0 0.0
    %2104 = vmatpush2.msra.mxu0 0.0
    %2105 = vmatprep.subr.mxu0 0.0
    %2106 = vmatpush2.msra.mxu0 0.0
    %2107 = vmatprep.subr.mxu0 0.0
    %2108 = vmatpush2.msra.mxu0 0.0
    %2109 = vmatprep.subr.mxu0 0.0
    %2110 = vmatpush2.msra.mxu0 0.0
    %2111 = vmatprep.subr.mxu0 0.0
    %2112 = vmatpush2.msra.mxu0 0.0
    %2113 = vmatprep.subr.mxu0 0.0
    %2114 = vmatpush2.msra.mxu0 0.0
    %2115 = vmatprep.subr.mxu0 0.0
    %2116 = vmatpush2.msra.mxu0 0.0
    %2117 = vmatprep.subr.mxu0 0.0
    %2118 = vmatpush2.msra.mxu0 0.0
    %2119 = vmatprep.subr.mxu0 0.0
    %2120 = vmatpush2.msra.mxu0 0.0
    %2121 = vmatprep.subr.mxu0 0.0
    %2122 = vmatpush2.msra.mxu0 0.0
    %2123 = vmatprep.subr.mxu0 0.0
    %2124 = vmatpush2.msra.mxu0 0.0
    %2125 = vmatprep.subr.mxu0 0.0
    %2126 = vmatpush2.msra.mxu0 0.0
    %2127 = vmatprep.mubr.f32.mxu0 0.0
    %2128 = vmatmul.mubr.f32.gmra.mxu0 %v2061
    %v2129 = vpop.f32.mrf.mxu0
    %v2130 = vadd.f32 0.0, %v2129
    %v2131 = vpop.f32.mrf.mxu0
    %2132 = vdwg.mxu0
    %v2133 = vadd.f32 %v1790, %v2053
    %v2134 = vadd.f32 %v1791, %v2130
    %v2136 = vlaneseq
    %v2137 = vshrl.u32 %v2136, 7
    %v2138 = vsub.s32 0, %v2137
    %v2139 = vrot.slane %v669, %v2138
    %v2142 = vsel %vm678, %v2133, 0
    %v2145 = vsel %vm678, %v2134, 0
    %2147 = vmatprep.subr.mxu0 0.0
    %2148 = vmatpush1.msra.mxu0 0.0
    %2149 = vmatprep.subr.mxu0 0.0
    %2150 = vmatpush1.msra.mxu0 0.0
    %2151 = vmatprep.subr.mxu0 0.0
    %2152 = vmatpush1.msra.mxu0 0.0
    %2153 = vmatprep.subr.mxu0 0.0
    %2154 = vmatpush1.msra.mxu0 0.0
    %2155 = vmatprep.subr.mxu0 0.0
    %2156 = vmatpush1.msra.mxu0 0.0
    %2157 = vmatprep.subr.mxu0 0.0
    %2158 = vmatpush1.msra.mxu0 0.0
    %2159 = vmatprep.subr.mxu0 0.0
    %2160 = vmatpush1.msra.mxu0 0.0
    %2161 = vmatprep.subr.mxu0 0.0
    %2162 = vmatpush1.msra.mxu0 0.0
    %2163 = vmatprep.subr.mxu0 0.0
    %2164 = vmatpush1.msra.mxu0 0.0
    %2165 = vmatprep.subr.mxu0 0.0
    %2166 = vmatpush1.msra.mxu0 0.0
    %2167 = vmatprep.subr.mxu0 0.0
    %2168 = vmatpush1.msra.mxu0 0.0
    %2169 = vmatprep.subr.mxu0 0.0
    %2170 = vmatpush1.msra.mxu0 0.0
    %2171 = vmatprep.subr.mxu0 0.0
    %2172 = vmatpush1.msra.mxu0 %v668
    %2173 = vmatprep.subr.mxu0 0.0
    %2174 = vmatpush1.msra.mxu0 %v667
    %2175 = vmatprep.subr.mxu0 0.0
    %2176 = vmatpush1.msra.mxu0 %v666
    %2177 = vmatprep.subr.mxu0 0.0
    %2178 = vmatpush1.msra.mxu0 %v665
    %2179 = vmatprep.subr.mxu0 0.0
    %2180 = vmatpush2.msra.mxu0 0.0
    %2181 = vmatprep.subr.mxu0 0.0
    %2182 = vmatpush2.msra.mxu0 0.0
    %2183 = vmatprep.subr.mxu0 0.0
    %2184 = vmatpush2.msra.mxu0 0.0
    %2185 = vmatprep.subr.mxu0 0.0
    %2186 = vmatpush2.msra.mxu0 0.0
    %2187 = vmatprep.subr.mxu0 0.0
    %2188 = vmatpush2.msra.mxu0 0.0
    %2189 = vmatprep.subr.mxu0 0.0
    %2190 = vmatpush2.msra.mxu0 0.0
    %2191 = vmatprep.subr.mxu0 0.0
    %2192 = vmatpush2.msra.mxu0 0.0
    %2193 = vmatprep.subr.mxu0 0.0
    %2194 = vmatpush2.msra.mxu0 0.0
    %2195 = vmatprep.subr.mxu0 0.0
    %2196 = vmatpush2.msra.mxu0 0.0
    %2197 = vmatprep.subr.mxu0 0.0
    %2198 = vmatpush2.msra.mxu0 0.0
    %2199 = vmatprep.subr.mxu0 0.0
    %2200 = vmatpush2.msra.mxu0 0.0
    %2201 = vmatprep.subr.mxu0 0.0
    %2202 = vmatpush2.msra.mxu0 0.0
    %2203 = vmatprep.subr.mxu0 0.0
    %2204 = vmatpush2.msra.mxu0 0.0
    %2205 = vmatprep.subr.mxu0 0.0
    %2206 = vmatpush2.msra.mxu0 0.0
    %2207 = vmatprep.subr.mxu0 0.0
    %2208 = vmatpush2.msra.mxu0 0.0
    %2209 = vmatprep.subr.mxu0 0.0
    %2210 = vmatpush2.msra.mxu0 0.0
    %2211 = vmatprep.mubr.f32.mxu0 0.0
    %2212 = vmatmul.mubr.f32.gmra.mxu0 %v2142
    %v2213 = vpop.f32.mrf.mxu0
    %v2214 = vadd.f32 %v2139, %v2213
    %v2215 = vpop.f32.mrf.mxu0
    %2216 = vmatprep.mubr.f32.mxu0 0.0
    %2217 = vmatmul.mubr.f32.gmra.mxu0 %v2145
    %v2218 = vpop.f32.mrf.mxu0
    %v2219 = vadd.f32 %v2139, %v2218
    %v2220 = vpop.f32.mrf.mxu0
    %2221 = vdwg.mxu0
    %v2222 = vadd.f32 %v2214, %v656
    %v2223 = vadd.f32 %v2219, %v657
    %v2224 = vsel %vm678, %v2222, 0.0
    %2225 = vadd.xlane.f32.xlu0 %v2224
    %v2226 = vpop.xlane.xlu0 %2225
    %v2227 = vsel %vm678, %v2223, 0.0
    %2228 = vadd.xlane.f32.xlu0 %v2227
    %v2229 = vpop.xlane.xlu0 %2228
    %v2230 = vrcp.pop 32.0
    %v2231 = vmul.f32 %v2226, %v2230
    %v2232 = vmul.f32 %v2229, %v2230
    %v2233 = vsub.f32 %v2222, %v2231
    %v2234 = vsub.f32 %v2223, %v2232
    %v2235 = vmul.f32 %v2233, %v2233
    %v2236 = vmul.f32 %v2234, %v2234
    %v2237 = vsel %vm678, %v2235, 0.0
    %2238 = vadd.xlane.f32.xlu0 %v2237
    %v2239 = vpop.xlane.xlu0 %2238
    %v2240 = vsel %vm678, %v2236, 0.0
    %2241 = vadd.xlane.f32.xlu0 %v2240
    %v2242 = vpop.xlane.xlu0 %2241
    %v2243 = vmul.f32 %v2239, %v2230
    %v2244 = vmul.f32 %v2242, %v2230
    %v2245 = vadd.f32 %v2243, 1e-06
    %v2246 = vadd.f32 %v2244, 1e-06
    %v2247 = vrsqrt.pop %v2245
    %v2248 = vrsqrt.pop %v2246
    %v2249 = vmul.f32 %v2233, %v2247
    %v2250 = vmul.f32 %v2234, %v2248
    %v2252 = vlaneseq
    %v2253 = vshrl.u32 %v2252, 7
    %v2254 = vsub.s32 0, %v2253
    %v2255 = vrot.slane %v670, %v2254
    %v2257 = vmul.f32 %v2249, %v2255
    %v2258 = vmul.f32 %v2250, %v2255
    %v2260 = vlaneseq
    %v2261 = vshrl.u32 %v2260, 7
    %v2262 = vsub.s32 0, %v2261
    %v2263 = vrot.slane %v671, %v2262
    %v2265 = vadd.f32 %v2257, %v2263
    %v2266 = vadd.f32 %v2258, %v2263
    %v2267 = vld [vmem:[%s35] sm:$0xff]
    %v2268 = vld [vmem:[%s35 + $0x8] sm:$0xff]
    %v2269 = vld [vmem:[%s35 + $0x10] sm:$0xff]
    %v2270 = vld [vmem:[%s35 + $0x18] sm:$0xff]
    %v2271 = vld [vmem:[%s37] sm:$0x1]
    %v2272 = vld [vmem:[%s39] sm:$0xff]
    %v2273 = vld [vmem:[%s39 + $0x8] sm:$0xff]
    %v2274 = vld [vmem:[%s39 + $0x10] sm:$0xff]
    %v2275 = vld [vmem:[%s39 + $0x18] sm:$0xff]
    %v2276 = vld [vmem:[%s41] sm:$0x1]
    %v2277 = vld [vmem:[%s43] sm:$0x1]
    %v2278 = vld [vmem:[%s45] sm:$0x1]
    %v2280 = vlaneseq
    %v2281 = vshrl.u32 %v2280, 7
    %v2282 = vsub.s32 0, %v2281
    %v2283 = vrot.slane %v2271, %v2282
    %v2286 = vsel %vm678, %v2265, 0
    %v2289 = vsel %vm678, %v2266, 0
    %2291 = vmatprep.subr.mxu0 0.0
    %2292 = vmatpush1.msra.mxu0 0.0
    %2293 = vmatprep.subr.mxu0 0.0
    %2294 = vmatpush1.msra.mxu0 0.0
    %2295 = vmatprep.subr.mxu0 0.0
    %2296 = vmatpush1.msra.mxu0 0.0
    %2297 = vmatprep.subr.mxu0 0.0
    %2298 = vmatpush1.msra.mxu0 0.0
    %2299 = vmatprep.subr.mxu0 0.0
    %2300 = vmatpush1.msra.mxu0 0.0
    %2301 = vmatprep.subr.mxu0 0.0
    %2302 = vmatpush1.msra.mxu0 0.0
    %2303 = vmatprep.subr.mxu0 0.0
    %2304 = vmatpush1.msra.mxu0 0.0
    %2305 = vmatprep.subr.mxu0 0.0
    %2306 = vmatpush1.msra.mxu0 0.0
    %2307 = vmatprep.subr.mxu0 0.0
    %2308 = vmatpush1.msra.mxu0 0.0
    %2309 = vmatprep.subr.mxu0 0.0
    %2310 = vmatpush1.msra.mxu0 0.0
    %2311 = vmatprep.subr.mxu0 0.0
    %2312 = vmatpush1.msra.mxu0 0.0
    %2313 = vmatprep.subr.mxu0 0.0
    %2314 = vmatpush1.msra.mxu0 0.0
    %2315 = vmatprep.subr.mxu0 0.0
    %2316 = vmatpush1.msra.mxu0 %v2270
    %2317 = vmatprep.subr.mxu0 0.0
    %2318 = vmatpush1.msra.mxu0 %v2269
    %2319 = vmatprep.subr.mxu0 0.0
    %2320 = vmatpush1.msra.mxu0 %v2268
    %2321 = vmatprep.subr.mxu0 0.0
    %2322 = vmatpush1.msra.mxu0 %v2267
    %2323 = vmatprep.subr.mxu0 0.0
    %2324 = vmatpush2.msra.mxu0 0.0
    %2325 = vmatprep.subr.mxu0 0.0
    %2326 = vmatpush2.msra.mxu0 0.0
    %2327 = vmatprep.subr.mxu0 0.0
    %2328 = vmatpush2.msra.mxu0 0.0
    %2329 = vmatprep.subr.mxu0 0.0
    %2330 = vmatpush2.msra.mxu0 0.0
    %2331 = vmatprep.subr.mxu0 0.0
    %2332 = vmatpush2.msra.mxu0 0.0
    %2333 = vmatprep.subr.mxu0 0.0
    %2334 = vmatpush2.msra.mxu0 0.0
    %2335 = vmatprep.subr.mxu0 0.0
    %2336 = vmatpush2.msra.mxu0 0.0
    %2337 = vmatprep.subr.mxu0 0.0
    %2338 = vmatpush2.msra.mxu0 0.0
    %2339 = vmatprep.subr.mxu0 0.0
    %2340 = vmatpush2.msra.mxu0 0.0
    %2341 = vmatprep.subr.mxu0 0.0
    %2342 = vmatpush2.msra.mxu0 0.0
    %2343 = vmatprep.subr.mxu0 0.0
    %2344 = vmatpush2.msra.mxu0 0.0
    %2345 = vmatprep.subr.mxu0 0.0
    %2346 = vmatpush2.msra.mxu0 0.0
    %2347 = vmatprep.subr.mxu0 0.0
    %2348 = vmatpush2.msra.mxu0 0.0
    %2349 = vmatprep.subr.mxu0 0.0
    %2350 = vmatpush2.msra.mxu0 0.0
    %2351 = vmatprep.subr.mxu0 0.0
    %2352 = vmatpush2.msra.mxu0 0.0
    %2353 = vmatprep.subr.mxu0 0.0
    %2354 = vmatpush2.msra.mxu0 0.0
    %2355 = vmatprep.mubr.f32.mxu0 0.0
    %2356 = vmatmul.mubr.f32.gmra.mxu0 %v2286
    %v2357 = vpop.f32.mrf.mxu0
    %v2358 = vadd.f32 %v2283, %v2357
    %v2359 = vpop.f32.mrf.mxu0
    %2360 = vmatprep.mubr.f32.mxu0 0.0
    %2361 = vmatmul.mubr.f32.gmra.mxu0 %v2289
    %v2362 = vpop.f32.mrf.mxu0
    %v2363 = vadd.f32 %v2283, %v2362
    %v2364 = vpop.f32.mrf.mxu0
    %2365 = vdwg.mxu0
    %2370 = vrot.lane.b32.xlu0 %v2267, 96
    %v2371 = vpop.permute.xlu0 %2370
    %2372 = vrot.lane.b32.xlu0 %v2268, 96
    %v2373 = vpop.permute.xlu0 %2372
    %2374 = vrot.lane.b32.xlu0 %v2269, 96
    %v2375 = vpop.permute.xlu0 %2374
    %2376 = vrot.lane.b32.xlu0 %v2270, 96
    %v2377 = vpop.permute.xlu0 %2376
    %2382 = vrot.lane.b32.xlu0 %v2283, 96
    %v2383 = vpop.permute.xlu0 %2382
    %v2386 = vsel %vm678, %v658, 0
    %v2389 = vsel %vm678, %v659, 0
    %2391 = vmatprep.subr.mxu0 0.0
    %2392 = vmatpush1.msra.mxu0 0.0
    %2393 = vmatprep.subr.mxu0 0.0
    %2394 = vmatpush1.msra.mxu0 0.0
    %2395 = vmatprep.subr.mxu0 0.0
    %2396 = vmatpush1.msra.mxu0 0.0
    %2397 = vmatprep.subr.mxu0 0.0
    %2398 = vmatpush1.msra.mxu0 0.0
    %2399 = vmatprep.subr.mxu0 0.0
    %2400 = vmatpush1.msra.mxu0 0.0
    %2401 = vmatprep.subr.mxu0 0.0
    %2402 = vmatpush1.msra.mxu0 0.0
    %2403 = vmatprep.subr.mxu0 0.0
    %2404 = vmatpush1.msra.mxu0 0.0
    %2405 = vmatprep.subr.mxu0 0.0
    %2406 = vmatpush1.msra.mxu0 0.0
    %2407 = vmatprep.subr.mxu0 0.0
    %2408 = vmatpush1.msra.mxu0 0.0
    %2409 = vmatprep.subr.mxu0 0.0
    %2410 = vmatpush1.msra.mxu0 0.0
    %2411 = vmatprep.subr.mxu0 0.0
    %2412 = vmatpush1.msra.mxu0 0.0
    %2413 = vmatprep.subr.mxu0 0.0
    %2414 = vmatpush1.msra.mxu0 0.0
    %2415 = vmatprep.subr.mxu0 0.0
    %2416 = vmatpush1.msra.mxu0 %v2377
    %2417 = vmatprep.subr.mxu0 0.0
    %2418 = vmatpush1.msra.mxu0 %v2375
    %2419 = vmatprep.subr.mxu0 0.0
    %2420 = vmatpush1.msra.mxu0 %v2373
    %2421 = vmatprep.subr.mxu0 0.0
    %2422 = vmatpush1.msra.mxu0 %v2371
    %2423 = vmatprep.subr.mxu0 0.0
    %2424 = vmatpush2.msra.mxu0 0.0
    %2425 = vmatprep.subr.mxu0 0.0
    %2426 = vmatpush2.msra.mxu0 0.0
    %2427 = vmatprep.subr.mxu0 0.0
    %2428 = vmatpush2.msra.mxu0 0.0
    %2429 = vmatprep.subr.mxu0 0.0
    %2430 = vmatpush2.msra.mxu0 0.0
    %2431 = vmatprep.subr.mxu0 0.0
    %2432 = vmatpush2.msra.mxu0 0.0
    %2433 = vmatprep.subr.mxu0 0.0
    %2434 = vmatpush2.msra.mxu0 0.0
    %2435 = vmatprep.subr.mxu0 0.0
    %2436 = vmatpush2.msra.mxu0 0.0
    %2437 = vmatprep.subr.mxu0 0.0
    %2438 = vmatpush2.msra.mxu0 0.0
    %2439 = vmatprep.subr.mxu0 0.0
    %2440 = vmatpush2.msra.mxu0 0.0
    %2441 = vmatprep.subr.mxu0 0.0
    %2442 = vmatpush2.msra.mxu0 0.0
    %2443 = vmatprep.subr.mxu0 0.0
    %2444 = vmatpush2.msra.mxu0 0.0
    %2445 = vmatprep.subr.mxu0 0.0
    %2446 = vmatpush2.msra.mxu0 0.0
    %2447 = vmatprep.subr.mxu0 0.0
    %2448 = vmatpush2.msra.mxu0 0.0
    %2449 = vmatprep.subr.mxu0 0.0
    %2450 = vmatpush2.msra.mxu0 0.0
    %2451 = vmatprep.subr.mxu0 0.0
    %2452 = vmatpush2.msra.mxu0 0.0
    %2453 = vmatprep.subr.mxu0 0.0
    %2454 = vmatpush2.msra.mxu0 0.0
    %2455 = vmatprep.mubr.f32.mxu0 0.0
    %2456 = vmatmul.mubr.f32.gmra.mxu0 %v2386
    %v2457 = vpop.f32.mrf.mxu0
    %v2458 = vadd.f32 %v2383, %v2457
    %v2459 = vpop.f32.mrf.mxu0
    %2460 = vmatprep.mubr.f32.mxu0 0.0
    %2461 = vmatmul.mubr.f32.gmra.mxu0 %v2389
    %v2462 = vpop.f32.mrf.mxu0
    %v2463 = vadd.f32 %v2383, %v2462
    %v2464 = vpop.f32.mrf.mxu0
    %2465 = vdwg.mxu0
    %v2466 = vmul.f32 %v2458, %v129
    %v2467 = vmul.f32 %v2463, %v129
    %v2468 = vmul.f32 %v2458, %v762
    %v2469 = vmul.f32 %v2463, %v762
    %v2471 = vsel %vm678, %v2358, 0
    %v2474 = vsel %vm678, %v2466, 0
    %2476 = vmatprep.subr.mxu0 0.0
    %2477 = vmatpush1.xpose.msra.mxu0 0.0
    %2478 = vmatprep.subr.mxu0 0.0
    %2479 = vmatpush1.xpose.msra.mxu0 0.0
    %2480 = vmatprep.subr.mxu0 0.0
    %2481 = vmatpush1.xpose.msra.mxu0 0.0
    %2482 = vmatprep.subr.mxu0 0.0
    %2483 = vmatpush1.xpose.msra.mxu0 0.0
    %2484 = vmatprep.subr.mxu0 0.0
    %2485 = vmatpush1.xpose.msra.mxu0 0.0
    %2486 = vmatprep.subr.mxu0 0.0
    %2487 = vmatpush1.xpose.msra.mxu0 0.0
    %2488 = vmatprep.subr.mxu0 0.0
    %2489 = vmatpush1.xpose.msra.mxu0 0.0
    %2490 = vmatprep.subr.mxu0 0.0
    %2491 = vmatpush1.xpose.msra.mxu0 0.0
    %2492 = vmatprep.subr.mxu0 0.0
    %2493 = vmatpush1.xpose.msra.mxu0 0.0
    %2494 = vmatprep.subr.mxu0 0.0
    %2495 = vmatpush1.xpose.msra.mxu0 0.0
    %2496 = vmatprep.subr.mxu0 0.0
    %2497 = vmatpush1.xpose.msra.mxu0 0.0
    %2498 = vmatprep.subr.mxu0 0.0
    %2499 = vmatpush1.xpose.msra.mxu0 0.0
    %2500 = vmatprep.subr.mxu0 0.0
    %2501 = vmatpush1.xpose.msra.mxu0 0.0
    %2502 = vmatprep.subr.mxu0 0.0
    %2503 = vmatpush1.xpose.msra.mxu0 0.0
    %2504 = vmatprep.subr.mxu0 0.0
    %2505 = vmatpush1.xpose.msra.mxu0 0.0
    %2506 = vmatprep.subr.mxu0 0.0
    %2507 = vmatpush1.xpose.msra.mxu0 %v2474
    %2508 = vmatprep.subr.mxu0 0.0
    %2509 = vmatpush2.xpose.msra.mxu0 0.0
    %2510 = vmatprep.subr.mxu0 0.0
    %2511 = vmatpush2.xpose.msra.mxu0 0.0
    %2512 = vmatprep.subr.mxu0 0.0
    %2513 = vmatpush2.xpose.msra.mxu0 0.0
    %2514 = vmatprep.subr.mxu0 0.0
    %2515 = vmatpush2.xpose.msra.mxu0 0.0
    %2516 = vmatprep.subr.mxu0 0.0
    %2517 = vmatpush2.xpose.msra.mxu0 0.0
    %2518 = vmatprep.subr.mxu0 0.0
    %2519 = vmatpush2.xpose.msra.mxu0 0.0
    %2520 = vmatprep.subr.mxu0 0.0
    %2521 = vmatpush2.xpose.msra.mxu0 0.0
    %2522 = vmatprep.subr.mxu0 0.0
    %2523 = vmatpush2.xpose.msra.mxu0 0.0
    %2524 = vmatprep.subr.mxu0 0.0
    %2525 = vmatpush2.xpose.msra.mxu0 0.0
    %2526 = vmatprep.subr.mxu0 0.0
    %2527 = vmatpush2.xpose.msra.mxu0 0.0
    %2528 = vmatprep.subr.mxu0 0.0
    %2529 = vmatpush2.xpose.msra.mxu0 0.0
    %2530 = vmatprep.subr.mxu0 0.0
    %2531 = vmatpush2.xpose.msra.mxu0 0.0
    %2532 = vmatprep.subr.mxu0 0.0
    %2533 = vmatpush2.xpose.msra.mxu0 0.0
    %2534 = vmatprep.subr.mxu0 0.0
    %2535 = vmatpush2.xpose.msra.mxu0 0.0
    %2536 = vmatprep.subr.mxu0 0.0
    %2537 = vmatpush2.xpose.msra.mxu0 0.0
    %2538 = vmatprep.subr.mxu0 0.0
    %2539 = vmatpush2.xpose.msra.mxu0 0.0
    %2540 = vmatprep.mubr.f32.mxu0 0.0
    %2541 = vmatmul.mubr.f32.gmra.mxu0 %v2471
    %v2542 = vpop.f32.mrf.mxu0
    %v2543 = vadd.f32 0.0, %v2542
    %v2544 = vpop.f32.mrf.mxu0
    %2545 = vdwg.mxu0
    %v2547 = vsel %vm678, %v2363, 0
    %v2550 = vsel %vm678, %v2467, 0
    %2552 = vmatprep.subr.mxu0 0.0
    %2553 = vmatpush1.xpose.msra.mxu0 0.0
    %2554 = vmatprep.subr.mxu0 0.0
    %2555 = vmatpush1.xpose.msra.mxu0 0.0
    %2556 = vmatprep.subr.mxu0 0.0
    %2557 = vmatpush1.xpose.msra.mxu0 0.0
    %2558 = vmatprep.subr.mxu0 0.0
    %2559 = vmatpush1.xpose.msra.mxu0 0.0
    %2560 = vmatprep.subr.mxu0 0.0
    %2561 = vmatpush1.xpose.msra.mxu0 0.0
    %2562 = vmatprep.subr.mxu0 0.0
    %2563 = vmatpush1.xpose.msra.mxu0 0.0
    %2564 = vmatprep.subr.mxu0 0.0
    %2565 = vmatpush1.xpose.msra.mxu0 0.0
    %2566 = vmatprep.subr.mxu0 0.0
    %2567 = vmatpush1.xpose.msra.mxu0 0.0
    %2568 = vmatprep.subr.mxu0 0.0
    %2569 = vmatpush1.xpose.msra.mxu0 0.0
    %2570 = vmatprep.subr.mxu0 0.0
    %2571 = vmatpush1.xpose.msra.mxu0 0.0
    %2572 = vmatprep.subr.mxu0 0.0
    %2573 = vmatpush1.xpose.msra.mxu0 0.0
    %2574 = vmatprep.subr.mxu0 0.0
    %2575 = vmatpush1.xpose.msra.mxu0 0.0
    %2576 = vmatprep.subr.mxu0 0.0
    %2577 = vmatpush1.xpose.msra.mxu0 0.0
    %2578 = vmatprep.subr.mxu0 0.0
    %2579 = vmatpush1.xpose.msra.mxu0 0.0
    %2580 = vmatprep.subr.mxu0 0.0
    %2581 = vmatpush1.xpose.msra.mxu0 0.0
    %2582 = vmatprep.subr.mxu0 0.0
    %2583 = vmatpush1.xpose.msra.mxu0 %v2550
    %2584 = vmatprep.subr.mxu0 0.0
    %2585 = vmatpush2.xpose.msra.mxu0 0.0
    %2586 = vmatprep.subr.mxu0 0.0
    %2587 = vmatpush2.xpose.msra.mxu0 0.0
    %2588 = vmatprep.subr.mxu0 0.0
    %2589 = vmatpush2.xpose.msra.mxu0 0.0
    %2590 = vmatprep.subr.mxu0 0.0
    %2591 = vmatpush2.xpose.msra.mxu0 0.0
    %2592 = vmatprep.subr.mxu0 0.0
    %2593 = vmatpush2.xpose.msra.mxu0 0.0
    %2594 = vmatprep.subr.mxu0 0.0
    %2595 = vmatpush2.xpose.msra.mxu0 0.0
    %2596 = vmatprep.subr.mxu0 0.0
    %2597 = vmatpush2.xpose.msra.mxu0 0.0
    %2598 = vmatprep.subr.mxu0 0.0
    %2599 = vmatpush2.xpose.msra.mxu0 0.0
    %2600 = vmatprep.subr.mxu0 0.0
    %2601 = vmatpush2.xpose.msra.mxu0 0.0
    %2602 = vmatprep.subr.mxu0 0.0
    %2603 = vmatpush2.xpose.msra.mxu0 0.0
    %2604 = vmatprep.subr.mxu0 0.0
    %2605 = vmatpush2.xpose.msra.mxu0 0.0
    %2606 = vmatprep.subr.mxu0 0.0
    %2607 = vmatpush2.xpose.msra.mxu0 0.0
    %2608 = vmatprep.subr.mxu0 0.0
    %2609 = vmatpush2.xpose.msra.mxu0 0.0
    %2610 = vmatprep.subr.mxu0 0.0
    %2611 = vmatpush2.xpose.msra.mxu0 0.0
    %2612 = vmatprep.subr.mxu0 0.0
    %2613 = vmatpush2.xpose.msra.mxu0 0.0
    %2614 = vmatprep.subr.mxu0 0.0
    %2615 = vmatpush2.xpose.msra.mxu0 0.0
    %2616 = vmatprep.mubr.f32.mxu0 0.0
    %2617 = vmatmul.mubr.f32.gmra.mxu0 %v2547
    %v2618 = vpop.f32.mrf.mxu0
    %v2619 = vadd.f32 0.0, %v2618
    %v2620 = vpop.f32.mrf.mxu0
    %2621 = vdwg.mxu0
    %v2622 = vmul.f32 %v2543, 0.35355338
    %v2623 = vmul.f32 %v2619, 0.35355338
    %v2624 = vadd.f32 %v2622, %v226
    %v2625 = vadd.f32 %v2623, %v227
    %v2626 = vsel %vm931, %v2624, -inf
    %2627 = vmax.xlane.f32.xlu0 %v2626
    %v2628 = vpop.xlane.xlu0 %2627
    %v2629 = vsel %vm931, %v2625, -inf
    %2630 = vmax.xlane.f32.xlu0 %v2629
    %v2631 = vpop.xlane.xlu0 %2630
    %v2632 = vsub.f32 %v2624, %v2628
    %v2633 = vsub.f32 %v2625, %v2631
    %v2634 = vmul.f32 %v2632, 1.442695
    %v2635 = vpow.pop %v2634
    %v2636 = vmul.f32 %v2633, 1.442695
    %v2637 = vpow.pop %v2636
    %v2638 = vsel %vm931, %v2635, 0.0
    %2639 = vadd.xlane.f32.xlu0 %v2638
    %v2640 = vpop.xlane.xlu0 %2639
    %v2641 = vsel %vm931, %v2637, 0.0
    %2642 = vadd.xlane.f32.xlu0 %v2641
    %v2643 = vpop.xlane.xlu0 %2642
    %v2644 = vrcp.pop %v2640
    %v2645 = vrcp.pop %v2643
    %v2646 = vmul.f32 %v2635, %v2644
    %v2647 = vmul.f32 %v2637, %v2645
    %v2648 = vmul.f32 %v2458, %v134
    %v2649 = vmul.f32 %v2463, %v134
    %v2650 = vmul.f32 %v2458, %v956
    %v2651 = vmul.f32 %v2463, %v956
    %v2653 = vsel %vm678, %v2648, 0
    %2655 = vmatprep.subr.mxu0 0.0
    %2656 = vmatpush1.xpose.msra.mxu0 0.0
    %2657 = vmatprep.subr.mxu0 0.0
    %2658 = vmatpush1.xpose.msra.mxu0 0.0
    %2659 = vmatprep.subr.mxu0 0.0
    %2660 = vmatpush1.xpose.msra.mxu0 0.0
    %2661 = vmatprep.subr.mxu0 0.0
    %2662 = vmatpush1.xpose.msra.mxu0 0.0
    %2663 = vmatprep.subr.mxu0 0.0
    %2664 = vmatpush1.xpose.msra.mxu0 0.0
    %2665 = vmatprep.subr.mxu0 0.0
    %2666 = vmatpush1.xpose.msra.mxu0 0.0
    %2667 = vmatprep.subr.mxu0 0.0
    %2668 = vmatpush1.xpose.msra.mxu0 0.0
    %2669 = vmatprep.subr.mxu0 0.0
    %2670 = vmatpush1.xpose.msra.mxu0 0.0
    %2671 = vmatprep.subr.mxu0 0.0
    %2672 = vmatpush1.xpose.msra.mxu0 0.0
    %2673 = vmatprep.subr.mxu0 0.0
    %2674 = vmatpush1.xpose.msra.mxu0 0.0
    %2675 = vmatprep.subr.mxu0 0.0
    %2676 = vmatpush1.xpose.msra.mxu0 0.0
    %2677 = vmatprep.subr.mxu0 0.0
    %2678 = vmatpush1.xpose.msra.mxu0 0.0
    %2679 = vmatprep.subr.mxu0 0.0
    %2680 = vmatpush1.xpose.msra.mxu0 0.0
    %2681 = vmatprep.subr.mxu0 0.0
    %2682 = vmatpush1.xpose.msra.mxu0 0.0
    %2683 = vmatprep.subr.mxu0 0.0
    %2684 = vmatpush1.xpose.msra.mxu0 0.0
    %2685 = vmatprep.subr.mxu0 0.0
    %2686 = vmatpush1.xpose.msra.mxu0 %v2653
    %2687 = vmatprep.subr.mxu0 0.0
    %2688 = vmatpush2.xpose.msra.mxu0 0.0
    %2689 = vmatprep.subr.mxu0 0.0
    %2690 = vmatpush2.xpose.msra.mxu0 0.0
    %2691 = vmatprep.subr.mxu0 0.0
    %2692 = vmatpush2.xpose.msra.mxu0 0.0
    %2693 = vmatprep.subr.mxu0 0.0
    %2694 = vmatpush2.xpose.msra.mxu0 0.0
    %2695 = vmatprep.subr.mxu0 0.0
    %2696 = vmatpush2.xpose.msra.mxu0 0.0
    %2697 = vmatprep.subr.mxu0 0.0
    %2698 = vmatpush2.xpose.msra.mxu0 0.0
    %2699 = vmatprep.subr.mxu0 0.0
    %2700 = vmatpush2.xpose.msra.mxu0 0.0
    %2701 = vmatprep.subr.mxu0 0.0
    %2702 = vmatpush2.xpose.msra.mxu0 0.0
    %2703 = vmatprep.subr.mxu0 0.0
    %2704 = vmatpush2.xpose.msra.mxu0 0.0
    %2705 = vmatprep.subr.mxu0 0.0
    %2706 = vmatpush2.xpose.msra.mxu0 0.0
    %2707 = vmatprep.subr.mxu0 0.0
    %2708 = vmatpush2.xpose.msra.mxu0 0.0
    %2709 = vmatprep.subr.mxu0 0.0
    %2710 = vmatpush2.xpose.msra.mxu0 0.0
    %2711 = vmatprep.subr.mxu0 0.0
    %2712 = vmatpush2.xpose.msra.mxu0 0.0
    %2713 = vmatprep.subr.mxu0 0.0
    %2714 = vmatpush2.xpose.msra.mxu0 0.0
    %2715 = vmatprep.subr.mxu0 0.0
    %2716 = vmatpush2.xpose.msra.mxu0 0.0
    %2717 = vmatprep.subr.mxu0 0.0
    %2718 = vmatpush2.xpose.msra.mxu0 0.0
    %2719 = vmatprep.mubr.f32.mxu0 0.0
    %2720 = vmatmul.mubr.f32.gmra.mxu0 %v2471
    %v2721 = vpop.f32.mrf.mxu0
    %v2722 = vadd.f32 0.0, %v2721
    %v2723 = vpop.f32.mrf.mxu0
    %2724 = vdwg.mxu0
    %v2726 = vsel %vm678, %v2649, 0
    %2728 = vmatprep.subr.mxu0 0.0
    %2729 = vmatpush1.xpose.msra.mxu0 0.0
    %2730 = vmatprep.subr.mxu0 0.0
    %2731 = vmatpush1.xpose.msra.mxu0 0.0
    %2732 = vmatprep.subr.mxu0 0.0
    %2733 = vmatpush1.xpose.msra.mxu0 0.0
    %2734 = vmatprep.subr.mxu0 0.0
    %2735 = vmatpush1.xpose.msra.mxu0 0.0
    %2736 = vmatprep.subr.mxu0 0.0
    %2737 = vmatpush1.xpose.msra.mxu0 0.0
    %2738 = vmatprep.subr.mxu0 0.0
    %2739 = vmatpush1.xpose.msra.mxu0 0.0
    %2740 = vmatprep.subr.mxu0 0.0
    %2741 = vmatpush1.xpose.msra.mxu0 0.0
    %2742 = vmatprep.subr.mxu0 0.0
    %2743 = vmatpush1.xpose.msra.mxu0 0.0
    %2744 = vmatprep.subr.mxu0 0.0
    %2745 = vmatpush1.xpose.msra.mxu0 0.0
    %2746 = vmatprep.subr.mxu0 0.0
    %2747 = vmatpush1.xpose.msra.mxu0 0.0
    %2748 = vmatprep.subr.mxu0 0.0
    %2749 = vmatpush1.xpose.msra.mxu0 0.0
    %2750 = vmatprep.subr.mxu0 0.0
    %2751 = vmatpush1.xpose.msra.mxu0 0.0
    %2752 = vmatprep.subr.mxu0 0.0
    %2753 = vmatpush1.xpose.msra.mxu0 0.0
    %2754 = vmatprep.subr.mxu0 0.0
    %2755 = vmatpush1.xpose.msra.mxu0 0.0
    %2756 = vmatprep.subr.mxu0 0.0
    %2757 = vmatpush1.xpose.msra.mxu0 0.0
    %2758 = vmatprep.subr.mxu0 0.0
    %2759 = vmatpush1.xpose.msra.mxu0 %v2726
    %2760 = vmatprep.subr.mxu0 0.0
    %2761 = vmatpush2.xpose.msra.mxu0 0.0
    %2762 = vmatprep.subr.mxu0 0.0
    %2763 = vmatpush2.xpose.msra.mxu0 0.0
    %2764 = vmatprep.subr.mxu0 0.0
    %2765 = vmatpush2.xpose.msra.mxu0 0.0
    %2766 = vmatprep.subr.mxu0 0.0
    %2767 = vmatpush2.xpose.msra.mxu0 0.0
    %2768 = vmatprep.subr.mxu0 0.0
    %2769 = vmatpush2.xpose.msra.mxu0 0.0
    %2770 = vmatprep.subr.mxu0 0.0
    %2771 = vmatpush2.xpose.msra.mxu0 0.0
    %2772 = vmatprep.subr.mxu0 0.0
    %2773 = vmatpush2.xpose.msra.mxu0 0.0
    %2774 = vmatprep.subr.mxu0 0.0
    %2775 = vmatpush2.xpose.msra.mxu0 0.0
    %2776 = vmatprep.subr.mxu0 0.0
    %2777 = vmatpush2.xpose.msra.mxu0 0.0
    %2778 = vmatprep.subr.mxu0 0.0
    %2779 = vmatpush2.xpose.msra.mxu0 0.0
    %2780 = vmatprep.subr.mxu0 0.0
    %2781 = vmatpush2.xpose.msra.mxu0 0.0
    %2782 = vmatprep.subr.mxu0 0.0
    %2783 = vmatpush2.xpose.msra.mxu0 0.0
    %2784 = vmatprep.subr.mxu0 0.0
    %2785 = vmatpush2.xpose.msra.mxu0 0.0
    %2786 = vmatprep.subr.mxu0 0.0
    %2787 = vmatpush2.xpose.msra.mxu0 0.0
    %2788 = vmatprep.subr.mxu0 0.0
    %2789 = vmatpush2.xpose.msra.mxu0 0.0
    %2790 = vmatprep.subr.mxu0 0.0
    %2791 = vmatpush2.xpose.msra.mxu0 0.0
    %2792 = vmatprep.mubr.f32.mxu0 0.0
    %2793 = vmatmul.mubr.f32.gmra.mxu0 %v2547
    %v2794 = vpop.f32.mrf.mxu0
    %v2795 = vadd.f32 0.0, %v2794
    %v2796 = vpop.f32.mrf.mxu0
    %2797 = vdwg.mxu0
    %v2798 = vmul.f32 %v2722, 0.35355338
    %v2799 = vmul.f32 %v2795, 0.35355338
    %v2800 = vadd.f32 %v2798, %v226
    %v2801 = vadd.f32 %v2799, %v227
    %v2802 = vsel %vm931, %v2800, -inf
    %2803 = vmax.xlane.f32.xlu0 %v2802
    %v2804 = vpop.xlane.xlu0 %2803
    %v2805 = vsel %vm931, %v2801, -inf
    %2806 = vmax.xlane.f32.xlu0 %v2805
    %v2807 = vpop.xlane.xlu0 %2806
    %v2808 = vsub.f32 %v2800, %v2804
    %v2809 = vsub.f32 %v2801, %v2807
    %v2810 = vmul.f32 %v2808, 1.442695
    %v2811 = vpow.pop %v2810
    %v2812 = vmul.f32 %v2809, 1.442695
    %v2813 = vpow.pop %v2812
    %v2814 = vsel %vm931, %v2811, 0.0
    %2815 = vadd.xlane.f32.xlu0 %v2814
    %v2816 = vpop.xlane.xlu0 %2815
    %v2817 = vsel %vm931, %v2813, 0.0
    %2818 = vadd.xlane.f32.xlu0 %v2817
    %v2819 = vpop.xlane.xlu0 %2818
    %v2820 = vrcp.pop %v2816
    %v2821 = vrcp.pop %v2819
    %v2822 = vmul.f32 %v2811, %v2820
    %v2823 = vmul.f32 %v2813, %v2821
    %2825 = vrot.lane.b32.xlu0 %v2650, 96
    %v2826 = vpop.permute.xlu0 %2825
    %v2829 = vsel %vm931, %v2822, 0
    %2831 = vmatprep.subr.mxu0 0.0
    %2832 = vmatpush1.msra.mxu0 0.0
    %2833 = vmatprep.subr.mxu0 0.0
    %2834 = vmatpush1.msra.mxu0 0.0
    %2835 = vmatprep.subr.mxu0 0.0
    %2836 = vmatpush1.msra.mxu0 0.0
    %2837 = vmatprep.subr.mxu0 0.0
    %2838 = vmatpush1.msra.mxu0 0.0
    %2839 = vmatprep.subr.mxu0 0.0
    %2840 = vmatpush1.msra.mxu0 0.0
    %2841 = vmatprep.subr.mxu0 0.0
    %2842 = vmatpush1.msra.mxu0 0.0
    %2843 = vmatprep.subr.mxu0 0.0
    %2844 = vmatpush1.msra.mxu0 0.0
    %2845 = vmatprep.subr.mxu0 0.0
    %2846 = vmatpush1.msra.mxu0 0.0
    %2847 = vmatprep.subr.mxu0 0.0
    %2848 = vmatpush1.msra.mxu0 0.0
    %2849 = vmatprep.subr.mxu0 0.0
    %2850 = vmatpush1.msra.mxu0 0.0
    %2851 = vmatprep.subr.mxu0 0.0
    %2852 = vmatpush1.msra.mxu0 0.0
    %2853 = vmatprep.subr.mxu0 0.0
    %2854 = vmatpush1.msra.mxu0 0.0
    %2855 = vmatprep.subr.mxu0 0.0
    %2856 = vmatpush1.msra.mxu0 0.0
    %2857 = vmatprep.subr.mxu0 0.0
    %2858 = vmatpush1.msra.mxu0 0.0
    %2859 = vmatprep.subr.mxu0 0.0
    %2860 = vmatpush1.msra.mxu0 0.0
    %2861 = vmatprep.subr.mxu0 0.0
    %2862 = vmatpush1.msra.mxu0 %v2826
    %2863 = vmatprep.subr.mxu0 0.0
    %2864 = vmatpush2.msra.mxu0 0.0
    %2865 = vmatprep.subr.mxu0 0.0
    %2866 = vmatpush2.msra.mxu0 0.0
    %2867 = vmatprep.subr.mxu0 0.0
    %2868 = vmatpush2.msra.mxu0 0.0
    %2869 = vmatprep.subr.mxu0 0.0
    %2870 = vmatpush2.msra.mxu0 0.0
    %2871 = vmatprep.subr.mxu0 0.0
    %2872 = vmatpush2.msra.mxu0 0.0
    %2873 = vmatprep.subr.mxu0 0.0
    %2874 = vmatpush2.msra.mxu0 0.0
    %2875 = vmatprep.subr.mxu0 0.0
    %2876 = vmatpush2.msra.mxu0 0.0
    %2877 = vmatprep.subr.mxu0 0.0
    %2878 = vmatpush2.msra.mxu0 0.0
    %2879 = vmatprep.subr.mxu0 0.0
    %2880 = vmatpush2.msra.mxu0 0.0
    %2881 = vmatprep.subr.mxu0 0.0
    %2882 = vmatpush2.msra.mxu0 0.0
    %2883 = vmatprep.subr.mxu0 0.0
    %2884 = vmatpush2.msra.mxu0 0.0
    %2885 = vmatprep.subr.mxu0 0.0
    %2886 = vmatpush2.msra.mxu0 0.0
    %2887 = vmatprep.subr.mxu0 0.0
    %2888 = vmatpush2.msra.mxu0 0.0
    %2889 = vmatprep.subr.mxu0 0.0
    %2890 = vmatpush2.msra.mxu0 0.0
    %2891 = vmatprep.subr.mxu0 0.0
    %2892 = vmatpush2.msra.mxu0 0.0
    %2893 = vmatprep.subr.mxu0 0.0
    %2894 = vmatpush2.msra.mxu0 0.0
    %2895 = vmatprep.mubr.f32.mxu0 0.0
    %2896 = vmatmul.mubr.f32.gmra.mxu0 %v2829
    %v2897 = vpop.f32.mrf.mxu0
    %v2898 = vadd.f32 0.0, %v2897
    %v2899 = vpop.f32.mrf.mxu0
    %2900 = vdwg.mxu0
    %2902 = vrot.lane.b32.xlu0 %v2651, 96
    %v2903 = vpop.permute.xlu0 %2902
    %v2906 = vsel %vm931, %v2823, 0
    %2908 = vmatprep.subr.mxu0 0.0
    %2909 = vmatpush1.msra.mxu0 0.0
    %2910 = vmatprep.subr.mxu0 0.0
    %2911 = vmatpush1.msra.mxu0 0.0
    %2912 = vmatprep.subr.mxu0 0.0
    %2913 = vmatpush1.msra.mxu0 0.0
    %2914 = vmatprep.subr.mxu0 0.0
    %2915 = vmatpush1.msra.mxu0 0.0
    %2916 = vmatprep.subr.mxu0 0.0
    %2917 = vmatpush1.msra.mxu0 0.0
    %2918 = vmatprep.subr.mxu0 0.0
    %2919 = vmatpush1.msra.mxu0 0.0
    %2920 = vmatprep.subr.mxu0 0.0
    %2921 = vmatpush1.msra.mxu0 0.0
    %2922 = vmatprep.subr.mxu0 0.0
    %2923 = vmatpush1.msra.mxu0 0.0
    %2924 = vmatprep.subr.mxu0 0.0
    %2925 = vmatpush1.msra.mxu0 0.0
    %2926 = vmatprep.subr.mxu0 0.0
    %2927 = vmatpush1.msra.mxu0 0.0
    %2928 = vmatprep.subr.mxu0 0.0
    %2929 = vmatpush1.msra.mxu0 0.0
    %2930 = vmatprep.subr.mxu0 0.0
    %2931 = vmatpush1.msra.mxu0 0.0
    %2932 = vmatprep.subr.mxu0 0.0
    %2933 = vmatpush1.msra.mxu0 0.0
    %2934 = vmatprep.subr.mxu0 0.0
    %2935 = vmatpush1.msra.mxu0 0.0
    %2936 = vmatprep.subr.mxu0 0.0
    %2937 = vmatpush1.msra.mxu0 0.0
    %2938 = vmatprep.subr.mxu0 0.0
    %2939 = vmatpush1.msra.mxu0 %v2903
    %2940 = vmatprep.subr.mxu0 0.0
    %2941 = vmatpush2.msra.mxu0 0.0
    %2942 = vmatprep.subr.mxu0 0.0
    %2943 = vmatpush2.msra.mxu0 0.0
    %2944 = vmatprep.subr.mxu0 0.0
    %2945 = vmatpush2.msra.mxu0 0.0
    %2946 = vmatprep.subr.mxu0 0.0
    %2947 = vmatpush2.msra.mxu0 0.0
    %2948 = vmatprep.subr.mxu0 0.0
    %2949 = vmatpush2.msra.mxu0 0.0
    %2950 = vmatprep.subr.mxu0 0.0
    %2951 = vmatpush2.msra.mxu0 0.0
    %2952 = vmatprep.subr.mxu0 0.0
    %2953 = vmatpush2.msra.mxu0 0.0
    %2954 = vmatprep.subr.mxu0 0.0
    %2955 = vmatpush2.msra.mxu0 0.0
    %2956 = vmatprep.subr.mxu0 0.0
    %2957 = vmatpush2.msra.mxu0 0.0
    %2958 = vmatprep.subr.mxu0 0.0
    %2959 = vmatpush2.msra.mxu0 0.0
    %2960 = vmatprep.subr.mxu0 0.0
    %2961 = vmatpush2.msra.mxu0 0.0
    %2962 = vmatprep.subr.mxu0 0.0
    %2963 = vmatpush2.msra.mxu0 0.0
    %2964 = vmatprep.subr.mxu0 0.0
    %2965 = vmatpush2.msra.mxu0 0.0
    %2966 = vmatprep.subr.mxu0 0.0
    %2967 = vmatpush2.msra.mxu0 0.0
    %2968 = vmatprep.subr.mxu0 0.0
    %2969 = vmatpush2.msra.mxu0 0.0
    %2970 = vmatprep.subr.mxu0 0.0
    %2971 = vmatpush2.msra.mxu0 0.0
    %2972 = vmatprep.mubr.f32.mxu0 0.0
    %2973 = vmatmul.mubr.f32.gmra.mxu0 %v2906
    %v2974 = vpop.f32.mrf.mxu0
    %v2975 = vadd.f32 0.0, %v2974
    %v2976 = vpop.f32.mrf.mxu0
    %2977 = vdwg.mxu0
    %2979 = vrot.lane.b32.xlu0 %v2468, 96
    %v2980 = vpop.permute.xlu0 %2979
    %v2983 = vsel %vm931, %v2646, 0
    %2985 = vmatprep.subr.mxu0 0.0
    %2986 = vmatpush1.msra.mxu0 0.0
    %2987 = vmatprep.subr.mxu0 0.0
    %2988 = vmatpush1.msra.mxu0 0.0
    %2989 = vmatprep.subr.mxu0 0.0
    %2990 = vmatpush1.msra.mxu0 0.0
    %2991 = vmatprep.subr.mxu0 0.0
    %2992 = vmatpush1.msra.mxu0 0.0
    %2993 = vmatprep.subr.mxu0 0.0
    %2994 = vmatpush1.msra.mxu0 0.0
    %2995 = vmatprep.subr.mxu0 0.0
    %2996 = vmatpush1.msra.mxu0 0.0
    %2997 = vmatprep.subr.mxu0 0.0
    %2998 = vmatpush1.msra.mxu0 0.0
    %2999 = vmatprep.subr.mxu0 0.0
    %3000 = vmatpush1.msra.mxu0 0.0
    %3001 = vmatprep.subr.mxu0 0.0
    %3002 = vmatpush1.msra.mxu0 0.0
    %3003 = vmatprep.subr.mxu0 0.0
    %3004 = vmatpush1.msra.mxu0 0.0
    %3005 = vmatprep.subr.mxu0 0.0
    %3006 = vmatpush1.msra.mxu0 0.0
    %3007 = vmatprep.subr.mxu0 0.0
    %3008 = vmatpush1.msra.mxu0 0.0
    %3009 = vmatprep.subr.mxu0 0.0
    %3010 = vmatpush1.msra.mxu0 0.0
    %3011 = vmatprep.subr.mxu0 0.0
    %3012 = vmatpush1.msra.mxu0 0.0
    %3013 = vmatprep.subr.mxu0 0.0
    %3014 = vmatpush1.msra.mxu0 0.0
    %3015 = vmatprep.subr.mxu0 0.0
    %3016 = vmatpush1.msra.mxu0 %v2980
    %3017 = vmatprep.subr.mxu0 0.0
    %3018 = vmatpush2.msra.mxu0 0.0
    %3019 = vmatprep.subr.mxu0 0.0
    %3020 = vmatpush2.msra.mxu0 0.0
    %3021 = vmatprep.subr.mxu0 0.0
    %3022 = vmatpush2.msra.mxu0 0.0
    %3023 = vmatprep.subr.mxu0 0.0
    %3024 = vmatpush2.msra.mxu0 0.0
    %3025 = vmatprep.subr.mxu0 0.0
    %3026 = vmatpush2.msra.mxu0 0.0
    %3027 = vmatprep.subr.mxu0 0.0
    %3028 = vmatpush2.msra.mxu0 0.0
    %3029 = vmatprep.subr.mxu0 0.0
    %3030 = vmatpush2.msra.mxu0 0.0
    %3031 = vmatprep.subr.mxu0 0.0
    %3032 = vmatpush2.msra.mxu0 0.0
    %3033 = vmatprep.subr.mxu0 0.0
    %3034 = vmatpush2.msra.mxu0 0.0
    %3035 = vmatprep.subr.mxu0 0.0
    %3036 = vmatpush2.msra.mxu0 0.0
    %3037 = vmatprep.subr.mxu0 0.0
    %3038 = vmatpush2.msra.mxu0 0.0
    %3039 = vmatprep.subr.mxu0 0.0
    %3040 = vmatpush2.msra.mxu0 0.0
    %3041 = vmatprep.subr.mxu0 0.0
    %3042 = vmatpush2.msra.mxu0 0.0
    %3043 = vmatprep.subr.mxu0 0.0
    %3044 = vmatpush2.msra.mxu0 0.0
    %3045 = vmatprep.subr.mxu0 0.0
    %3046 = vmatpush2.msra.mxu0 0.0
    %3047 = vmatprep.subr.mxu0 0.0
    %3048 = vmatpush2.msra.mxu0 0.0
    %3049 = vmatprep.mubr.f32.mxu0 0.0
    %3050 = vmatmul.mubr.f32.gmra.mxu0 %v2983
    %v3051 = vpop.f32.mrf.mxu0
    %v3052 = vadd.f32 %v2898, %v3051
    %v3053 = vpop.f32.mrf.mxu0
    %3054 = vdwg.mxu0
    %3056 = vrot.lane.b32.xlu0 %v2469, 96
    %v3057 = vpop.permute.xlu0 %3056
    %v3060 = vsel %vm931, %v2647, 0
    %3062 = vmatprep.subr.mxu0 0.0
    %3063 = vmatpush1.msra.mxu0 0.0
    %3064 = vmatprep.subr.mxu0 0.0
    %3065 = vmatpush1.msra.mxu0 0.0
    %3066 = vmatprep.subr.mxu0 0.0
    %3067 = vmatpush1.msra.mxu0 0.0
    %3068 = vmatprep.subr.mxu0 0.0
    %3069 = vmatpush1.msra.mxu0 0.0
    %3070 = vmatprep.subr.mxu0 0.0
    %3071 = vmatpush1.msra.mxu0 0.0
    %3072 = vmatprep.subr.mxu0 0.0
    %3073 = vmatpush1.msra.mxu0 0.0
    %3074 = vmatprep.subr.mxu0 0.0
    %3075 = vmatpush1.msra.mxu0 0.0
    %3076 = vmatprep.subr.mxu0 0.0
    %3077 = vmatpush1.msra.mxu0 0.0
    %3078 = vmatprep.subr.mxu0 0.0
    %3079 = vmatpush1.msra.mxu0 0.0
    %3080 = vmatprep.subr.mxu0 0.0
    %3081 = vmatpush1.msra.mxu0 0.0
    %3082 = vmatprep.subr.mxu0 0.0
    %3083 = vmatpush1.msra.mxu0 0.0
    %3084 = vmatprep.subr.mxu0 0.0
    %3085 = vmatpush1.msra.mxu0 0.0
    %3086 = vmatprep.subr.mxu0 0.0
    %3087 = vmatpush1.msra.mxu0 0.0
    %3088 = vmatprep.subr.mxu0 0.0
    %3089 = vmatpush1.msra.mxu0 0.0
    %3090 = vmatprep.subr.mxu0 0.0
    %3091 = vmatpush1.msra.mxu0 0.0
    %3092 = vmatprep.subr.mxu0 0.0
    %3093 = vmatpush1.msra.mxu0 %v3057
    %3094 = vmatprep.subr.mxu0 0.0
    %3095 = vmatpush2.msra.mxu0 0.0
    %3096 = vmatprep.subr.mxu0 0.0
    %3097 = vmatpush2.msra.mxu0 0.0
    %3098 = vmatprep.subr.mxu0 0.0
    %3099 = vmatpush2.msra.mxu0 0.0
    %3100 = vmatprep.subr.mxu0 0.0
    %3101 = vmatpush2.msra.mxu0 0.0
    %3102 = vmatprep.subr.mxu0 0.0
    %3103 = vmatpush2.msra.mxu0 0.0
    %3104 = vmatprep.subr.mxu0 0.0
    %3105 = vmatpush2.msra.mxu0 0.0
    %3106 = vmatprep.subr.mxu0 0.0
    %3107 = vmatpush2.msra.mxu0 0.0
    %3108 = vmatprep.subr.mxu0 0.0
    %3109 = vmatpush2.msra.mxu0 0.0
    %3110 = vmatprep.subr.mxu0 0.0
    %3111 = vmatpush2.msra.mxu0 0.0
    %3112 = vmatprep.subr.mxu0 0.0
    %3113 = vmatpush2.msra.mxu0 0.0
    %3114 = vmatprep.subr.mxu0 0.0
    %3115 = vmatpush2.msra.mxu0 0.0
    %3116 = vmatprep.subr.mxu0 0.0
    %3117 = vmatpush2.msra.mxu0 0.0
    %3118 = vmatprep.subr.mxu0 0.0
    %3119 = vmatpush2.msra.mxu0 0.0
    %3120 = vmatprep.subr.mxu0 0.0
    %3121 = vmatpush2.msra.mxu0 0.0
    %3122 = vmatprep.subr.mxu0 0.0
    %3123 = vmatpush2.msra.mxu0 0.0
    %3124 = vmatprep.subr.mxu0 0.0
    %3125 = vmatpush2.msra.mxu0 0.0
    %3126 = vmatprep.mubr.f32.mxu0 0.0
    %3127 = vmatmul.mubr.f32.gmra.mxu0 %v3060
    %v3128 = vpop.f32.mrf.mxu0
    %v3129 = vadd.f32 %v2975, %v3128
    %v3130 = vpop.f32.mrf.mxu0
    %3131 = vdwg.mxu0
    %v3132 = vmul.f32 %v2458, %v139
    %v3133 = vmul.f32 %v2463, %v139
    %v3134 = vmul.f32 %v2458, %v1451
    %v3135 = vmul.f32 %v2463, %v1451
    %v3137 = vsel %vm678, %v3132, 0
    %3139 = vmatprep.subr.mxu0 0.0
    %3140 = vmatpush1.xpose.msra.mxu0 0.0
    %3141 = vmatprep.subr.mxu0 0.0
    %3142 = vmatpush1.xpose.msra.mxu0 0.0
    %3143 = vmatprep.subr.mxu0 0.0
    %3144 = vmatpush1.xpose.msra.mxu0 0.0
    %3145 = vmatprep.subr.mxu0 0.0
    %3146 = vmatpush1.xpose.msra.mxu0 0.0
    %3147 = vmatprep.subr.mxu0 0.0
    %3148 = vmatpush1.xpose.msra.mxu0 0.0
    %3149 = vmatprep.subr.mxu0 0.0
    %3150 = vmatpush1.xpose.msra.mxu0 0.0
    %3151 = vmatprep.subr.mxu0 0.0
    %3152 = vmatpush1.xpose.msra.mxu0 0.0
    %3153 = vmatprep.subr.mxu0 0.0
    %3154 = vmatpush1.xpose.msra.mxu0 0.0
    %3155 = vmatprep.subr.mxu0 0.0
    %3156 = vmatpush1.xpose.msra.mxu0 0.0
    %3157 = vmatprep.subr.mxu0 0.0
    %3158 = vmatpush1.xpose.msra.mxu0 0.0
    %3159 = vmatprep.subr.mxu0 0.0
    %3160 = vmatpush1.xpose.msra.mxu0 0.0
    %3161 = vmatprep.subr.mxu0 0.0
    %3162 = vmatpush1.xpose.msra.mxu0 0.0
    %3163 = vmatprep.subr.mxu0 0.0
    %3164 = vmatpush1.xpose.msra.mxu0 0.0
    %3165 = vmatprep.subr.mxu0 0.0
    %3166 = vmatpush1.xpose.msra.mxu0 0.0
    %3167 = vmatprep.subr.mxu0 0.0
    %3168 = vmatpush1.xpose.msra.mxu0 0.0
    %3169 = vmatprep.subr.mxu0 0.0
    %3170 = vmatpush1.xpose.msra.mxu0 %v3137
    %3171 = vmatprep.subr.mxu0 0.0
    %3172 = vmatpush2.xpose.msra.mxu0 0.0
    %3173 = vmatprep.subr.mxu0 0.0
    %3174 = vmatpush2.xpose.msra.mxu0 0.0
    %3175 = vmatprep.subr.mxu0 0.0
    %3176 = vmatpush2.xpose.msra.mxu0 0.0
    %3177 = vmatprep.subr.mxu0 0.0
    %3178 = vmatpush2.xpose.msra.mxu0 0.0
    %3179 = vmatprep.subr.mxu0 0.0
    %3180 = vmatpush2.xpose.msra.mxu0 0.0
    %3181 = vmatprep.subr.mxu0 0.0
    %3182 = vmatpush2.xpose.msra.mxu0 0.0
    %3183 = vmatprep.subr.mxu0 0.0
    %3184 = vmatpush2.xpose.msra.mxu0 0.0
    %3185 = vmatprep.subr.mxu0 0.0
    %3186 = vmatpush2.xpose.msra.mxu0 0.0
    %3187 = vmatprep.subr.mxu0 0.0
    %3188 = vmatpush2.xpose.msra.mxu0 0.0
    %3189 = vmatprep.subr.mxu0 0.0
    %3190 = vmatpush2.xpose.msra.mxu0 0.0
    %3191 = vmatprep.subr.mxu0 0.0
    %3192 = vmatpush2.xpose.msra.mxu0 0.0
    %3193 = vmatprep.subr.mxu0 0.0
    %3194 = vmatpush2.xpose.msra.mxu0 0.0
    %3195 = vmatprep.subr.mxu0 0.0
    %3196 = vmatpush2.xpose.msra.mxu0 0.0
    %3197 = vmatprep.subr.mxu0 0.0
    %3198 = vmatpush2.xpose.msra.mxu0 0.0
    %3199 = vmatprep.subr.mxu0 0.0
    %3200 = vmatpush2.xpose.msra.mxu0 0.0
    %3201 = vmatprep.subr.mxu0 0.0
    %3202 = vmatpush2.xpose.msra.mxu0 0.0
    %3203 = vmatprep.mubr.f32.mxu0 0.0
    %3204 = vmatmul.mubr.f32.gmra.mxu0 %v2471
    %v3205 = vpop.f32.mrf.mxu0
    %v3206 = vadd.f32 0.0, %v3205
    %v3207 = vpop.f32.mrf.mxu0
    %3208 = vdwg.mxu0
    %v3210 = vsel %vm678, %v3133, 0
    %3212 = vmatprep.subr.mxu0 0.0
    %3213 = vmatpush1.xpose.msra.mxu0 0.0
    %3214 = vmatprep.subr.mxu0 0.0
    %3215 = vmatpush1.xpose.msra.mxu0 0.0
    %3216 = vmatprep.subr.mxu0 0.0
    %3217 = vmatpush1.xpose.msra.mxu0 0.0
    %3218 = vmatprep.subr.mxu0 0.0
    %3219 = vmatpush1.xpose.msra.mxu0 0.0
    %3220 = vmatprep.subr.mxu0 0.0
    %3221 = vmatpush1.xpose.msra.mxu0 0.0
    %3222 = vmatprep.subr.mxu0 0.0
    %3223 = vmatpush1.xpose.msra.mxu0 0.0
    %3224 = vmatprep.subr.mxu0 0.0
    %3225 = vmatpush1.xpose.msra.mxu0 0.0
    %3226 = vmatprep.subr.mxu0 0.0
    %3227 = vmatpush1.xpose.msra.mxu0 0.0
    %3228 = vmatprep.subr.mxu0 0.0
    %3229 = vmatpush1.xpose.msra.mxu0 0.0
    %3230 = vmatprep.subr.mxu0 0.0
    %3231 = vmatpush1.xpose.msra.mxu0 0.0
    %3232 = vmatprep.subr.mxu0 0.0
    %3233 = vmatpush1.xpose.msra.mxu0 0.0
    %3234 = vmatprep.subr.mxu0 0.0
    %3235 = vmatpush1.xpose.msra.mxu0 0.0
    %3236 = vmatprep.subr.mxu0 0.0
    %3237 = vmatpush1.xpose.msra.mxu0 0.0
    %3238 = vmatprep.subr.mxu0 0.0
    %3239 = vmatpush1.xpose.msra.mxu0 0.0
    %3240 = vmatprep.subr.mxu0 0.0
    %3241 = vmatpush1.xpose.msra.mxu0 0.0
    %3242 = vmatprep.subr.mxu0 0.0
    %3243 = vmatpush1.xpose.msra.mxu0 %v3210
    %3244 = vmatprep.subr.mxu0 0.0
    %3245 = vmatpush2.xpose.msra.mxu0 0.0
    %3246 = vmatprep.subr.mxu0 0.0
    %3247 = vmatpush2.xpose.msra.mxu0 0.0
    %3248 = vmatprep.subr.mxu0 0.0
    %3249 = vmatpush2.xpose.msra.mxu0 0.0
    %3250 = vmatprep.subr.mxu0 0.0
    %3251 = vmatpush2.xpose.msra.mxu0 0.0
    %3252 = vmatprep.subr.mxu0 0.0
    %3253 = vmatpush2.xpose.msra.mxu0 0.0
    %3254 = vmatprep.subr.mxu0 0.0
    %3255 = vmatpush2.xpose.msra.mxu0 0.0
    %3256 = vmatprep.subr.mxu0 0.0
    %3257 = vmatpush2.xpose.msra.mxu0 0.0
    %3258 = vmatprep.subr.mxu0 0.0
    %3259 = vmatpush2.xpose.msra.mxu0 0.0
    %3260 = vmatprep.subr.mxu0 0.0
    %3261 = vmatpush2.xpose.msra.mxu0 0.0
    %3262 = vmatprep.subr.mxu0 0.0
    %3263 = vmatpush2.xpose.msra.mxu0 0.0
    %3264 = vmatprep.subr.mxu0 0.0
    %3265 = vmatpush2.xpose.msra.mxu0 0.0
    %3266 = vmatprep.subr.mxu0 0.0
    %3267 = vmatpush2.xpose.msra.mxu0 0.0
    %3268 = vmatprep.subr.mxu0 0.0
    %3269 = vmatpush2.xpose.msra.mxu0 0.0
    %3270 = vmatprep.subr.mxu0 0.0
    %3271 = vmatpush2.xpose.msra.mxu0 0.0
    %3272 = vmatprep.subr.mxu0 0.0
    %3273 = vmatpush2.xpose.msra.mxu0 0.0
    %3274 = vmatprep.subr.mxu0 0.0
    %3275 = vmatpush2.xpose.msra.mxu0 0.0
    %3276 = vmatprep.mubr.f32.mxu0 0.0
    %3277 = vmatmul.mubr.f32.gmra.mxu0 %v2547
    %v3278 = vpop.f32.mrf.mxu0
    %v3279 = vadd.f32 0.0, %v3278
    %v3280 = vpop.f32.mrf.mxu0
    %3281 = vdwg.mxu0
    %v3282 = vmul.f32 %v3206, 0.35355338
    %v3283 = vmul.f32 %v3279, 0.35355338
    %v3284 = vadd.f32 %v3282, %v226
    %v3285 = vadd.f32 %v3283, %v227
    %v3286 = vsel %vm931, %v3284, -inf
    %3287 = vmax.xlane.f32.xlu0 %v3286
    %v3288 = vpop.xlane.xlu0 %3287
    %v3289 = vsel %vm931, %v3285, -inf
    %3290 = vmax.xlane.f32.xlu0 %v3289
    %v3291 = vpop.xlane.xlu0 %3290
    %v3292 = vsub.f32 %v3284, %v3288
    %v3293 = vsub.f32 %v3285, %v3291
    %v3294 = vmul.f32 %v3292, 1.442695
    %v3295 = vpow.pop %v3294
    %v3296 = vmul.f32 %v3293, 1.442695
    %v3297 = vpow.pop %v3296
    %v3298 = vsel %vm931, %v3295, 0.0
    %3299 = vadd.xlane.f32.xlu0 %v3298
    %v3300 = vpop.xlane.xlu0 %3299
    %v3301 = vsel %vm931, %v3297, 0.0
    %3302 = vadd.xlane.f32.xlu0 %v3301
    %v3303 = vpop.xlane.xlu0 %3302
    %v3304 = vrcp.pop %v3300
    %v3305 = vrcp.pop %v3303
    %v3306 = vmul.f32 %v3295, %v3304
    %v3307 = vmul.f32 %v3297, %v3305
    %3309 = vrot.lane.b32.xlu0 %v3134, 96
    %v3310 = vpop.permute.xlu0 %3309
    %v3313 = vsel %vm931, %v3306, 0
    %3315 = vmatprep.subr.mxu0 0.0
    %3316 = vmatpush1.msra.mxu0 0.0
    %3317 = vmatprep.subr.mxu0 0.0
    %3318 = vmatpush1.msra.mxu0 0.0
    %3319 = vmatprep.subr.mxu0 0.0
    %3320 = vmatpush1.msra.mxu0 0.0
    %3321 = vmatprep.subr.mxu0 0.0
    %3322 = vmatpush1.msra.mxu0 0.0
    %3323 = vmatprep.subr.mxu0 0.0
    %3324 = vmatpush1.msra.mxu0 0.0
    %3325 = vmatprep.subr.mxu0 0.0
    %3326 = vmatpush1.msra.mxu0 0.0
    %3327 = vmatprep.subr.mxu0 0.0
    %3328 = vmatpush1.msra.mxu0 0.0
    %3329 = vmatprep.subr.mxu0 0.0
    %3330 = vmatpush1.msra.mxu0 0.0
    %3331 = vmatprep.subr.mxu0 0.0
    %3332 = vmatpush1.msra.mxu0 0.0
    %3333 = vmatprep.subr.mxu0 0.0
    %3334 = vmatpush1.msra.mxu0 0.0
    %3335 = vmatprep.subr.mxu0 0.0
    %3336 = vmatpush1.msra.mxu0 0.0
    %3337 = vmatprep.subr.mxu0 0.0
    %3338 = vmatpush1.msra.mxu0 0.0
    %3339 = vmatprep.subr.mxu0 0.0
    %3340 = vmatpush1.msra.mxu0 0.0
    %3341 = vmatprep.subr.mxu0 0.0
    %3342 = vmatpush1.msra.mxu0 0.0
    %3343 = vmatprep.subr.mxu0 0.0
    %3344 = vmatpush1.msra.mxu0 0.0
    %3345 = vmatprep.subr.mxu0 0.0
    %3346 = vmatpush1.msra.mxu0 %v3310
    %3347 = vmatprep.subr.mxu0 0.0
    %3348 = vmatpush2.msra.mxu0 0.0
    %3349 = vmatprep.subr.mxu0 0.0
    %3350 = vmatpush2.msra.mxu0 0.0
    %3351 = vmatprep.subr.mxu0 0.0
    %3352 = vmatpush2.msra.mxu0 0.0
    %3353 = vmatprep.subr.mxu0 0.0
    %3354 = vmatpush2.msra.mxu0 0.0
    %3355 = vmatprep.subr.mxu0 0.0
    %3356 = vmatpush2.msra.mxu0 0.0
    %3357 = vmatprep.subr.mxu0 0.0
    %3358 = vmatpush2.msra.mxu0 0.0
    %3359 = vmatprep.subr.mxu0 0.0
    %3360 = vmatpush2.msra.mxu0 0.0
    %3361 = vmatprep.subr.mxu0 0.0
    %3362 = vmatpush2.msra.mxu0 0.0
    %3363 = vmatprep.subr.mxu0 0.0
    %3364 = vmatpush2.msra.mxu0 0.0
    %3365 = vmatprep.subr.mxu0 0.0
    %3366 = vmatpush2.msra.mxu0 0.0
    %3367 = vmatprep.subr.mxu0 0.0
    %3368 = vmatpush2.msra.mxu0 0.0
    %3369 = vmatprep.subr.mxu0 0.0
    %3370 = vmatpush2.msra.mxu0 0.0
    %3371 = vmatprep.subr.mxu0 0.0
    %3372 = vmatpush2.msra.mxu0 0.0
    %3373 = vmatprep.subr.mxu0 0.0
    %3374 = vmatpush2.msra.mxu0 0.0
    %3375 = vmatprep.subr.mxu0 0.0
    %3376 = vmatpush2.msra.mxu0 0.0
    %3377 = vmatprep.subr.mxu0 0.0
    %3378 = vmatpush2.msra.mxu0 0.0
    %3379 = vmatprep.mubr.f32.mxu0 0.0
    %3380 = vmatmul.mubr.f32.gmra.mxu0 %v3313
    %v3381 = vpop.f32.mrf.mxu0
    %v3382 = vadd.f32 0.0, %v3381
    %v3383 = vpop.f32.mrf.mxu0
    %3384 = vdwg.mxu0
    %3386 = vrot.lane.b32.xlu0 %v3135, 96
    %v3387 = vpop.permute.xlu0 %3386
    %v3390 = vsel %vm931, %v3307, 0
    %3392 = vmatprep.subr.mxu0 0.0
    %3393 = vmatpush1.msra.mxu0 0.0
    %3394 = vmatprep.subr.mxu0 0.0
    %3395 = vmatpush1.msra.mxu0 0.0
    %3396 = vmatprep.subr.mxu0 0.0
    %3397 = vmatpush1.msra.mxu0 0.0
    %3398 = vmatprep.subr.mxu0 0.0
    %3399 = vmatpush1.msra.mxu0 0.0
    %3400 = vmatprep.subr.mxu0 0.0
    %3401 = vmatpush1.msra.mxu0 0.0
    %3402 = vmatprep.subr.mxu0 0.0
    %3403 = vmatpush1.msra.mxu0 0.0
    %3404 = vmatprep.subr.mxu0 0.0
    %3405 = vmatpush1.msra.mxu0 0.0
    %3406 = vmatprep.subr.mxu0 0.0
    %3407 = vmatpush1.msra.mxu0 0.0
    %3408 = vmatprep.subr.mxu0 0.0
    %3409 = vmatpush1.msra.mxu0 0.0
    %3410 = vmatprep.subr.mxu0 0.0
    %3411 = vmatpush1.msra.mxu0 0.0
    %3412 = vmatprep.subr.mxu0 0.0
    %3413 = vmatpush1.msra.mxu0 0.0
    %3414 = vmatprep.subr.mxu0 0.0
    %3415 = vmatpush1.msra.mxu0 0.0
    %3416 = vmatprep.subr.mxu0 0.0
    %3417 = vmatpush1.msra.mxu0 0.0
    %3418 = vmatprep.subr.mxu0 0.0
    %3419 = vmatpush1.msra.mxu0 0.0
    %3420 = vmatprep.subr.mxu0 0.0
    %3421 = vmatpush1.msra.mxu0 0.0
    %3422 = vmatprep.subr.mxu0 0.0
    %3423 = vmatpush1.msra.mxu0 %v3387
    %3424 = vmatprep.subr.mxu0 0.0
    %3425 = vmatpush2.msra.mxu0 0.0
    %3426 = vmatprep.subr.mxu0 0.0
    %3427 = vmatpush2.msra.mxu0 0.0
    %3428 = vmatprep.subr.mxu0 0.0
    %3429 = vmatpush2.msra.mxu0 0.0
    %3430 = vmatprep.subr.mxu0 0.0
    %3431 = vmatpush2.msra.mxu0 0.0
    %3432 = vmatprep.subr.mxu0 0.0
    %3433 = vmatpush2.msra.mxu0 0.0
    %3434 = vmatprep.subr.mxu0 0.0
    %3435 = vmatpush2.msra.mxu0 0.0
    %3436 = vmatprep.subr.mxu0 0.0
    %3437 = vmatpush2.msra.mxu0 0.0
    %3438 = vmatprep.subr.mxu0 0.0
    %3439 = vmatpush2.msra.mxu0 0.0
    %3440 = vmatprep.subr.mxu0 0.0
    %3441 = vmatpush2.msra.mxu0 0.0
    %3442 = vmatprep.subr.mxu0 0.0
    %3443 = vmatpush2.msra.mxu0 0.0
    %3444 = vmatprep.subr.mxu0 0.0
    %3445 = vmatpush2.msra.mxu0 0.0
    %3446 = vmatprep.subr.mxu0 0.0
    %3447 = vmatpush2.msra.mxu0 0.0
    %3448 = vmatprep.subr.mxu0 0.0
    %3449 = vmatpush2.msra.mxu0 0.0
    %3450 = vmatprep.subr.mxu0 0.0
    %3451 = vmatpush2.msra.mxu0 0.0
    %3452 = vmatprep.subr.mxu0 0.0
    %3453 = vmatpush2.msra.mxu0 0.0
    %3454 = vmatprep.subr.mxu0 0.0
    %3455 = vmatpush2.msra.mxu0 0.0
    %3456 = vmatprep.mubr.f32.mxu0 0.0
    %3457 = vmatmul.mubr.f32.gmra.mxu0 %v3390
    %v3458 = vpop.f32.mrf.mxu0
    %v3459 = vadd.f32 0.0, %v3458
    %v3460 = vpop.f32.mrf.mxu0
    %3461 = vdwg.mxu0
    %v3462 = vadd.f32 %v3052, %v3382
    %v3463 = vadd.f32 %v3129, %v3459
    %v3464 = vmul.f32 %v2458, %v144
    %v3465 = vmul.f32 %v2463, %v144
    %v3466 = vmul.f32 %v2458, %v1794
    %v3467 = vmul.f32 %v2463, %v1794
    %v3469 = vsel %vm678, %v3464, 0
    %3471 = vmatprep.subr.mxu0 0.0
    %3472 = vmatpush1.xpose.msra.mxu0 0.0
    %3473 = vmatprep.subr.mxu0 0.0
    %3474 = vmatpush1.xpose.msra.mxu0 0.0
    %3475 = vmatprep.subr.mxu0 0.0
    %3476 = vmatpush1.xpose.msra.mxu0 0.0
    %3477 = vmatprep.subr.mxu0 0.0
    %3478 = vmatpush1.xpose.msra.mxu0 0.0
    %3479 = vmatprep.subr.mxu0 0.0
    %3480 = vmatpush1.xpose.msra.mxu0 0.0
    %3481 = vmatprep.subr.mxu0 0.0
    %3482 = vmatpush1.xpose.msra.mxu0 0.0
    %3483 = vmatprep.subr.mxu0 0.0
    %3484 = vmatpush1.xpose.msra.mxu0 0.0
    %3485 = vmatprep.subr.mxu0 0.0
    %3486 = vmatpush1.xpose.msra.mxu0 0.0
    %3487 = vmatprep.subr.mxu0 0.0
    %3488 = vmatpush1.xpose.msra.mxu0 0.0
    %3489 = vmatprep.subr.mxu0 0.0
    %3490 = vmatpush1.xpose.msra.mxu0 0.0
    %3491 = vmatprep.subr.mxu0 0.0
    %3492 = vmatpush1.xpose.msra.mxu0 0.0
    %3493 = vmatprep.subr.mxu0 0.0
    %3494 = vmatpush1.xpose.msra.mxu0 0.0
    %3495 = vmatprep.subr.mxu0 0.0
    %3496 = vmatpush1.xpose.msra.mxu0 0.0
    %3497 = vmatprep.subr.mxu0 0.0
    %3498 = vmatpush1.xpose.msra.mxu0 0.0
    %3499 = vmatprep.subr.mxu0 0.0
    %3500 = vmatpush1.xpose.msra.mxu0 0.0
    %3501 = vmatprep.subr.mxu0 0.0
    %3502 = vmatpush1.xpose.msra.mxu0 %v3469
    %3503 = vmatprep.subr.mxu0 0.0
    %3504 = vmatpush2.xpose.msra.mxu0 0.0
    %3505 = vmatprep.subr.mxu0 0.0
    %3506 = vmatpush2.xpose.msra.mxu0 0.0
    %3507 = vmatprep.subr.mxu0 0.0
    %3508 = vmatpush2.xpose.msra.mxu0 0.0
    %3509 = vmatprep.subr.mxu0 0.0
    %3510 = vmatpush2.xpose.msra.mxu0 0.0
    %3511 = vmatprep.subr.mxu0 0.0
    %3512 = vmatpush2.xpose.msra.mxu0 0.0
    %3513 = vmatprep.subr.mxu0 0.0
    %3514 = vmatpush2.xpose.msra.mxu0 0.0
    %3515 = vmatprep.subr.mxu0 0.0
    %3516 = vmatpush2.xpose.msra.mxu0 0.0
    %3517 = vmatprep.subr.mxu0 0.0
    %3518 = vmatpush2.xpose.msra.mxu0 0.0
    %3519 = vmatprep.subr.mxu0 0.0
    %3520 = vmatpush2.xpose.msra.mxu0 0.0
    %3521 = vmatprep.subr.mxu0 0.0
    %3522 = vmatpush2.xpose.msra.mxu0 0.0
    %3523 = vmatprep.subr.mxu0 0.0
    %3524 = vmatpush2.xpose.msra.mxu0 0.0
    %3525 = vmatprep.subr.mxu0 0.0
    %3526 = vmatpush2.xpose.msra.mxu0 0.0
    %3527 = vmatprep.subr.mxu0 0.0
    %3528 = vmatpush2.xpose.msra.mxu0 0.0
    %3529 = vmatprep.subr.mxu0 0.0
    %3530 = vmatpush2.xpose.msra.mxu0 0.0
    %3531 = vmatprep.subr.mxu0 0.0
    %3532 = vmatpush2.xpose.msra.mxu0 0.0
    %3533 = vmatprep.subr.mxu0 0.0
    %3534 = vmatpush2.xpose.msra.mxu0 0.0
    %3535 = vmatprep.mubr.f32.mxu0 0.0
    %3536 = vmatmul.mubr.f32.gmra.mxu0 %v2471
    %v3537 = vpop.f32.mrf.mxu0
    %v3538 = vadd.f32 0.0, %v3537
    %v3539 = vpop.f32.mrf.mxu0
    %3540 = vdwg.mxu0
    %v3542 = vsel %vm678, %v3465, 0
    %3544 = vmatprep.subr.mxu0 0.0
    %3545 = vmatpush1.xpose.msra.mxu0 0.0
    %3546 = vmatprep.subr.mxu0 0.0
    %3547 = vmatpush1.xpose.msra.mxu0 0.0
    %3548 = vmatprep.subr.mxu0 0.0
    %3549 = vmatpush1.xpose.msra.mxu0 0.0
    %3550 = vmatprep.subr.mxu0 0.0
    %3551 = vmatpush1.xpose.msra.mxu0 0.0
    %3552 = vmatprep.subr.mxu0 0.0
    %3553 = vmatpush1.xpose.msra.mxu0 0.0
    %3554 = vmatprep.subr.mxu0 0.0
    %3555 = vmatpush1.xpose.msra.mxu0 0.0
    %3556 = vmatprep.subr.mxu0 0.0
    %3557 = vmatpush1.xpose.msra.mxu0 0.0
    %3558 = vmatprep.subr.mxu0 0.0
    %3559 = vmatpush1.xpose.msra.mxu0 0.0
    %3560 = vmatprep.subr.mxu0 0.0
    %3561 = vmatpush1.xpose.msra.mxu0 0.0
    %3562 = vmatprep.subr.mxu0 0.0
    %3563 = vmatpush1.xpose.msra.mxu0 0.0
    %3564 = vmatprep.subr.mxu0 0.0
    %3565 = vmatpush1.xpose.msra.mxu0 0.0
    %3566 = vmatprep.subr.mxu0 0.0
    %3567 = vmatpush1.xpose.msra.mxu0 0.0
    %3568 = vmatprep.subr.mxu0 0.0
    %3569 = vmatpush1.xpose.msra.mxu0 0.0
    %3570 = vmatprep.subr.mxu0 0.0
    %3571 = vmatpush1.xpose.msra.mxu0 0.0
    %3572 = vmatprep.subr.mxu0 0.0
    %3573 = vmatpush1.xpose.msra.mxu0 0.0
    %3574 = vmatprep.subr.mxu0 0.0
    %3575 = vmatpush1.xpose.msra.mxu0 %v3542
    %3576 = vmatprep.subr.mxu0 0.0
    %3577 = vmatpush2.xpose.msra.mxu0 0.0
    %3578 = vmatprep.subr.mxu0 0.0
    %3579 = vmatpush2.xpose.msra.mxu0 0.0
    %3580 = vmatprep.subr.mxu0 0.0
    %3581 = vmatpush2.xpose.msra.mxu0 0.0
    %3582 = vmatprep.subr.mxu0 0.0
    %3583 = vmatpush2.xpose.msra.mxu0 0.0
    %3584 = vmatprep.subr.mxu0 0.0
    %3585 = vmatpush2.xpose.msra.mxu0 0.0
    %3586 = vmatprep.subr.mxu0 0.0
    %3587 = vmatpush2.xpose.msra.mxu0 0.0
    %3588 = vmatprep.subr.mxu0 0.0
    %3589 = vmatpush2.xpose.msra.mxu0 0.0
    %3590 = vmatprep.subr.mxu0 0.0
    %3591 = vmatpush2.xpose.msra.mxu0 0.0
    %3592 = vmatprep.subr.mxu0 0.0
    %3593 = vmatpush2.xpose.msra.mxu0 0.0
    %3594 = vmatprep.subr.mxu0 0.0
    %3595 = vmatpush2.xpose.msra.mxu0 0.0
    %3596 = vmatprep.subr.mxu0 0.0
    %3597 = vmatpush2.xpose.msra.mxu0 0.0
    %3598 = vmatprep.subr.mxu0 0.0
    %3599 = vmatpush2.xpose.msra.mxu0 0.0
    %3600 = vmatprep.subr.mxu0 0.0
    %3601 = vmatpush2.xpose.msra.mxu0 0.0
    %3602 = vmatprep.subr.mxu0 0.0
    %3603 = vmatpush2.xpose.msra.mxu0 0.0
    %3604 = vmatprep.subr.mxu0 0.0
    %3605 = vmatpush2.xpose.msra.mxu0 0.0
    %3606 = vmatprep.subr.mxu0 0.0
    %3607 = vmatpush2.xpose.msra.mxu0 0.0
    %3608 = vmatprep.mubr.f32.mxu0 0.0
    %3609 = vmatmul.mubr.f32.gmra.mxu0 %v2547
    %v3610 = vpop.f32.mrf.mxu0
    %v3611 = vadd.f32 0.0, %v3610
    %v3612 = vpop.f32.mrf.mxu0
    %3613 = vdwg.mxu0
    %v3614 = vmul.f32 %v3538, 0.35355338
    %v3615 = vmul.f32 %v3611, 0.35355338
    %v3616 = vadd.f32 %v3614, %v226
    %v3617 = vadd.f32 %v3615, %v227
    %v3618 = vsel %vm931, %v3616, -inf
    %3619 = vmax.xlane.f32.xlu0 %v3618
    %v3620 = vpop.xlane.xlu0 %3619
    %v3621 = vsel %vm931, %v3617, -inf
    %3622 = vmax.xlane.f32.xlu0 %v3621
    %v3623 = vpop.xlane.xlu0 %3622
    %v3624 = vsub.f32 %v3616, %v3620
    %v3625 = vsub.f32 %v3617, %v3623
    %v3626 = vmul.f32 %v3624, 1.442695
    %v3627 = vpow.pop %v3626
    %v3628 = vmul.f32 %v3625, 1.442695
    %v3629 = vpow.pop %v3628
    %v3630 = vsel %vm931, %v3627, 0.0
    %3631 = vadd.xlane.f32.xlu0 %v3630
    %v3632 = vpop.xlane.xlu0 %3631
    %v3633 = vsel %vm931, %v3629, 0.0
    %3634 = vadd.xlane.f32.xlu0 %v3633
    %v3635 = vpop.xlane.xlu0 %3634
    %v3636 = vrcp.pop %v3632
    %v3637 = vrcp.pop %v3635
    %v3638 = vmul.f32 %v3627, %v3636
    %v3639 = vmul.f32 %v3629, %v3637
    %3641 = vrot.lane.b32.xlu0 %v3466, 96
    %v3642 = vpop.permute.xlu0 %3641
    %v3645 = vsel %vm931, %v3638, 0
    %3647 = vmatprep.subr.mxu0 0.0
    %3648 = vmatpush1.msra.mxu0 0.0
    %3649 = vmatprep.subr.mxu0 0.0
    %3650 = vmatpush1.msra.mxu0 0.0
    %3651 = vmatprep.subr.mxu0 0.0
    %3652 = vmatpush1.msra.mxu0 0.0
    %3653 = vmatprep.subr.mxu0 0.0
    %3654 = vmatpush1.msra.mxu0 0.0
    %3655 = vmatprep.subr.mxu0 0.0
    %3656 = vmatpush1.msra.mxu0 0.0
    %3657 = vmatprep.subr.mxu0 0.0
    %3658 = vmatpush1.msra.mxu0 0.0
    %3659 = vmatprep.subr.mxu0 0.0
    %3660 = vmatpush1.msra.mxu0 0.0
    %3661 = vmatprep.subr.mxu0 0.0
    %3662 = vmatpush1.msra.mxu0 0.0
    %3663 = vmatprep.subr.mxu0 0.0
    %3664 = vmatpush1.msra.mxu0 0.0
    %3665 = vmatprep.subr.mxu0 0.0
    %3666 = vmatpush1.msra.mxu0 0.0
    %3667 = vmatprep.subr.mxu0 0.0
    %3668 = vmatpush1.msra.mxu0 0.0
    %3669 = vmatprep.subr.mxu0 0.0
    %3670 = vmatpush1.msra.mxu0 0.0
    %3671 = vmatprep.subr.mxu0 0.0
    %3672 = vmatpush1.msra.mxu0 0.0
    %3673 = vmatprep.subr.mxu0 0.0
    %3674 = vmatpush1.msra.mxu0 0.0
    %3675 = vmatprep.subr.mxu0 0.0
    %3676 = vmatpush1.msra.mxu0 0.0
    %3677 = vmatprep.subr.mxu0 0.0
    %3678 = vmatpush1.msra.mxu0 %v3642
    %3679 = vmatprep.subr.mxu0 0.0
    %3680 = vmatpush2.msra.mxu0 0.0
    %3681 = vmatprep.subr.mxu0 0.0
    %3682 = vmatpush2.msra.mxu0 0.0
    %3683 = vmatprep.subr.mxu0 0.0
    %3684 = vmatpush2.msra.mxu0 0.0
    %3685 = vmatprep.subr.mxu0 0.0
    %3686 = vmatpush2.msra.mxu0 0.0
    %3687 = vmatprep.subr.mxu0 0.0
    %3688 = vmatpush2.msra.mxu0 0.0
    %3689 = vmatprep.subr.mxu0 0.0
    %3690 = vmatpush2.msra.mxu0 0.0
    %3691 = vmatprep.subr.mxu0 0.0
    %3692 = vmatpush2.msra.mxu0 0.0
    %3693 = vmatprep.subr.mxu0 0.0
    %3694 = vmatpush2.msra.mxu0 0.0
    %3695 = vmatprep.subr.mxu0 0.0
    %3696 = vmatpush2.msra.mxu0 0.0
    %3697 = vmatprep.subr.mxu0 0.0
    %3698 = vmatpush2.msra.mxu0 0.0
    %3699 = vmatprep.subr.mxu0 0.0
    %3700 = vmatpush2.msra.mxu0 0.0
    %3701 = vmatprep.subr.mxu0 0.0
    %3702 = vmatpush2.msra.mxu0 0.0
    %3703 = vmatprep.subr.mxu0 0.0
    %3704 = vmatpush2.msra.mxu0 0.0
    %3705 = vmatprep.subr.mxu0 0.0
    %3706 = vmatpush2.msra.mxu0 0.0
    %3707 = vmatprep.subr.mxu0 0.0
    %3708 = vmatpush2.msra.mxu0 0.0
    %3709 = vmatprep.subr.mxu0 0.0
    %3710 = vmatpush2.msra.mxu0 0.0
    %3711 = vmatprep.mubr.f32.mxu0 0.0
    %3712 = vmatmul.mubr.f32.gmra.mxu0 %v3645
    %v3713 = vpop.f32.mrf.mxu0
    %v3714 = vadd.f32 0.0, %v3713
    %v3715 = vpop.f32.mrf.mxu0
    %3716 = vdwg.mxu0
    %3718 = vrot.lane.b32.xlu0 %v3467, 96
    %v3719 = vpop.permute.xlu0 %3718
    %v3722 = vsel %vm931, %v3639, 0
    %3724 = vmatprep.subr.mxu0 0.0
    %3725 = vmatpush1.msra.mxu0 0.0
    %3726 = vmatprep.subr.mxu0 0.0
    %3727 = vmatpush1.msra.mxu0 0.0
    %3728 = vmatprep.subr.mxu0 0.0
    %3729 = vmatpush1.msra.mxu0 0.0
    %3730 = vmatprep.subr.mxu0 0.0
    %3731 = vmatpush1.msra.mxu0 0.0
    %3732 = vmatprep.subr.mxu0 0.0
    %3733 = vmatpush1.msra.mxu0 0.0
    %3734 = vmatprep.subr.mxu0 0.0
    %3735 = vmatpush1.msra.mxu0 0.0
    %3736 = vmatprep.subr.mxu0 0.0
    %3737 = vmatpush1.msra.mxu0 0.0
    %3738 = vmatprep.subr.mxu0 0.0
    %3739 = vmatpush1.msra.mxu0 0.0
    %3740 = vmatprep.subr.mxu0 0.0
    %3741 = vmatpush1.msra.mxu0 0.0
    %3742 = vmatprep.subr.mxu0 0.0
    %3743 = vmatpush1.msra.mxu0 0.0
    %3744 = vmatprep.subr.mxu0 0.0
    %3745 = vmatpush1.msra.mxu0 0.0
    %3746 = vmatprep.subr.mxu0 0.0
    %3747 = vmatpush1.msra.mxu0 0.0
    %3748 = vmatprep.subr.mxu0 0.0
    %3749 = vmatpush1.msra.mxu0 0.0
    %3750 = vmatprep.subr.mxu0 0.0
    %3751 = vmatpush1.msra.mxu0 0.0
    %3752 = vmatprep.subr.mxu0 0.0
    %3753 = vmatpush1.msra.mxu0 0.0
    %3754 = vmatprep.subr.mxu0 0.0
    %3755 = vmatpush1.msra.mxu0 %v3719
    %3756 = vmatprep.subr.mxu0 0.0
    %3757 = vmatpush2.msra.mxu0 0.0
    %3758 = vmatprep.subr.mxu0 0.0
    %3759 = vmatpush2.msra.mxu0 0.0
    %3760 = vmatprep.subr.mxu0 0.0
    %3761 = vmatpush2.msra.mxu0 0.0
    %3762 = vmatprep.subr.mxu0 0.0
    %3763 = vmatpush2.msra.mxu0 0.0
    %3764 = vmatprep.subr.mxu0 0.0
    %3765 = vmatpush2.msra.mxu0 0.0
    %3766 = vmatprep.subr.mxu0 0.0
    %3767 = vmatpush2.msra.mxu0 0.0
    %3768 = vmatprep.subr.mxu0 0.0
    %3769 = vmatpush2.msra.mxu0 0.0
    %3770 = vmatprep.subr.mxu0 0.0
    %3771 = vmatpush2.msra.mxu0 0.0
    %3772 = vmatprep.subr.mxu0 0.0
    %3773 = vmatpush2.msra.mxu0 0.0
    %3774 = vmatprep.subr.mxu0 0.0
    %3775 = vmatpush2.msra.mxu0 0.0
    %3776 = vmatprep.subr.mxu0 0.0
    %3777 = vmatpush2.msra.mxu0 0.0
    %3778 = vmatprep.subr.mxu0 0.0
    %3779 = vmatpush2.msra.mxu0 0.0
    %3780 = vmatprep.subr.mxu0 0.0
    %3781 = vmatpush2.msra.mxu0 0.0
    %3782 = vmatprep.subr.mxu0 0.0
    %3783 = vmatpush2.msra.mxu0 0.0
    %3784 = vmatprep.subr.mxu0 0.0
    %3785 = vmatpush2.msra.mxu0 0.0
    %3786 = vmatprep.subr.mxu0 0.0
    %3787 = vmatpush2.msra.mxu0 0.0
    %3788 = vmatprep.mubr.f32.mxu0 0.0
    %3789 = vmatmul.mubr.f32.gmra.mxu0 %v3722
    %v3790 = vpop.f32.mrf.mxu0
    %v3791 = vadd.f32 0.0, %v3790
    %v3792 = vpop.f32.mrf.mxu0
    %3793 = vdwg.mxu0
    %v3794 = vadd.f32 %v3462, %v3714
    %v3795 = vadd.f32 %v3463, %v3791
    %v3797 = vlaneseq
    %v3798 = vshrl.u32 %v3797, 7
    %v3799 = vsub.s32 0, %v3798
    %v3800 = vrot.slane %v2276, %v3799
    %v3803 = vsel %vm678, %v3794, 0
    %v3806 = vsel %vm678, %v3795, 0
    %3808 = vmatprep.subr.mxu0 0.0
    %3809 = vmatpush1.msra.mxu0 0.0
    %3810 = vmatprep.subr.mxu0 0.0
    %3811 = vmatpush1.msra.mxu0 0.0
    %3812 = vmatprep.subr.mxu0 0.0
    %3813 = vmatpush1.msra.mxu0 0.0
    %3814 = vmatprep.subr.mxu0 0.0
    %3815 = vmatpush1.msra.mxu0 0.0
    %3816 = vmatprep.subr.mxu0 0.0
    %3817 = vmatpush1.msra.mxu0 0.0
    %3818 = vmatprep.subr.mxu0 0.0
    %3819 = vmatpush1.msra.mxu0 0.0
    %3820 = vmatprep.subr.mxu0 0.0
    %3821 = vmatpush1.msra.mxu0 0.0
    %3822 = vmatprep.subr.mxu0 0.0
    %3823 = vmatpush1.msra.mxu0 0.0
    %3824 = vmatprep.subr.mxu0 0.0
    %3825 = vmatpush1.msra.mxu0 0.0
    %3826 = vmatprep.subr.mxu0 0.0
    %3827 = vmatpush1.msra.mxu0 0.0
    %3828 = vmatprep.subr.mxu0 0.0
    %3829 = vmatpush1.msra.mxu0 0.0
    %3830 = vmatprep.subr.mxu0 0.0
    %3831 = vmatpush1.msra.mxu0 0.0
    %3832 = vmatprep.subr.mxu0 0.0
    %3833 = vmatpush1.msra.mxu0 %v2275
    %3834 = vmatprep.subr.mxu0 0.0
    %3835 = vmatpush1.msra.mxu0 %v2274
    %3836 = vmatprep.subr.mxu0 0.0
    %3837 = vmatpush1.msra.mxu0 %v2273
    %3838 = vmatprep.subr.mxu0 0.0
    %3839 = vmatpush1.msra.mxu0 %v2272
    %3840 = vmatprep.subr.mxu0 0.0
    %3841 = vmatpush2.msra.mxu0 0.0
    %3842 = vmatprep.subr.mxu0 0.0
    %3843 = vmatpush2.msra.mxu0 0.0
    %3844 = vmatprep.subr.mxu0 0.0
    %3845 = vmatpush2.msra.mxu0 0.0
    %3846 = vmatprep.subr.mxu0 0.0
    %3847 = vmatpush2.msra.mxu0 0.0
    %3848 = vmatprep.subr.mxu0 0.0
    %3849 = vmatpush2.msra.mxu0 0.0
    %3850 = vmatprep.subr.mxu0 0.0
    %3851 = vmatpush2.msra.mxu0 0.0
    %3852 = vmatprep.subr.mxu0 0.0
    %3853 = vmatpush2.msra.mxu0 0.0
    %3854 = vmatprep.subr.mxu0 0.0
    %3855 = vmatpush2.msra.mxu0 0.0
    %3856 = vmatprep.subr.mxu0 0.0
    %3857 = vmatpush2.msra.mxu0 0.0
    %3858 = vmatprep.subr.mxu0 0.0
    %3859 = vmatpush2.msra.mxu0 0.0
    %3860 = vmatprep.subr.mxu0 0.0
    %3861 = vmatpush2.msra.mxu0 0.0
    %3862 = vmatprep.subr.mxu0 0.0
    %3863 = vmatpush2.msra.mxu0 0.0
    %3864 = vmatprep.subr.mxu0 0.0
    %3865 = vmatpush2.msra.mxu0 0.0
    %3866 = vmatprep.subr.mxu0 0.0
    %3867 = vmatpush2.msra.mxu0 0.0
    %3868 = vmatprep.subr.mxu0 0.0
    %3869 = vmatpush2.msra.mxu0 0.0
    %3870 = vmatprep.subr.mxu0 0.0
    %3871 = vmatpush2.msra.mxu0 0.0
    %3872 = vmatprep.mubr.f32.mxu0 0.0
    %3873 = vmatmul.mubr.f32.gmra.mxu0 %v3803
    %v3874 = vpop.f32.mrf.mxu0
    %v3875 = vadd.f32 %v3800, %v3874
    %v3876 = vpop.f32.mrf.mxu0
    %3877 = vmatprep.mubr.f32.mxu0 0.0
    %3878 = vmatmul.mubr.f32.gmra.mxu0 %v3806
    %v3879 = vpop.f32.mrf.mxu0
    %v3880 = vadd.f32 %v3800, %v3879
    %v3881 = vpop.f32.mrf.mxu0
    %3882 = vdwg.mxu0
    %v3883 = vadd.f32 %v3875, %v2265
    %v3884 = vadd.f32 %v3880, %v2266
    %v3885 = vsel %vm678, %v3883, 0.0
    %3886 = vadd.xlane.f32.xlu0 %v3885
    %v3887 = vpop.xlane.xlu0 %3886
    %v3888 = vsel %vm678, %v3884, 0.0
    %3889 = vadd.xlane.f32.xlu0 %v3888
    %v3890 = vpop.xlane.xlu0 %3889
    %v3891 = vmul.f32 %v3887, %v2230
    %v3892 = vmul.f32 %v3890, %v2230
    %v3893 = vsub.f32 %v3883, %v3891
    %v3894 = vsub.f32 %v3884, %v3892
    %v3895 = vmul.f32 %v3893, %v3893
    %v3896 = vmul.f32 %v3894, %v3894
    %v3897 = vsel %vm678, %v3895, 0.0
    %3898 = vadd.xlane.f32.xlu0 %v3897
    %v3899 = vpop.xlane.xlu0 %3898
    %v3900 = vsel %vm678, %v3896, 0.0
    %3901 = vadd.xlane.f32.xlu0 %v3900
    %v3902 = vpop.xlane.xlu0 %3901
    %v3903 = vmul.f32 %v3899, %v2230
    %v3904 = vmul.f32 %v3902, %v2230
    %v3905 = vadd.f32 %v3903, 1e-06
    %v3906 = vadd.f32 %v3904, 1e-06
    %v3907 = vrsqrt.pop %v3905
    %v3908 = vrsqrt.pop %v3906
    %v3909 = vmul.f32 %v3893, %v3907
    %v3910 = vmul.f32 %v3894, %v3908
    %v3912 = vlaneseq
    %v3913 = vshrl.u32 %v3912, 7
    %v3914 = vsub.s32 0, %v3913
    %v3915 = vrot.slane %v2277, %v3914
    %v3917 = vmul.f32 %v3909, %v3915
    %v3918 = vmul.f32 %v3910, %v3915
    %v3920 = vlaneseq
    %v3921 = vshrl.u32 %v3920, 7
    %v3922 = vsub.s32 0, %v3921
    %v3923 = vrot.slane %v2278, %v3922
    %v3925 = vadd.f32 %v3917, %v3923
    %v3926 = vadd.f32 %v3918, %v3923
    %v3927 = vld [vmem:[%s47] sm:$0xff]
    %v3928 = vld [vmem:[%s47 + $0x8] sm:$0xff]
    %v3929 = vld [vmem:[%s47 + $0x10] sm:$0xff]
    %v3930 = vld [vmem:[%s47 + $0x18] sm:$0xff]
    %v3931 = vld [vmem:[%s49] sm:$0x1]
    %v3932 = vld [vmem:[%s51] sm:$0xff]
    %v3933 = vld [vmem:[%s51 + $0x8] sm:$0xff]
    %v3934 = vld [vmem:[%s51 + $0x10] sm:$0xff]
    %v3935 = vld [vmem:[%s51 + $0x18] sm:$0xff]
    %v3936 = vld [vmem:[%s51 + $0x20] sm:$0xff]
    %v3937 = vld [vmem:[%s51 + $0x28] sm:$0xff]
    %v3938 = vld [vmem:[%s51 + $0x30] sm:$0xff]
    %v3939 = vld [vmem:[%s51 + $0x38] sm:$0xff]
    %v3940 = vld [vmem:[%s53] sm:$0x1]
    %v3941 = vld [vmem:[%s55] sm:$0x1]
    %v3942 = vld [vmem:[%s57] sm:$0x1]
    %v3944 = vlaneseq
    %v3945 = vshrl.u32 %v3944, 7
    %v3946 = vsub.s32 0, %v3945
    %v3947 = vrot.slane %v3931, %v3946
    %v3950 = vsel %vm678, %v3925, 0
    %v3953 = vsel %vm678, %v3926, 0
    %3955 = vmatprep.subr.mxu0 0.0
    %3956 = vmatpush1.msra.mxu0 0.0
    %3957 = vmatprep.subr.mxu0 0.0
    %3958 = vmatpush1.msra.mxu0 0.0
    %3959 = vmatprep.subr.mxu0 0.0
    %3960 = vmatpush1.msra.mxu0 0.0
    %3961 = vmatprep.subr.mxu0 0.0
    %3962 = vmatpush1.msra.mxu0 0.0
    %3963 = vmatprep.subr.mxu0 0.0
    %3964 = vmatpush1.msra.mxu0 0.0
    %3965 = vmatprep.subr.mxu0 0.0
    %3966 = vmatpush1.msra.mxu0 0.0
    %3967 = vmatprep.subr.mxu0 0.0
    %3968 = vmatpush1.msra.mxu0 0.0
    %3969 = vmatprep.subr.mxu0 0.0
    %3970 = vmatpush1.msra.mxu0 0.0
    %3971 = vmatprep.subr.mxu0 0.0
    %3972 = vmatpush1.msra.mxu0 0.0
    %3973 = vmatprep.subr.mxu0 0.0
    %3974 = vmatpush1.msra.mxu0 0.0
    %3975 = vmatprep.subr.mxu0 0.0
    %3976 = vmatpush1.msra.mxu0 0.0
    %3977 = vmatprep.subr.mxu0 0.0
    %3978 = vmatpush1.msra.mxu0 0.0
    %3979 = vmatprep.subr.mxu0 0.0
    %3980 = vmatpush1.msra.mxu0 %v3930
    %3981 = vmatprep.subr.mxu0 0.0
    %3982 = vmatpush1.msra.mxu0 %v3929
    %3983 = vmatprep.subr.mxu0 0.0
    %3984 = vmatpush1.msra.mxu0 %v3928
    %3985 = vmatprep.subr.mxu0 0.0
    %3986 = vmatpush1.msra.mxu0 %v3927
    %3987 = vmatprep.subr.mxu0 0.0
    %3988 = vmatpush2.msra.mxu0 0.0
    %3989 = vmatprep.subr.mxu0 0.0
    %3990 = vmatpush2.msra.mxu0 0.0
    %3991 = vmatprep.subr.mxu0 0.0
    %3992 = vmatpush2.msra.mxu0 0.0
    %3993 = vmatprep.subr.mxu0 0.0
    %3994 = vmatpush2.msra.mxu0 0.0
    %3995 = vmatprep.subr.mxu0 0.0
    %3996 = vmatpush2.msra.mxu0 0.0
    %3997 = vmatprep.subr.mxu0 0.0
    %3998 = vmatpush2.msra.mxu0 0.0
    %3999 = vmatprep.subr.mxu0 0.0
    %4000 = vmatpush2.msra.mxu0 0.0
    %4001 = vmatprep.subr.mxu0 0.0
    %4002 = vmatpush2.msra.mxu0 0.0
    %4003 = vmatprep.subr.mxu0 0.0
    %4004 = vmatpush2.msra.mxu0 0.0
    %4005 = vmatprep.subr.mxu0 0.0
    %4006 = vmatpush2.msra.mxu0 0.0
    %4007 = vmatprep.subr.mxu0 0.0
    %4008 = vmatpush2.msra.mxu0 0.0
    %4009 = vmatprep.subr.mxu0 0.0
    %4010 = vmatpush2.msra.mxu0 0.0
    %4011 = vmatprep.subr.mxu0 0.0
    %4012 = vmatpush2.msra.mxu0 0.0
    %4013 = vmatprep.subr.mxu0 0.0
    %4014 = vmatpush2.msra.mxu0 0.0
    %4015 = vmatprep.subr.mxu0 0.0
    %4016 = vmatpush2.msra.mxu0 0.0
    %4017 = vmatprep.subr.mxu0 0.0
    %4018 = vmatpush2.msra.mxu0 0.0
    %4019 = vmatprep.mubr.f32.mxu0 0.0
    %4020 = vmatmul.mubr.f32.gmra.mxu0 %v3950
    %v4021 = vpop.f32.mrf.mxu0
    %v4022 = vadd.f32 %v3947, %v4021
    %v4023 = vpop.f32.mrf.mxu0
    %4024 = vmatprep.mubr.f32.mxu0 0.0
    %4025 = vmatmul.mubr.f32.gmra.mxu0 %v3953
    %v4026 = vpop.f32.mrf.mxu0
    %v4027 = vadd.f32 %v3947, %v4026
    %v4028 = vpop.f32.mrf.mxu0
    %4029 = vdwg.mxu0
    %v4030 = vmax.f32 %v4022, 0.0
    %v4031 = vmax.f32 %v4027, 0.0
    %v4033 = vlaneseq
    %v4034 = vshrl.u32 %v4033, 7
    %v4035 = vsub.s32 0, %v4034
    %v4036 = vrot.slane %v3940, %v4035
    %vm4038 = vcmask 523264
    %v4040 = vsel %vm4038, %v4030, 0
    %v4043 = vsel %vm4038, %v4031, 0
    %4045 = vmatprep.subr.mxu0 0.0
    %4046 = vmatpush1.msra.mxu0 0.0
    %4047 = vmatprep.subr.mxu0 0.0
    %4048 = vmatpush1.msra.mxu0 0.0
    %4049 = vmatprep.subr.mxu0 0.0
    %4050 = vmatpush1.msra.mxu0 0.0
    %4051 = vmatprep.subr.mxu0 0.0
    %4052 = vmatpush1.msra.mxu0 0.0
    %4053 = vmatprep.subr.mxu0 0.0
    %4054 = vmatpush1.msra.mxu0 0.0
    %4055 = vmatprep.subr.mxu0 0.0
    %4056 = vmatpush1.msra.mxu0 0.0
    %4057 = vmatprep.subr.mxu0 0.0
    %4058 = vmatpush1.msra.mxu0 0.0
    %4059 = vmatprep.subr.mxu0 0.0
    %4060 = vmatpush1.msra.mxu0 0.0
    %4061 = vmatprep.subr.mxu0 0.0
    %4062 = vmatpush1.msra.mxu0 %v3939
    %4063 = vmatprep.subr.mxu0 0.0
    %4064 = vmatpush1.msra.mxu0 %v3938
    %4065 = vmatprep.subr.mxu0 0.0
    %4066 = vmatpush1.msra.mxu0 %v3937
    %4067 = vmatprep.subr.mxu0 0.0
    %4068 = vmatpush1.msra.mxu0 %v3936
    %4069 = vmatprep.subr.mxu0 0.0
    %4070 = vmatpush1.msra.mxu0 %v3935
    %4071 = vmatprep.subr.mxu0 0.0
    %4072 = vmatpush1.msra.mxu0 %v3934
    %4073 = vmatprep.subr.mxu0 0.0
    %4074 = vmatpush1.msra.mxu0 %v3933
    %4075 = vmatprep.subr.mxu0 0.0
    %4076 = vmatpush1.msra.mxu0 %v3932
    %4077 = vmatprep.subr.mxu0 0.0
    %4078 = vmatpush2.msra.mxu0 0.0
    %4079 = vmatprep.subr.mxu0 0.0
    %4080 = vmatpush2.msra.mxu0 0.0
    %4081 = vmatprep.subr.mxu0 0.0
    %4082 = vmatpush2.msra.mxu0 0.0
    %4083 = vmatprep.subr.mxu0 0.0
    %4084 = vmatpush2.msra.mxu0 0.0
    %4085 = vmatprep.subr.mxu0 0.0
    %4086 = vmatpush2.msra.mxu0 0.0
    %4087 = vmatprep.subr.mxu0 0.0
    %4088 = vmatpush2.msra.mxu0 0.0
    %4089 = vmatprep.subr.mxu0 0.0
    %4090 = vmatpush2.msra.mxu0 0.0
    %4091 = vmatprep.subr.mxu0 0.0
    %4092 = vmatpush2.msra.mxu0 0.0
    %4093 = vmatprep.subr.mxu0 0.0
    %4094 = vmatpush2.msra.mxu0 0.0
    %4095 = vmatprep.subr.mxu0 0.0
    %4096 = vmatpush2.msra.mxu0 0.0
    %4097 = vmatprep.subr.mxu0 0.0
    %4098 = vmatpush2.msra.mxu0 0.0
    %4099 = vmatprep.subr.mxu0 0.0
    %4100 = vmatpush2.msra.mxu0 0.0
    %4101 = vmatprep.subr.mxu0 0.0
    %4102 = vmatpush2.msra.mxu0 0.0
    %4103 = vmatprep.subr.mxu0 0.0
    %4104 = vmatpush2.msra.mxu0 0.0
    %4105 = vmatprep.subr.mxu0 0.0
    %4106 = vmatpush2.msra.mxu0 0.0
    %4107 = vmatprep.subr.mxu0 0.0
    %4108 = vmatpush2.msra.mxu0 0.0
    %4109 = vmatprep.mubr.f32.mxu0 0.0
    %4110 = vmatmul.mubr.f32.gmra.mxu0 %v4040
    %v4111 = vpop.f32.mrf.mxu0
    %v4112 = vadd.f32 %v4036, %v4111
    %v4113 = vpop.f32.mrf.mxu0
    %4114 = vmatprep.mubr.f32.mxu0 0.0
    %4115 = vmatmul.mubr.f32.gmra.mxu0 %v4043
    %v4116 = vpop.f32.mrf.mxu0
    %v4117 = vadd.f32 %v4036, %v4116
    %v4118 = vpop.f32.mrf.mxu0
    %4119 = vdwg.mxu0
    %v4120 = vadd.f32 %v4112, %v3925
    %v4121 = vadd.f32 %v4117, %v3926
    %v4122 = vsel %vm678, %v4120, 0.0
    %4123 = vadd.xlane.f32.xlu0 %v4122
    %v4124 = vpop.xlane.xlu0 %4123
    %v4125 = vsel %vm678, %v4121, 0.0
    %4126 = vadd.xlane.f32.xlu0 %v4125
    %v4127 = vpop.xlane.xlu0 %4126
    %v4128 = vmul.f32 %v4124, %v2230
    %v4129 = vmul.f32 %v4127, %v2230
    %v4130 = vsub.f32 %v4120, %v4128
    %v4131 = vsub.f32 %v4121, %v4129
    %v4132 = vmul.f32 %v4130, %v4130
    %v4133 = vmul.f32 %v4131, %v4131
    %v4134 = vsel %vm678, %v4132, 0.0
    %4135 = vadd.xlane.f32.xlu0 %v4134
    %v4136 = vpop.xlane.xlu0 %4135
    %v4137 = vsel %vm678, %v4133, 0.0
    %4138 = vadd.xlane.f32.xlu0 %v4137
    %v4139 = vpop.xlane.xlu0 %4138
    %v4140 = vmul.f32 %v4136, %v2230
    %v4141 = vmul.f32 %v4139, %v2230
    %v4142 = vadd.f32 %v4140, 1e-06
    %v4143 = vadd.f32 %v4141, 1e-06
    %v4144 = vrsqrt.pop %v4142
    %v4145 = vrsqrt.pop %v4143
    %v4146 = vmul.f32 %v4130, %v4144
    %v4147 = vmul.f32 %v4131, %v4145
    %v4149 = vlaneseq
    %v4150 = vshrl.u32 %v4149, 7
    %v4151 = vsub.s32 0, %v4150
    %v4152 = vrot.slane %v3941, %v4151
    %v4154 = vmul.f32 %v4146, %v4152
    %v4155 = vmul.f32 %v4147, %v4152
    %v4157 = vlaneseq
    %v4158 = vshrl.u32 %v4157, 7
    %v4159 = vsub.s32 0, %v4158
    %v4160 = vrot.slane %v3942, %v4159
    %v4162 = vadd.f32 %v4154, %v4160
    %v4163 = vadd.f32 %v4155, %v4160
    %s4164 = scalar_lea.vmem %s23, 32
    %v4165 = vld [vmem:[%s4164] sm:$0xff]
    %v4166 = vld [vmem:[%s4164 + $0x8] sm:$0xff]
    %v4167 = vld [vmem:[%s4164 + $0x10] sm:$0xff]
    %v4168 = vld [vmem:[%s4164 + $0x18] sm:$0xff]
    %s4169 = scalar_lea.vmem %s25, 1
    %v4170 = vld [vmem:[%s4169] sm:$0x1]
    %s4171 = scalar_lea.vmem %s27, 32
    %v4172 = vld [vmem:[%s4171] sm:$0xff]
    %v4173 = vld [vmem:[%s4171 + $0x8] sm:$0xff]
    %v4174 = vld [vmem:[%s4171 + $0x10] sm:$0xff]
    %v4175 = vld [vmem:[%s4171 + $0x18] sm:$0xff]
    %s4176 = scalar_lea.vmem %s29, 1
    %v4177 = vld [vmem:[%s4176] sm:$0x1]
    %s4178 = scalar_lea.vmem %s31, 1
    %v4179 = vld [vmem:[%s4178] sm:$0x1]
    %s4180 = scalar_lea.vmem %s33, 1
    %v4181 = vld [vmem:[%s4180] sm:$0x1]
    %v4183 = vlaneseq
    %v4184 = vshrl.u32 %v4183, 7
    %v4185 = vsub.s32 0, %v4184
    %v4186 = vrot.slane %v4170, %v4185
    %v4189 = vsel %vm678, %v4162, 0
    %v4192 = vsel %vm678, %v4163, 0
    %4194 = vmatprep.subr.mxu0 0.0
    %4195 = vmatpush1.msra.mxu0 0.0
    %4196 = vmatprep.subr.mxu0 0.0
    %4197 = vmatpush1.msra.mxu0 0.0
    %4198 = vmatprep.subr.mxu0 0.0
    %4199 = vmatpush1.msra.mxu0 0.0
    %4200 = vmatprep.subr.mxu0 0.0
    %4201 = vmatpush1.msra.mxu0 0.0
    %4202 = vmatprep.subr.mxu0 0.0
    %4203 = vmatpush1.msra.mxu0 0.0
    %4204 = vmatprep.subr.mxu0 0.0
    %4205 = vmatpush1.msra.mxu0 0.0
    %4206 = vmatprep.subr.mxu0 0.0
    %4207 = vmatpush1.msra.mxu0 0.0
    %4208 = vmatprep.subr.mxu0 0.0
    %4209 = vmatpush1.msra.mxu0 0.0
    %4210 = vmatprep.subr.mxu0 0.0
    %4211 = vmatpush1.msra.mxu0 0.0
    %4212 = vmatprep.subr.mxu0 0.0
    %4213 = vmatpush1.msra.mxu0 0.0
    %4214 = vmatprep.subr.mxu0 0.0
    %4215 = vmatpush1.msra.mxu0 0.0
    %4216 = vmatprep.subr.mxu0 0.0
    %4217 = vmatpush1.msra.mxu0 0.0
    %4218 = vmatprep.subr.mxu0 0.0
    %4219 = vmatpush1.msra.mxu0 %v4168
    %4220 = vmatprep.subr.mxu0 0.0
    %4221 = vmatpush1.msra.mxu0 %v4167
    %4222 = vmatprep.subr.mxu0 0.0
    %4223 = vmatpush1.msra.mxu0 %v4166
    %4224 = vmatprep.subr.mxu0 0.0
    %4225 = vmatpush1.msra.mxu0 %v4165
    %4226 = vmatprep.subr.mxu0 0.0
    %4227 = vmatpush2.msra.mxu0 0.0
    %4228 = vmatprep.subr.mxu0 0.0
    %4229 = vmatpush2.msra.mxu0 0.0
    %4230 = vmatprep.subr.mxu0 0.0
    %4231 = vmatpush2.msra.mxu0 0.0
    %4232 = vmatprep.subr.mxu0 0.0
    %4233 = vmatpush2.msra.mxu0 0.0
    %4234 = vmatprep.subr.mxu0 0.0
    %4235 = vmatpush2.msra.mxu0 0.0
    %4236 = vmatprep.subr.mxu0 0.0
    %4237 = vmatpush2.msra.mxu0 0.0
    %4238 = vmatprep.subr.mxu0 0.0
    %4239 = vmatpush2.msra.mxu0 0.0
    %4240 = vmatprep.subr.mxu0 0.0
    %4241 = vmatpush2.msra.mxu0 0.0
    %4242 = vmatprep.subr.mxu0 0.0
    %4243 = vmatpush2.msra.mxu0 0.0
    %4244 = vmatprep.subr.mxu0 0.0
    %4245 = vmatpush2.msra.mxu0 0.0
    %4246 = vmatprep.subr.mxu0 0.0
    %4247 = vmatpush2.msra.mxu0 0.0
    %4248 = vmatprep.subr.mxu0 0.0
    %4249 = vmatpush2.msra.mxu0 0.0
    %4250 = vmatprep.subr.mxu0 0.0
    %4251 = vmatpush2.msra.mxu0 0.0
    %4252 = vmatprep.subr.mxu0 0.0
    %4253 = vmatpush2.msra.mxu0 0.0
    %4254 = vmatprep.subr.mxu0 0.0
    %4255 = vmatpush2.msra.mxu0 0.0
    %4256 = vmatprep.subr.mxu0 0.0
    %4257 = vmatpush2.msra.mxu0 0.0
    %4258 = vmatprep.mubr.f32.mxu0 0.0
    %4259 = vmatmul.mubr.f32.gmra.mxu0 %v4189
    %v4260 = vpop.f32.mrf.mxu0
    %v4261 = vadd.f32 %v4186, %v4260
    %v4262 = vpop.f32.mrf.mxu0
    %4263 = vmatprep.mubr.f32.mxu0 0.0
    %4264 = vmatmul.mubr.f32.gmra.mxu0 %v4192
    %v4265 = vpop.f32.mrf.mxu0
    %v4266 = vadd.f32 %v4186, %v4265
    %v4267 = vpop.f32.mrf.mxu0
    %4268 = vdwg.mxu0
    %v4269 = vmul.f32 %v4261, %v762
    %v4270 = vmul.f32 %v4266, %v762
    %v4271 = vmul.f32 %v4261, %v767
    %v4272 = vmul.f32 %v4266, %v767
    %4274 = vrot.lane.b32.xlu0 %v4269, 96
    %v4275 = vpop.permute.xlu0 %4274
    %v4277 = vsel %vm678, %v4261, 0
    %v4279 = vsel %vm678, %v4275, 0
    %4281 = vmatprep.subr.mxu0 0.0
    %4282 = vmatpush1.xpose.msra.mxu0 0.0
    %4283 = vmatprep.subr.mxu0 0.0
    %4284 = vmatpush1.xpose.msra.mxu0 0.0
    %4285 = vmatprep.subr.mxu0 0.0
    %4286 = vmatpush1.xpose.msra.mxu0 0.0
    %4287 = vmatprep.subr.mxu0 0.0
    %4288 = vmatpush1.xpose.msra.mxu0 0.0
    %4289 = vmatprep.subr.mxu0 0.0
    %4290 = vmatpush1.xpose.msra.mxu0 0.0
    %4291 = vmatprep.subr.mxu0 0.0
    %4292 = vmatpush1.xpose.msra.mxu0 0.0
    %4293 = vmatprep.subr.mxu0 0.0
    %4294 = vmatpush1.xpose.msra.mxu0 0.0
    %4295 = vmatprep.subr.mxu0 0.0
    %4296 = vmatpush1.xpose.msra.mxu0 0.0
    %4297 = vmatprep.subr.mxu0 0.0
    %4298 = vmatpush1.xpose.msra.mxu0 0.0
    %4299 = vmatprep.subr.mxu0 0.0
    %4300 = vmatpush1.xpose.msra.mxu0 0.0
    %4301 = vmatprep.subr.mxu0 0.0
    %4302 = vmatpush1.xpose.msra.mxu0 0.0
    %4303 = vmatprep.subr.mxu0 0.0
    %4304 = vmatpush1.xpose.msra.mxu0 0.0
    %4305 = vmatprep.subr.mxu0 0.0
    %4306 = vmatpush1.xpose.msra.mxu0 0.0
    %4307 = vmatprep.subr.mxu0 0.0
    %4308 = vmatpush1.xpose.msra.mxu0 0.0
    %4309 = vmatprep.subr.mxu0 0.0
    %4310 = vmatpush1.xpose.msra.mxu0 0.0
    %4311 = vmatprep.subr.mxu0 0.0
    %4312 = vmatpush1.xpose.msra.mxu0 %v4279
    %4313 = vmatprep.subr.mxu0 0.0
    %4314 = vmatpush2.xpose.msra.mxu0 0.0
    %4315 = vmatprep.subr.mxu0 0.0
    %4316 = vmatpush2.xpose.msra.mxu0 0.0
    %4317 = vmatprep.subr.mxu0 0.0
    %4318 = vmatpush2.xpose.msra.mxu0 0.0
    %4319 = vmatprep.subr.mxu0 0.0
    %4320 = vmatpush2.xpose.msra.mxu0 0.0
    %4321 = vmatprep.subr.mxu0 0.0
    %4322 = vmatpush2.xpose.msra.mxu0 0.0
    %4323 = vmatprep.subr.mxu0 0.0
    %4324 = vmatpush2.xpose.msra.mxu0 0.0
    %4325 = vmatprep.subr.mxu0 0.0
    %4326 = vmatpush2.xpose.msra.mxu0 0.0
    %4327 = vmatprep.subr.mxu0 0.0
    %4328 = vmatpush2.xpose.msra.mxu0 0.0
    %4329 = vmatprep.subr.mxu0 0.0
    %4330 = vmatpush2.xpose.msra.mxu0 0.0
    %4331 = vmatprep.subr.mxu0 0.0
    %4332 = vmatpush2.xpose.msra.mxu0 0.0
    %4333 = vmatprep.subr.mxu0 0.0
    %4334 = vmatpush2.xpose.msra.mxu0 0.0
    %4335 = vmatprep.subr.mxu0 0.0
    %4336 = vmatpush2.xpose.msra.mxu0 0.0
    %4337 = vmatprep.subr.mxu0 0.0
    %4338 = vmatpush2.xpose.msra.mxu0 0.0
    %4339 = vmatprep.subr.mxu0 0.0
    %4340 = vmatpush2.xpose.msra.mxu0 0.0
    %4341 = vmatprep.subr.mxu0 0.0
    %4342 = vmatpush2.xpose.msra.mxu0 0.0
    %4343 = vmatprep.subr.mxu0 0.0
    %4344 = vmatpush2.xpose.msra.mxu0 0.0
    %4345 = vmatprep.mubr.f32.mxu0 0.0
    %4346 = vmatmul.mubr.f32.gmra.mxu0 %v4277
    %v4347 = vpop.f32.mrf.mxu0
    %v4348 = vadd.f32 0.0, %v4347
    %v4349 = vpop.f32.mrf.mxu0
    %4350 = vdwg.mxu0
    %4352 = vrot.lane.b32.xlu0 %v4270, 96
    %v4353 = vpop.permute.xlu0 %4352
    %v4355 = vsel %vm678, %v4266, 0
    %v4357 = vsel %vm678, %v4353, 0
    %4359 = vmatprep.subr.mxu0 0.0
    %4360 = vmatpush1.xpose.msra.mxu0 0.0
    %4361 = vmatprep.subr.mxu0 0.0
    %4362 = vmatpush1.xpose.msra.mxu0 0.0
    %4363 = vmatprep.subr.mxu0 0.0
    %4364 = vmatpush1.xpose.msra.mxu0 0.0
    %4365 = vmatprep.subr.mxu0 0.0
    %4366 = vmatpush1.xpose.msra.mxu0 0.0
    %4367 = vmatprep.subr.mxu0 0.0
    %4368 = vmatpush1.xpose.msra.mxu0 0.0
    %4369 = vmatprep.subr.mxu0 0.0
    %4370 = vmatpush1.xpose.msra.mxu0 0.0
    %4371 = vmatprep.subr.mxu0 0.0
    %4372 = vmatpush1.xpose.msra.mxu0 0.0
    %4373 = vmatprep.subr.mxu0 0.0
    %4374 = vmatpush1.xpose.msra.mxu0 0.0
    %4375 = vmatprep.subr.mxu0 0.0
    %4376 = vmatpush1.xpose.msra.mxu0 0.0
    %4377 = vmatprep.subr.mxu0 0.0
    %4378 = vmatpush1.xpose.msra.mxu0 0.0
    %4379 = vmatprep.subr.mxu0 0.0
    %4380 = vmatpush1.xpose.msra.mxu0 0.0
    %4381 = vmatprep.subr.mxu0 0.0
    %4382 = vmatpush1.xpose.msra.mxu0 0.0
    %4383 = vmatprep.subr.mxu0 0.0
    %4384 = vmatpush1.xpose.msra.mxu0 0.0
    %4385 = vmatprep.subr.mxu0 0.0
    %4386 = vmatpush1.xpose.msra.mxu0 0.0
    %4387 = vmatprep.subr.mxu0 0.0
    %4388 = vmatpush1.xpose.msra.mxu0 0.0
    %4389 = vmatprep.subr.mxu0 0.0
    %4390 = vmatpush1.xpose.msra.mxu0 %v4357
    %4391 = vmatprep.subr.mxu0 0.0
    %4392 = vmatpush2.xpose.msra.mxu0 0.0
    %4393 = vmatprep.subr.mxu0 0.0
    %4394 = vmatpush2.xpose.msra.mxu0 0.0
    %4395 = vmatprep.subr.mxu0 0.0
    %4396 = vmatpush2.xpose.msra.mxu0 0.0
    %4397 = vmatprep.subr.mxu0 0.0
    %4398 = vmatpush2.xpose.msra.mxu0 0.0
    %4399 = vmatprep.subr.mxu0 0.0
    %4400 = vmatpush2.xpose.msra.mxu0 0.0
    %4401 = vmatprep.subr.mxu0 0.0
    %4402 = vmatpush2.xpose.msra.mxu0 0.0
    %4403 = vmatprep.subr.mxu0 0.0
    %4404 = vmatpush2.xpose.msra.mxu0 0.0
    %4405 = vmatprep.subr.mxu0 0.0
    %4406 = vmatpush2.xpose.msra.mxu0 0.0
    %4407 = vmatprep.subr.mxu0 0.0
    %4408 = vmatpush2.xpose.msra.mxu0 0.0
    %4409 = vmatprep.subr.mxu0 0.0
    %4410 = vmatpush2.xpose.msra.mxu0 0.0
    %4411 = vmatprep.subr.mxu0 0.0
    %4412 = vmatpush2.xpose.msra.mxu0 0.0
    %4413 = vmatprep.subr.mxu0 0.0
    %4414 = vmatpush2.xpose.msra.mxu0 0.0
    %4415 = vmatprep.subr.mxu0 0.0
    %4416 = vmatpush2.xpose.msra.mxu0 0.0
    %4417 = vmatprep.subr.mxu0 0.0
    %4418 = vmatpush2.xpose.msra.mxu0 0.0
    %4419 = vmatprep.subr.mxu0 0.0
    %4420 = vmatpush2.xpose.msra.mxu0 0.0
    %4421 = vmatprep.subr.mxu0 0.0
    %4422 = vmatpush2.xpose.msra.mxu0 0.0
    %4423 = vmatprep.mubr.f32.mxu0 0.0
    %4424 = vmatmul.mubr.f32.gmra.mxu0 %v4355
    %v4425 = vpop.f32.mrf.mxu0
    %v4426 = vadd.f32 0.0, %v4425
    %v4427 = vpop.f32.mrf.mxu0
    %4428 = vdwg.mxu0
    %v4429 = vmul.f32 %v4348, 0.35355338
    %v4430 = vmul.f32 %v4426, 0.35355338
    %v4431 = vadd.f32 %v4429, %v189
    %v4432 = vadd.f32 %v4430, %v190
    %v4433 = vsel %vm931, %v4431, -inf
    %4434 = vmax.xlane.f32.xlu0 %v4433
    %v4435 = vpop.xlane.xlu0 %4434
    %v4436 = vsel %vm931, %v4432, -inf
    %4437 = vmax.xlane.f32.xlu0 %v4436
    %v4438 = vpop.xlane.xlu0 %4437
    %v4439 = vsub.f32 %v4431, %v4435
    %v4440 = vsub.f32 %v4432, %v4438
    %v4441 = vmul.f32 %v4439, 1.442695
    %v4442 = vpow.pop %v4441
    %v4443 = vmul.f32 %v4440, 1.442695
    %v4444 = vpow.pop %v4443
    %v4445 = vsel %vm931, %v4442, 0.0
    %4446 = vadd.xlane.f32.xlu0 %v4445
    %v4447 = vpop.xlane.xlu0 %4446
    %v4448 = vsel %vm931, %v4444, 0.0
    %4449 = vadd.xlane.f32.xlu0 %v4448
    %v4450 = vpop.xlane.xlu0 %4449
    %v4451 = vrcp.pop %v4447
    %v4452 = vrcp.pop %v4450
    %v4453 = vmul.f32 %v4442, %v4451
    %v4454 = vmul.f32 %v4444, %v4452
    %v4455 = vmul.f32 %v4261, %v956
    %v4456 = vmul.f32 %v4266, %v956
    %v4457 = vmul.f32 %v4261, %v961
    %v4458 = vmul.f32 %v4266, %v961
    %4460 = vrot.lane.b32.xlu0 %v4455, 96
    %v4461 = vpop.permute.xlu0 %4460
    %v4462 = vsel %vm678, %v4461, 0
    %4464 = vmatprep.subr.mxu0 0.0
    %4465 = vmatpush1.xpose.msra.mxu0 0.0
    %4466 = vmatprep.subr.mxu0 0.0
    %4467 = vmatpush1.xpose.msra.mxu0 0.0
    %4468 = vmatprep.subr.mxu0 0.0
    %4469 = vmatpush1.xpose.msra.mxu0 0.0
    %4470 = vmatprep.subr.mxu0 0.0
    %4471 = vmatpush1.xpose.msra.mxu0 0.0
    %4472 = vmatprep.subr.mxu0 0.0
    %4473 = vmatpush1.xpose.msra.mxu0 0.0
    %4474 = vmatprep.subr.mxu0 0.0
    %4475 = vmatpush1.xpose.msra.mxu0 0.0
    %4476 = vmatprep.subr.mxu0 0.0
    %4477 = vmatpush1.xpose.msra.mxu0 0.0
    %4478 = vmatprep.subr.mxu0 0.0
    %4479 = vmatpush1.xpose.msra.mxu0 0.0
    %4480 = vmatprep.subr.mxu0 0.0
    %4481 = vmatpush1.xpose.msra.mxu0 0.0
    %4482 = vmatprep.subr.mxu0 0.0
    %4483 = vmatpush1.xpose.msra.mxu0 0.0
    %4484 = vmatprep.subr.mxu0 0.0
    %4485 = vmatpush1.xpose.msra.mxu0 0.0
    %4486 = vmatprep.subr.mxu0 0.0
    %4487 = vmatpush1.xpose.msra.mxu0 0.0
    %4488 = vmatprep.subr.mxu0 0.0
    %4489 = vmatpush1.xpose.msra.mxu0 0.0
    %4490 = vmatprep.subr.mxu0 0.0
    %4491 = vmatpush1.xpose.msra.mxu0 0.0
    %4492 = vmatprep.subr.mxu0 0.0
    %4493 = vmatpush1.xpose.msra.mxu0 0.0
    %4494 = vmatprep.subr.mxu0 0.0
    %4495 = vmatpush1.xpose.msra.mxu0 %v4462
    %4496 = vmatprep.subr.mxu0 0.0
    %4497 = vmatpush2.xpose.msra.mxu0 0.0
    %4498 = vmatprep.subr.mxu0 0.0
    %4499 = vmatpush2.xpose.msra.mxu0 0.0
    %4500 = vmatprep.subr.mxu0 0.0
    %4501 = vmatpush2.xpose.msra.mxu0 0.0
    %4502 = vmatprep.subr.mxu0 0.0
    %4503 = vmatpush2.xpose.msra.mxu0 0.0
    %4504 = vmatprep.subr.mxu0 0.0
    %4505 = vmatpush2.xpose.msra.mxu0 0.0
    %4506 = vmatprep.subr.mxu0 0.0
    %4507 = vmatpush2.xpose.msra.mxu0 0.0
    %4508 = vmatprep.subr.mxu0 0.0
    %4509 = vmatpush2.xpose.msra.mxu0 0.0
    %4510 = vmatprep.subr.mxu0 0.0
    %4511 = vmatpush2.xpose.msra.mxu0 0.0
    %4512 = vmatprep.subr.mxu0 0.0
    %4513 = vmatpush2.xpose.msra.mxu0 0.0
    %4514 = vmatprep.subr.mxu0 0.0
    %4515 = vmatpush2.xpose.msra.mxu0 0.0
    %4516 = vmatprep.subr.mxu0 0.0
    %4517 = vmatpush2.xpose.msra.mxu0 0.0
    %4518 = vmatprep.subr.mxu0 0.0
    %4519 = vmatpush2.xpose.msra.mxu0 0.0
    %4520 = vmatprep.subr.mxu0 0.0
    %4521 = vmatpush2.xpose.msra.mxu0 0.0
    %4522 = vmatprep.subr.mxu0 0.0
    %4523 = vmatpush2.xpose.msra.mxu0 0.0
    %4524 = vmatprep.subr.mxu0 0.0
    %4525 = vmatpush2.xpose.msra.mxu0 0.0
    %4526 = vmatprep.subr.mxu0 0.0
    %4527 = vmatpush2.xpose.msra.mxu0 0.0
    %4528 = vmatprep.mubr.f32.mxu0 0.0
    %4529 = vmatmul.mubr.f32.gmra.mxu0 %v4277
    %v4530 = vpop.f32.mrf.mxu0
    %v4531 = vadd.f32 0.0, %v4530
    %v4532 = vpop.f32.mrf.mxu0
    %4533 = vdwg.mxu0
    %4535 = vrot.lane.b32.xlu0 %v4456, 96
    %v4536 = vpop.permute.xlu0 %4535
    %v4537 = vsel %vm678, %v4536, 0
    %4539 = vmatprep.subr.mxu0 0.0
    %4540 = vmatpush1.xpose.msra.mxu0 0.0
    %4541 = vmatprep.subr.mxu0 0.0
    %4542 = vmatpush1.xpose.msra.mxu0 0.0
    %4543 = vmatprep.subr.mxu0 0.0
    %4544 = vmatpush1.xpose.msra.mxu0 0.0
    %4545 = vmatprep.subr.mxu0 0.0
    %4546 = vmatpush1.xpose.msra.mxu0 0.0
    %4547 = vmatprep.subr.mxu0 0.0
    %4548 = vmatpush1.xpose.msra.mxu0 0.0
    %4549 = vmatprep.subr.mxu0 0.0
    %4550 = vmatpush1.xpose.msra.mxu0 0.0
    %4551 = vmatprep.subr.mxu0 0.0
    %4552 = vmatpush1.xpose.msra.mxu0 0.0
    %4553 = vmatprep.subr.mxu0 0.0
    %4554 = vmatpush1.xpose.msra.mxu0 0.0
    %4555 = vmatprep.subr.mxu0 0.0
    %4556 = vmatpush1.xpose.msra.mxu0 0.0
    %4557 = vmatprep.subr.mxu0 0.0
    %4558 = vmatpush1.xpose.msra.mxu0 0.0
    %4559 = vmatprep.subr.mxu0 0.0
    %4560 = vmatpush1.xpose.msra.mxu0 0.0
    %4561 = vmatprep.subr.mxu0 0.0
    %4562 = vmatpush1.xpose.msra.mxu0 0.0
    %4563 = vmatprep.subr.mxu0 0.0
    %4564 = vmatpush1.xpose.msra.mxu0 0.0
    %4565 = vmatprep.subr.mxu0 0.0
    %4566 = vmatpush1.xpose.msra.mxu0 0.0
    %4567 = vmatprep.subr.mxu0 0.0
    %4568 = vmatpush1.xpose.msra.mxu0 0.0
    %4569 = vmatprep.subr.mxu0 0.0
    %4570 = vmatpush1.xpose.msra.mxu0 %v4537
    %4571 = vmatprep.subr.mxu0 0.0
    %4572 = vmatpush2.xpose.msra.mxu0 0.0
    %4573 = vmatprep.subr.mxu0 0.0
    %4574 = vmatpush2.xpose.msra.mxu0 0.0
    %4575 = vmatprep.subr.mxu0 0.0
    %4576 = vmatpush2.xpose.msra.mxu0 0.0
    %4577 = vmatprep.subr.mxu0 0.0
    %4578 = vmatpush2.xpose.msra.mxu0 0.0
    %4579 = vmatprep.subr.mxu0 0.0
    %4580 = vmatpush2.xpose.msra.mxu0 0.0
    %4581 = vmatprep.subr.mxu0 0.0
    %4582 = vmatpush2.xpose.msra.mxu0 0.0
    %4583 = vmatprep.subr.mxu0 0.0
    %4584 = vmatpush2.xpose.msra.mxu0 0.0
    %4585 = vmatprep.subr.mxu0 0.0
    %4586 = vmatpush2.xpose.msra.mxu0 0.0
    %4587 = vmatprep.subr.mxu0 0.0
    %4588 = vmatpush2.xpose.msra.mxu0 0.0
    %4589 = vmatprep.subr.mxu0 0.0
    %4590 = vmatpush2.xpose.msra.mxu0 0.0
    %4591 = vmatprep.subr.mxu0 0.0
    %4592 = vmatpush2.xpose.msra.mxu0 0.0
    %4593 = vmatprep.subr.mxu0 0.0
    %4594 = vmatpush2.xpose.msra.mxu0 0.0
    %4595 = vmatprep.subr.mxu0 0.0
    %4596 = vmatpush2.xpose.msra.mxu0 0.0
    %4597 = vmatprep.subr.mxu0 0.0
    %4598 = vmatpush2.xpose.msra.mxu0 0.0
    %4599 = vmatprep.subr.mxu0 0.0
    %4600 = vmatpush2.xpose.msra.mxu0 0.0
    %4601 = vmatprep.subr.mxu0 0.0
    %4602 = vmatpush2.xpose.msra.mxu0 0.0
    %4603 = vmatprep.mubr.f32.mxu0 0.0
    %4604 = vmatmul.mubr.f32.gmra.mxu0 %v4355
    %v4605 = vpop.f32.mrf.mxu0
    %v4606 = vadd.f32 0.0, %v4605
    %v4607 = vpop.f32.mrf.mxu0
    %4608 = vdwg.mxu0
    %v4609 = vmul.f32 %v4531, 0.35355338
    %v4610 = vmul.f32 %v4606, 0.35355338
    %v4611 = vadd.f32 %v4609, %v189
    %v4612 = vadd.f32 %v4610, %v190
    %v4613 = vsel %vm931, %v4611, -inf
    %4614 = vmax.xlane.f32.xlu0 %v4613
    %v4615 = vpop.xlane.xlu0 %4614
    %v4616 = vsel %vm931, %v4612, -inf
    %4617 = vmax.xlane.f32.xlu0 %v4616
    %v4618 = vpop.xlane.xlu0 %4617
    %v4619 = vsub.f32 %v4611, %v4615
    %v4620 = vsub.f32 %v4612, %v4618
    %v4621 = vmul.f32 %v4619, 1.442695
    %v4622 = vpow.pop %v4621
    %v4623 = vmul.f32 %v4620, 1.442695
    %v4624 = vpow.pop %v4623
    %v4625 = vsel %vm931, %v4622, 0.0
    %4626 = vadd.xlane.f32.xlu0 %v4625
    %v4627 = vpop.xlane.xlu0 %4626
    %v4628 = vsel %vm931, %v4624, 0.0
    %4629 = vadd.xlane.f32.xlu0 %v4628
    %v4630 = vpop.xlane.xlu0 %4629
    %v4631 = vrcp.pop %v4627
    %v4632 = vrcp.pop %v4630
    %v4633 = vmul.f32 %v4622, %v4631
    %v4634 = vmul.f32 %v4624, %v4632
    %4636 = vrot.lane.b32.xlu0 %v4457, 64
    %v4637 = vpop.permute.xlu0 %4636
    %v4640 = vsel %vm931, %v4633, 0
    %4642 = vmatprep.subr.mxu0 0.0
    %4643 = vmatpush1.msra.mxu0 0.0
    %4644 = vmatprep.subr.mxu0 0.0
    %4645 = vmatpush1.msra.mxu0 0.0
    %4646 = vmatprep.subr.mxu0 0.0
    %4647 = vmatpush1.msra.mxu0 0.0
    %4648 = vmatprep.subr.mxu0 0.0
    %4649 = vmatpush1.msra.mxu0 0.0
    %4650 = vmatprep.subr.mxu0 0.0
    %4651 = vmatpush1.msra.mxu0 0.0
    %4652 = vmatprep.subr.mxu0 0.0
    %4653 = vmatpush1.msra.mxu0 0.0
    %4654 = vmatprep.subr.mxu0 0.0
    %4655 = vmatpush1.msra.mxu0 0.0
    %4656 = vmatprep.subr.mxu0 0.0
    %4657 = vmatpush1.msra.mxu0 0.0
    %4658 = vmatprep.subr.mxu0 0.0
    %4659 = vmatpush1.msra.mxu0 0.0
    %4660 = vmatprep.subr.mxu0 0.0
    %4661 = vmatpush1.msra.mxu0 0.0
    %4662 = vmatprep.subr.mxu0 0.0
    %4663 = vmatpush1.msra.mxu0 0.0
    %4664 = vmatprep.subr.mxu0 0.0
    %4665 = vmatpush1.msra.mxu0 0.0
    %4666 = vmatprep.subr.mxu0 0.0
    %4667 = vmatpush1.msra.mxu0 0.0
    %4668 = vmatprep.subr.mxu0 0.0
    %4669 = vmatpush1.msra.mxu0 0.0
    %4670 = vmatprep.subr.mxu0 0.0
    %4671 = vmatpush1.msra.mxu0 0.0
    %4672 = vmatprep.subr.mxu0 0.0
    %4673 = vmatpush1.msra.mxu0 %v4637
    %4674 = vmatprep.subr.mxu0 0.0
    %4675 = vmatpush2.msra.mxu0 0.0
    %4676 = vmatprep.subr.mxu0 0.0
    %4677 = vmatpush2.msra.mxu0 0.0
    %4678 = vmatprep.subr.mxu0 0.0
    %4679 = vmatpush2.msra.mxu0 0.0
    %4680 = vmatprep.subr.mxu0 0.0
    %4681 = vmatpush2.msra.mxu0 0.0
    %4682 = vmatprep.subr.mxu0 0.0
    %4683 = vmatpush2.msra.mxu0 0.0
    %4684 = vmatprep.subr.mxu0 0.0
    %4685 = vmatpush2.msra.mxu0 0.0
    %4686 = vmatprep.subr.mxu0 0.0
    %4687 = vmatpush2.msra.mxu0 0.0
    %4688 = vmatprep.subr.mxu0 0.0
    %4689 = vmatpush2.msra.mxu0 0.0
    %4690 = vmatprep.subr.mxu0 0.0
    %4691 = vmatpush2.msra.mxu0 0.0
    %4692 = vmatprep.subr.mxu0 0.0
    %4693 = vmatpush2.msra.mxu0 0.0
    %4694 = vmatprep.subr.mxu0 0.0
    %4695 = vmatpush2.msra.mxu0 0.0
    %4696 = vmatprep.subr.mxu0 0.0
    %4697 = vmatpush2.msra.mxu0 0.0
    %4698 = vmatprep.subr.mxu0 0.0
    %4699 = vmatpush2.msra.mxu0 0.0
    %4700 = vmatprep.subr.mxu0 0.0
    %4701 = vmatpush2.msra.mxu0 0.0
    %4702 = vmatprep.subr.mxu0 0.0
    %4703 = vmatpush2.msra.mxu0 0.0
    %4704 = vmatprep.subr.mxu0 0.0
    %4705 = vmatpush2.msra.mxu0 0.0
    %4706 = vmatprep.mubr.f32.mxu0 0.0
    %4707 = vmatmul.mubr.f32.gmra.mxu0 %v4640
    %v4708 = vpop.f32.mrf.mxu0
    %v4709 = vadd.f32 0.0, %v4708
    %v4710 = vpop.f32.mrf.mxu0
    %4711 = vdwg.mxu0
    %4713 = vrot.lane.b32.xlu0 %v4458, 64
    %v4714 = vpop.permute.xlu0 %4713
    %v4717 = vsel %vm931, %v4634, 0
    %4719 = vmatprep.subr.mxu0 0.0
    %4720 = vmatpush1.msra.mxu0 0.0
    %4721 = vmatprep.subr.mxu0 0.0
    %4722 = vmatpush1.msra.mxu0 0.0
    %4723 = vmatprep.subr.mxu0 0.0
    %4724 = vmatpush1.msra.mxu0 0.0
    %4725 = vmatprep.subr.mxu0 0.0
    %4726 = vmatpush1.msra.mxu0 0.0
    %4727 = vmatprep.subr.mxu0 0.0
    %4728 = vmatpush1.msra.mxu0 0.0
    %4729 = vmatprep.subr.mxu0 0.0
    %4730 = vmatpush1.msra.mxu0 0.0
    %4731 = vmatprep.subr.mxu0 0.0
    %4732 = vmatpush1.msra.mxu0 0.0
    %4733 = vmatprep.subr.mxu0 0.0
    %4734 = vmatpush1.msra.mxu0 0.0
    %4735 = vmatprep.subr.mxu0 0.0
    %4736 = vmatpush1.msra.mxu0 0.0
    %4737 = vmatprep.subr.mxu0 0.0
    %4738 = vmatpush1.msra.mxu0 0.0
    %4739 = vmatprep.subr.mxu0 0.0
    %4740 = vmatpush1.msra.mxu0 0.0
    %4741 = vmatprep.subr.mxu0 0.0
    %4742 = vmatpush1.msra.mxu0 0.0
    %4743 = vmatprep.subr.mxu0 0.0
    %4744 = vmatpush1.msra.mxu0 0.0
    %4745 = vmatprep.subr.mxu0 0.0
    %4746 = vmatpush1.msra.mxu0 0.0
    %4747 = vmatprep.subr.mxu0 0.0
    %4748 = vmatpush1.msra.mxu0 0.0
    %4749 = vmatprep.subr.mxu0 0.0
    %4750 = vmatpush1.msra.mxu0 %v4714
    %4751 = vmatprep.subr.mxu0 0.0
    %4752 = vmatpush2.msra.mxu0 0.0
    %4753 = vmatprep.subr.mxu0 0.0
    %4754 = vmatpush2.msra.mxu0 0.0
    %4755 = vmatprep.subr.mxu0 0.0
    %4756 = vmatpush2.msra.mxu0 0.0
    %4757 = vmatprep.subr.mxu0 0.0
    %4758 = vmatpush2.msra.mxu0 0.0
    %4759 = vmatprep.subr.mxu0 0.0
    %4760 = vmatpush2.msra.mxu0 0.0
    %4761 = vmatprep.subr.mxu0 0.0
    %4762 = vmatpush2.msra.mxu0 0.0
    %4763 = vmatprep.subr.mxu0 0.0
    %4764 = vmatpush2.msra.mxu0 0.0
    %4765 = vmatprep.subr.mxu0 0.0
    %4766 = vmatpush2.msra.mxu0 0.0
    %4767 = vmatprep.subr.mxu0 0.0
    %4768 = vmatpush2.msra.mxu0 0.0
    %4769 = vmatprep.subr.mxu0 0.0
    %4770 = vmatpush2.msra.mxu0 0.0
    %4771 = vmatprep.subr.mxu0 0.0
    %4772 = vmatpush2.msra.mxu0 0.0
    %4773 = vmatprep.subr.mxu0 0.0
    %4774 = vmatpush2.msra.mxu0 0.0
    %4775 = vmatprep.subr.mxu0 0.0
    %4776 = vmatpush2.msra.mxu0 0.0
    %4777 = vmatprep.subr.mxu0 0.0
    %4778 = vmatpush2.msra.mxu0 0.0
    %4779 = vmatprep.subr.mxu0 0.0
    %4780 = vmatpush2.msra.mxu0 0.0
    %4781 = vmatprep.subr.mxu0 0.0
    %4782 = vmatpush2.msra.mxu0 0.0
    %4783 = vmatprep.mubr.f32.mxu0 0.0
    %4784 = vmatmul.mubr.f32.gmra.mxu0 %v4717
    %v4785 = vpop.f32.mrf.mxu0
    %v4786 = vadd.f32 0.0, %v4785
    %v4787 = vpop.f32.mrf.mxu0
    %4788 = vdwg.mxu0
    %4790 = vrot.lane.b32.xlu0 %v4271, 64
    %v4791 = vpop.permute.xlu0 %4790
    %v4794 = vsel %vm931, %v4453, 0
    %4796 = vmatprep.subr.mxu0 0.0
    %4797 = vmatpush1.msra.mxu0 0.0
    %4798 = vmatprep.subr.mxu0 0.0
    %4799 = vmatpush1.msra.mxu0 0.0
    %4800 = vmatprep.subr.mxu0 0.0
    %4801 = vmatpush1.msra.mxu0 0.0
    %4802 = vmatprep.subr.mxu0 0.0
    %4803 = vmatpush1.msra.mxu0 0.0
    %4804 = vmatprep.subr.mxu0 0.0
    %4805 = vmatpush1.msra.mxu0 0.0
    %4806 = vmatprep.subr.mxu0 0.0
    %4807 = vmatpush1.msra.mxu0 0.0
    %4808 = vmatprep.subr.mxu0 0.0
    %4809 = vmatpush1.msra.mxu0 0.0
    %4810 = vmatprep.subr.mxu0 0.0
    %4811 = vmatpush1.msra.mxu0 0.0
    %4812 = vmatprep.subr.mxu0 0.0
    %4813 = vmatpush1.msra.mxu0 0.0
    %4814 = vmatprep.subr.mxu0 0.0
    %4815 = vmatpush1.msra.mxu0 0.0
    %4816 = vmatprep.subr.mxu0 0.0
    %4817 = vmatpush1.msra.mxu0 0.0
    %4818 = vmatprep.subr.mxu0 0.0
    %4819 = vmatpush1.msra.mxu0 0.0
    %4820 = vmatprep.subr.mxu0 0.0
    %4821 = vmatpush1.msra.mxu0 0.0
    %4822 = vmatprep.subr.mxu0 0.0
    %4823 = vmatpush1.msra.mxu0 0.0
    %4824 = vmatprep.subr.mxu0 0.0
    %4825 = vmatpush1.msra.mxu0 0.0
    %4826 = vmatprep.subr.mxu0 0.0
    %4827 = vmatpush1.msra.mxu0 %v4791
    %4828 = vmatprep.subr.mxu0 0.0
    %4829 = vmatpush2.msra.mxu0 0.0
    %4830 = vmatprep.subr.mxu0 0.0
    %4831 = vmatpush2.msra.mxu0 0.0
    %4832 = vmatprep.subr.mxu0 0.0
    %4833 = vmatpush2.msra.mxu0 0.0
    %4834 = vmatprep.subr.mxu0 0.0
    %4835 = vmatpush2.msra.mxu0 0.0
    %4836 = vmatprep.subr.mxu0 0.0
    %4837 = vmatpush2.msra.mxu0 0.0
    %4838 = vmatprep.subr.mxu0 0.0
    %4839 = vmatpush2.msra.mxu0 0.0
    %4840 = vmatprep.subr.mxu0 0.0
    %4841 = vmatpush2.msra.mxu0 0.0
    %4842 = vmatprep.subr.mxu0 0.0
    %4843 = vmatpush2.msra.mxu0 0.0
    %4844 = vmatprep.subr.mxu0 0.0
    %4845 = vmatpush2.msra.mxu0 0.0
    %4846 = vmatprep.subr.mxu0 0.0
    %4847 = vmatpush2.msra.mxu0 0.0
    %4848 = vmatprep.subr.mxu0 0.0
    %4849 = vmatpush2.msra.mxu0 0.0
    %4850 = vmatprep.subr.mxu0 0.0
    %4851 = vmatpush2.msra.mxu0 0.0
    %4852 = vmatprep.subr.mxu0 0.0
    %4853 = vmatpush2.msra.mxu0 0.0
    %4854 = vmatprep.subr.mxu0 0.0
    %4855 = vmatpush2.msra.mxu0 0.0
    %4856 = vmatprep.subr.mxu0 0.0
    %4857 = vmatpush2.msra.mxu0 0.0
    %4858 = vmatprep.subr.mxu0 0.0
    %4859 = vmatpush2.msra.mxu0 0.0
    %4860 = vmatprep.mubr.f32.mxu0 0.0
    %4861 = vmatmul.mubr.f32.gmra.mxu0 %v4794
    %v4862 = vpop.f32.mrf.mxu0
    %v4863 = vadd.f32 %v4709, %v4862
    %v4864 = vpop.f32.mrf.mxu0
    %4865 = vdwg.mxu0
    %4867 = vrot.lane.b32.xlu0 %v4272, 64
    %v4868 = vpop.permute.xlu0 %4867
    %v4871 = vsel %vm931, %v4454, 0
    %4873 = vmatprep.subr.mxu0 0.0
    %4874 = vmatpush1.msra.mxu0 0.0
    %4875 = vmatprep.subr.mxu0 0.0
    %4876 = vmatpush1.msra.mxu0 0.0
    %4877 = vmatprep.subr.mxu0 0.0
    %4878 = vmatpush1.msra.mxu0 0.0
    %4879 = vmatprep.subr.mxu0 0.0
    %4880 = vmatpush1.msra.mxu0 0.0
    %4881 = vmatprep.subr.mxu0 0.0
    %4882 = vmatpush1.msra.mxu0 0.0
    %4883 = vmatprep.subr.mxu0 0.0
    %4884 = vmatpush1.msra.mxu0 0.0
    %4885 = vmatprep.subr.mxu0 0.0
    %4886 = vmatpush1.msra.mxu0 0.0
    %4887 = vmatprep.subr.mxu0 0.0
    %4888 = vmatpush1.msra.mxu0 0.0
    %4889 = vmatprep.subr.mxu0 0.0
    %4890 = vmatpush1.msra.mxu0 0.0
    %4891 = vmatprep.subr.mxu0 0.0
    %4892 = vmatpush1.msra.mxu0 0.0
    %4893 = vmatprep.subr.mxu0 0.0
    %4894 = vmatpush1.msra.mxu0 0.0
    %4895 = vmatprep.subr.mxu0 0.0
    %4896 = vmatpush1.msra.mxu0 0.0
    %4897 = vmatprep.subr.mxu0 0.0
    %4898 = vmatpush1.msra.mxu0 0.0
    %4899 = vmatprep.subr.mxu0 0.0
    %4900 = vmatpush1.msra.mxu0 0.0
    %4901 = vmatprep.subr.mxu0 0.0
    %4902 = vmatpush1.msra.mxu0 0.0
    %4903 = vmatprep.subr.mxu0 0.0
    %4904 = vmatpush1.msra.mxu0 %v4868
    %4905 = vmatprep.subr.mxu0 0.0
    %4906 = vmatpush2.msra.mxu0 0.0
    %4907 = vmatprep.subr.mxu0 0.0
    %4908 = vmatpush2.msra.mxu0 0.0
    %4909 = vmatprep.subr.mxu0 0.0
    %4910 = vmatpush2.msra.mxu0 0.0
    %4911 = vmatprep.subr.mxu0 0.0
    %4912 = vmatpush2.msra.mxu0 0.0
    %4913 = vmatprep.subr.mxu0 0.0
    %4914 = vmatpush2.msra.mxu0 0.0
    %4915 = vmatprep.subr.mxu0 0.0
    %4916 = vmatpush2.msra.mxu0 0.0
    %4917 = vmatprep.subr.mxu0 0.0
    %4918 = vmatpush2.msra.mxu0 0.0
    %4919 = vmatprep.subr.mxu0 0.0
    %4920 = vmatpush2.msra.mxu0 0.0
    %4921 = vmatprep.subr.mxu0 0.0
    %4922 = vmatpush2.msra.mxu0 0.0
    %4923 = vmatprep.subr.mxu0 0.0
    %4924 = vmatpush2.msra.mxu0 0.0
    %4925 = vmatprep.subr.mxu0 0.0
    %4926 = vmatpush2.msra.mxu0 0.0
    %4927 = vmatprep.subr.mxu0 0.0
    %4928 = vmatpush2.msra.mxu0 0.0
    %4929 = vmatprep.subr.mxu0 0.0
    %4930 = vmatpush2.msra.mxu0 0.0
    %4931 = vmatprep.subr.mxu0 0.0
    %4932 = vmatpush2.msra.mxu0 0.0
    %4933 = vmatprep.subr.mxu0 0.0
    %4934 = vmatpush2.msra.mxu0 0.0
    %4935 = vmatprep.subr.mxu0 0.0
    %4936 = vmatpush2.msra.mxu0 0.0
    %4937 = vmatprep.mubr.f32.mxu0 0.0
    %4938 = vmatmul.mubr.f32.gmra.mxu0 %v4871
    %v4939 = vpop.f32.mrf.mxu0
    %v4940 = vadd.f32 %v4786, %v4939
    %v4941 = vpop.f32.mrf.mxu0
    %4942 = vdwg.mxu0
    %v4943 = vmul.f32 %v4261, %v1451
    %v4944 = vmul.f32 %v4266, %v1451
    %v4945 = vmul.f32 %v4261, %v1456
    %v4946 = vmul.f32 %v4266, %v1456
    %4948 = vrot.lane.b32.xlu0 %v4943, 96
    %v4949 = vpop.permute.xlu0 %4948
    %v4950 = vsel %vm678, %v4949, 0
    %4952 = vmatprep.subr.mxu0 0.0
    %4953 = vmatpush1.xpose.msra.mxu0 0.0
    %4954 = vmatprep.subr.mxu0 0.0
    %4955 = vmatpush1.xpose.msra.mxu0 0.0
    %4956 = vmatprep.subr.mxu0 0.0
    %4957 = vmatpush1.xpose.msra.mxu0 0.0
    %4958 = vmatprep.subr.mxu0 0.0
    %4959 = vmatpush1.xpose.msra.mxu0 0.0
    %4960 = vmatprep.subr.mxu0 0.0
    %4961 = vmatpush1.xpose.msra.mxu0 0.0
    %4962 = vmatprep.subr.mxu0 0.0
    %4963 = vmatpush1.xpose.msra.mxu0 0.0
    %4964 = vmatprep.subr.mxu0 0.0
    %4965 = vmatpush1.xpose.msra.mxu0 0.0
    %4966 = vmatprep.subr.mxu0 0.0
    %4967 = vmatpush1.xpose.msra.mxu0 0.0
    %4968 = vmatprep.subr.mxu0 0.0
    %4969 = vmatpush1.xpose.msra.mxu0 0.0
    %4970 = vmatprep.subr.mxu0 0.0
    %4971 = vmatpush1.xpose.msra.mxu0 0.0
    %4972 = vmatprep.subr.mxu0 0.0
    %4973 = vmatpush1.xpose.msra.mxu0 0.0
    %4974 = vmatprep.subr.mxu0 0.0
    %4975 = vmatpush1.xpose.msra.mxu0 0.0
    %4976 = vmatprep.subr.mxu0 0.0
    %4977 = vmatpush1.xpose.msra.mxu0 0.0
    %4978 = vmatprep.subr.mxu0 0.0
    %4979 = vmatpush1.xpose.msra.mxu0 0.0
    %4980 = vmatprep.subr.mxu0 0.0
    %4981 = vmatpush1.xpose.msra.mxu0 0.0
    %4982 = vmatprep.subr.mxu0 0.0
    %4983 = vmatpush1.xpose.msra.mxu0 %v4950
    %4984 = vmatprep.subr.mxu0 0.0
    %4985 = vmatpush2.xpose.msra.mxu0 0.0
    %4986 = vmatprep.subr.mxu0 0.0
    %4987 = vmatpush2.xpose.msra.mxu0 0.0
    %4988 = vmatprep.subr.mxu0 0.0
    %4989 = vmatpush2.xpose.msra.mxu0 0.0
    %4990 = vmatprep.subr.mxu0 0.0
    %4991 = vmatpush2.xpose.msra.mxu0 0.0
    %4992 = vmatprep.subr.mxu0 0.0
    %4993 = vmatpush2.xpose.msra.mxu0 0.0
    %4994 = vmatprep.subr.mxu0 0.0
    %4995 = vmatpush2.xpose.msra.mxu0 0.0
    %4996 = vmatprep.subr.mxu0 0.0
    %4997 = vmatpush2.xpose.msra.mxu0 0.0
    %4998 = vmatprep.subr.mxu0 0.0
    %4999 = vmatpush2.xpose.msra.mxu0 0.0
    %5000 = vmatprep.subr.mxu0 0.0
    %5001 = vmatpush2.xpose.msra.mxu0 0.0
    %5002 = vmatprep.subr.mxu0 0.0
    %5003 = vmatpush2.xpose.msra.mxu0 0.0
    %5004 = vmatprep.subr.mxu0 0.0
    %5005 = vmatpush2.xpose.msra.mxu0 0.0
    %5006 = vmatprep.subr.mxu0 0.0
    %5007 = vmatpush2.xpose.msra.mxu0 0.0
    %5008 = vmatprep.subr.mxu0 0.0
    %5009 = vmatpush2.xpose.msra.mxu0 0.0
    %5010 = vmatprep.subr.mxu0 0.0
    %5011 = vmatpush2.xpose.msra.mxu0 0.0
    %5012 = vmatprep.subr.mxu0 0.0
    %5013 = vmatpush2.xpose.msra.mxu0 0.0
    %5014 = vmatprep.subr.mxu0 0.0
    %5015 = vmatpush2.xpose.msra.mxu0 0.0
    %5016 = vmatprep.mubr.f32.mxu0 0.0
    %5017 = vmatmul.mubr.f32.gmra.mxu0 %v4277
    %v5018 = vpop.f32.mrf.mxu0
    %v5019 = vadd.f32 0.0, %v5018
    %v5020 = vpop.f32.mrf.mxu0
    %5021 = vdwg.mxu0
    %5023 = vrot.lane.b32.xlu0 %v4944, 96
    %v5024 = vpop.permute.xlu0 %5023
    %v5025 = vsel %vm678, %v5024, 0
    %5027 = vmatprep.subr.mxu0 0.0
    %5028 = vmatpush1.xpose.msra.mxu0 0.0
    %5029 = vmatprep.subr.mxu0 0.0
    %5030 = vmatpush1.xpose.msra.mxu0 0.0
    %5031 = vmatprep.subr.mxu0 0.0
    %5032 = vmatpush1.xpose.msra.mxu0 0.0
    %5033 = vmatprep.subr.mxu0 0.0
    %5034 = vmatpush1.xpose.msra.mxu0 0.0
    %5035 = vmatprep.subr.mxu0 0.0
    %5036 = vmatpush1.xpose.msra.mxu0 0.0
    %5037 = vmatprep.subr.mxu0 0.0
    %5038 = vmatpush1.xpose.msra.mxu0 0.0
    %5039 = vmatprep.subr.mxu0 0.0
    %5040 = vmatpush1.xpose.msra.mxu0 0.0
    %5041 = vmatprep.subr.mxu0 0.0
    %5042 = vmatpush1.xpose.msra.mxu0 0.0
    %5043 = vmatprep.subr.mxu0 0.0
    %5044 = vmatpush1.xpose.msra.mxu0 0.0
    %5045 = vmatprep.subr.mxu0 0.0
    %5046 = vmatpush1.xpose.msra.mxu0 0.0
    %5047 = vmatprep.subr.mxu0 0.0
    %5048 = vmatpush1.xpose.msra.mxu0 0.0
    %5049 = vmatprep.subr.mxu0 0.0
    %5050 = vmatpush1.xpose.msra.mxu0 0.0
    %5051 = vmatprep.subr.mxu0 0.0
    %5052 = vmatpush1.xpose.msra.mxu0 0.0
    %5053 = vmatprep.subr.mxu0 0.0
    %5054 = vmatpush1.xpose.msra.mxu0 0.0
    %5055 = vmatprep.subr.mxu0 0.0
    %5056 = vmatpush1.xpose.msra.mxu0 0.0
    %5057 = vmatprep.subr.mxu0 0.0
    %5058 = vmatpush1.xpose.msra.mxu0 %v5025
    %5059 = vmatprep.subr.mxu0 0.0
    %5060 = vmatpush2.xpose.msra.mxu0 0.0
    %5061 = vmatprep.subr.mxu0 0.0
    %5062 = vmatpush2.xpose.msra.mxu0 0.0
    %5063 = vmatprep.subr.mxu0 0.0
    %5064 = vmatpush2.xpose.msra.mxu0 0.0
    %5065 = vmatprep.subr.mxu0 0.0
    %5066 = vmatpush2.xpose.msra.mxu0 0.0
    %5067 = vmatprep.subr.mxu0 0.0
    %5068 = vmatpush2.xpose.msra.mxu0 0.0
    %5069 = vmatprep.subr.mxu0 0.0
    %5070 = vmatpush2.xpose.msra.mxu0 0.0
    %5071 = vmatprep.subr.mxu0 0.0
    %5072 = vmatpush2.xpose.msra.mxu0 0.0
    %5073 = vmatprep.subr.mxu0 0.0
    %5074 = vmatpush2.xpose.msra.mxu0 0.0
    %5075 = vmatprep.subr.mxu0 0.0
    %5076 = vmatpush2.xpose.msra.mxu0 0.0
    %5077 = vmatprep.subr.mxu0 0.0
    %5078 = vmatpush2.xpose.msra.mxu0 0.0
    %5079 = vmatprep.subr.mxu0 0.0
    %5080 = vmatpush2.xpose.msra.mxu0 0.0
    %5081 = vmatprep.subr.mxu0 0.0
    %5082 = vmatpush2.xpose.msra.mxu0 0.0
    %5083 = vmatprep.subr.mxu0 0.0
    %5084 = vmatpush2.xpose.msra.mxu0 0.0
    %5085 = vmatprep.subr.mxu0 0.0
    %5086 = vmatpush2.xpose.msra.mxu0 0.0
    %5087 = vmatprep.subr.mxu0 0.0
    %5088 = vmatpush2.xpose.msra.mxu0 0.0
    %5089 = vmatprep.subr.mxu0 0.0
    %5090 = vmatpush2.xpose.msra.mxu0 0.0
    %5091 = vmatprep.mubr.f32.mxu0 0.0
    %5092 = vmatmul.mubr.f32.gmra.mxu0 %v4355
    %v5093 = vpop.f32.mrf.mxu0
    %v5094 = vadd.f32 0.0, %v5093
    %v5095 = vpop.f32.mrf.mxu0
    %5096 = vdwg.mxu0
    %v5097 = vmul.f32 %v5019, 0.35355338
    %v5098 = vmul.f32 %v5094, 0.35355338
    %v5099 = vadd.f32 %v5097, %v189
    %v5100 = vadd.f32 %v5098, %v190
    %v5101 = vsel %vm931, %v5099, -inf
    %5102 = vmax.xlane.f32.xlu0 %v5101
    %v5103 = vpop.xlane.xlu0 %5102
    %v5104 = vsel %vm931, %v5100, -inf
    %5105 = vmax.xlane.f32.xlu0 %v5104
    %v5106 = vpop.xlane.xlu0 %5105
    %v5107 = vsub.f32 %v5099, %v5103
    %v5108 = vsub.f32 %v5100, %v5106
    %v5109 = vmul.f32 %v5107, 1.442695
    %v5110 = vpow.pop %v5109
    %v5111 = vmul.f32 %v5108, 1.442695
    %v5112 = vpow.pop %v5111
    %v5113 = vsel %vm931, %v5110, 0.0
    %5114 = vadd.xlane.f32.xlu0 %v5113
    %v5115 = vpop.xlane.xlu0 %5114
    %v5116 = vsel %vm931, %v5112, 0.0
    %5117 = vadd.xlane.f32.xlu0 %v5116
    %v5118 = vpop.xlane.xlu0 %5117
    %v5119 = vrcp.pop %v5115
    %v5120 = vrcp.pop %v5118
    %v5121 = vmul.f32 %v5110, %v5119
    %v5122 = vmul.f32 %v5112, %v5120
    %5124 = vrot.lane.b32.xlu0 %v4945, 64
    %v5125 = vpop.permute.xlu0 %5124
    %v5128 = vsel %vm931, %v5121, 0
    %5130 = vmatprep.subr.mxu0 0.0
    %5131 = vmatpush1.msra.mxu0 0.0
    %5132 = vmatprep.subr.mxu0 0.0
    %5133 = vmatpush1.msra.mxu0 0.0
    %5134 = vmatprep.subr.mxu0 0.0
    %5135 = vmatpush1.msra.mxu0 0.0
    %5136 = vmatprep.subr.mxu0 0.0
    %5137 = vmatpush1.msra.mxu0 0.0
    %5138 = vmatprep.subr.mxu0 0.0
    %5139 = vmatpush1.msra.mxu0 0.0
    %5140 = vmatprep.subr.mxu0 0.0
    %5141 = vmatpush1.msra.mxu0 0.0
    %5142 = vmatprep.subr.mxu0 0.0
    %5143 = vmatpush1.msra.mxu0 0.0
    %5144 = vmatprep.subr.mxu0 0.0
    %5145 = vmatpush1.msra.mxu0 0.0
    %5146 = vmatprep.subr.mxu0 0.0
    %5147 = vmatpush1.msra.mxu0 0.0
    %5148 = vmatprep.subr.mxu0 0.0
    %5149 = vmatpush1.msra.mxu0 0.0
    %5150 = vmatprep.subr.mxu0 0.0
    %5151 = vmatpush1.msra.mxu0 0.0
    %5152 = vmatprep.subr.mxu0 0.0
    %5153 = vmatpush1.msra.mxu0 0.0
    %5154 = vmatprep.subr.mxu0 0.0
    %5155 = vmatpush1.msra.mxu0 0.0
    %5156 = vmatprep.subr.mxu0 0.0
    %5157 = vmatpush1.msra.mxu0 0.0
    %5158 = vmatprep.subr.mxu0 0.0
    %5159 = vmatpush1.msra.mxu0 0.0
    %5160 = vmatprep.subr.mxu0 0.0
    %5161 = vmatpush1.msra.mxu0 %v5125
    %5162 = vmatprep.subr.mxu0 0.0
    %5163 = vmatpush2.msra.mxu0 0.0
    %5164 = vmatprep.subr.mxu0 0.0
    %5165 = vmatpush2.msra.mxu0 0.0
    %5166 = vmatprep.subr.mxu0 0.0
    %5167 = vmatpush2.msra.mxu0 0.0
    %5168 = vmatprep.subr.mxu0 0.0
    %5169 = vmatpush2.msra.mxu0 0.0
    %5170 = vmatprep.subr.mxu0 0.0
    %5171 = vmatpush2.msra.mxu0 0.0
    %5172 = vmatprep.subr.mxu0 0.0
    %5173 = vmatpush2.msra.mxu0 0.0
    %5174 = vmatprep.subr.mxu0 0.0
    %5175 = vmatpush2.msra.mxu0 0.0
    %5176 = vmatprep.subr.mxu0 0.0
    %5177 = vmatpush2.msra.mxu0 0.0
    %5178 = vmatprep.subr.mxu0 0.0
    %5179 = vmatpush2.msra.mxu0 0.0
    %5180 = vmatprep.subr.mxu0 0.0
    %5181 = vmatpush2.msra.mxu0 0.0
    %5182 = vmatprep.subr.mxu0 0.0
    %5183 = vmatpush2.msra.mxu0 0.0
    %5184 = vmatprep.subr.mxu0 0.0
    %5185 = vmatpush2.msra.mxu0 0.0
    %5186 = vmatprep.subr.mxu0 0.0
    %5187 = vmatpush2.msra.mxu0 0.0
    %5188 = vmatprep.subr.mxu0 0.0
    %5189 = vmatpush2.msra.mxu0 0.0
    %5190 = vmatprep.subr.mxu0 0.0
    %5191 = vmatpush2.msra.mxu0 0.0
    %5192 = vmatprep.subr.mxu0 0.0
    %5193 = vmatpush2.msra.mxu0 0.0
    %5194 = vmatprep.mubr.f32.mxu0 0.0
    %5195 = vmatmul.mubr.f32.gmra.mxu0 %v5128
    %v5196 = vpop.f32.mrf.mxu0
    %v5197 = vadd.f32 0.0, %v5196
    %v5198 = vpop.f32.mrf.mxu0
    %5199 = vdwg.mxu0
    %5201 = vrot.lane.b32.xlu0 %v4946, 64
    %v5202 = vpop.permute.xlu0 %5201
    %v5205 = vsel %vm931, %v5122, 0
    %5207 = vmatprep.subr.mxu0 0.0
    %5208 = vmatpush1.msra.mxu0 0.0
    %5209 = vmatprep.subr.mxu0 0.0
    %5210 = vmatpush1.msra.mxu0 0.0
    %5211 = vmatprep.subr.mxu0 0.0
    %5212 = vmatpush1.msra.mxu0 0.0
    %5213 = vmatprep.subr.mxu0 0.0
    %5214 = vmatpush1.msra.mxu0 0.0
    %5215 = vmatprep.subr.mxu0 0.0
    %5216 = vmatpush1.msra.mxu0 0.0
    %5217 = vmatprep.subr.mxu0 0.0
    %5218 = vmatpush1.msra.mxu0 0.0
    %5219 = vmatprep.subr.mxu0 0.0
    %5220 = vmatpush1.msra.mxu0 0.0
    %5221 = vmatprep.subr.mxu0 0.0
    %5222 = vmatpush1.msra.mxu0 0.0
    %5223 = vmatprep.subr.mxu0 0.0
    %5224 = vmatpush1.msra.mxu0 0.0
    %5225 = vmatprep.subr.mxu0 0.0
    %5226 = vmatpush1.msra.mxu0 0.0
    %5227 = vmatprep.subr.mxu0 0.0
    %5228 = vmatpush1.msra.mxu0 0.0
    %5229 = vmatprep.subr.mxu0 0.0
    %5230 = vmatpush1.msra.mxu0 0.0
    %5231 = vmatprep.subr.mxu0 0.0
    %5232 = vmatpush1.msra.mxu0 0.0
    %5233 = vmatprep.subr.mxu0 0.0
    %5234 = vmatpush1.msra.mxu0 0.0
    %5235 = vmatprep.subr.mxu0 0.0
    %5236 = vmatpush1.msra.mxu0 0.0
    %5237 = vmatprep.subr.mxu0 0.0
    %5238 = vmatpush1.msra.mxu0 %v5202
    %5239 = vmatprep.subr.mxu0 0.0
    %5240 = vmatpush2.msra.mxu0 0.0
    %5241 = vmatprep.subr.mxu0 0.0
    %5242 = vmatpush2.msra.mxu0 0.0
    %5243 = vmatprep.subr.mxu0 0.0
    %5244 = vmatpush2.msra.mxu0 0.0
    %5245 = vmatprep.subr.mxu0 0.0
    %5246 = vmatpush2.msra.mxu0 0.0
    %5247 = vmatprep.subr.mxu0 0.0
    %5248 = vmatpush2.msra.mxu0 0.0
    %5249 = vmatprep.subr.mxu0 0.0
    %5250 = vmatpush2.msra.mxu0 0.0
    %5251 = vmatprep.subr.mxu0 0.0
    %5252 = vmatpush2.msra.mxu0 0.0
    %5253 = vmatprep.subr.mxu0 0.0
    %5254 = vmatpush2.msra.mxu0 0.0
    %5255 = vmatprep.subr.mxu0 0.0
    %5256 = vmatpush2.msra.mxu0 0.0
    %5257 = vmatprep.subr.mxu0 0.0
    %5258 = vmatpush2.msra.mxu0 0.0
    %5259 = vmatprep.subr.mxu0 0.0
    %5260 = vmatpush2.msra.mxu0 0.0
    %5261 = vmatprep.subr.mxu0 0.0
    %5262 = vmatpush2.msra.mxu0 0.0
    %5263 = vmatprep.subr.mxu0 0.0
    %5264 = vmatpush2.msra.mxu0 0.0
    %5265 = vmatprep.subr.mxu0 0.0
    %5266 = vmatpush2.msra.mxu0 0.0
    %5267 = vmatprep.subr.mxu0 0.0
    %5268 = vmatpush2.msra.mxu0 0.0
    %5269 = vmatprep.subr.mxu0 0.0
    %5270 = vmatpush2.msra.mxu0 0.0
    %5271 = vmatprep.mubr.f32.mxu0 0.0
    %5272 = vmatmul.mubr.f32.gmra.mxu0 %v5205
    %v5273 = vpop.f32.mrf.mxu0
    %v5274 = vadd.f32 0.0, %v5273
    %v5275 = vpop.f32.mrf.mxu0
    %5276 = vdwg.mxu0
    %v5277 = vadd.f32 %v4863, %v5197
    %v5278 = vadd.f32 %v4940, %v5274
    %v5279 = vmul.f32 %v4261, %v1794
    %v5280 = vmul.f32 %v4266, %v1794
    %v5281 = vmul.f32 %v4261, %v1799
    %v5282 = vmul.f32 %v4266, %v1799
    %5284 = vrot.lane.b32.xlu0 %v5279, 96
    %v5285 = vpop.permute.xlu0 %5284
    %v5286 = vsel %vm678, %v5285, 0
    %5288 = vmatprep.subr.mxu0 0.0
    %5289 = vmatpush1.xpose.msra.mxu0 0.0
    %5290 = vmatprep.subr.mxu0 0.0
    %5291 = vmatpush1.xpose.msra.mxu0 0.0
    %5292 = vmatprep.subr.mxu0 0.0
    %5293 = vmatpush1.xpose.msra.mxu0 0.0
    %5294 = vmatprep.subr.mxu0 0.0
    %5295 = vmatpush1.xpose.msra.mxu0 0.0
    %5296 = vmatprep.subr.mxu0 0.0
    %5297 = vmatpush1.xpose.msra.mxu0 0.0
    %5298 = vmatprep.subr.mxu0 0.0
    %5299 = vmatpush1.xpose.msra.mxu0 0.0
    %5300 = vmatprep.subr.mxu0 0.0
    %5301 = vmatpush1.xpose.msra.mxu0 0.0
    %5302 = vmatprep.subr.mxu0 0.0
    %5303 = vmatpush1.xpose.msra.mxu0 0.0
    %5304 = vmatprep.subr.mxu0 0.0
    %5305 = vmatpush1.xpose.msra.mxu0 0.0
    %5306 = vmatprep.subr.mxu0 0.0
    %5307 = vmatpush1.xpose.msra.mxu0 0.0
    %5308 = vmatprep.subr.mxu0 0.0
    %5309 = vmatpush1.xpose.msra.mxu0 0.0
    %5310 = vmatprep.subr.mxu0 0.0
    %5311 = vmatpush1.xpose.msra.mxu0 0.0
    %5312 = vmatprep.subr.mxu0 0.0
    %5313 = vmatpush1.xpose.msra.mxu0 0.0
    %5314 = vmatprep.subr.mxu0 0.0
    %5315 = vmatpush1.xpose.msra.mxu0 0.0
    %5316 = vmatprep.subr.mxu0 0.0
    %5317 = vmatpush1.xpose.msra.mxu0 0.0
    %5318 = vmatprep.subr.mxu0 0.0
    %5319 = vmatpush1.xpose.msra.mxu0 %v5286
    %5320 = vmatprep.subr.mxu0 0.0
    %5321 = vmatpush2.xpose.msra.mxu0 0.0
    %5322 = vmatprep.subr.mxu0 0.0
    %5323 = vmatpush2.xpose.msra.mxu0 0.0
    %5324 = vmatprep.subr.mxu0 0.0
    %5325 = vmatpush2.xpose.msra.mxu0 0.0
    %5326 = vmatprep.subr.mxu0 0.0
    %5327 = vmatpush2.xpose.msra.mxu0 0.0
    %5328 = vmatprep.subr.mxu0 0.0
    %5329 = vmatpush2.xpose.msra.mxu0 0.0
    %5330 = vmatprep.subr.mxu0 0.0
    %5331 = vmatpush2.xpose.msra.mxu0 0.0
    %5332 = vmatprep.subr.mxu0 0.0
    %5333 = vmatpush2.xpose.msra.mxu0 0.0
    %5334 = vmatprep.subr.mxu0 0.0
    %5335 = vmatpush2.xpose.msra.mxu0 0.0
    %5336 = vmatprep.subr.mxu0 0.0
    %5337 = vmatpush2.xpose.msra.mxu0 0.0
    %5338 = vmatprep.subr.mxu0 0.0
    %5339 = vmatpush2.xpose.msra.mxu0 0.0
    %5340 = vmatprep.subr.mxu0 0.0
    %5341 = vmatpush2.xpose.msra.mxu0 0.0
    %5342 = vmatprep.subr.mxu0 0.0
    %5343 = vmatpush2.xpose.msra.mxu0 0.0
    %5344 = vmatprep.subr.mxu0 0.0
    %5345 = vmatpush2.xpose.msra.mxu0 0.0
    %5346 = vmatprep.subr.mxu0 0.0
    %5347 = vmatpush2.xpose.msra.mxu0 0.0
    %5348 = vmatprep.subr.mxu0 0.0
    %5349 = vmatpush2.xpose.msra.mxu0 0.0
    %5350 = vmatprep.subr.mxu0 0.0
    %5351 = vmatpush2.xpose.msra.mxu0 0.0
    %5352 = vmatprep.mubr.f32.mxu0 0.0
    %5353 = vmatmul.mubr.f32.gmra.mxu0 %v4277
    %v5354 = vpop.f32.mrf.mxu0
    %v5355 = vadd.f32 0.0, %v5354
    %v5356 = vpop.f32.mrf.mxu0
    %5357 = vdwg.mxu0
    %5359 = vrot.lane.b32.xlu0 %v5280, 96
    %v5360 = vpop.permute.xlu0 %5359
    %v5361 = vsel %vm678, %v5360, 0
    %5363 = vmatprep.subr.mxu0 0.0
    %5364 = vmatpush1.xpose.msra.mxu0 0.0
    %5365 = vmatprep.subr.mxu0 0.0
    %5366 = vmatpush1.xpose.msra.mxu0 0.0
    %5367 = vmatprep.subr.mxu0 0.0
    %5368 = vmatpush1.xpose.msra.mxu0 0.0
    %5369 = vmatprep.subr.mxu0 0.0
    %5370 = vmatpush1.xpose.msra.mxu0 0.0
    %5371 = vmatprep.subr.mxu0 0.0
    %5372 = vmatpush1.xpose.msra.mxu0 0.0
    %5373 = vmatprep.subr.mxu0 0.0
    %5374 = vmatpush1.xpose.msra.mxu0 0.0
    %5375 = vmatprep.subr.mxu0 0.0
    %5376 = vmatpush1.xpose.msra.mxu0 0.0
    %5377 = vmatprep.subr.mxu0 0.0
    %5378 = vmatpush1.xpose.msra.mxu0 0.0
    %5379 = vmatprep.subr.mxu0 0.0
    %5380 = vmatpush1.xpose.msra.mxu0 0.0
    %5381 = vmatprep.subr.mxu0 0.0
    %5382 = vmatpush1.xpose.msra.mxu0 0.0
    %5383 = vmatprep.subr.mxu0 0.0
    %5384 = vmatpush1.xpose.msra.mxu0 0.0
    %5385 = vmatprep.subr.mxu0 0.0
    %5386 = vmatpush1.xpose.msra.mxu0 0.0
    %5387 = vmatprep.subr.mxu0 0.0
    %5388 = vmatpush1.xpose.msra.mxu0 0.0
    %5389 = vmatprep.subr.mxu0 0.0
    %5390 = vmatpush1.xpose.msra.mxu0 0.0
    %5391 = vmatprep.subr.mxu0 0.0
    %5392 = vmatpush1.xpose.msra.mxu0 0.0
    %5393 = vmatprep.subr.mxu0 0.0
    %5394 = vmatpush1.xpose.msra.mxu0 %v5361
    %5395 = vmatprep.subr.mxu0 0.0
    %5396 = vmatpush2.xpose.msra.mxu0 0.0
    %5397 = vmatprep.subr.mxu0 0.0
    %5398 = vmatpush2.xpose.msra.mxu0 0.0
    %5399 = vmatprep.subr.mxu0 0.0
    %5400 = vmatpush2.xpose.msra.mxu0 0.0
    %5401 = vmatprep.subr.mxu0 0.0
    %5402 = vmatpush2.xpose.msra.mxu0 0.0
    %5403 = vmatprep.subr.mxu0 0.0
    %5404 = vmatpush2.xpose.msra.mxu0 0.0
    %5405 = vmatprep.subr.mxu0 0.0
    %5406 = vmatpush2.xpose.msra.mxu0 0.0
    %5407 = vmatprep.subr.mxu0 0.0
    %5408 = vmatpush2.xpose.msra.mxu0 0.0
    %5409 = vmatprep.subr.mxu0 0.0
    %5410 = vmatpush2.xpose.msra.mxu0 0.0
    %5411 = vmatprep.subr.mxu0 0.0
    %5412 = vmatpush2.xpose.msra.mxu0 0.0
    %5413 = vmatprep.subr.mxu0 0.0
    %5414 = vmatpush2.xpose.msra.mxu0 0.0
    %5415 = vmatprep.subr.mxu0 0.0
    %5416 = vmatpush2.xpose.msra.mxu0 0.0
    %5417 = vmatprep.subr.mxu0 0.0
    %5418 = vmatpush2.xpose.msra.mxu0 0.0
    %5419 = vmatprep.subr.mxu0 0.0
    %5420 = vmatpush2.xpose.msra.mxu0 0.0
    %5421 = vmatprep.subr.mxu0 0.0
    %5422 = vmatpush2.xpose.msra.mxu0 0.0
    %5423 = vmatprep.subr.mxu0 0.0
    %5424 = vmatpush2.xpose.msra.mxu0 0.0
    %5425 = vmatprep.subr.mxu0 0.0
    %5426 = vmatpush2.xpose.msra.mxu0 0.0
    %5427 = vmatprep.mubr.f32.mxu0 0.0
    %5428 = vmatmul.mubr.f32.gmra.mxu0 %v4355
    %v5429 = vpop.f32.mrf.mxu0
    %v5430 = vadd.f32 0.0, %v5429
    %v5431 = vpop.f32.mrf.mxu0
    %5432 = vdwg.mxu0
    %v5433 = vmul.f32 %v5355, 0.35355338
    %v5434 = vmul.f32 %v5430, 0.35355338
    %v5435 = vadd.f32 %v5433, %v189
    %v5436 = vadd.f32 %v5434, %v190
    %v5437 = vsel %vm931, %v5435, -inf
    %5438 = vmax.xlane.f32.xlu0 %v5437
    %v5439 = vpop.xlane.xlu0 %5438
    %v5440 = vsel %vm931, %v5436, -inf
    %5441 = vmax.xlane.f32.xlu0 %v5440
    %v5442 = vpop.xlane.xlu0 %5441
    %v5443 = vsub.f32 %v5435, %v5439
    %v5444 = vsub.f32 %v5436, %v5442
    %v5445 = vmul.f32 %v5443, 1.442695
    %v5446 = vpow.pop %v5445
    %v5447 = vmul.f32 %v5444, 1.442695
    %v5448 = vpow.pop %v5447
    %v5449 = vsel %vm931, %v5446, 0.0
    %5450 = vadd.xlane.f32.xlu0 %v5449
    %v5451 = vpop.xlane.xlu0 %5450
    %v5452 = vsel %vm931, %v5448, 0.0
    %5453 = vadd.xlane.f32.xlu0 %v5452
    %v5454 = vpop.xlane.xlu0 %5453
    %v5455 = vrcp.pop %v5451
    %v5456 = vrcp.pop %v5454
    %v5457 = vmul.f32 %v5446, %v5455
    %v5458 = vmul.f32 %v5448, %v5456
    %5460 = vrot.lane.b32.xlu0 %v5281, 64
    %v5461 = vpop.permute.xlu0 %5460
    %v5464 = vsel %vm931, %v5457, 0
    %5466 = vmatprep.subr.mxu0 0.0
    %5467 = vmatpush1.msra.mxu0 0.0
    %5468 = vmatprep.subr.mxu0 0.0
    %5469 = vmatpush1.msra.mxu0 0.0
    %5470 = vmatprep.subr.mxu0 0.0
    %5471 = vmatpush1.msra.mxu0 0.0
    %5472 = vmatprep.subr.mxu0 0.0
    %5473 = vmatpush1.msra.mxu0 0.0
    %5474 = vmatprep.subr.mxu0 0.0
    %5475 = vmatpush1.msra.mxu0 0.0
    %5476 = vmatprep.subr.mxu0 0.0
    %5477 = vmatpush1.msra.mxu0 0.0
    %5478 = vmatprep.subr.mxu0 0.0
    %5479 = vmatpush1.msra.mxu0 0.0
    %5480 = vmatprep.subr.mxu0 0.0
    %5481 = vmatpush1.msra.mxu0 0.0
    %5482 = vmatprep.subr.mxu0 0.0
    %5483 = vmatpush1.msra.mxu0 0.0
    %5484 = vmatprep.subr.mxu0 0.0
    %5485 = vmatpush1.msra.mxu0 0.0
    %5486 = vmatprep.subr.mxu0 0.0
    %5487 = vmatpush1.msra.mxu0 0.0
    %5488 = vmatprep.subr.mxu0 0.0
    %5489 = vmatpush1.msra.mxu0 0.0
    %5490 = vmatprep.subr.mxu0 0.0
    %5491 = vmatpush1.msra.mxu0 0.0
    %5492 = vmatprep.subr.mxu0 0.0
    %5493 = vmatpush1.msra.mxu0 0.0
    %5494 = vmatprep.subr.mxu0 0.0
    %5495 = vmatpush1.msra.mxu0 0.0
    %5496 = vmatprep.subr.mxu0 0.0
    %5497 = vmatpush1.msra.mxu0 %v5461
    %5498 = vmatprep.subr.mxu0 0.0
    %5499 = vmatpush2.msra.mxu0 0.0
    %5500 = vmatprep.subr.mxu0 0.0
    %5501 = vmatpush2.msra.mxu0 0.0
    %5502 = vmatprep.subr.mxu0 0.0
    %5503 = vmatpush2.msra.mxu0 0.0
    %5504 = vmatprep.subr.mxu0 0.0
    %5505 = vmatpush2.msra.mxu0 0.0
    %5506 = vmatprep.subr.mxu0 0.0
    %5507 = vmatpush2.msra.mxu0 0.0
    %5508 = vmatprep.subr.mxu0 0.0
    %5509 = vmatpush2.msra.mxu0 0.0
    %5510 = vmatprep.subr.mxu0 0.0
    %5511 = vmatpush2.msra.mxu0 0.0
    %5512 = vmatprep.subr.mxu0 0.0
    %5513 = vmatpush2.msra.mxu0 0.0
    %5514 = vmatprep.subr.mxu0 0.0
    %5515 = vmatpush2.msra.mxu0 0.0
    %5516 = vmatprep.subr.mxu0 0.0
    %5517 = vmatpush2.msra.mxu0 0.0
    %5518 = vmatprep.subr.mxu0 0.0
    %5519 = vmatpush2.msra.mxu0 0.0
    %5520 = vmatprep.subr.mxu0 0.0
    %5521 = vmatpush2.msra.mxu0 0.0
    %5522 = vmatprep.subr.mxu0 0.0
    %5523 = vmatpush2.msra.mxu0 0.0
    %5524 = vmatprep.subr.mxu0 0.0
    %5525 = vmatpush2.msra.mxu0 0.0
    %5526 = vmatprep.subr.mxu0 0.0
    %5527 = vmatpush2.msra.mxu0 0.0
    %5528 = vmatprep.subr.mxu0 0.0
    %5529 = vmatpush2.msra.mxu0 0.0
    %5530 = vmatprep.mubr.f32.mxu0 0.0
    %5531 = vmatmul.mubr.f32.gmra.mxu0 %v5464
    %v5532 = vpop.f32.mrf.mxu0
    %v5533 = vadd.f32 0.0, %v5532
    %v5534 = vpop.f32.mrf.mxu0
    %5535 = vdwg.mxu0
    %5537 = vrot.lane.b32.xlu0 %v5282, 64
    %v5538 = vpop.permute.xlu0 %5537
    %v5541 = vsel %vm931, %v5458, 0
    %5543 = vmatprep.subr.mxu0 0.0
    %5544 = vmatpush1.msra.mxu0 0.0
    %5545 = vmatprep.subr.mxu0 0.0
    %5546 = vmatpush1.msra.mxu0 0.0
    %5547 = vmatprep.subr.mxu0 0.0
    %5548 = vmatpush1.msra.mxu0 0.0
    %5549 = vmatprep.subr.mxu0 0.0
    %5550 = vmatpush1.msra.mxu0 0.0
    %5551 = vmatprep.subr.mxu0 0.0
    %5552 = vmatpush1.msra.mxu0 0.0
    %5553 = vmatprep.subr.mxu0 0.0
    %5554 = vmatpush1.msra.mxu0 0.0
    %5555 = vmatprep.subr.mxu0 0.0
    %5556 = vmatpush1.msra.mxu0 0.0
    %5557 = vmatprep.subr.mxu0 0.0
    %5558 = vmatpush1.msra.mxu0 0.0
    %5559 = vmatprep.subr.mxu0 0.0
    %5560 = vmatpush1.msra.mxu0 0.0
    %5561 = vmatprep.subr.mxu0 0.0
    %5562 = vmatpush1.msra.mxu0 0.0
    %5563 = vmatprep.subr.mxu0 0.0
    %5564 = vmatpush1.msra.mxu0 0.0
    %5565 = vmatprep.subr.mxu0 0.0
    %5566 = vmatpush1.msra.mxu0 0.0
    %5567 = vmatprep.subr.mxu0 0.0
    %5568 = vmatpush1.msra.mxu0 0.0
    %5569 = vmatprep.subr.mxu0 0.0
    %5570 = vmatpush1.msra.mxu0 0.0
    %5571 = vmatprep.subr.mxu0 0.0
    %5572 = vmatpush1.msra.mxu0 0.0
    %5573 = vmatprep.subr.mxu0 0.0
    %5574 = vmatpush1.msra.mxu0 %v5538
    %5575 = vmatprep.subr.mxu0 0.0
    %5576 = vmatpush2.msra.mxu0 0.0
    %5577 = vmatprep.subr.mxu0 0.0
    %5578 = vmatpush2.msra.mxu0 0.0
    %5579 = vmatprep.subr.mxu0 0.0
    %5580 = vmatpush2.msra.mxu0 0.0
    %5581 = vmatprep.subr.mxu0 0.0
    %5582 = vmatpush2.msra.mxu0 0.0
    %5583 = vmatprep.subr.mxu0 0.0
    %5584 = vmatpush2.msra.mxu0 0.0
    %5585 = vmatprep.subr.mxu0 0.0
    %5586 = vmatpush2.msra.mxu0 0.0
    %5587 = vmatprep.subr.mxu0 0.0
    %5588 = vmatpush2.msra.mxu0 0.0
    %5589 = vmatprep.subr.mxu0 0.0
    %5590 = vmatpush2.msra.mxu0 0.0
    %5591 = vmatprep.subr.mxu0 0.0
    %5592 = vmatpush2.msra.mxu0 0.0
    %5593 = vmatprep.subr.mxu0 0.0
    %5594 = vmatpush2.msra.mxu0 0.0
    %5595 = vmatprep.subr.mxu0 0.0
    %5596 = vmatpush2.msra.mxu0 0.0
    %5597 = vmatprep.subr.mxu0 0.0
    %5598 = vmatpush2.msra.mxu0 0.0
    %5599 = vmatprep.subr.mxu0 0.0
    %5600 = vmatpush2.msra.mxu0 0.0
    %5601 = vmatprep.subr.mxu0 0.0
    %5602 = vmatpush2.msra.mxu0 0.0
    %5603 = vmatprep.subr.mxu0 0.0
    %5604 = vmatpush2.msra.mxu0 0.0
    %5605 = vmatprep.subr.mxu0 0.0
    %5606 = vmatpush2.msra.mxu0 0.0
    %5607 = vmatprep.mubr.f32.mxu0 0.0
    %5608 = vmatmul.mubr.f32.gmra.mxu0 %v5541
    %v5609 = vpop.f32.mrf.mxu0
    %v5610 = vadd.f32 0.0, %v5609
    %v5611 = vpop.f32.mrf.mxu0
    %5612 = vdwg.mxu0
    %v5613 = vadd.f32 %v5277, %v5533
    %v5614 = vadd.f32 %v5278, %v5610
    %v5616 = vlaneseq
    %v5617 = vshrl.u32 %v5616, 7
    %v5618 = vsub.s32 0, %v5617
    %v5619 = vrot.slane %v4177, %v5618
    %v5622 = vsel %vm678, %v5613, 0
    %v5625 = vsel %vm678, %v5614, 0
    %5627 = vmatprep.subr.mxu0 0.0
    %5628 = vmatpush1.msra.mxu0 0.0
    %5629 = vmatprep.subr.mxu0 0.0
    %5630 = vmatpush1.msra.mxu0 0.0
    %5631 = vmatprep.subr.mxu0 0.0
    %5632 = vmatpush1.msra.mxu0 0.0
    %5633 = vmatprep.subr.mxu0 0.0
    %5634 = vmatpush1.msra.mxu0 0.0
    %5635 = vmatprep.subr.mxu0 0.0
    %5636 = vmatpush1.msra.mxu0 0.0
    %5637 = vmatprep.subr.mxu0 0.0
    %5638 = vmatpush1.msra.mxu0 0.0
    %5639 = vmatprep.subr.mxu0 0.0
    %5640 = vmatpush1.msra.mxu0 0.0
    %5641 = vmatprep.subr.mxu0 0.0
    %5642 = vmatpush1.msra.mxu0 0.0
    %5643 = vmatprep.subr.mxu0 0.0
    %5644 = vmatpush1.msra.mxu0 0.0
    %5645 = vmatprep.subr.mxu0 0.0
    %5646 = vmatpush1.msra.mxu0 0.0
    %5647 = vmatprep.subr.mxu0 0.0
    %5648 = vmatpush1.msra.mxu0 0.0
    %5649 = vmatprep.subr.mxu0 0.0
    %5650 = vmatpush1.msra.mxu0 0.0
    %5651 = vmatprep.subr.mxu0 0.0
    %5652 = vmatpush1.msra.mxu0 %v4175
    %5653 = vmatprep.subr.mxu0 0.0
    %5654 = vmatpush1.msra.mxu0 %v4174
    %5655 = vmatprep.subr.mxu0 0.0
    %5656 = vmatpush1.msra.mxu0 %v4173
    %5657 = vmatprep.subr.mxu0 0.0
    %5658 = vmatpush1.msra.mxu0 %v4172
    %5659 = vmatprep.subr.mxu0 0.0
    %5660 = vmatpush2.msra.mxu0 0.0
    %5661 = vmatprep.subr.mxu0 0.0
    %5662 = vmatpush2.msra.mxu0 0.0
    %5663 = vmatprep.subr.mxu0 0.0
    %5664 = vmatpush2.msra.mxu0 0.0
    %5665 = vmatprep.subr.mxu0 0.0
    %5666 = vmatpush2.msra.mxu0 0.0
    %5667 = vmatprep.subr.mxu0 0.0
    %5668 = vmatpush2.msra.mxu0 0.0
    %5669 = vmatprep.subr.mxu0 0.0
    %5670 = vmatpush2.msra.mxu0 0.0
    %5671 = vmatprep.subr.mxu0 0.0
    %5672 = vmatpush2.msra.mxu0 0.0
    %5673 = vmatprep.subr.mxu0 0.0
    %5674 = vmatpush2.msra.mxu0 0.0
    %5675 = vmatprep.subr.mxu0 0.0
    %5676 = vmatpush2.msra.mxu0 0.0
    %5677 = vmatprep.subr.mxu0 0.0
    %5678 = vmatpush2.msra.mxu0 0.0
    %5679 = vmatprep.subr.mxu0 0.0
    %5680 = vmatpush2.msra.mxu0 0.0
    %5681 = vmatprep.subr.mxu0 0.0
    %5682 = vmatpush2.msra.mxu0 0.0
    %5683 = vmatprep.subr.mxu0 0.0
    %5684 = vmatpush2.msra.mxu0 0.0
    %5685 = vmatprep.subr.mxu0 0.0
    %5686 = vmatpush2.msra.mxu0 0.0
    %5687 = vmatprep.subr.mxu0 0.0
    %5688 = vmatpush2.msra.mxu0 0.0
    %5689 = vmatprep.subr.mxu0 0.0
    %5690 = vmatpush2.msra.mxu0 0.0
    %5691 = vmatprep.mubr.f32.mxu0 0.0
    %5692 = vmatmul.mubr.f32.gmra.mxu0 %v5622
    %v5693 = vpop.f32.mrf.mxu0
    %v5694 = vadd.f32 %v5619, %v5693
    %v5695 = vpop.f32.mrf.mxu0
    %5696 = vmatprep.mubr.f32.mxu0 0.0
    %5697 = vmatmul.mubr.f32.gmra.mxu0 %v5625
    %v5698 = vpop.f32.mrf.mxu0
    %v5699 = vadd.f32 %v5619, %v5698
    %v5700 = vpop.f32.mrf.mxu0
    %5701 = vdwg.mxu0
    %v5702 = vadd.f32 %v5694, %v4162
    %v5703 = vadd.f32 %v5699, %v4163
    %v5704 = vsel %vm678, %v5702, 0.0
    %5705 = vadd.xlane.f32.xlu0 %v5704
    %v5706 = vpop.xlane.xlu0 %5705
    %v5707 = vsel %vm678, %v5703, 0.0
    %5708 = vadd.xlane.f32.xlu0 %v5707
    %v5709 = vpop.xlane.xlu0 %5708
    %v5710 = vmul.f32 %v5706, %v2230
    %v5711 = vmul.f32 %v5709, %v2230
    %v5712 = vsub.f32 %v5702, %v5710
    %v5713 = vsub.f32 %v5703, %v5711
    %v5714 = vmul.f32 %v5712, %v5712
    %v5715 = vmul.f32 %v5713, %v5713
    %v5716 = vsel %vm678, %v5714, 0.0
    %5717 = vadd.xlane.f32.xlu0 %v5716
    %v5718 = vpop.xlane.xlu0 %5717
    %v5719 = vsel %vm678, %v5715, 0.0
    %5720 = vadd.xlane.f32.xlu0 %v5719
    %v5721 = vpop.xlane.xlu0 %5720
    %v5722 = vmul.f32 %v5718, %v2230
    %v5723 = vmul.f32 %v5721, %v2230
    %v5724 = vadd.f32 %v5722, 1e-06
    %v5725 = vadd.f32 %v5723, 1e-06
    %v5726 = vrsqrt.pop %v5724
    %v5727 = vrsqrt.pop %v5725
    %v5728 = vmul.f32 %v5712, %v5726
    %v5729 = vmul.f32 %v5713, %v5727
    %v5731 = vlaneseq
    %v5732 = vshrl.u32 %v5731, 7
    %v5733 = vsub.s32 0, %v5732
    %v5734 = vrot.slane %v4179, %v5733
    %v5736 = vmul.f32 %v5728, %v5734
    %v5737 = vmul.f32 %v5729, %v5734
    %v5739 = vlaneseq
    %v5740 = vshrl.u32 %v5739, 7
    %v5741 = vsub.s32 0, %v5740
    %v5742 = vrot.slane %v4181, %v5741
    %v5744 = vadd.f32 %v5736, %v5742
    %v5745 = vadd.f32 %v5737, %v5742
    %s5746 = scalar_lea.vmem %s35, 32
    %v5747 = vld [vmem:[%s5746] sm:$0xff]
    %v5748 = vld [vmem:[%s5746 + $0x8] sm:$0xff]
    %v5749 = vld [vmem:[%s5746 + $0x10] sm:$0xff]
    %v5750 = vld [vmem:[%s5746 + $0x18] sm:$0xff]
    %s5751 = scalar_lea.vmem %s37, 1
    %v5752 = vld [vmem:[%s5751] sm:$0x1]
    %s5753 = scalar_lea.vmem %s39, 32
    %v5754 = vld [vmem:[%s5753] sm:$0xff]
    %v5755 = vld [vmem:[%s5753 + $0x8] sm:$0xff]
    %v5756 = vld [vmem:[%s5753 + $0x10] sm:$0xff]
    %v5757 = vld [vmem:[%s5753 + $0x18] sm:$0xff]
    %s5758 = scalar_lea.vmem %s41, 1
    %v5759 = vld [vmem:[%s5758] sm:$0x1]
    %s5760 = scalar_lea.vmem %s43, 1
    %v5761 = vld [vmem:[%s5760] sm:$0x1]
    %s5762 = scalar_lea.vmem %s45, 1
    %v5763 = vld [vmem:[%s5762] sm:$0x1]
    %v5765 = vlaneseq
    %v5766 = vshrl.u32 %v5765, 7
    %v5767 = vsub.s32 0, %v5766
    %v5768 = vrot.slane %v5752, %v5767
    %v5771 = vsel %vm678, %v5744, 0
    %v5774 = vsel %vm678, %v5745, 0
    %5776 = vmatprep.subr.mxu0 0.0
    %5777 = vmatpush1.msra.mxu0 0.0
    %5778 = vmatprep.subr.mxu0 0.0
    %5779 = vmatpush1.msra.mxu0 0.0
    %5780 = vmatprep.subr.mxu0 0.0
    %5781 = vmatpush1.msra.mxu0 0.0
    %5782 = vmatprep.subr.mxu0 0.0
    %5783 = vmatpush1.msra.mxu0 0.0
    %5784 = vmatprep.subr.mxu0 0.0
    %5785 = vmatpush1.msra.mxu0 0.0
    %5786 = vmatprep.subr.mxu0 0.0
    %5787 = vmatpush1.msra.mxu0 0.0
    %5788 = vmatprep.subr.mxu0 0.0
    %5789 = vmatpush1.msra.mxu0 0.0
    %5790 = vmatprep.subr.mxu0 0.0
    %5791 = vmatpush1.msra.mxu0 0.0
    %5792 = vmatprep.subr.mxu0 0.0
    %5793 = vmatpush1.msra.mxu0 0.0
    %5794 = vmatprep.subr.mxu0 0.0
    %5795 = vmatpush1.msra.mxu0 0.0
    %5796 = vmatprep.subr.mxu0 0.0
    %5797 = vmatpush1.msra.mxu0 0.0
    %5798 = vmatprep.subr.mxu0 0.0
    %5799 = vmatpush1.msra.mxu0 0.0
    %5800 = vmatprep.subr.mxu0 0.0
    %5801 = vmatpush1.msra.mxu0 %v5750
    %5802 = vmatprep.subr.mxu0 0.0
    %5803 = vmatpush1.msra.mxu0 %v5749
    %5804 = vmatprep.subr.mxu0 0.0
    %5805 = vmatpush1.msra.mxu0 %v5748
    %5806 = vmatprep.subr.mxu0 0.0
    %5807 = vmatpush1.msra.mxu0 %v5747
    %5808 = vmatprep.subr.mxu0 0.0
    %5809 = vmatpush2.msra.mxu0 0.0
    %5810 = vmatprep.subr.mxu0 0.0
    %5811 = vmatpush2.msra.mxu0 0.0
    %5812 = vmatprep.subr.mxu0 0.0
    %5813 = vmatpush2.msra.mxu0 0.0
    %5814 = vmatprep.subr.mxu0 0.0
    %5815 = vmatpush2.msra.mxu0 0.0
    %5816 = vmatprep.subr.mxu0 0.0
    %5817 = vmatpush2.msra.mxu0 0.0
    %5818 = vmatprep.subr.mxu0 0.0
    %5819 = vmatpush2.msra.mxu0 0.0
    %5820 = vmatprep.subr.mxu0 0.0
    %5821 = vmatpush2.msra.mxu0 0.0
    %5822 = vmatprep.subr.mxu0 0.0
    %5823 = vmatpush2.msra.mxu0 0.0
    %5824 = vmatprep.subr.mxu0 0.0
    %5825 = vmatpush2.msra.mxu0 0.0
    %5826 = vmatprep.subr.mxu0 0.0
    %5827 = vmatpush2.msra.mxu0 0.0
    %5828 = vmatprep.subr.mxu0 0.0
    %5829 = vmatpush2.msra.mxu0 0.0
    %5830 = vmatprep.subr.mxu0 0.0
    %5831 = vmatpush2.msra.mxu0 0.0
    %5832 = vmatprep.subr.mxu0 0.0
    %5833 = vmatpush2.msra.mxu0 0.0
    %5834 = vmatprep.subr.mxu0 0.0
    %5835 = vmatpush2.msra.mxu0 0.0
    %5836 = vmatprep.subr.mxu0 0.0
    %5837 = vmatpush2.msra.mxu0 0.0
    %5838 = vmatprep.subr.mxu0 0.0
    %5839 = vmatpush2.msra.mxu0 0.0
    %5840 = vmatprep.mubr.f32.mxu0 0.0
    %5841 = vmatmul.mubr.f32.gmra.mxu0 %v5771
    %v5842 = vpop.f32.mrf.mxu0
    %v5843 = vadd.f32 %v5768, %v5842
    %v5844 = vpop.f32.mrf.mxu0
    %5845 = vmatprep.mubr.f32.mxu0 0.0
    %5846 = vmatmul.mubr.f32.gmra.mxu0 %v5774
    %v5847 = vpop.f32.mrf.mxu0
    %v5848 = vadd.f32 %v5768, %v5847
    %v5849 = vpop.f32.mrf.mxu0
    %5850 = vdwg.mxu0
    %5855 = vrot.lane.b32.xlu0 %v5747, 96
    %v5856 = vpop.permute.xlu0 %5855
    %5857 = vrot.lane.b32.xlu0 %v5748, 96
    %v5858 = vpop.permute.xlu0 %5857
    %5859 = vrot.lane.b32.xlu0 %v5749, 96
    %v5860 = vpop.permute.xlu0 %5859
    %5861 = vrot.lane.b32.xlu0 %v5750, 96
    %v5862 = vpop.permute.xlu0 %5861
    %5867 = vrot.lane.b32.xlu0 %v5768, 96
    %v5868 = vpop.permute.xlu0 %5867
    %5870 = vmatprep.subr.mxu0 0.0
    %5871 = vmatpush1.msra.mxu0 0.0
    %5872 = vmatprep.subr.mxu0 0.0
    %5873 = vmatpush1.msra.mxu0 0.0
    %5874 = vmatprep.subr.mxu0 0.0
    %5875 = vmatpush1.msra.mxu0 0.0
    %5876 = vmatprep.subr.mxu0 0.0
    %5877 = vmatpush1.msra.mxu0 0.0
    %5878 = vmatprep.subr.mxu0 0.0
    %5879 = vmatpush1.msra.mxu0 0.0
    %5880 = vmatprep.subr.mxu0 0.0
    %5881 = vmatpush1.msra.mxu0 0.0
    %5882 = vmatprep.subr.mxu0 0.0
    %5883 = vmatpush1.msra.mxu0 0.0
    %5884 = vmatprep.subr.mxu0 0.0
    %5885 = vmatpush1.msra.mxu0 0.0
    %5886 = vmatprep.subr.mxu0 0.0
    %5887 = vmatpush1.msra.mxu0 0.0
    %5888 = vmatprep.subr.mxu0 0.0
    %5889 = vmatpush1.msra.mxu0 0.0
    %5890 = vmatprep.subr.mxu0 0.0
    %5891 = vmatpush1.msra.mxu0 0.0
    %5892 = vmatprep.subr.mxu0 0.0
    %5893 = vmatpush1.msra.mxu0 0.0
    %5894 = vmatprep.subr.mxu0 0.0
    %5895 = vmatpush1.msra.mxu0 %v5862
    %5896 = vmatprep.subr.mxu0 0.0
    %5897 = vmatpush1.msra.mxu0 %v5860
    %5898 = vmatprep.subr.mxu0 0.0
    %5899 = vmatpush1.msra.mxu0 %v5858
    %5900 = vmatprep.subr.mxu0 0.0
    %5901 = vmatpush1.msra.mxu0 %v5856
    %5902 = vmatprep.subr.mxu0 0.0
    %5903 = vmatpush2.msra.mxu0 0.0
    %5904 = vmatprep.subr.mxu0 0.0
    %5905 = vmatpush2.msra.mxu0 0.0
    %5906 = vmatprep.subr.mxu0 0.0
    %5907 = vmatpush2.msra.mxu0 0.0
    %5908 = vmatprep.subr.mxu0 0.0
    %5909 = vmatpush2.msra.mxu0 0.0
    %5910 = vmatprep.subr.mxu0 0.0
    %5911 = vmatpush2.msra.mxu0 0.0
    %5912 = vmatprep.subr.mxu0 0.0
    %5913 = vmatpush2.msra.mxu0 0.0
    %5914 = vmatprep.subr.mxu0 0.0
    %5915 = vmatpush2.msra.mxu0 0.0
    %5916 = vmatprep.subr.mxu0 0.0
    %5917 = vmatpush2.msra.mxu0 0.0
    %5918 = vmatprep.subr.mxu0 0.0
    %5919 = vmatpush2.msra.mxu0 0.0
    %5920 = vmatprep.subr.mxu0 0.0
    %5921 = vmatpush2.msra.mxu0 0.0
    %5922 = vmatprep.subr.mxu0 0.0
    %5923 = vmatpush2.msra.mxu0 0.0
    %5924 = vmatprep.subr.mxu0 0.0
    %5925 = vmatpush2.msra.mxu0 0.0
    %5926 = vmatprep.subr.mxu0 0.0
    %5927 = vmatpush2.msra.mxu0 0.0
    %5928 = vmatprep.subr.mxu0 0.0
    %5929 = vmatpush2.msra.mxu0 0.0
    %5930 = vmatprep.subr.mxu0 0.0
    %5931 = vmatpush2.msra.mxu0 0.0
    %5932 = vmatprep.subr.mxu0 0.0
    %5933 = vmatpush2.msra.mxu0 0.0
    %5934 = vmatprep.mubr.f32.mxu0 0.0
    %5935 = vmatmul.mubr.f32.gmra.mxu0 %v2386
    %v5936 = vpop.f32.mrf.mxu0
    %v5937 = vadd.f32 %v5868, %v5936
    %v5938 = vpop.f32.mrf.mxu0
    %5939 = vmatprep.mubr.f32.mxu0 0.0
    %5940 = vmatmul.mubr.f32.gmra.mxu0 %v2389
    %v5941 = vpop.f32.mrf.mxu0
    %v5942 = vadd.f32 %v5868, %v5941
    %v5943 = vpop.f32.mrf.mxu0
    %5944 = vdwg.mxu0
    %v5945 = vmul.f32 %v5937, %v129
    %v5946 = vmul.f32 %v5942, %v129
    %v5947 = vmul.f32 %v5937, %v762
    %v5948 = vmul.f32 %v5942, %v762
    %v5950 = vsel %vm678, %v5843, 0
    %v5953 = vsel %vm678, %v5945, 0
    %5955 = vmatprep.subr.mxu0 0.0
    %5956 = vmatpush1.xpose.msra.mxu0 0.0
    %5957 = vmatprep.subr.mxu0 0.0
    %5958 = vmatpush1.xpose.msra.mxu0 0.0
    %5959 = vmatprep.subr.mxu0 0.0
    %5960 = vmatpush1.xpose.msra.mxu0 0.0
    %5961 = vmatprep.subr.mxu0 0.0
    %5962 = vmatpush1.xpose.msra.mxu0 0.0
    %5963 = vmatprep.subr.mxu0 0.0
    %5964 = vmatpush1.xpose.msra.mxu0 0.0
    %5965 = vmatprep.subr.mxu0 0.0
    %5966 = vmatpush1.xpose.msra.mxu0 0.0
    %5967 = vmatprep.subr.mxu0 0.0
    %5968 = vmatpush1.xpose.msra.mxu0 0.0
    %5969 = vmatprep.subr.mxu0 0.0
    %5970 = vmatpush1.xpose.msra.mxu0 0.0
    %5971 = vmatprep.subr.mxu0 0.0
    %5972 = vmatpush1.xpose.msra.mxu0 0.0
    %5973 = vmatprep.subr.mxu0 0.0
    %5974 = vmatpush1.xpose.msra.mxu0 0.0
    %5975 = vmatprep.subr.mxu0 0.0
    %5976 = vmatpush1.xpose.msra.mxu0 0.0
    %5977 = vmatprep.subr.mxu0 0.0
    %5978 = vmatpush1.xpose.msra.mxu0 0.0
    %5979 = vmatprep.subr.mxu0 0.0
    %5980 = vmatpush1.xpose.msra.mxu0 0.0
    %5981 = vmatprep.subr.mxu0 0.0
    %5982 = vmatpush1.xpose.msra.mxu0 0.0
    %5983 = vmatprep.subr.mxu0 0.0
    %5984 = vmatpush1.xpose.msra.mxu0 0.0
    %5985 = vmatprep.subr.mxu0 0.0
    %5986 = vmatpush1.xpose.msra.mxu0 %v5953
    %5987 = vmatprep.subr.mxu0 0.0
    %5988 = vmatpush2.xpose.msra.mxu0 0.0
    %5989 = vmatprep.subr.mxu0 0.0
    %5990 = vmatpush2.xpose.msra.mxu0 0.0
    %5991 = vmatprep.subr.mxu0 0.0
    %5992 = vmatpush2.xpose.msra.mxu0 0.0
    %5993 = vmatprep.subr.mxu0 0.0
    %5994 = vmatpush2.xpose.msra.mxu0 0.0
    %5995 = vmatprep.subr.mxu0 0.0
    %5996 = vmatpush2.xpose.msra.mxu0 0.0
    %5997 = vmatprep.subr.mxu0 0.0
    %5998 = vmatpush2.xpose.msra.mxu0 0.0
    %5999 = vmatprep.subr.mxu0 0.0
    %6000 = vmatpush2.xpose.msra.mxu0 0.0
    %6001 = vmatprep.subr.mxu0 0.0
    %6002 = vmatpush2.xpose.msra.mxu0 0.0
    %6003 = vmatprep.subr.mxu0 0.0
    %6004 = vmatpush2.xpose.msra.mxu0 0.0
    %6005 = vmatprep.subr.mxu0 0.0
    %6006 = vmatpush2.xpose.msra.mxu0 0.0
    %6007 = vmatprep.subr.mxu0 0.0
    %6008 = vmatpush2.xpose.msra.mxu0 0.0
    %6009 = vmatprep.subr.mxu0 0.0
    %6010 = vmatpush2.xpose.msra.mxu0 0.0
    %6011 = vmatprep.subr.mxu0 0.0
    %6012 = vmatpush2.xpose.msra.mxu0 0.0
    %6013 = vmatprep.subr.mxu0 0.0
    %6014 = vmatpush2.xpose.msra.mxu0 0.0
    %6015 = vmatprep.subr.mxu0 0.0
    %6016 = vmatpush2.xpose.msra.mxu0 0.0
    %6017 = vmatprep.subr.mxu0 0.0
    %6018 = vmatpush2.xpose.msra.mxu0 0.0
    %6019 = vmatprep.mubr.f32.mxu0 0.0
    %6020 = vmatmul.mubr.f32.gmra.mxu0 %v5950
    %v6021 = vpop.f32.mrf.mxu0
    %v6022 = vadd.f32 0.0, %v6021
    %v6023 = vpop.f32.mrf.mxu0
    %6024 = vdwg.mxu0
    %v6026 = vsel %vm678, %v5848, 0
    %v6029 = vsel %vm678, %v5946, 0
    %6031 = vmatprep.subr.mxu0 0.0
    %6032 = vmatpush1.xpose.msra.mxu0 0.0
    %6033 = vmatprep.subr.mxu0 0.0
    %6034 = vmatpush1.xpose.msra.mxu0 0.0
    %6035 = vmatprep.subr.mxu0 0.0
    %6036 = vmatpush1.xpose.msra.mxu0 0.0
    %6037 = vmatprep.subr.mxu0 0.0
    %6038 = vmatpush1.xpose.msra.mxu0 0.0
    %6039 = vmatprep.subr.mxu0 0.0
    %6040 = vmatpush1.xpose.msra.mxu0 0.0
    %6041 = vmatprep.subr.mxu0 0.0
    %6042 = vmatpush1.xpose.msra.mxu0 0.0
    %6043 = vmatprep.subr.mxu0 0.0
    %6044 = vmatpush1.xpose.msra.mxu0 0.0
    %6045 = vmatprep.subr.mxu0 0.0
    %6046 = vmatpush1.xpose.msra.mxu0 0.0
    %6047 = vmatprep.subr.mxu0 0.0
    %6048 = vmatpush1.xpose.msra.mxu0 0.0
    %6049 = vmatprep.subr.mxu0 0.0
    %6050 = vmatpush1.xpose.msra.mxu0 0.0
    %6051 = vmatprep.subr.mxu0 0.0
    %6052 = vmatpush1.xpose.msra.mxu0 0.0
    %6053 = vmatprep.subr.mxu0 0.0
    %6054 = vmatpush1.xpose.msra.mxu0 0.0
    %6055 = vmatprep.subr.mxu0 0.0
    %6056 = vmatpush1.xpose.msra.mxu0 0.0
    %6057 = vmatprep.subr.mxu0 0.0
    %6058 = vmatpush1.xpose.msra.mxu0 0.0
    %6059 = vmatprep.subr.mxu0 0.0
    %6060 = vmatpush1.xpose.msra.mxu0 0.0
    %6061 = vmatprep.subr.mxu0 0.0
    %6062 = vmatpush1.xpose.msra.mxu0 %v6029
    %6063 = vmatprep.subr.mxu0 0.0
    %6064 = vmatpush2.xpose.msra.mxu0 0.0
    %6065 = vmatprep.subr.mxu0 0.0
    %6066 = vmatpush2.xpose.msra.mxu0 0.0
    %6067 = vmatprep.subr.mxu0 0.0
    %6068 = vmatpush2.xpose.msra.mxu0 0.0
    %6069 = vmatprep.subr.mxu0 0.0
    %6070 = vmatpush2.xpose.msra.mxu0 0.0
    %6071 = vmatprep.subr.mxu0 0.0
    %6072 = vmatpush2.xpose.msra.mxu0 0.0
    %6073 = vmatprep.subr.mxu0 0.0
    %6074 = vmatpush2.xpose.msra.mxu0 0.0
    %6075 = vmatprep.subr.mxu0 0.0
    %6076 = vmatpush2.xpose.msra.mxu0 0.0
    %6077 = vmatprep.subr.mxu0 0.0
    %6078 = vmatpush2.xpose.msra.mxu0 0.0
    %6079 = vmatprep.subr.mxu0 0.0
    %6080 = vmatpush2.xpose.msra.mxu0 0.0
    %6081 = vmatprep.subr.mxu0 0.0
    %6082 = vmatpush2.xpose.msra.mxu0 0.0
    %6083 = vmatprep.subr.mxu0 0.0
    %6084 = vmatpush2.xpose.msra.mxu0 0.0
    %6085 = vmatprep.subr.mxu0 0.0
    %6086 = vmatpush2.xpose.msra.mxu0 0.0
    %6087 = vmatprep.subr.mxu0 0.0
    %6088 = vmatpush2.xpose.msra.mxu0 0.0
    %6089 = vmatprep.subr.mxu0 0.0
    %6090 = vmatpush2.xpose.msra.mxu0 0.0
    %6091 = vmatprep.subr.mxu0 0.0
    %6092 = vmatpush2.xpose.msra.mxu0 0.0
    %6093 = vmatprep.subr.mxu0 0.0
    %6094 = vmatpush2.xpose.msra.mxu0 0.0
    %6095 = vmatprep.mubr.f32.mxu0 0.0
    %6096 = vmatmul.mubr.f32.gmra.mxu0 %v6026
    %v6097 = vpop.f32.mrf.mxu0
    %v6098 = vadd.f32 0.0, %v6097
    %v6099 = vpop.f32.mrf.mxu0
    %6100 = vdwg.mxu0
    %v6101 = vmul.f32 %v6022, 0.35355338
    %v6102 = vmul.f32 %v6098, 0.35355338
    %v6103 = vadd.f32 %v6101, %v226
    %v6104 = vadd.f32 %v6102, %v227
    %v6105 = vsel %vm931, %v6103, -inf
    %6106 = vmax.xlane.f32.xlu0 %v6105
    %v6107 = vpop.xlane.xlu0 %6106
    %v6108 = vsel %vm931, %v6104, -inf
    %6109 = vmax.xlane.f32.xlu0 %v6108
    %v6110 = vpop.xlane.xlu0 %6109
    %v6111 = vsub.f32 %v6103, %v6107
    %v6112 = vsub.f32 %v6104, %v6110
    %v6113 = vmul.f32 %v6111, 1.442695
    %v6114 = vpow.pop %v6113
    %v6115 = vmul.f32 %v6112, 1.442695
    %v6116 = vpow.pop %v6115
    %v6117 = vsel %vm931, %v6114, 0.0
    %6118 = vadd.xlane.f32.xlu0 %v6117
    %v6119 = vpop.xlane.xlu0 %6118
    %v6120 = vsel %vm931, %v6116, 0.0
    %6121 = vadd.xlane.f32.xlu0 %v6120
    %v6122 = vpop.xlane.xlu0 %6121
    %v6123 = vrcp.pop %v6119
    %v6124 = vrcp.pop %v6122
    %v6125 = vmul.f32 %v6114, %v6123
    %v6126 = vmul.f32 %v6116, %v6124
    %v6127 = vmul.f32 %v5937, %v134
    %v6128 = vmul.f32 %v5942, %v134
    %v6129 = vmul.f32 %v5937, %v956
    %v6130 = vmul.f32 %v5942, %v956
    %v6132 = vsel %vm678, %v6127, 0
    %6134 = vmatprep.subr.mxu0 0.0
    %6135 = vmatpush1.xpose.msra.mxu0 0.0
    %6136 = vmatprep.subr.mxu0 0.0
    %6137 = vmatpush1.xpose.msra.mxu0 0.0
    %6138 = vmatprep.subr.mxu0 0.0
    %6139 = vmatpush1.xpose.msra.mxu0 0.0
    %6140 = vmatprep.subr.mxu0 0.0
    %6141 = vmatpush1.xpose.msra.mxu0 0.0
    %6142 = vmatprep.subr.mxu0 0.0
    %6143 = vmatpush1.xpose.msra.mxu0 0.0
    %6144 = vmatprep.subr.mxu0 0.0
    %6145 = vmatpush1.xpose.msra.mxu0 0.0
    %6146 = vmatprep.subr.mxu0 0.0
    %6147 = vmatpush1.xpose.msra.mxu0 0.0
    %6148 = vmatprep.subr.mxu0 0.0
    %6149 = vmatpush1.xpose.msra.mxu0 0.0
    %6150 = vmatprep.subr.mxu0 0.0
    %6151 = vmatpush1.xpose.msra.mxu0 0.0
    %6152 = vmatprep.subr.mxu0 0.0
    %6153 = vmatpush1.xpose.msra.mxu0 0.0
    %6154 = vmatprep.subr.mxu0 0.0
    %6155 = vmatpush1.xpose.msra.mxu0 0.0
    %6156 = vmatprep.subr.mxu0 0.0
    %6157 = vmatpush1.xpose.msra.mxu0 0.0
    %6158 = vmatprep.subr.mxu0 0.0
    %6159 = vmatpush1.xpose.msra.mxu0 0.0
    %6160 = vmatprep.subr.mxu0 0.0
    %6161 = vmatpush1.xpose.msra.mxu0 0.0
    %6162 = vmatprep.subr.mxu0 0.0
    %6163 = vmatpush1.xpose.msra.mxu0 0.0
    %6164 = vmatprep.subr.mxu0 0.0
    %6165 = vmatpush1.xpose.msra.mxu0 %v6132
    %6166 = vmatprep.subr.mxu0 0.0
    %6167 = vmatpush2.xpose.msra.mxu0 0.0
    %6168 = vmatprep.subr.mxu0 0.0
    %6169 = vmatpush2.xpose.msra.mxu0 0.0
    %6170 = vmatprep.subr.mxu0 0.0
    %6171 = vmatpush2.xpose.msra.mxu0 0.0
    %6172 = vmatprep.subr.mxu0 0.0
    %6173 = vmatpush2.xpose.msra.mxu0 0.0
    %6174 = vmatprep.subr.mxu0 0.0
    %6175 = vmatpush2.xpose.msra.mxu0 0.0
    %6176 = vmatprep.subr.mxu0 0.0
    %6177 = vmatpush2.xpose.msra.mxu0 0.0
    %6178 = vmatprep.subr.mxu0 0.0
    %6179 = vmatpush2.xpose.msra.mxu0 0.0
    %6180 = vmatprep.subr.mxu0 0.0
    %6181 = vmatpush2.xpose.msra.mxu0 0.0
    %6182 = vmatprep.subr.mxu0 0.0
    %6183 = vmatpush2.xpose.msra.mxu0 0.0
    %6184 = vmatprep.subr.mxu0 0.0
    %6185 = vmatpush2.xpose.msra.mxu0 0.0
    %6186 = vmatprep.subr.mxu0 0.0
    %6187 = vmatpush2.xpose.msra.mxu0 0.0
    %6188 = vmatprep.subr.mxu0 0.0
    %6189 = vmatpush2.xpose.msra.mxu0 0.0
    %6190 = vmatprep.subr.mxu0 0.0
    %6191 = vmatpush2.xpose.msra.mxu0 0.0
    %6192 = vmatprep.subr.mxu0 0.0
    %6193 = vmatpush2.xpose.msra.mxu0 0.0
    %6194 = vmatprep.subr.mxu0 0.0
    %6195 = vmatpush2.xpose.msra.mxu0 0.0
    %6196 = vmatprep.subr.mxu0 0.0
    %6197 = vmatpush2.xpose.msra.mxu0 0.0
    %6198 = vmatprep.mubr.f32.mxu0 0.0
    %6199 = vmatmul.mubr.f32.gmra.mxu0 %v5950
    %v6200 = vpop.f32.mrf.mxu0
    %v6201 = vadd.f32 0.0, %v6200
    %v6202 = vpop.f32.mrf.mxu0
    %6203 = vdwg.mxu0
    %v6205 = vsel %vm678, %v6128, 0
    %6207 = vmatprep.subr.mxu0 0.0
    %6208 = vmatpush1.xpose.msra.mxu0 0.0
    %6209 = vmatprep.subr.mxu0 0.0
    %6210 = vmatpush1.xpose.msra.mxu0 0.0
    %6211 = vmatprep.subr.mxu0 0.0
    %6212 = vmatpush1.xpose.msra.mxu0 0.0
    %6213 = vmatprep.subr.mxu0 0.0
    %6214 = vmatpush1.xpose.msra.mxu0 0.0
    %6215 = vmatprep.subr.mxu0 0.0
    %6216 = vmatpush1.xpose.msra.mxu0 0.0
    %6217 = vmatprep.subr.mxu0 0.0
    %6218 = vmatpush1.xpose.msra.mxu0 0.0
    %6219 = vmatprep.subr.mxu0 0.0
    %6220 = vmatpush1.xpose.msra.mxu0 0.0
    %6221 = vmatprep.subr.mxu0 0.0
    %6222 = vmatpush1.xpose.msra.mxu0 0.0
    %6223 = vmatprep.subr.mxu0 0.0
    %6224 = vmatpush1.xpose.msra.mxu0 0.0
    %6225 = vmatprep.subr.mxu0 0.0
    %6226 = vmatpush1.xpose.msra.mxu0 0.0
    %6227 = vmatprep.subr.mxu0 0.0
    %6228 = vmatpush1.xpose.msra.mxu0 0.0
    %6229 = vmatprep.subr.mxu0 0.0
    %6230 = vmatpush1.xpose.msra.mxu0 0.0
    %6231 = vmatprep.subr.mxu0 0.0
    %6232 = vmatpush1.xpose.msra.mxu0 0.0
    %6233 = vmatprep.subr.mxu0 0.0
    %6234 = vmatpush1.xpose.msra.mxu0 0.0
    %6235 = vmatprep.subr.mxu0 0.0
    %6236 = vmatpush1.xpose.msra.mxu0 0.0
    %6237 = vmatprep.subr.mxu0 0.0
    %6238 = vmatpush1.xpose.msra.mxu0 %v6205
    %6239 = vmatprep.subr.mxu0 0.0
    %6240 = vmatpush2.xpose.msra.mxu0 0.0
    %6241 = vmatprep.subr.mxu0 0.0
    %6242 = vmatpush2.xpose.msra.mxu0 0.0
    %6243 = vmatprep.subr.mxu0 0.0
    %6244 = vmatpush2.xpose.msra.mxu0 0.0
    %6245 = vmatprep.subr.mxu0 0.0
    %6246 = vmatpush2.xpose.msra.mxu0 0.0
    %6247 = vmatprep.subr.mxu0 0.0
    %6248 = vmatpush2.xpose.msra.mxu0 0.0
    %6249 = vmatprep.subr.mxu0 0.0
    %6250 = vmatpush2.xpose.msra.mxu0 0.0
    %6251 = vmatprep.subr.mxu0 0.0
    %6252 = vmatpush2.xpose.msra.mxu0 0.0
    %6253 = vmatprep.subr.mxu0 0.0
    %6254 = vmatpush2.xpose.msra.mxu0 0.0
    %6255 = vmatprep.subr.mxu0 0.0
    %6256 = vmatpush2.xpose.msra.mxu0 0.0
    %6257 = vmatprep.subr.mxu0 0.0
    %6258 = vmatpush2.xpose.msra.mxu0 0.0
    %6259 = vmatprep.subr.mxu0 0.0
    %6260 = vmatpush2.xpose.msra.mxu0 0.0
    %6261 = vmatprep.subr.mxu0 0.0
    %6262 = vmatpush2.xpose.msra.mxu0 0.0
    %6263 = vmatprep.subr.mxu0 0.0
    %6264 = vmatpush2.xpose.msra.mxu0 0.0
    %6265 = vmatprep.subr.mxu0 0.0
    %6266 = vmatpush2.xpose.msra.mxu0 0.0
    %6267 = vmatprep.subr.mxu0 0.0
    %6268 = vmatpush2.xpose.msra.mxu0 0.0
    %6269 = vmatprep.subr.mxu0 0.0
    %6270 = vmatpush2.xpose.msra.mxu0 0.0
    %6271 = vmatprep.mubr.f32.mxu0 0.0
    %6272 = vmatmul.mubr.f32.gmra.mxu0 %v6026
    %v6273 = vpop.f32.mrf.mxu0
    %v6274 = vadd.f32 0.0, %v6273
    %v6275 = vpop.f32.mrf.mxu0
    %6276 = vdwg.mxu0
    %v6277 = vmul.f32 %v6201, 0.35355338
    %v6278 = vmul.f32 %v6274, 0.35355338
    %v6279 = vadd.f32 %v6277, %v226
    %v6280 = vadd.f32 %v6278, %v227
    %v6281 = vsel %vm931, %v6279, -inf
    %6282 = vmax.xlane.f32.xlu0 %v6281
    %v6283 = vpop.xlane.xlu0 %6282
    %v6284 = vsel %vm931, %v6280, -inf
    %6285 = vmax.xlane.f32.xlu0 %v6284
    %v6286 = vpop.xlane.xlu0 %6285
    %v6287 = vsub.f32 %v6279, %v6283
    %v6288 = vsub.f32 %v6280, %v6286
    %v6289 = vmul.f32 %v6287, 1.442695
    %v6290 = vpow.pop %v6289
    %v6291 = vmul.f32 %v6288, 1.442695
    %v6292 = vpow.pop %v6291
    %v6293 = vsel %vm931, %v6290, 0.0
    %6294 = vadd.xlane.f32.xlu0 %v6293
    %v6295 = vpop.xlane.xlu0 %6294
    %v6296 = vsel %vm931, %v6292, 0.0
    %6297 = vadd.xlane.f32.xlu0 %v6296
    %v6298 = vpop.xlane.xlu0 %6297
    %v6299 = vrcp.pop %v6295
    %v6300 = vrcp.pop %v6298
    %v6301 = vmul.f32 %v6290, %v6299
    %v6302 = vmul.f32 %v6292, %v6300
    %6304 = vrot.lane.b32.xlu0 %v6129, 96
    %v6305 = vpop.permute.xlu0 %6304
    %v6308 = vsel %vm931, %v6301, 0
    %6310 = vmatprep.subr.mxu0 0.0
    %6311 = vmatpush1.msra.mxu0 0.0
    %6312 = vmatprep.subr.mxu0 0.0
    %6313 = vmatpush1.msra.mxu0 0.0
    %6314 = vmatprep.subr.mxu0 0.0
    %6315 = vmatpush1.msra.mxu0 0.0
    %6316 = vmatprep.subr.mxu0 0.0
    %6317 = vmatpush1.msra.mxu0 0.0
    %6318 = vmatprep.subr.mxu0 0.0
    %6319 = vmatpush1.msra.mxu0 0.0
    %6320 = vmatprep.subr.mxu0 0.0
    %6321 = vmatpush1.msra.mxu0 0.0
    %6322 = vmatprep.subr.mxu0 0.0
    %6323 = vmatpush1.msra.mxu0 0.0
    %6324 = vmatprep.subr.mxu0 0.0
    %6325 = vmatpush1.msra.mxu0 0.0
    %6326 = vmatprep.subr.mxu0 0.0
    %6327 = vmatpush1.msra.mxu0 0.0
    %6328 = vmatprep.subr.mxu0 0.0
    %6329 = vmatpush1.msra.mxu0 0.0
    %6330 = vmatprep.subr.mxu0 0.0
    %6331 = vmatpush1.msra.mxu0 0.0
    %6332 = vmatprep.subr.mxu0 0.0
    %6333 = vmatpush1.msra.mxu0 0.0
    %6334 = vmatprep.subr.mxu0 0.0
    %6335 = vmatpush1.msra.mxu0 0.0
    %6336 = vmatprep.subr.mxu0 0.0
    %6337 = vmatpush1.msra.mxu0 0.0
    %6338 = vmatprep.subr.mxu0 0.0
    %6339 = vmatpush1.msra.mxu0 0.0
    %6340 = vmatprep.subr.mxu0 0.0
    %6341 = vmatpush1.msra.mxu0 %v6305
    %6342 = vmatprep.subr.mxu0 0.0
    %6343 = vmatpush2.msra.mxu0 0.0
    %6344 = vmatprep.subr.mxu0 0.0
    %6345 = vmatpush2.msra.mxu0 0.0
    %6346 = vmatprep.subr.mxu0 0.0
    %6347 = vmatpush2.msra.mxu0 0.0
    %6348 = vmatprep.subr.mxu0 0.0
    %6349 = vmatpush2.msra.mxu0 0.0
    %6350 = vmatprep.subr.mxu0 0.0
    %6351 = vmatpush2.msra.mxu0 0.0
    %6352 = vmatprep.subr.mxu0 0.0
    %6353 = vmatpush2.msra.mxu0 0.0
    %6354 = vmatprep.subr.mxu0 0.0
    %6355 = vmatpush2.msra.mxu0 0.0
    %6356 = vmatprep.subr.mxu0 0.0
    %6357 = vmatpush2.msra.mxu0 0.0
    %6358 = vmatprep.subr.mxu0 0.0
    %6359 = vmatpush2.msra.mxu0 0.0
    %6360 = vmatprep.subr.mxu0 0.0
    %6361 = vmatpush2.msra.mxu0 0.0
    %6362 = vmatprep.subr.mxu0 0.0
    %6363 = vmatpush2.msra.mxu0 0.0
    %6364 = vmatprep.subr.mxu0 0.0
    %6365 = vmatpush2.msra.mxu0 0.0
    %6366 = vmatprep.subr.mxu0 0.0
    %6367 = vmatpush2.msra.mxu0 0.0
    %6368 = vmatprep.subr.mxu0 0.0
    %6369 = vmatpush2.msra.mxu0 0.0
    %6370 = vmatprep.subr.mxu0 0.0
    %6371 = vmatpush2.msra.mxu0 0.0
    %6372 = vmatprep.subr.mxu0 0.0
    %6373 = vmatpush2.msra.mxu0 0.0
    %6374 = vmatprep.mubr.f32.mxu0 0.0
    %6375 = vmatmul.mubr.f32.gmra.mxu0 %v6308
    %v6376 = vpop.f32.mrf.mxu0
    %v6377 = vadd.f32 0.0, %v6376
    %v6378 = vpop.f32.mrf.mxu0
    %6379 = vdwg.mxu0
    %6381 = vrot.lane.b32.xlu0 %v6130, 96
    %v6382 = vpop.permute.xlu0 %6381
    %v6385 = vsel %vm931, %v6302, 0
    %6387 = vmatprep.subr.mxu0 0.0
    %6388 = vmatpush1.msra.mxu0 0.0
    %6389 = vmatprep.subr.mxu0 0.0
    %6390 = vmatpush1.msra.mxu0 0.0
    %6391 = vmatprep.subr.mxu0 0.0
    %6392 = vmatpush1.msra.mxu0 0.0
    %6393 = vmatprep.subr.mxu0 0.0
    %6394 = vmatpush1.msra.mxu0 0.0
    %6395 = vmatprep.subr.mxu0 0.0
    %6396 = vmatpush1.msra.mxu0 0.0
    %6397 = vmatprep.subr.mxu0 0.0
    %6398 = vmatpush1.msra.mxu0 0.0
    %6399 = vmatprep.subr.mxu0 0.0
    %6400 = vmatpush1.msra.mxu0 0.0
    %6401 = vmatprep.subr.mxu0 0.0
    %6402 = vmatpush1.msra.mxu0 0.0
    %6403 = vmatprep.subr.mxu0 0.0
    %6404 = vmatpush1.msra.mxu0 0.0
    %6405 = vmatprep.subr.mxu0 0.0
    %6406 = vmatpush1.msra.mxu0 0.0
    %6407 = vmatprep.subr.mxu0 0.0
    %6408 = vmatpush1.msra.mxu0 0.0
    %6409 = vmatprep.subr.mxu0 0.0
    %6410 = vmatpush1.msra.mxu0 0.0
    %6411 = vmatprep.subr.mxu0 0.0
    %6412 = vmatpush1.msra.mxu0 0.0
    %6413 = vmatprep.subr.mxu0 0.0
    %6414 = vmatpush1.msra.mxu0 0.0
    %6415 = vmatprep.subr.mxu0 0.0
    %6416 = vmatpush1.msra.mxu0 0.0
    %6417 = vmatprep.subr.mxu0 0.0
    %6418 = vmatpush1.msra.mxu0 %v6382
    %6419 = vmatprep.subr.mxu0 0.0
    %6420 = vmatpush2.msra.mxu0 0.0
    %6421 = vmatprep.subr.mxu0 0.0
    %6422 = vmatpush2.msra.mxu0 0.0
    %6423 = vmatprep.subr.mxu0 0.0
    %6424 = vmatpush2.msra.mxu0 0.0
    %6425 = vmatprep.subr.mxu0 0.0
    %6426 = vmatpush2.msra.mxu0 0.0
    %6427 = vmatprep.subr.mxu0 0.0
    %6428 = vmatpush2.msra.mxu0 0.0
    %6429 = vmatprep.subr.mxu0 0.0
    %6430 = vmatpush2.msra.mxu0 0.0
    %6431 = vmatprep.subr.mxu0 0.0
    %6432 = vmatpush2.msra.mxu0 0.0
    %6433 = vmatprep.subr.mxu0 0.0
    %6434 = vmatpush2.msra.mxu0 0.0
    %6435 = vmatprep.subr.mxu0 0.0
    %6436 = vmatpush2.msra.mxu0 0.0
    %6437 = vmatprep.subr.mxu0 0.0
    %6438 = vmatpush2.msra.mxu0 0.0
    %6439 = vmatprep.subr.mxu0 0.0
    %6440 = vmatpush2.msra.mxu0 0.0
    %6441 = vmatprep.subr.mxu0 0.0
    %6442 = vmatpush2.msra.mxu0 0.0
    %6443 = vmatprep.subr.mxu0 0.0
    %6444 = vmatpush2.msra.mxu0 0.0
    %6445 = vmatprep.subr.mxu0 0.0
    %6446 = vmatpush2.msra.mxu0 0.0
    %6447 = vmatprep.subr.mxu0 0.0
    %6448 = vmatpush2.msra.mxu0 0.0
    %6449 = vmatprep.subr.mxu0 0.0
    %6450 = vmatpush2.msra.mxu0 0.0
    %6451 = vmatprep.mubr.f32.mxu0 0.0
    %6452 = vmatmul.mubr.f32.gmra.mxu0 %v6385
    %v6453 = vpop.f32.mrf.mxu0
    %v6454 = vadd.f32 0.0, %v6453
    %v6455 = vpop.f32.mrf.mxu0
    %6456 = vdwg.mxu0
    %6458 = vrot.lane.b32.xlu0 %v5947, 96
    %v6459 = vpop.permute.xlu0 %6458
    %v6462 = vsel %vm931, %v6125, 0
    %6464 = vmatprep.subr.mxu0 0.0
    %6465 = vmatpush1.msra.mxu0 0.0
    %6466 = vmatprep.subr.mxu0 0.0
    %6467 = vmatpush1.msra.mxu0 0.0
    %6468 = vmatprep.subr.mxu0 0.0
    %6469 = vmatpush1.msra.mxu0 0.0
    %6470 = vmatprep.subr.mxu0 0.0
    %6471 = vmatpush1.msra.mxu0 0.0
    %6472 = vmatprep.subr.mxu0 0.0
    %6473 = vmatpush1.msra.mxu0 0.0
    %6474 = vmatprep.subr.mxu0 0.0
    %6475 = vmatpush1.msra.mxu0 0.0
    %6476 = vmatprep.subr.mxu0 0.0
    %6477 = vmatpush1.msra.mxu0 0.0
    %6478 = vmatprep.subr.mxu0 0.0
    %6479 = vmatpush1.msra.mxu0 0.0
    %6480 = vmatprep.subr.mxu0 0.0
    %6481 = vmatpush1.msra.mxu0 0.0
    %6482 = vmatprep.subr.mxu0 0.0
    %6483 = vmatpush1.msra.mxu0 0.0
    %6484 = vmatprep.subr.mxu0 0.0
    %6485 = vmatpush1.msra.mxu0 0.0
    %6486 = vmatprep.subr.mxu0 0.0
    %6487 = vmatpush1.msra.mxu0 0.0
    %6488 = vmatprep.subr.mxu0 0.0
    %6489 = vmatpush1.msra.mxu0 0.0
    %6490 = vmatprep.subr.mxu0 0.0
    %6491 = vmatpush1.msra.mxu0 0.0
    %6492 = vmatprep.subr.mxu0 0.0
    %6493 = vmatpush1.msra.mxu0 0.0
    %6494 = vmatprep.subr.mxu0 0.0
    %6495 = vmatpush1.msra.mxu0 %v6459
    %6496 = vmatprep.subr.mxu0 0.0
    %6497 = vmatpush2.msra.mxu0 0.0
    %6498 = vmatprep.subr.mxu0 0.0
    %6499 = vmatpush2.msra.mxu0 0.0
    %6500 = vmatprep.subr.mxu0 0.0
    %6501 = vmatpush2.msra.mxu0 0.0
    %6502 = vmatprep.subr.mxu0 0.0
    %6503 = vmatpush2.msra.mxu0 0.0
    %6504 = vmatprep.subr.mxu0 0.0
    %6505 = vmatpush2.msra.mxu0 0.0
    %6506 = vmatprep.subr.mxu0 0.0
    %6507 = vmatpush2.msra.mxu0 0.0
    %6508 = vmatprep.subr.mxu0 0.0
    %6509 = vmatpush2.msra.mxu0 0.0
    %6510 = vmatprep.subr.mxu0 0.0
    %6511 = vmatpush2.msra.mxu0 0.0
    %6512 = vmatprep.subr.mxu0 0.0
    %6513 = vmatpush2.msra.mxu0 0.0
    %6514 = vmatprep.subr.mxu0 0.0
    %6515 = vmatpush2.msra.mxu0 0.0
    %6516 = vmatprep.subr.mxu0 0.0
    %6517 = vmatpush2.msra.mxu0 0.0
    %6518 = vmatprep.subr.mxu0 0.0
    %6519 = vmatpush2.msra.mxu0 0.0
    %6520 = vmatprep.subr.mxu0 0.0
    %6521 = vmatpush2.msra.mxu0 0.0
    %6522 = vmatprep.subr.mxu0 0.0
    %6523 = vmatpush2.msra.mxu0 0.0
    %6524 = vmatprep.subr.mxu0 0.0
    %6525 = vmatpush2.msra.mxu0 0.0
    %6526 = vmatprep.subr.mxu0 0.0
    %6527 = vmatpush2.msra.mxu0 0.0
    %6528 = vmatprep.mubr.f32.mxu0 0.0
    %6529 = vmatmul.mubr.f32.gmra.mxu0 %v6462
    %v6530 = vpop.f32.mrf.mxu0
    %v6531 = vadd.f32 %v6377, %v6530
    %v6532 = vpop.f32.mrf.mxu0
    %6533 = vdwg.mxu0
    %6535 = vrot.lane.b32.xlu0 %v5948, 96
    %v6536 = vpop.permute.xlu0 %6535
    %v6539 = vsel %vm931, %v6126, 0
    %6541 = vmatprep.subr.mxu0 0.0
    %6542 = vmatpush1.msra.mxu0 0.0
    %6543 = vmatprep.subr.mxu0 0.0
    %6544 = vmatpush1.msra.mxu0 0.0
    %6545 = vmatprep.subr.mxu0 0.0
    %6546 = vmatpush1.msra.mxu0 0.0
    %6547 = vmatprep.subr.mxu0 0.0
    %6548 = vmatpush1.msra.mxu0 0.0
    %6549 = vmatprep.subr.mxu0 0.0
    %6550 = vmatpush1.msra.mxu0 0.0
    %6551 = vmatprep.subr.mxu0 0.0
    %6552 = vmatpush1.msra.mxu0 0.0
    %6553 = vmatprep.subr.mxu0 0.0
    %6554 = vmatpush1.msra.mxu0 0.0
    %6555 = vmatprep.subr.mxu0 0.0
    %6556 = vmatpush1.msra.mxu0 0.0
    %6557 = vmatprep.subr.mxu0 0.0
    %6558 = vmatpush1.msra.mxu0 0.0
    %6559 = vmatprep.subr.mxu0 0.0
    %6560 = vmatpush1.msra.mxu0 0.0
    %6561 = vmatprep.subr.mxu0 0.0
    %6562 = vmatpush1.msra.mxu0 0.0
    %6563 = vmatprep.subr.mxu0 0.0
    %6564 = vmatpush1.msra.mxu0 0.0
    %6565 = vmatprep.subr.mxu0 0.0
    %6566 = vmatpush1.msra.mxu0 0.0
    %6567 = vmatprep.subr.mxu0 0.0
    %6568 = vmatpush1.msra.mxu0 0.0
    %6569 = vmatprep.subr.mxu0 0.0
    %6570 = vmatpush1.msra.mxu0 0.0
    %6571 = vmatprep.subr.mxu0 0.0
    %6572 = vmatpush1.msra.mxu0 %v6536
    %6573 = vmatprep.subr.mxu0 0.0
    %6574 = vmatpush2.msra.mxu0 0.0
    %6575 = vmatprep.subr.mxu0 0.0
    %6576 = vmatpush2.msra.mxu0 0.0
    %6577 = vmatprep.subr.mxu0 0.0
    %6578 = vmatpush2.msra.mxu0 0.0
    %6579 = vmatprep.subr.mxu0 0.0
    %6580 = vmatpush2.msra.mxu0 0.0
    %6581 = vmatprep.subr.mxu0 0.0
    %6582 = vmatpush2.msra.mxu0 0.0
    %6583 = vmatprep.subr.mxu0 0.0
    %6584 = vmatpush2.msra.mxu0 0.0
    %6585 = vmatprep.subr.mxu0 0.0
    %6586 = vmatpush2.msra.mxu0 0.0
    %6587 = vmatprep.subr.mxu0 0.0
    %6588 = vmatpush2.msra.mxu0 0.0
    %6589 = vmatprep.subr.mxu0 0.0
    %6590 = vmatpush2.msra.mxu0 0.0
    %6591 = vmatprep.subr.mxu0 0.0
    %6592 = vmatpush2.msra.mxu0 0.0
    %6593 = vmatprep.subr.mxu0 0.0
    %6594 = vmatpush2.msra.mxu0 0.0
    %6595 = vmatprep.subr.mxu0 0.0
    %6596 = vmatpush2.msra.mxu0 0.0
    %6597 = vmatprep.subr.mxu0 0.0
    %6598 = vmatpush2.msra.mxu0 0.0
    %6599 = vmatprep.subr.mxu0 0.0
    %6600 = vmatpush2.msra.mxu0 0.0
    %6601 = vmatprep.subr.mxu0 0.0
    %6602 = vmatpush2.msra.mxu0 0.0
    %6603 = vmatprep.subr.mxu0 0.0
    %6604 = vmatpush2.msra.mxu0 0.0
    %6605 = vmatprep.mubr.f32.mxu0 0.0
    %6606 = vmatmul.mubr.f32.gmra.mxu0 %v6539
    %v6607 = vpop.f32.mrf.mxu0
    %v6608 = vadd.f32 %v6454, %v6607
    %v6609 = vpop.f32.mrf.mxu0
    %6610 = vdwg.mxu0
    %v6611 = vmul.f32 %v5937, %v139
    %v6612 = vmul.f32 %v5942, %v139
    %v6613 = vmul.f32 %v5937, %v1451
    %v6614 = vmul.f32 %v5942, %v1451
    %v6616 = vsel %vm678, %v6611, 0
    %6618 = vmatprep.subr.mxu0 0.0
    %6619 = vmatpush1.xpose.msra.mxu0 0.0
    %6620 = vmatprep.subr.mxu0 0.0
    %6621 = vmatpush1.xpose.msra.mxu0 0.0
    %6622 = vmatprep.subr.mxu0 0.0
    %6623 = vmatpush1.xpose.msra.mxu0 0.0
    %6624 = vmatprep.subr.mxu0 0.0
    %6625 = vmatpush1.xpose.msra.mxu0 0.0
    %6626 = vmatprep.subr.mxu0 0.0
    %6627 = vmatpush1.xpose.msra.mxu0 0.0
    %6628 = vmatprep.subr.mxu0 0.0
    %6629 = vmatpush1.xpose.msra.mxu0 0.0
    %6630 = vmatprep.subr.mxu0 0.0
    %6631 = vmatpush1.xpose.msra.mxu0 0.0
    %6632 = vmatprep.subr.mxu0 0.0
    %6633 = vmatpush1.xpose.msra.mxu0 0.0
    %6634 = vmatprep.subr.mxu0 0.0
    %6635 = vmatpush1.xpose.msra.mxu0 0.0
    %6636 = vmatprep.subr.mxu0 0.0
    %6637 = vmatpush1.xpose.msra.mxu0 0.0
    %6638 = vmatprep.subr.mxu0 0.0
    %6639 = vmatpush1.xpose.msra.mxu0 0.0
    %6640 = vmatprep.subr.mxu0 0.0
    %6641 = vmatpush1.xpose.msra.mxu0 0.0
    %6642 = vmatprep.subr.mxu0 0.0
    %6643 = vmatpush1.xpose.msra.mxu0 0.0
    %6644 = vmatprep.subr.mxu0 0.0
    %6645 = vmatpush1.xpose.msra.mxu0 0.0
    %6646 = vmatprep.subr.mxu0 0.0
    %6647 = vmatpush1.xpose.msra.mxu0 0.0
    %6648 = vmatprep.subr.mxu0 0.0
    %6649 = vmatpush1.xpose.msra.mxu0 %v6616
    %6650 = vmatprep.subr.mxu0 0.0
    %6651 = vmatpush2.xpose.msra.mxu0 0.0
    %6652 = vmatprep.subr.mxu0 0.0
    %6653 = vmatpush2.xpose.msra.mxu0 0.0
    %6654 = vmatprep.subr.mxu0 0.0
    %6655 = vmatpush2.xpose.msra.mxu0 0.0
    %6656 = vmatprep.subr.mxu0 0.0
    %6657 = vmatpush2.xpose.msra.mxu0 0.0
    %6658 = vmatprep.subr.mxu0 0.0
    %6659 = vmatpush2.xpose.msra.mxu0 0.0
    %6660 = vmatprep.subr.mxu0 0.0
    %6661 = vmatpush2.xpose.msra.mxu0 0.0
    %6662 = vmatprep.subr.mxu0 0.0
    %6663 = vmatpush2.xpose.msra.mxu0 0.0
    %6664 = vmatprep.subr.mxu0 0.0
    %6665 = vmatpush2.xpose.msra.mxu0 0.0
    %6666 = vmatprep.subr.mxu0 0.0
    %6667 = vmatpush2.xpose.msra.mxu0 0.0
    %6668 = vmatprep.subr.mxu0 0.0
    %6669 = vmatpush2.xpose.msra.mxu0 0.0
    %6670 = vmatprep.subr.mxu0 0.0
    %6671 = vmatpush2.xpose.msra.mxu0 0.0
    %6672 = vmatprep.subr.mxu0 0.0
    %6673 = vmatpush2.xpose.msra.mxu0 0.0
    %6674 = vmatprep.subr.mxu0 0.0
    %6675 = vmatpush2.xpose.msra.mxu0 0.0
    %6676 = vmatprep.subr.mxu0 0.0
    %6677 = vmatpush2.xpose.msra.mxu0 0.0
    %6678 = vmatprep.subr.mxu0 0.0
    %6679 = vmatpush2.xpose.msra.mxu0 0.0
    %6680 = vmatprep.subr.mxu0 0.0
    %6681 = vmatpush2.xpose.msra.mxu0 0.0
    %6682 = vmatprep.mubr.f32.mxu0 0.0
    %6683 = vmatmul.mubr.f32.gmra.mxu0 %v5950
    %v6684 = vpop.f32.mrf.mxu0
    %v6685 = vadd.f32 0.0, %v6684
    %v6686 = vpop.f32.mrf.mxu0
    %6687 = vdwg.mxu0
    %v6689 = vsel %vm678, %v6612, 0
    %6691 = vmatprep.subr.mxu0 0.0
    %6692 = vmatpush1.xpose.msra.mxu0 0.0
    %6693 = vmatprep.subr.mxu0 0.0
    %6694 = vmatpush1.xpose.msra.mxu0 0.0
    %6695 = vmatprep.subr.mxu0 0.0
    %6696 = vmatpush1.xpose.msra.mxu0 0.0
    %6697 = vmatprep.subr.mxu0 0.0
    %6698 = vmatpush1.xpose.msra.mxu0 0.0
    %6699 = vmatprep.subr.mxu0 0.0
    %6700 = vmatpush1.xpose.msra.mxu0 0.0
    %6701 = vmatprep.subr.mxu0 0.0
    %6702 = vmatpush1.xpose.msra.mxu0 0.0
    %6703 = vmatprep.subr.mxu0 0.0
    %6704 = vmatpush1.xpose.msra.mxu0 0.0
    %6705 = vmatprep.subr.mxu0 0.0
    %6706 = vmatpush1.xpose.msra.mxu0 0.0
    %6707 = vmatprep.subr.mxu0 0.0
    %6708 = vmatpush1.xpose.msra.mxu0 0.0
    %6709 = vmatprep.subr.mxu0 0.0
    %6710 = vmatpush1.xpose.msra.mxu0 0.0
    %6711 = vmatprep.subr.mxu0 0.0
    %6712 = vmatpush1.xpose.msra.mxu0 0.0
    %6713 = vmatprep.subr.mxu0 0.0
    %6714 = vmatpush1.xpose.msra.mxu0 0.0
    %6715 = vmatprep.subr.mxu0 0.0
    %6716 = vmatpush1.xpose.msra.mxu0 0.0
    %6717 = vmatprep.subr.mxu0 0.0
    %6718 = vmatpush1.xpose.msra.mxu0 0.0
    %6719 = vmatprep.subr.mxu0 0.0
    %6720 = vmatpush1.xpose.msra.mxu0 0.0
    %6721 = vmatprep.subr.mxu0 0.0
    %6722 = vmatpush1.xpose.msra.mxu0 %v6689
    %6723 = vmatprep.subr.mxu0 0.0
    %6724 = vmatpush2.xpose.msra.mxu0 0.0
    %6725 = vmatprep.subr.mxu0 0.0
    %6726 = vmatpush2.xpose.msra.mxu0 0.0
    %6727 = vmatprep.subr.mxu0 0.0
    %6728 = vmatpush2.xpose.msra.mxu0 0.0
    %6729 = vmatprep.subr.mxu0 0.0
    %6730 = vmatpush2.xpose.msra.mxu0 0.0
    %6731 = vmatprep.subr.mxu0 0.0
    %6732 = vmatpush2.xpose.msra.mxu0 0.0
    %6733 = vmatprep.subr.mxu0 0.0
    %6734 = vmatpush2.xpose.msra.mxu0 0.0
    %6735 = vmatprep.subr.mxu0 0.0
    %6736 = vmatpush2.xpose.msra.mxu0 0.0
    %6737 = vmatprep.subr.mxu0 0.0
    %6738 = vmatpush2.xpose.msra.mxu0 0.0
    %6739 = vmatprep.subr.mxu0 0.0
    %6740 = vmatpush2.xpose.msra.mxu0 0.0
    %6741 = vmatprep.subr.mxu0 0.0
    %6742 = vmatpush2.xpose.msra.mxu0 0.0
    %6743 = vmatprep.subr.mxu0 0.0
    %6744 = vmatpush2.xpose.msra.mxu0 0.0
    %6745 = vmatprep.subr.mxu0 0.0
    %6746 = vmatpush2.xpose.msra.mxu0 0.0
    %6747 = vmatprep.subr.mxu0 0.0
    %6748 = vmatpush2.xpose.msra.mxu0 0.0
    %6749 = vmatprep.subr.mxu0 0.0
    %6750 = vmatpush2.xpose.msra.mxu0 0.0
    %6751 = vmatprep.subr.mxu0 0.0
    %6752 = vmatpush2.xpose.msra.mxu0 0.0
    %6753 = vmatprep.subr.mxu0 0.0
    %6754 = vmatpush2.xpose.msra.mxu0 0.0
    %6755 = vmatprep.mubr.f32.mxu0 0.0
    %6756 = vmatmul.mubr.f32.gmra.mxu0 %v6026
    %v6757 = vpop.f32.mrf.mxu0
    %v6758 = vadd.f32 0.0, %v6757
    %v6759 = vpop.f32.mrf.mxu0
    %6760 = vdwg.mxu0
    %v6761 = vmul.f32 %v6685, 0.35355338
    %v6762 = vmul.f32 %v6758, 0.35355338
    %v6763 = vadd.f32 %v6761, %v226
    %v6764 = vadd.f32 %v6762, %v227
    %v6765 = vsel %vm931, %v6763, -inf
    %6766 = vmax.xlane.f32.xlu0 %v6765
    %v6767 = vpop.xlane.xlu0 %6766
    %v6768 = vsel %vm931, %v6764, -inf
    %6769 = vmax.xlane.f32.xlu0 %v6768
    %v6770 = vpop.xlane.xlu0 %6769
    %v6771 = vsub.f32 %v6763, %v6767
    %v6772 = vsub.f32 %v6764, %v6770
    %v6773 = vmul.f32 %v6771, 1.442695
    %v6774 = vpow.pop %v6773
    %v6775 = vmul.f32 %v6772, 1.442695
    %v6776 = vpow.pop %v6775
    %v6777 = vsel %vm931, %v6774, 0.0
    %6778 = vadd.xlane.f32.xlu0 %v6777
    %v6779 = vpop.xlane.xlu0 %6778
    %v6780 = vsel %vm931, %v6776, 0.0
    %6781 = vadd.xlane.f32.xlu0 %v6780
    %v6782 = vpop.xlane.xlu0 %6781
    %v6783 = vrcp.pop %v6779
    %v6784 = vrcp.pop %v6782
    %v6785 = vmul.f32 %v6774, %v6783
    %v6786 = vmul.f32 %v6776, %v6784
    %6788 = vrot.lane.b32.xlu0 %v6613, 96
    %v6789 = vpop.permute.xlu0 %6788
    %v6792 = vsel %vm931, %v6785, 0
    %6794 = vmatprep.subr.mxu0 0.0
    %6795 = vmatpush1.msra.mxu0 0.0
    %6796 = vmatprep.subr.mxu0 0.0
    %6797 = vmatpush1.msra.mxu0 0.0
    %6798 = vmatprep.subr.mxu0 0.0
    %6799 = vmatpush1.msra.mxu0 0.0
    %6800 = vmatprep.subr.mxu0 0.0
    %6801 = vmatpush1.msra.mxu0 0.0
    %6802 = vmatprep.subr.mxu0 0.0
    %6803 = vmatpush1.msra.mxu0 0.0
    %6804 = vmatprep.subr.mxu0 0.0
    %6805 = vmatpush1.msra.mxu0 0.0
    %6806 = vmatprep.subr.mxu0 0.0
    %6807 = vmatpush1.msra.mxu0 0.0
    %6808 = vmatprep.subr.mxu0 0.0
    %6809 = vmatpush1.msra.mxu0 0.0
    %6810 = vmatprep.subr.mxu0 0.0
    %6811 = vmatpush1.msra.mxu0 0.0
    %6812 = vmatprep.subr.mxu0 0.0
    %6813 = vmatpush1.msra.mxu0 0.0
    %6814 = vmatprep.subr.mxu0 0.0
    %6815 = vmatpush1.msra.mxu0 0.0
    %6816 = vmatprep.subr.mxu0 0.0
    %6817 = vmatpush1.msra.mxu0 0.0
    %6818 = vmatprep.subr.mxu0 0.0
    %6819 = vmatpush1.msra.mxu0 0.0
    %6820 = vmatprep.subr.mxu0 0.0
    %6821 = vmatpush1.msra.mxu0 0.0
    %6822 = vmatprep.subr.mxu0 0.0
    %6823 = vmatpush1.msra.mxu0 0.0
    %6824 = vmatprep.subr.mxu0 0.0
    %6825 = vmatpush1.msra.mxu0 %v6789
    %6826 = vmatprep.subr.mxu0 0.0
    %6827 = vmatpush2.msra.mxu0 0.0
    %6828 = vmatprep.subr.mxu0 0.0
    %6829 = vmatpush2.msra.mxu0 0.0
    %6830 = vmatprep.subr.mxu0 0.0
    %6831 = vmatpush2.msra.mxu0 0.0
    %6832 = vmatprep.subr.mxu0 0.0
    %6833 = vmatpush2.msra.mxu0 0.0
    %6834 = vmatprep.subr.mxu0 0.0
    %6835 = vmatpush2.msra.mxu0 0.0
    %6836 = vmatprep.subr.mxu0 0.0
    %6837 = vmatpush2.msra.mxu0 0.0
    %6838 = vmatprep.subr.mxu0 0.0
    %6839 = vmatpush2.msra.mxu0 0.0
    %6840 = vmatprep.subr.mxu0 0.0
    %6841 = vmatpush2.msra.mxu0 0.0
    %6842 = vmatprep.subr.mxu0 0.0
    %6843 = vmatpush2.msra.mxu0 0.0
    %6844 = vmatprep.subr.mxu0 0.0
    %6845 = vmatpush2.msra.mxu0 0.0
    %6846 = vmatprep.subr.mxu0 0.0
    %6847 = vmatpush2.msra.mxu0 0.0
    %6848 = vmatprep.subr.mxu0 0.0
    %6849 = vmatpush2.msra.mxu0 0.0
    %6850 = vmatprep.subr.mxu0 0.0
    %6851 = vmatpush2.msra.mxu0 0.0
    %6852 = vmatprep.subr.mxu0 0.0
    %6853 = vmatpush2.msra.mxu0 0.0
    %6854 = vmatprep.subr.mxu0 0.0
    %6855 = vmatpush2.msra.mxu0 0.0
    %6856 = vmatprep.subr.mxu0 0.0
    %6857 = vmatpush2.msra.mxu0 0.0
    %6858 = vmatprep.mubr.f32.mxu0 0.0
    %6859 = vmatmul.mubr.f32.gmra.mxu0 %v6792
    %v6860 = vpop.f32.mrf.mxu0
    %v6861 = vadd.f32 0.0, %v6860
    %v6862 = vpop.f32.mrf.mxu0
    %6863 = vdwg.mxu0
    %6865 = vrot.lane.b32.xlu0 %v6614, 96
    %v6866 = vpop.permute.xlu0 %6865
    %v6869 = vsel %vm931, %v6786, 0
    %6871 = vmatprep.subr.mxu0 0.0
    %6872 = vmatpush1.msra.mxu0 0.0
    %6873 = vmatprep.subr.mxu0 0.0
    %6874 = vmatpush1.msra.mxu0 0.0
    %6875 = vmatprep.subr.mxu0 0.0
    %6876 = vmatpush1.msra.mxu0 0.0
    %6877 = vmatprep.subr.mxu0 0.0
    %6878 = vmatpush1.msra.mxu0 0.0
    %6879 = vmatprep.subr.mxu0 0.0
    %6880 = vmatpush1.msra.mxu0 0.0
    %6881 = vmatprep.subr.mxu0 0.0
    %6882 = vmatpush1.msra.mxu0 0.0
    %6883 = vmatprep.subr.mxu0 0.0
    %6884 = vmatpush1.msra.mxu0 0.0
    %6885 = vmatprep.subr.mxu0 0.0
    %6886 = vmatpush1.msra.mxu0 0.0
    %6887 = vmatprep.subr.mxu0 0.0
    %6888 = vmatpush1.msra.mxu0 0.0
    %6889 = vmatprep.subr.mxu0 0.0
    %6890 = vmatpush1.msra.mxu0 0.0
    %6891 = vmatprep.subr.mxu0 0.0
    %6892 = vmatpush1.msra.mxu0 0.0
    %6893 = vmatprep.subr.mxu0 0.0
    %6894 = vmatpush1.msra.mxu0 0.0
    %6895 = vmatprep.subr.mxu0 0.0
    %6896 = vmatpush1.msra.mxu0 0.0
    %6897 = vmatprep.subr.mxu0 0.0
    %6898 = vmatpush1.msra.mxu0 0.0
    %6899 = vmatprep.subr.mxu0 0.0
    %6900 = vmatpush1.msra.mxu0 0.0
    %6901 = vmatprep.subr.mxu0 0.0
    %6902 = vmatpush1.msra.mxu0 %v6866
    %6903 = vmatprep.subr.mxu0 0.0
    %6904 = vmatpush2.msra.mxu0 0.0
    %6905 = vmatprep.subr.mxu0 0.0
    %6906 = vmatpush2.msra.mxu0 0.0
    %6907 = vmatprep.subr.mxu0 0.0
    %6908 = vmatpush2.msra.mxu0 0.0
    %6909 = vmatprep.subr.mxu0 0.0
    %6910 = vmatpush2.msra.mxu0 0.0
    %6911 = vmatprep.subr.mxu0 0.0
    %6912 = vmatpush2.msra.mxu0 0.0
    %6913 = vmatprep.subr.mxu0 0.0
    %6914 = vmatpush2.msra.mxu0 0.0
    %6915 = vmatprep.subr.mxu0 0.0
    %6916 = vmatpush2.msra.mxu0 0.0
    %6917 = vmatprep.subr.mxu0 0.0
    %6918 = vmatpush2.msra.mxu0 0.0
    %6919 = vmatprep.subr.mxu0 0.0
    %6920 = vmatpush2.msra.mxu0 0.0
    %6921 = vmatprep.subr.mxu0 0.0
    %6922 = vmatpush2.msra.mxu0 0.0
    %6923 = vmatprep.subr.mxu0 0.0
    %6924 = vmatpush2.msra.mxu0 0.0
    %6925 = vmatprep.subr.mxu0 0.0
    %6926 = vmatpush2.msra.mxu0 0.0
    %6927 = vmatprep.subr.mxu0 0.0
    %6928 = vmatpush2.msra.mxu0 0.0
    %6929 = vmatprep.subr.mxu0 0.0
    %6930 = vmatpush2.msra.mxu0 0.0
    %6931 = vmatprep.subr.mxu0 0.0
    %6932 = vmatpush2.msra.mxu0 0.0
    %6933 = vmatprep.subr.mxu0 0.0
    %6934 = vmatpush2.msra.mxu0 0.0
    %6935 = vmatprep.mubr.f32.mxu0 0.0
    %6936 = vmatmul.mubr.f32.gmra.mxu0 %v6869
    %v6937 = vpop.f32.mrf.mxu0
    %v6938 = vadd.f32 0.0, %v6937
    %v6939 = vpop.f32.mrf.mxu0
    %6940 = vdwg.mxu0
    %v6941 = vadd.f32 %v6531, %v6861
    %v6942 = vadd.f32 %v6608, %v6938
    %v6943 = vmul.f32 %v5937, %v144
    %v6944 = vmul.f32 %v5942, %v144
    %v6945 = vmul.f32 %v5937, %v1794
    %v6946 = vmul.f32 %v5942, %v1794
    %v6948 = vsel %vm678, %v6943, 0
    %6950 = vmatprep.subr.mxu0 0.0
    %6951 = vmatpush1.xpose.msra.mxu0 0.0
    %6952 = vmatprep.subr.mxu0 0.0
    %6953 = vmatpush1.xpose.msra.mxu0 0.0
    %6954 = vmatprep.subr.mxu0 0.0
    %6955 = vmatpush1.xpose.msra.mxu0 0.0
    %6956 = vmatprep.subr.mxu0 0.0
    %6957 = vmatpush1.xpose.msra.mxu0 0.0
    %6958 = vmatprep.subr.mxu0 0.0
    %6959 = vmatpush1.xpose.msra.mxu0 0.0
    %6960 = vmatprep.subr.mxu0 0.0
    %6961 = vmatpush1.xpose.msra.mxu0 0.0
    %6962 = vmatprep.subr.mxu0 0.0
    %6963 = vmatpush1.xpose.msra.mxu0 0.0
    %6964 = vmatprep.subr.mxu0 0.0
    %6965 = vmatpush1.xpose.msra.mxu0 0.0
    %6966 = vmatprep.subr.mxu0 0.0
    %6967 = vmatpush1.xpose.msra.mxu0 0.0
    %6968 = vmatprep.subr.mxu0 0.0
    %6969 = vmatpush1.xpose.msra.mxu0 0.0
    %6970 = vmatprep.subr.mxu0 0.0
    %6971 = vmatpush1.xpose.msra.mxu0 0.0
    %6972 = vmatprep.subr.mxu0 0.0
    %6973 = vmatpush1.xpose.msra.mxu0 0.0
    %6974 = vmatprep.subr.mxu0 0.0
    %6975 = vmatpush1.xpose.msra.mxu0 0.0
    %6976 = vmatprep.subr.mxu0 0.0
    %6977 = vmatpush1.xpose.msra.mxu0 0.0
    %6978 = vmatprep.subr.mxu0 0.0
    %6979 = vmatpush1.xpose.msra.mxu0 0.0
    %6980 = vmatprep.subr.mxu0 0.0
    %6981 = vmatpush1.xpose.msra.mxu0 %v6948
    %6982 = vmatprep.subr.mxu0 0.0
    %6983 = vmatpush2.xpose.msra.mxu0 0.0
    %6984 = vmatprep.subr.mxu0 0.0
    %6985 = vmatpush2.xpose.msra.mxu0 0.0
    %6986 = vmatprep.subr.mxu0 0.0
    %6987 = vmatpush2.xpose.msra.mxu0 0.0
    %6988 = vmatprep.subr.mxu0 0.0
    %6989 = vmatpush2.xpose.msra.mxu0 0.0
    %6990 = vmatprep.subr.mxu0 0.0
    %6991 = vmatpush2.xpose.msra.mxu0 0.0
    %6992 = vmatprep.subr.mxu0 0.0
    %6993 = vmatpush2.xpose.msra.mxu0 0.0
    %6994 = vmatprep.subr.mxu0 0.0
    %6995 = vmatpush2.xpose.msra.mxu0 0.0
    %6996 = vmatprep.subr.mxu0 0.0
    %6997 = vmatpush2.xpose.msra.mxu0 0.0
    %6998 = vmatprep.subr.mxu0 0.0
    %6999 = vmatpush2.xpose.msra.mxu0 0.0
    %7000 = vmatprep.subr.mxu0 0.0
    %7001 = vmatpush2.xpose.msra.mxu0 0.0
    %7002 = vmatprep.subr.mxu0 0.0
    %7003 = vmatpush2.xpose.msra.mxu0 0.0
    %7004 = vmatprep.subr.mxu0 0.0
    %7005 = vmatpush2.xpose.msra.mxu0 0.0
    %7006 = vmatprep.subr.mxu0 0.0
    %7007 = vmatpush2.xpose.msra.mxu0 0.0
    %7008 = vmatprep.subr.mxu0 0.0
    %7009 = vmatpush2.xpose.msra.mxu0 0.0
    %7010 = vmatprep.subr.mxu0 0.0
    %7011 = vmatpush2.xpose.msra.mxu0 0.0
    %7012 = vmatprep.subr.mxu0 0.0
    %7013 = vmatpush2.xpose.msra.mxu0 0.0
    %7014 = vmatprep.mubr.f32.mxu0 0.0
    %7015 = vmatmul.mubr.f32.gmra.mxu0 %v5950
    %v7016 = vpop.f32.mrf.mxu0
    %v7017 = vadd.f32 0.0, %v7016
    %v7018 = vpop.f32.mrf.mxu0
    %7019 = vdwg.mxu0
    %v7021 = vsel %vm678, %v6944, 0
    %7023 = vmatprep.subr.mxu0 0.0
    %7024 = vmatpush1.xpose.msra.mxu0 0.0
    %7025 = vmatprep.subr.mxu0 0.0
    %7026 = vmatpush1.xpose.msra.mxu0 0.0
    %7027 = vmatprep.subr.mxu0 0.0
    %7028 = vmatpush1.xpose.msra.mxu0 0.0
    %7029 = vmatprep.subr.mxu0 0.0
    %7030 = vmatpush1.xpose.msra.mxu0 0.0
    %7031 = vmatprep.subr.mxu0 0.0
    %7032 = vmatpush1.xpose.msra.mxu0 0.0
    %7033 = vmatprep.subr.mxu0 0.0
    %7034 = vmatpush1.xpose.msra.mxu0 0.0
    %7035 = vmatprep.subr.mxu0 0.0
    %7036 = vmatpush1.xpose.msra.mxu0 0.0
    %7037 = vmatprep.subr.mxu0 0.0
    %7038 = vmatpush1.xpose.msra.mxu0 0.0
    %7039 = vmatprep.subr.mxu0 0.0
    %7040 = vmatpush1.xpose.msra.mxu0 0.0
    %7041 = vmatprep.subr.mxu0 0.0
    %7042 = vmatpush1.xpose.msra.mxu0 0.0
    %7043 = vmatprep.subr.mxu0 0.0
    %7044 = vmatpush1.xpose.msra.mxu0 0.0
    %7045 = vmatprep.subr.mxu0 0.0
    %7046 = vmatpush1.xpose.msra.mxu0 0.0
    %7047 = vmatprep.subr.mxu0 0.0
    %7048 = vmatpush1.xpose.msra.mxu0 0.0
    %7049 = vmatprep.subr.mxu0 0.0
    %7050 = vmatpush1.xpose.msra.mxu0 0.0
    %7051 = vmatprep.subr.mxu0 0.0
    %7052 = vmatpush1.xpose.msra.mxu0 0.0
    %7053 = vmatprep.subr.mxu0 0.0
    %7054 = vmatpush1.xpose.msra.mxu0 %v7021
    %7055 = vmatprep.subr.mxu0 0.0
    %7056 = vmatpush2.xpose.msra.mxu0 0.0
    %7057 = vmatprep.subr.mxu0 0.0
    %7058 = vmatpush2.xpose.msra.mxu0 0.0
    %7059 = vmatprep.subr.mxu0 0.0
    %7060 = vmatpush2.xpose.msra.mxu0 0.0
    %7061 = vmatprep.subr.mxu0 0.0
    %7062 = vmatpush2.xpose.msra.mxu0 0.0
    %7063 = vmatprep.subr.mxu0 0.0
    %7064 = vmatpush2.xpose.msra.mxu0 0.0
    %7065 = vmatprep.subr.mxu0 0.0
    %7066 = vmatpush2.xpose.msra.mxu0 0.0
    %7067 = vmatprep.subr.mxu0 0.0
    %7068 = vmatpush2.xpose.msra.mxu0 0.0
    %7069 = vmatprep.subr.mxu0 0.0
    %7070 = vmatpush2.xpose.msra.mxu0 0.0
    %7071 = vmatprep.subr.mxu0 0.0
    %7072 = vmatpush2.xpose.msra.mxu0 0.0
    %7073 = vmatprep.subr.mxu0 0.0
    %7074 = vmatpush2.xpose.msra.mxu0 0.0
    %7075 = vmatprep.subr.mxu0 0.0
    %7076 = vmatpush2.xpose.msra.mxu0 0.0
    %7077 = vmatprep.subr.mxu0 0.0
    %7078 = vmatpush2.xpose.msra.mxu0 0.0
    %7079 = vmatprep.subr.mxu0 0.0
    %7080 = vmatpush2.xpose.msra.mxu0 0.0
    %7081 = vmatprep.subr.mxu0 0.0
    %7082 = vmatpush2.xpose.msra.mxu0 0.0
    %7083 = vmatprep.subr.mxu0 0.0
    %7084 = vmatpush2.xpose.msra.mxu0 0.0
    %7085 = vmatprep.subr.mxu0 0.0
    %7086 = vmatpush2.xpose.msra.mxu0 0.0
    %7087 = vmatprep.mubr.f32.mxu0 0.0
    %7088 = vmatmul.mubr.f32.gmra.mxu0 %v6026
    %v7089 = vpop.f32.mrf.mxu0
    %v7090 = vadd.f32 0.0, %v7089
    %v7091 = vpop.f32.mrf.mxu0
    %7092 = vdwg.mxu0
    %v7093 = vmul.f32 %v7017, 0.35355338
    %v7094 = vmul.f32 %v7090, 0.35355338
    %v7095 = vadd.f32 %v7093, %v226
    %v7096 = vadd.f32 %v7094, %v227
    %v7097 = vsel %vm931, %v7095, -inf
    %7098 = vmax.xlane.f32.xlu0 %v7097
    %v7099 = vpop.xlane.xlu0 %7098
    %v7100 = vsel %vm931, %v7096, -inf
    %7101 = vmax.xlane.f32.xlu0 %v7100
    %v7102 = vpop.xlane.xlu0 %7101
    %v7103 = vsub.f32 %v7095, %v7099
    %v7104 = vsub.f32 %v7096, %v7102
    %v7105 = vmul.f32 %v7103, 1.442695
    %v7106 = vpow.pop %v7105
    %v7107 = vmul.f32 %v7104, 1.442695
    %v7108 = vpow.pop %v7107
    %v7109 = vsel %vm931, %v7106, 0.0
    %7110 = vadd.xlane.f32.xlu0 %v7109
    %v7111 = vpop.xlane.xlu0 %7110
    %v7112 = vsel %vm931, %v7108, 0.0
    %7113 = vadd.xlane.f32.xlu0 %v7112
    %v7114 = vpop.xlane.xlu0 %7113
    %v7115 = vrcp.pop %v7111
    %v7116 = vrcp.pop %v7114
    %v7117 = vmul.f32 %v7106, %v7115
    %v7118 = vmul.f32 %v7108, %v7116
    %7120 = vrot.lane.b32.xlu0 %v6945, 96
    %v7121 = vpop.permute.xlu0 %7120
    %v7124 = vsel %vm931, %v7117, 0
    %7126 = vmatprep.subr.mxu0 0.0
    %7127 = vmatpush1.msra.mxu0 0.0
    %7128 = vmatprep.subr.mxu0 0.0
    %7129 = vmatpush1.msra.mxu0 0.0
    %7130 = vmatprep.subr.mxu0 0.0
    %7131 = vmatpush1.msra.mxu0 0.0
    %7132 = vmatprep.subr.mxu0 0.0
    %7133 = vmatpush1.msra.mxu0 0.0
    %7134 = vmatprep.subr.mxu0 0.0
    %7135 = vmatpush1.msra.mxu0 0.0
    %7136 = vmatprep.subr.mxu0 0.0
    %7137 = vmatpush1.msra.mxu0 0.0
    %7138 = vmatprep.subr.mxu0 0.0
    %7139 = vmatpush1.msra.mxu0 0.0
    %7140 = vmatprep.subr.mxu0 0.0
    %7141 = vmatpush1.msra.mxu0 0.0
    %7142 = vmatprep.subr.mxu0 0.0
    %7143 = vmatpush1.msra.mxu0 0.0
    %7144 = vmatprep.subr.mxu0 0.0
    %7145 = vmatpush1.msra.mxu0 0.0
    %7146 = vmatprep.subr.mxu0 0.0
    %7147 = vmatpush1.msra.mxu0 0.0
    %7148 = vmatprep.subr.mxu0 0.0
    %7149 = vmatpush1.msra.mxu0 0.0
    %7150 = vmatprep.subr.mxu0 0.0
    %7151 = vmatpush1.msra.mxu0 0.0
    %7152 = vmatprep.subr.mxu0 0.0
    %7153 = vmatpush1.msra.mxu0 0.0
    %7154 = vmatprep.subr.mxu0 0.0
    %7155 = vmatpush1.msra.mxu0 0.0
    %7156 = vmatprep.subr.mxu0 0.0
    %7157 = vmatpush1.msra.mxu0 %v7121
    %7158 = vmatprep.subr.mxu0 0.0
    %7159 = vmatpush2.msra.mxu0 0.0
    %7160 = vmatprep.subr.mxu0 0.0
    %7161 = vmatpush2.msra.mxu0 0.0
    %7162 = vmatprep.subr.mxu0 0.0
    %7163 = vmatpush2.msra.mxu0 0.0
    %7164 = vmatprep.subr.mxu0 0.0
    %7165 = vmatpush2.msra.mxu0 0.0
    %7166 = vmatprep.subr.mxu0 0.0
    %7167 = vmatpush2.msra.mxu0 0.0
    %7168 = vmatprep.subr.mxu0 0.0
    %7169 = vmatpush2.msra.mxu0 0.0
    %7170 = vmatprep.subr.mxu0 0.0
    %7171 = vmatpush2.msra.mxu0 0.0
    %7172 = vmatprep.subr.mxu0 0.0
    %7173 = vmatpush2.msra.mxu0 0.0
    %7174 = vmatprep.subr.mxu0 0.0
    %7175 = vmatpush2.msra.mxu0 0.0
    %7176 = vmatprep.subr.mxu0 0.0
    %7177 = vmatpush2.msra.mxu0 0.0
    %7178 = vmatprep.subr.mxu0 0.0
    %7179 = vmatpush2.msra.mxu0 0.0
    %7180 = vmatprep.subr.mxu0 0.0
    %7181 = vmatpush2.msra.mxu0 0.0
    %7182 = vmatprep.subr.mxu0 0.0
    %7183 = vmatpush2.msra.mxu0 0.0
    %7184 = vmatprep.subr.mxu0 0.0
    %7185 = vmatpush2.msra.mxu0 0.0
    %7186 = vmatprep.subr.mxu0 0.0
    %7187 = vmatpush2.msra.mxu0 0.0
    %7188 = vmatprep.subr.mxu0 0.0
    %7189 = vmatpush2.msra.mxu0 0.0
    %7190 = vmatprep.mubr.f32.mxu0 0.0
    %7191 = vmatmul.mubr.f32.gmra.mxu0 %v7124
    %v7192 = vpop.f32.mrf.mxu0
    %v7193 = vadd.f32 0.0, %v7192
    %v7194 = vpop.f32.mrf.mxu0
    %7195 = vdwg.mxu0
    %7197 = vrot.lane.b32.xlu0 %v6946, 96
    %v7198 = vpop.permute.xlu0 %7197
    %v7201 = vsel %vm931, %v7118, 0
    %7203 = vmatprep.subr.mxu0 0.0
    %7204 = vmatpush1.msra.mxu0 0.0
    %7205 = vmatprep.subr.mxu0 0.0
    %7206 = vmatpush1.msra.mxu0 0.0
    %7207 = vmatprep.subr.mxu0 0.0
    %7208 = vmatpush1.msra.mxu0 0.0
    %7209 = vmatprep.subr.mxu0 0.0
    %7210 = vmatpush1.msra.mxu0 0.0
    %7211 = vmatprep.subr.mxu0 0.0
    %7212 = vmatpush1.msra.mxu0 0.0
    %7213 = vmatprep.subr.mxu0 0.0
    %7214 = vmatpush1.msra.mxu0 0.0
    %7215 = vmatprep.subr.mxu0 0.0
    %7216 = vmatpush1.msra.mxu0 0.0
    %7217 = vmatprep.subr.mxu0 0.0
    %7218 = vmatpush1.msra.mxu0 0.0
    %7219 = vmatprep.subr.mxu0 0.0
    %7220 = vmatpush1.msra.mxu0 0.0
    %7221 = vmatprep.subr.mxu0 0.0
    %7222 = vmatpush1.msra.mxu0 0.0
    %7223 = vmatprep.subr.mxu0 0.0
    %7224 = vmatpush1.msra.mxu0 0.0
    %7225 = vmatprep.subr.mxu0 0.0
    %7226 = vmatpush1.msra.mxu0 0.0
    %7227 = vmatprep.subr.mxu0 0.0
    %7228 = vmatpush1.msra.mxu0 0.0
    %7229 = vmatprep.subr.mxu0 0.0
    %7230 = vmatpush1.msra.mxu0 0.0
    %7231 = vmatprep.subr.mxu0 0.0
    %7232 = vmatpush1.msra.mxu0 0.0
    %7233 = vmatprep.subr.mxu0 0.0
    %7234 = vmatpush1.msra.mxu0 %v7198
    %7235 = vmatprep.subr.mxu0 0.0
    %7236 = vmatpush2.msra.mxu0 0.0
    %7237 = vmatprep.subr.mxu0 0.0
    %7238 = vmatpush2.msra.mxu0 0.0
    %7239 = vmatprep.subr.mxu0 0.0
    %7240 = vmatpush2.msra.mxu0 0.0
    %7241 = vmatprep.subr.mxu0 0.0
    %7242 = vmatpush2.msra.mxu0 0.0
    %7243 = vmatprep.subr.mxu0 0.0
    %7244 = vmatpush2.msra.mxu0 0.0
    %7245 = vmatprep.subr.mxu0 0.0
    %7246 = vmatpush2.msra.mxu0 0.0
    %7247 = vmatprep.subr.mxu0 0.0
    %7248 = vmatpush2.msra.mxu0 0.0
    %7249 = vmatprep.subr.mxu0 0.0
    %7250 = vmatpush2.msra.mxu0 0.0
    %7251 = vmatprep.subr.mxu0 0.0
    %7252 = vmatpush2.msra.mxu0 0.0
    %7253 = vmatprep.subr.mxu0 0.0
    %7254 = vmatpush2.msra.mxu0 0.0
    %7255 = vmatprep.subr.mxu0 0.0
    %7256 = vmatpush2.msra.mxu0 0.0
    %7257 = vmatprep.subr.mxu0 0.0
    %7258 = vmatpush2.msra.mxu0 0.0
    %7259 = vmatprep.subr.mxu0 0.0
    %7260 = vmatpush2.msra.mxu0 0.0
    %7261 = vmatprep.subr.mxu0 0.0
    %7262 = vmatpush2.msra.mxu0 0.0
    %7263 = vmatprep.subr.mxu0 0.0
    %7264 = vmatpush2.msra.mxu0 0.0
    %7265 = vmatprep.subr.mxu0 0.0
    %7266 = vmatpush2.msra.mxu0 0.0
    %7267 = vmatprep.mubr.f32.mxu0 0.0
    %7268 = vmatmul.mubr.f32.gmra.mxu0 %v7201
    %v7269 = vpop.f32.mrf.mxu0
    %v7270 = vadd.f32 0.0, %v7269
    %v7271 = vpop.f32.mrf.mxu0
    %7272 = vdwg.mxu0
    %v7273 = vadd.f32 %v6941, %v7193
    %v7274 = vadd.f32 %v6942, %v7270
    %v7276 = vlaneseq
    %v7277 = vshrl.u32 %v7276, 7
    %v7278 = vsub.s32 0, %v7277
    %v7279 = vrot.slane %v5759, %v7278
    %v7282 = vsel %vm678, %v7273, 0
    %v7285 = vsel %vm678, %v7274, 0
    %7287 = vmatprep.subr.mxu0 0.0
    %7288 = vmatpush1.msra.mxu0 0.0
    %7289 = vmatprep.subr.mxu0 0.0
    %7290 = vmatpush1.msra.mxu0 0.0
    %7291 = vmatprep.subr.mxu0 0.0
    %7292 = vmatpush1.msra.mxu0 0.0
    %7293 = vmatprep.subr.mxu0 0.0
    %7294 = vmatpush1.msra.mxu0 0.0
    %7295 = vmatprep.subr.mxu0 0.0
    %7296 = vmatpush1.msra.mxu0 0.0
    %7297 = vmatprep.subr.mxu0 0.0
    %7298 = vmatpush1.msra.mxu0 0.0
    %7299 = vmatprep.subr.mxu0 0.0
    %7300 = vmatpush1.msra.mxu0 0.0
    %7301 = vmatprep.subr.mxu0 0.0
    %7302 = vmatpush1.msra.mxu0 0.0
    %7303 = vmatprep.subr.mxu0 0.0
    %7304 = vmatpush1.msra.mxu0 0.0
    %7305 = vmatprep.subr.mxu0 0.0
    %7306 = vmatpush1.msra.mxu0 0.0
    %7307 = vmatprep.subr.mxu0 0.0
    %7308 = vmatpush1.msra.mxu0 0.0
    %7309 = vmatprep.subr.mxu0 0.0
    %7310 = vmatpush1.msra.mxu0 0.0
    %7311 = vmatprep.subr.mxu0 0.0
    %7312 = vmatpush1.msra.mxu0 %v5757
    %7313 = vmatprep.subr.mxu0 0.0
    %7314 = vmatpush1.msra.mxu0 %v5756
    %7315 = vmatprep.subr.mxu0 0.0
    %7316 = vmatpush1.msra.mxu0 %v5755
    %7317 = vmatprep.subr.mxu0 0.0
    %7318 = vmatpush1.msra.mxu0 %v5754
    %7319 = vmatprep.subr.mxu0 0.0
    %7320 = vmatpush2.msra.mxu0 0.0
    %7321 = vmatprep.subr.mxu0 0.0
    %7322 = vmatpush2.msra.mxu0 0.0
    %7323 = vmatprep.subr.mxu0 0.0
    %7324 = vmatpush2.msra.mxu0 0.0
    %7325 = vmatprep.subr.mxu0 0.0
    %7326 = vmatpush2.msra.mxu0 0.0
    %7327 = vmatprep.subr.mxu0 0.0
    %7328 = vmatpush2.msra.mxu0 0.0
    %7329 = vmatprep.subr.mxu0 0.0
    %7330 = vmatpush2.msra.mxu0 0.0
    %7331 = vmatprep.subr.mxu0 0.0
    %7332 = vmatpush2.msra.mxu0 0.0
    %7333 = vmatprep.subr.mxu0 0.0
    %7334 = vmatpush2.msra.mxu0 0.0
    %7335 = vmatprep.subr.mxu0 0.0
    %7336 = vmatpush2.msra.mxu0 0.0
    %7337 = vmatprep.subr.mxu0 0.0
    %7338 = vmatpush2.msra.mxu0 0.0
    %7339 = vmatprep.subr.mxu0 0.0
    %7340 = vmatpush2.msra.mxu0 0.0
    %7341 = vmatprep.subr.mxu0 0.0
    %7342 = vmatpush2.msra.mxu0 0.0
    %7343 = vmatprep.subr.mxu0 0.0
    %7344 = vmatpush2.msra.mxu0 0.0
    %7345 = vmatprep.subr.mxu0 0.0
    %7346 = vmatpush2.msra.mxu0 0.0
    %7347 = vmatprep.subr.mxu0 0.0
    %7348 = vmatpush2.msra.mxu0 0.0
    %7349 = vmatprep.subr.mxu0 0.0
    %7350 = vmatpush2.msra.mxu0 0.0
    %7351 = vmatprep.mubr.f32.mxu0 0.0
    %7352 = vmatmul.mubr.f32.gmra.mxu0 %v7282
    %v7353 = vpop.f32.mrf.mxu0
    %v7354 = vadd.f32 %v7279, %v7353
    %v7355 = vpop.f32.mrf.mxu0
    %7356 = vmatprep.mubr.f32.mxu0 0.0
    %7357 = vmatmul.mubr.f32.gmra.mxu0 %v7285
    %v7358 = vpop.f32.mrf.mxu0
    %v7359 = vadd.f32 %v7279, %v7358
    %v7360 = vpop.f32.mrf.mxu0
    %7361 = vdwg.mxu0
    %v7362 = vadd.f32 %v7354, %v5744
    %v7363 = vadd.f32 %v7359, %v5745
    %v7364 = vsel %vm678, %v7362, 0.0
    %7365 = vadd.xlane.f32.xlu0 %v7364
    %v7366 = vpop.xlane.xlu0 %7365
    %v7367 = vsel %vm678, %v7363, 0.0
    %7368 = vadd.xlane.f32.xlu0 %v7367
    %v7369 = vpop.xlane.xlu0 %7368
    %v7370 = vmul.f32 %v7366, %v2230
    %v7371 = vmul.f32 %v7369, %v2230
    %v7372 = vsub.f32 %v7362, %v7370
    %v7373 = vsub.f32 %v7363, %v7371
    %v7374 = vmul.f32 %v7372, %v7372
    %v7375 = vmul.f32 %v7373, %v7373
    %v7376 = vsel %vm678, %v7374, 0.0
    %7377 = vadd.xlane.f32.xlu0 %v7376
    %v7378 = vpop.xlane.xlu0 %7377
    %v7379 = vsel %vm678, %v7375, 0.0
    %7380 = vadd.xlane.f32.xlu0 %v7379
    %v7381 = vpop.xlane.xlu0 %7380
    %v7382 = vmul.f32 %v7378, %v2230
    %v7383 = vmul.f32 %v7381, %v2230
    %v7384 = vadd.f32 %v7382, 1e-06
    %v7385 = vadd.f32 %v7383, 1e-06
    %v7386 = vrsqrt.pop %v7384
    %v7387 = vrsqrt.pop %v7385
    %v7388 = vmul.f32 %v7372, %v7386
    %v7389 = vmul.f32 %v7373, %v7387
    %v7391 = vlaneseq
    %v7392 = vshrl.u32 %v7391, 7
    %v7393 = vsub.s32 0, %v7392
    %v7394 = vrot.slane %v5761, %v7393
    %v7396 = vmul.f32 %v7388, %v7394
    %v7397 = vmul.f32 %v7389, %v7394
    %v7399 = vlaneseq
    %v7400 = vshrl.u32 %v7399, 7
    %v7401 = vsub.s32 0, %v7400
    %v7402 = vrot.slane %v5763, %v7401
    %v7404 = vadd.f32 %v7396, %v7402
    %v7405 = vadd.f32 %v7397, %v7402
    %s7406 = scalar_lea.vmem %s47, 32
    %v7407 = vld [vmem:[%s7406] sm:$0xff]
    %v7408 = vld [vmem:[%s7406 + $0x8] sm:$0xff]
    %v7409 = vld [vmem:[%s7406 + $0x10] sm:$0xff]
    %v7410 = vld [vmem:[%s7406 + $0x18] sm:$0xff]
    %s7411 = scalar_lea.vmem %s49, 1
    %v7412 = vld [vmem:[%s7411] sm:$0x1]
    %s7413 = scalar_lea.vmem %s51, 64
    %v7414 = vld [vmem:[%s7413] sm:$0xff]
    %v7415 = vld [vmem:[%s7413 + $0x8] sm:$0xff]
    %v7416 = vld [vmem:[%s7413 + $0x10] sm:$0xff]
    %v7417 = vld [vmem:[%s7413 + $0x18] sm:$0xff]
    %v7418 = vld [vmem:[%s7413 + $0x20] sm:$0xff]
    %v7419 = vld [vmem:[%s7413 + $0x28] sm:$0xff]
    %v7420 = vld [vmem:[%s7413 + $0x30] sm:$0xff]
    %v7421 = vld [vmem:[%s7413 + $0x38] sm:$0xff]
    %s7422 = scalar_lea.vmem %s53, 1
    %v7423 = vld [vmem:[%s7422] sm:$0x1]
    %s7424 = scalar_lea.vmem %s55, 1
    %v7425 = vld [vmem:[%s7424] sm:$0x1]
    %s7426 = scalar_lea.vmem %s57, 1
    %v7427 = vld [vmem:[%s7426] sm:$0x1]
    %v7429 = vlaneseq
    %v7430 = vshrl.u32 %v7429, 7
    %v7431 = vsub.s32 0, %v7430
    %v7432 = vrot.slane %v7412, %v7431
    %v7435 = vsel %vm678, %v7404, 0
    %v7438 = vsel %vm678, %v7405, 0
    %7440 = vmatprep.subr.mxu0 0.0
    %7441 = vmatpush1.msra.mxu0 0.0
    %7442 = vmatprep.subr.mxu0 0.0
    %7443 = vmatpush1.msra.mxu0 0.0
    %7444 = vmatprep.subr.mxu0 0.0
    %7445 = vmatpush1.msra.mxu0 0.0
    %7446 = vmatprep.subr.mxu0 0.0
    %7447 = vmatpush1.msra.mxu0 0.0
    %7448 = vmatprep.subr.mxu0 0.0
    %7449 = vmatpush1.msra.mxu0 0.0
    %7450 = vmatprep.subr.mxu0 0.0
    %7451 = vmatpush1.msra.mxu0 0.0
    %7452 = vmatprep.subr.mxu0 0.0
    %7453 = vmatpush1.msra.mxu0 0.0
    %7454 = vmatprep.subr.mxu0 0.0
    %7455 = vmatpush1.msra.mxu0 0.0
    %7456 = vmatprep.subr.mxu0 0.0
    %7457 = vmatpush1.msra.mxu0 0.0
    %7458 = vmatprep.subr.mxu0 0.0
    %7459 = vmatpush1.msra.mxu0 0.0
    %7460 = vmatprep.subr.mxu0 0.0
    %7461 = vmatpush1.msra.mxu0 0.0
    %7462 = vmatprep.subr.mxu0 0.0
    %7463 = vmatpush1.msra.mxu0 0.0
    %7464 = vmatprep.subr.mxu0 0.0
    %7465 = vmatpush1.msra.mxu0 %v7410
    %7466 = vmatprep.subr.mxu0 0.0
    %7467 = vmatpush1.msra.mxu0 %v7409
    %7468 = vmatprep.subr.mxu0 0.0
    %7469 = vmatpush1.msra.mxu0 %v7408
    %7470 = vmatprep.subr.mxu0 0.0
    %7471 = vmatpush1.msra.mxu0 %v7407
    %7472 = vmatprep.subr.mxu0 0.0
    %7473 = vmatpush2.msra.mxu0 0.0
    %7474 = vmatprep.subr.mxu0 0.0
    %7475 = vmatpush2.msra.mxu0 0.0
    %7476 = vmatprep.subr.mxu0 0.0
    %7477 = vmatpush2.msra.mxu0 0.0
    %7478 = vmatprep.subr.mxu0 0.0
    %7479 = vmatpush2.msra.mxu0 0.0
    %7480 = vmatprep.subr.mxu0 0.0
    %7481 = vmatpush2.msra.mxu0 0.0
    %7482 = vmatprep.subr.mxu0 0.0
    %7483 = vmatpush2.msra.mxu0 0.0
    %7484 = vmatprep.subr.mxu0 0.0
    %7485 = vmatpush2.msra.mxu0 0.0
    %7486 = vmatprep.subr.mxu0 0.0
    %7487 = vmatpush2.msra.mxu0 0.0
    %7488 = vmatprep.subr.mxu0 0.0
    %7489 = vmatpush2.msra.mxu0 0.0
    %7490 = vmatprep.subr.mxu0 0.0
    %7491 = vmatpush2.msra.mxu0 0.0
    %7492 = vmatprep.subr.mxu0 0.0
    %7493 = vmatpush2.msra.mxu0 0.0
    %7494 = vmatprep.subr.mxu0 0.0
    %7495 = vmatpush2.msra.mxu0 0.0
    %7496 = vmatprep.subr.mxu0 0.0
    %7497 = vmatpush2.msra.mxu0 0.0
    %7498 = vmatprep.subr.mxu0 0.0
    %7499 = vmatpush2.msra.mxu0 0.0
    %7500 = vmatprep.subr.mxu0 0.0
    %7501 = vmatpush2.msra.mxu0 0.0
    %7502 = vmatprep.subr.mxu0 0.0
    %7503 = vmatpush2.msra.mxu0 0.0
    %7504 = vmatprep.mubr.f32.mxu0 0.0
    %7505 = vmatmul.mubr.f32.gmra.mxu0 %v7435
    %v7506 = vpop.f32.mrf.mxu0
    %v7507 = vadd.f32 %v7432, %v7506
    %v7508 = vpop.f32.mrf.mxu0
    %7509 = vmatprep.mubr.f32.mxu0 0.0
    %7510 = vmatmul.mubr.f32.gmra.mxu0 %v7438
    %v7511 = vpop.f32.mrf.mxu0
    %v7512 = vadd.f32 %v7432, %v7511
    %v7513 = vpop.f32.mrf.mxu0
    %7514 = vdwg.mxu0
    %v7515 = vmax.f32 %v7507, 0.0
    %v7516 = vmax.f32 %v7512, 0.0
    %v7518 = vlaneseq
    %v7519 = vshrl.u32 %v7518, 7
    %v7520 = vsub.s32 0, %v7519
    %v7521 = vrot.slane %v7423, %v7520
    %v7524 = vsel %vm4038, %v7515, 0
    %v7527 = vsel %vm4038, %v7516, 0
    %7529 = vmatprep.subr.mxu0 0.0
    %7530 = vmatpush1.msra.mxu0 0.0
    %7531 = vmatprep.subr.mxu0 0.0
    %7532 = vmatpush1.msra.mxu0 0.0
    %7533 = vmatprep.subr.mxu0 0.0
    %7534 = vmatpush1.msra.mxu0 0.0
    %7535 = vmatprep.subr.mxu0 0.0
    %7536 = vmatpush1.msra.mxu0 0.0
    %7537 = vmatprep.subr.mxu0 0.0
    %7538 = vmatpush1.msra.mxu0 0.0
    %7539 = vmatprep.subr.mxu0 0.0
    %7540 = vmatpush1.msra.mxu0 0.0
    %7541 = vmatprep.subr.mxu0 0.0
    %7542 = vmatpush1.msra.mxu0 0.0
    %7543 = vmatprep.subr.mxu0 0.0
    %7544 = vmatpush1.msra.mxu0 0.0
    %7545 = vmatprep.subr.mxu0 0.0
    %7546 = vmatpush1.msra.mxu0 %v7421
    %7547 = vmatprep.subr.mxu0 0.0
    %7548 = vmatpush1.msra.mxu0 %v7420
    %7549 = vmatprep.subr.mxu0 0.0
    %7550 = vmatpush1.msra.mxu0 %v7419
    %7551 = vmatprep.subr.mxu0 0.0
    %7552 = vmatpush1.msra.mxu0 %v7418
    %7553 = vmatprep.subr.mxu0 0.0
    %7554 = vmatpush1.msra.mxu0 %v7417
    %7555 = vmatprep.subr.mxu0 0.0
    %7556 = vmatpush1.msra.mxu0 %v7416
    %7557 = vmatprep.subr.mxu0 0.0
    %7558 = vmatpush1.msra.mxu0 %v7415
    %7559 = vmatprep.subr.mxu0 0.0
    %7560 = vmatpush1.msra.mxu0 %v7414
    %7561 = vmatprep.subr.mxu0 0.0
    %7562 = vmatpush2.msra.mxu0 0.0
    %7563 = vmatprep.subr.mxu0 0.0
    %7564 = vmatpush2.msra.mxu0 0.0
    %7565 = vmatprep.subr.mxu0 0.0
    %7566 = vmatpush2.msra.mxu0 0.0
    %7567 = vmatprep.subr.mxu0 0.0
    %7568 = vmatpush2.msra.mxu0 0.0
    %7569 = vmatprep.subr.mxu0 0.0
    %7570 = vmatpush2.msra.mxu0 0.0
    %7571 = vmatprep.subr.mxu0 0.0
    %7572 = vmatpush2.msra.mxu0 0.0
    %7573 = vmatprep.subr.mxu0 0.0
    %7574 = vmatpush2.msra.mxu0 0.0
    %7575 = vmatprep.subr.mxu0 0.0
    %7576 = vmatpush2.msra.mxu0 0.0
    %7577 = vmatprep.subr.mxu0 0.0
    %7578 = vmatpush2.msra.mxu0 0.0
    %7579 = vmatprep.subr.mxu0 0.0
    %7580 = vmatpush2.msra.mxu0 0.0
    %7581 = vmatprep.subr.mxu0 0.0
    %7582 = vmatpush2.msra.mxu0 0.0
    %7583 = vmatprep.subr.mxu0 0.0
    %7584 = vmatpush2.msra.mxu0 0.0
    %7585 = vmatprep.subr.mxu0 0.0
    %7586 = vmatpush2.msra.mxu0 0.0
    %7587 = vmatprep.subr.mxu0 0.0
    %7588 = vmatpush2.msra.mxu0 0.0
    %7589 = vmatprep.subr.mxu0 0.0
    %7590 = vmatpush2.msra.mxu0 0.0
    %7591 = vmatprep.subr.mxu0 0.0
    %7592 = vmatpush2.msra.mxu0 0.0
    %7593 = vmatprep.mubr.f32.mxu0 0.0
    %7594 = vmatmul.mubr.f32.gmra.mxu0 %v7524
    %v7595 = vpop.f32.mrf.mxu0
    %v7596 = vadd.f32 %v7521, %v7595
    %v7597 = vpop.f32.mrf.mxu0
    %7598 = vmatprep.mubr.f32.mxu0 0.0
    %7599 = vmatmul.mubr.f32.gmra.mxu0 %v7527
    %v7600 = vpop.f32.mrf.mxu0
    %v7601 = vadd.f32 %v7521, %v7600
    %v7602 = vpop.f32.mrf.mxu0
    %7603 = vdwg.mxu0
    %v7604 = vadd.f32 %v7596, %v7404
    %v7605 = vadd.f32 %v7601, %v7405
    %v7606 = vsel %vm678, %v7604, 0.0
    %7607 = vadd.xlane.f32.xlu0 %v7606
    %v7608 = vpop.xlane.xlu0 %7607
    %v7609 = vsel %vm678, %v7605, 0.0
    %7610 = vadd.xlane.f32.xlu0 %v7609
    %v7611 = vpop.xlane.xlu0 %7610
    %v7612 = vmul.f32 %v7608, %v2230
    %v7613 = vmul.f32 %v7611, %v2230
    %v7614 = vsub.f32 %v7604, %v7612
    %v7615 = vsub.f32 %v7605, %v7613
    %v7616 = vmul.f32 %v7614, %v7614
    %v7617 = vmul.f32 %v7615, %v7615
    %v7618 = vsel %vm678, %v7616, 0.0
    %7619 = vadd.xlane.f32.xlu0 %v7618
    %v7620 = vpop.xlane.xlu0 %7619
    %v7621 = vsel %vm678, %v7617, 0.0
    %7622 = vadd.xlane.f32.xlu0 %v7621
    %v7623 = vpop.xlane.xlu0 %7622
    %v7624 = vmul.f32 %v7620, %v2230
    %v7625 = vmul.f32 %v7623, %v2230
    %v7626 = vadd.f32 %v7624, 1e-06
    %v7627 = vadd.f32 %v7625, 1e-06
    %v7628 = vrsqrt.pop %v7626
    %v7629 = vrsqrt.pop %v7627
    %v7630 = vmul.f32 %v7614, %v7628
    %v7631 = vmul.f32 %v7615, %v7629
    %v7633 = vlaneseq
    %v7634 = vshrl.u32 %v7633, 7
    %v7635 = vsub.s32 0, %v7634
    %v7636 = vrot.slane %v7425, %v7635
    %v7638 = vmul.f32 %v7630, %v7636
    %v7639 = vmul.f32 %v7631, %v7636
    %v7641 = vlaneseq
    %v7642 = vshrl.u32 %v7641, 7
    %v7643 = vsub.s32 0, %v7642
    %v7644 = vrot.slane %v7427, %v7643
    %v7646 = vadd.f32 %v7638, %v7644
    %v7647 = vadd.f32 %v7639, %v7644
    %7648 = vst.msk [vmem:[#allocation2] sm:$0xff] %vm678, %v7646
    %7649 = vst.msk [vmem:[#allocation2 + $0x8] sm:$0xff] %vm678, %v7647
    // Predicated region
    $region118: #{transformer_decoder_forward.1} parent=1 // pred_check
      _
    $region119: #{transformer_decoder_forward.1} parent=1 // pred_check_branch
      %7651 = sbr.rel (0) target = $region121
    $region120: #{transformer_decoder_forward.1} parent=1 // pred_region
      %s7653 = ssub.s32 256, 256
      %7654 = vsyncadd [#allocation3], %s7653
      %s7655 = sshll.u32 [#allocation2], 4
      %s7656 = int_to_ptr.vmem [resolvable:$true] %s7655
      %7661 = dma.vmem_to_hbm [thread:$0]  %s7656, 256, %s59, [#allocation3], 128, 128, 8
    $region121: #{transformer_decoder_forward.1} parent=1 // pred_fallthru
      _
    // Predicated region
    $region122: #{transformer_decoder_forward.1} parent=1 // pred_check
      _
    $region123: #{transformer_decoder_forward.1} parent=1 // pred_check_branch
      %7663 = sbr.rel (0) target = $region125
    $region124: #{transformer_decoder_forward.1} parent=1 // pred_region
      %7664 = dma.done [#allocation3], 256
    $region125: #{transformer_decoder_forward.1} parent=1 // pred_fallthru
      _
    %7665 = vsyncpa [#allocation3], 1

</llo_original>
